<compile_context>
chip_gen: v6e
topology: v6e:2x2x1
jax: 0.10.0
libtpu: 0.0.40
codegen_flags: <defaults>
</compile_context>

<pallas_src>
import functools

import numpy as np
import jax
import jax.numpy as jnp
from jax.experimental import pallas as pl
from jax.experimental.pallas import tpu as pltpu


# Small version shims (harmless on current JAX).
_CompilerParams = getattr(pltpu, "CompilerParams", None) or getattr(pltpu, "TPUCompilerParams")


def _mosaic(dimension_semantics):
    return _CompilerParams(dimension_semantics=dimension_semantics)


def _recip(x):
    # EUP approximate reciprocal (free slot); falls back to a VPU divide if unavailable.
    if hasattr(pl, "reciprocal"):
        return pl.reciprocal(x, approx=True)
    return 1.0 / x


# ---------------------------------------------------------------------------
# Fixed Gaussian pyramid taps (replicates cv2.getGaussianKernel for sigma > 0).
# ---------------------------------------------------------------------------
def _gauss_taps(ksize, sigma):
    xs = np.arange(ksize, dtype=np.float64) - (ksize - 1) / 2.0
    g = np.exp(-(xs ** 2) / (2.0 * sigma ** 2))
    g = g / g.sum()
    return tuple(float(v) for v in g)


_S_VALUE = 2.0 ** (1.0 / 3.0)
G3_TAPS = _gauss_taps(3, 1.6 * _S_VALUE)        # sigma1 kernel (3x3, separable)
G5_TAPS = _gauss_taps(5, 1.6 * _S_VALUE ** 2)   # sigma2 kernel (5x5, separable)

_SQRT_2_OVER_PI = 0.7978845608028654


def _gelu_tanh(x):
    # TODO(synk): PyTorch F.gelu defaults to the exact erf form; the tanh
    # approximation is used so the op lowers cleanly to the TPU EUP.
    return 0.5 * x * (1.0 + jnp.tanh(_SQRT_2_OVER_PI * (x + 0.044715 * x * x * x)))


def _kernel_sigmoid(x):
    return _recip(1.0 + jnp.exp(-x))


# ---------------------------------------------------------------------------
# In-kernel helpers (operate on VMEM-resident values).
# ---------------------------------------------------------------------------
def _layernorm(x, w, b):
    """Per-row LayerNorm over the channel axis. x: (N, C) f32; w, b: (1, C) f32."""
    mu = jnp.mean(x, axis=1, keepdims=True)
    xc = x - mu
    var = jnp.mean(xc * xc, axis=1, keepdims=True)
    return xc * jax.lax.rsqrt(var + 1e-5) * w + b


def _pad_hw(x, ph, pw):
    """Zero-pad a (H, W, C) value spatially (single padded copy per conv)."""
    H, W, C = x.shape
    if ph:
        zr = jnp.zeros((ph, W, C), x.dtype)
        x = jnp.concatenate([zr, x, zr], axis=0)
    if pw:
        zc = jnp.zeros((x.shape[0], pw, C), x.dtype)
        x = jnp.concatenate([zc, x, zc], axis=1)
    return x


def _dwconv3x3(x, w9):
    """Depthwise 3x3 conv, zero padding.  x: (H, W, C); w9: (9, C) row-major taps."""
    H, W, C = x.shape
    xp = _pad_hw(x, 1, 1)
    acc = None
    for ky in range(3):
        for kx in range(3):
            idx = ky * 3 + kx
            term = xp[ky:ky + H, kx:kx + W, :] * w9[idx:idx + 1, :]
            acc = term if acc is None else acc + term
    return acc


def _gauss_blur(x, taps):
    """Separable depthwise Gaussian blur (same taps per channel), zero padding."""
    H, W, C = x.shape
    r = len(taps) // 2
    xp = _pad_hw(x, r, 0)
    acc = taps[0] * xp[0:H]
    for k in range(1, len(taps)):
        acc = acc + taps[k] * xp[k:k + H]
    ap = _pad_hw(acc, 0, r)
    out = taps[0] * ap[:, 0:W]
    for k in range(1, len(taps)):
        out = out + taps[k] * ap[:, k:k + W]
    return out


def _bf16(x):
    return x.astype(jnp.bfloat16)


# ---------------------------------------------------------------------------
# Kernel 1: per-pixel LayerNorm over channels (feeds the DWT glue path only).
# ---------------------------------------------------------------------------
def _ln_kernel(x_ref, w_ref, b_ref, o_ref):
    _, H, W, C = x_ref.shape
    x = x_ref[0].reshape(H * W, C).astype(jnp.float32)
    y = _layernorm(x, w_ref[...].astype(jnp.float32), b_ref[...].astype(jnp.float32))
    o_ref[0] = y.reshape(H, W, C).astype(o_ref.dtype)


def layer_norm(x, w, b):
    B, H, W, C = x.shape
    return pl.pallas_call(
        _ln_kernel,
        out_shape=jax.ShapeDtypeStruct((B, H, W, C), x.dtype),
        grid=(B,),
        in_specs=[
            pl.BlockSpec((1, H, W, C), lambda i: (i, 0, 0, 0)),
            pl.BlockSpec((1, C), lambda i: (0, 0)),
            pl.BlockSpec((1, C), lambda i: (0, 0)),
        ],
        out_specs=pl.BlockSpec((1, H, W, C), lambda i: (i, 0, 0, 0)),
        compiler_params=_mosaic(("parallel",)),
    )(x, w, b)


# ---------------------------------------------------------------------------
# Kernel 2: fused LowFreqEnhancement (eca) + HighFreqEnhancement.
# ---------------------------------------------------------------------------
def _freq_kernel(ll_ref, hl_ref, lh_ref, hh_ref, eca_ref, hf_ref, det_ref,
                 faw_ref, fab_ref, low_ref, high_ref, *, g3, g5):
    _, H2, W2, C = ll_ref.shape
    ll = ll_ref[0].astype(jnp.float32)
    hl = hl_ref[0].astype(jnp.float32)
    lh = lh_ref[0].astype(jnp.float32)
    hh = hh_ref[0].astype(jnp.float32)

    # ---- eca channel gate on LL (LowFreqEnhancement) ----
    pooled = jnp.mean(ll.reshape(H2 * W2, C), axis=0, keepdims=True)       # (1, C)
    zc = jnp.zeros((1, 1), jnp.float32)
    p_prev = jnp.concatenate([zc, pooled[:, :C - 1]], axis=1)              # pooled[c-1]
    p_next = jnp.concatenate([pooled[:, 1:], zc], axis=1)                  # pooled[c+1]
    ew = eca_ref[...].astype(jnp.float32)
    gate = _kernel_sigmoid(ew[0:1, :] * p_prev + ew[1:2, :] * pooled + ew[2:3, :] * p_next)
    low_ref[0] = (ll * gate).astype(low_ref.dtype)

    # ---- HighFreqEnhancement: hf_agg + Gaussian pyramid + detail_agg + feature_agg ----
    hf = hf_ref[...].astype(jnp.float32)
    g0 = hf[0:1, :] * hl + hf[1:2, :] * lh + hf[2:3, :] * hh
    g1 = _gauss_blur(g0, g3)
    g2 = _gauss_blur(g0, g5)
    dt = det_ref[...].astype(jnp.float32)
    detail = dt[0:1, :] * g0 + dt[1:2, :] * (g0 - g1) + dt[2:3, :] * (g1 - g2)
    feat = (jnp.dot(_bf16(detail.reshape(H2 * W2, C)), _bf16(faw_ref[...]),
                    preferred_element_type=jnp.float32)
            + fab_ref[...].astype(jnp.float32))
    high_ref[0] = feat.reshape(H2, W2, 3 * C).astype(high_ref.dtype)


def freq_enhance(ll, hl, lh, hh, p):
    B, H2, W2, C = ll.shape
    kern = functools.partial(_freq_kernel, g3=G3_TAPS, g5=G5_TAPS)
    band_spec = pl.BlockSpec((1, H2, W2, C), lambda i: (i, 0, 0, 0))
    return pl.pallas_call(
        kern,
        out_shape=(jax.ShapeDtypeStruct((B, H2, W2, C), ll.dtype),
                   jax.ShapeDtypeStruct((B, H2, W2, 3 * C), ll.dtype)),
        grid=(B,),
        in_specs=[band_spec, band_spec, band_spec, band_spec,
                  pl.BlockSpec((3, C), lambda i: (0, 0)),
                  pl.BlockSpec((3, C), lambda i: (0, 0)),
                  pl.BlockSpec((3, C), lambda i: (0, 0)),
                  pl.BlockSpec((C, 3 * C), lambda i: (0, 0)),
                  pl.BlockSpec((1, 3 * C), lambda i: (0, 0))],
        out_specs=(band_spec,
                   pl.BlockSpec((1, H2, W2, 3 * C), lambda i: (i, 0, 0, 0))),
        compiler_params=_mosaic(("parallel",)),
    )(ll, hl, lh, hh, p["eca_w"], p["hf_w"], p["det_w"], p["fa_w"], p["fa_b"])


# ---------------------------------------------------------------------------
# Kernel 3: LN1 (fused) -> qkv 1x1 -> depthwise 3x3 -> full-width masked channel
#           attention -> project_out -> +x.
# ---------------------------------------------------------------------------
def _attn_kernel(x_ref, q_ref, lnw_ref, lnb_ref, wqkv_ref, wdw_ref, temp_ref,
                 mask_ref, wproj_ref, o_ref):
    _, H, W, C = x_ref.shape
    HW = H * W
    x = x_ref[0].reshape(HW, C).astype(jnp.float32)

    # LayerNorm1 recomputed here (the standalone LN kernel only feeds the DWT glue).
    y = _layernorm(x, lnw_ref[...].astype(jnp.float32), lnb_ref[...].astype(jnp.float32))

    kv = jnp.dot(_bf16(y), _bf16(wqkv_ref[...]),
                 preferred_element_type=jnp.float32)                   # (HW, 2C)
    kv = _dwconv3x3(kv.reshape(H, W, 2 * C), wdw_ref[...].astype(jnp.float32))
    kv = kv.reshape(HW, 2 * C)
    k = kv[:, :C]
    v = kv[:, C:]

    q = q_ref[0].reshape(HW, C).astype(jnp.float32)
    # Per-channel L2 normalization over the spatial axis (head-independent).
    qn = q * jax.lax.rsqrt(jnp.maximum(jnp.sum(q * q, axis=0, keepdims=True), 1e-24))
    kn = k * jax.lax.rsqrt(jnp.maximum(jnp.sum(k * k, axis=0, keepdims=True), 1e-24))
    # Fold the per-head temperature into the q columns (scales logits row-wise).
    qn = qn * temp_ref[...].astype(jnp.float32)

    # Full-width channel attention: logits[i, j] = sum_n qn[n, i] * kn[n, j].
    logits = jax.lax.dot_general(_bf16(qn), _bf16(kn),
                                 (((0,), (0,)), ((), ())),
                                 preferred_element_type=jnp.float32)   # (C, C)
    logits = logits + mask_ref[...].astype(jnp.float32)                # block-diag head mask
    logits = logits - jnp.max(logits, axis=-1, keepdims=True)
    e = jnp.exp(logits)
    attn = e * _recip(jnp.sum(e, axis=-1, keepdims=True))

    # out[n, i] = sum_j attn[i, j] * v[n, j]
    o = jax.lax.dot_general(_bf16(v), _bf16(attn),
                            (((1,), (1,)), ((), ())),
                            preferred_element_type=jnp.float32)        # (HW, C)
    out = jnp.dot(_bf16(o), _bf16(wproj_ref[...]),
                  preferred_element_type=jnp.float32)
    o_ref[0] = (x + out).reshape(H, W, C).astype(o_ref.dtype)


def watt_attention(x, restored, ln_w, ln_b, p, num_heads):
    B, H, W, C = x.shape
    d = C // num_heads
    # Block-diagonal additive mask and per-channel temperature (built at trace time).
    head = np.arange(C) // d
    mask = np.where(head[:, None] == head[None, :], 0.0, -1e30).astype(np.float32)
    temp_c = jnp.repeat(p["temperature"], d, axis=1)                   # (1, C)
    w_dw9 = p["w_qkv_dw"].reshape(9, 2 * C)

    img_spec = pl.BlockSpec((1, H, W, C), lambda i: (i, 0, 0, 0))
    return pl.pallas_call(
        _attn_kernel,
        out_shape=jax.ShapeDtypeStruct((B, H, W, C), x.dtype),
        grid=(B,),
        in_specs=[img_spec, img_spec,
                  pl.BlockSpec((1, C), lambda i: (0, 0)),
                  pl.BlockSpec((1, C), lambda i: (0, 0)),
                  pl.BlockSpec((C, 2 * C), lambda i: (0, 0)),
                  pl.BlockSpec((9, 2 * C), lambda i: (0, 0)),
                  pl.BlockSpec((1, C), lambda i: (0, 0)),
                  pl.BlockSpec((C, C), lambda i: (0, 0)),
                  pl.BlockSpec((C, C), lambda i: (0, 0))],
        out_specs=img_spec,
        compiler_params=_mosaic(("parallel",)),
    )(x, restored, ln_w, ln_b, p["w_qkv"], w_dw9, temp_c, jnp.asarray(mask), p["w_proj"])


# ---------------------------------------------------------------------------
# Kernel 4: LayerNorm2 + FD (ffn) + residual + fused final 1x1 conv on cat([r, x]).
# ---------------------------------------------------------------------------
def _ffn_fuse_kernel(x_ref, r_ref, lnw_ref, lnb_ref, win_ref, wdw_ref, wout_ref,
                     wfuse_ref, o_ref):
    _, H, W, C = x_ref.shape
    HW = H * W
    hid2 = win_ref.shape[1]
    hid = hid2 // 2

    x = x_ref[0].reshape(HW, C).astype(jnp.float32)
    y = _layernorm(x, lnw_ref[...].astype(jnp.float32), lnb_ref[...].astype(jnp.float32))

    t = jnp.dot(_bf16(y), _bf16(win_ref[...]),
                preferred_element_type=jnp.float32)                    # (HW, 2*hid)
    t = _dwconv3x3(t.reshape(H, W, hid2), wdw_ref[...].astype(jnp.float32))
    t = t.reshape(HW, hid2)
    g = _gelu_tanh(t[:, :hid]) * t[:, hid:]
    x_new = x + jnp.dot(_bf16(g), _bf16(wout_ref[...]),
                        preferred_element_type=jnp.float32)            # residual

    r = r_ref[0].reshape(HW, C).astype(jnp.float32)
    cat = jnp.concatenate([r, x_new], axis=1)                          # (HW, 2C)
    fused = jnp.dot(_bf16(cat), _bf16(wfuse_ref[...]),
                    preferred_element_type=jnp.float32)                # single (HW,2C)x(2C,C)
    o_ref[0] = fused.reshape(H, W, C).astype(o_ref.dtype)


def ffn_fuse(x1, restored2, ln_w, ln_b, ffn_p, w_fuse):
    B, H, W, C = x1.shape
    hid2 = ffn_p["w_in"].shape[1]
    hid = hid2 // 2
    w_dw9 = ffn_p["w_dw"].reshape(9, hid2)
    img_spec = pl.BlockSpec((1, H, W, C), lambda i: (i, 0, 0, 0))
    return pl.pallas_call(
        _ffn_fuse_kernel,
        out_shape=jax.ShapeDtypeStruct((B, H, W, C), x1.dtype),
        grid=(B,),
        in_specs=[img_spec, img_spec,
                  pl.BlockSpec((1, C), lambda i: (0, 0)),
                  pl.BlockSpec((1, C), lambda i: (0, 0)),
                  pl.BlockSpec((C, hid2), lambda i: (0, 0)),
                  pl.BlockSpec((9, hid2), lambda i: (0, 0)),
                  pl.BlockSpec((hid, C), lambda i: (0, 0)),
                  pl.BlockSpec((2 * C, C), lambda i: (0, 0))],
        out_specs=img_spec,
        compiler_params=_mosaic(("parallel",)),
    )(x1, restored2, ln_w, ln_b, ffn_p["w_in"], w_dw9, ffn_p["w_out"], w_fuse)


# ---------------------------------------------------------------------------
# DWT / IWT: pure strided pixel (de)interleaving, kept as tiny XLA glue.
# TODO(synk): fold into the kernels (strided pl.ds reads) for production image sizes.
# ---------------------------------------------------------------------------
def dwt_nhwc(x):
    x1 = x[:, 0::2, 0::2, :] * 0.5
    x2 = x[:, 1::2, 0::2, :] * 0.5
    x3 = x[:, 0::2, 1::2, :] * 0.5
    x4 = x[:, 1::2, 1::2, :] * 0.5
    ll = x1 + x2 + x3 + x4
    hl = -x1 - x2 + x3 + x4
    lh = -x1 + x2 - x3 + x4
    hh = x1 - x2 - x3 + x4
    return ll, hl, lh, hh


def iwt_nhwc(y1, y2, y3, y4):
    B, H2, W2, C = y1.shape
    a00 = (y1 - y2 - y3 + y4) * 0.5
    a10 = (y1 - y2 + y3 - y4) * 0.5
    a01 = (y1 + y2 - y3 - y4) * 0.5
    a11 = (y1 + y2 + y3 + y4) * 0.5
    even = jnp.stack([a00, a01], axis=3).reshape(B, H2, 2 * W2, C)
    odd = jnp.stack([a10, a11], axis=3).reshape(B, H2, 2 * W2, C)
    return jnp.stack([even, odd], axis=2).reshape(B, 2 * H2, 2 * W2, C)


# ---------------------------------------------------------------------------
# Parameters + forward.
# ---------------------------------------------------------------------------
def init_params(key, C, num_heads, expansion, dtype=jnp.float32):
    hid = int(C * expansion)
    ks = iter(jax.random.split(key, 32))

    def nrm(shape, s=0.1):
        return jax.random.normal(next(ks), shape, dtype) * s

    def freq_params():
        return {"eca_w": nrm((3, C)), "hf_w": nrm((3, C)), "det_w": nrm((3, C)),
                "fa_w": nrm((C, 3 * C)), "fa_b": nrm((1, 3 * C))}

    return {
        "ln1_w": jnp.ones((1, C), dtype) + nrm((1, C)),
        "ln1_b": nrm((1, C)),
        "ln2_w": jnp.ones((1, C), dtype) + nrm((1, C)),
        "ln2_b": nrm((1, C)),
        "watt": {
            "w_qkv": nrm((C, 2 * C)),
            "w_qkv_dw": nrm((3, 3, 2 * C)),
            "w_proj": nrm((C, C)),
            "temperature": jnp.ones((1, num_heads), dtype) + nrm((1, num_heads)),
        },
        "watt_freq": freq_params(),
        "blk_freq": freq_params(),
        "ffn": {"w_in": nrm((C, 2 * hid)), "w_dw": nrm((3, 3, 2 * hid)),
                "w_out": nrm((hid, C))},
        "w_fuse": nrm((2 * C, C)),        # final conv on cat([restored, x]) -> C
    }


@functools.partial(jax.jit, static_argnames=("num_heads",))
def transformer_block_forward(params, x_nchw, *, num_heads):
    if isinstance(x_nchw, (list, tuple)):
        x_nchw = x_nchw[0]
    x = jnp.transpose(x_nchw, (0, 2, 3, 1))            # NCHW -> NHWC (once)
    B, H, W, C = x.shape

    # --- attention branch: x + watt(LayerNorm1(x)) ---
    y = layer_norm(x, params["ln1_w"], params["ln1_b"])        # feeds DWT glue only
    ll, hl, lh, hh = dwt_nhwc(y)
    low, high = freq_enhance(ll, hl, lh, hh, params["watt_freq"])
    restored = iwt_nhwc(low, high[..., :C], high[..., C:2 * C], high[..., 2 * C:])
    x1 = watt_attention(x, restored, params["ln1_w"], params["ln1_b"],
                        params["watt"], num_heads)

    # --- wavelet enhancement branch on the original input ---
    ll2, hl2, lh2, hh2 = dwt_nhwc(x)
    low2, high2 = freq_enhance(ll2, hl2, lh2, hh2, params["blk_freq"])
    restored2 = iwt_nhwc(low2, high2[..., :C], high2[..., C:2 * C], high2[..., 2 * C:])

    # --- x + FD(LayerNorm2(x)) and the final fuse conv, fused in one kernel ---
    out = ffn_fuse(x1, restored2, params["ln2_w"], params["ln2_b"], params["ffn"],
                   params["w_fuse"])
    return jnp.transpose(out, (0, 3, 1, 2))            # back to NCHW


# ---------------------------------------------------------------------------
# Pure-JAX reference (same math, same bf16 matmul operands, no Pallas).
# ---------------------------------------------------------------------------
def _ref_mm(a, b):
    shp = a.shape
    a2 = a.reshape(-1, shp[-1])
    out = jnp.dot(a2.astype(jnp.bfloat16), b.astype(jnp.bfloat16),
                  preferred_element_type=jnp.float32)
    return out.reshape(shp[:-1] + (b.shape[-1],))


def _ref_ln(x, w, b):
    mu = jnp.mean(x, axis=-1, keepdims=True)
    xc = x - mu
    var = jnp.mean(xc * xc, axis=-1, keepdims=True)
    return xc * jax.lax.rsqrt(var + 1e-5) * w[0] + b[0]


def _ref_dwconv3x3(x, w):
    B, H, W, C = x.shape
    xp = jnp.pad(x, ((0, 0), (1, 1), (1, 1), (0, 0)))
    out = jnp.zeros_like(x)
    for ky in range(3):
        for kx in range(3):
            out = out + xp[:, ky:ky + H, kx:kx + W, :] * w[ky, kx]
    return out


def _ref_gauss_blur(x, taps):
    B, H, W, C = x.shape
    r = len(taps) // 2
    xp = jnp.pad(x, ((0, 0), (r, r), (0, 0), (0, 0)))
    acc = jnp.zeros_like(x)
    for k, g in enumerate(taps):
        acc = acc + g * xp[:, k:k + H, :, :]
    accp = jnp.pad(acc, ((0, 0), (0, 0), (r, r), (0, 0)))
    out = jnp.zeros_like(x)
    for k, g in enumerate(taps):
        out = out + g * accp[:, :, k:k + W, :]
    return out


def _ref_freq(ll, hl, lh, hh, p):
    B, H2, W2, C = ll.shape
    pooled = jnp.mean(ll, axis=(1, 2))                                 # (B, C)
    p_prev = jnp.pad(pooled, ((0, 0), (1, 0)))[:, :C]
    p_next = jnp.pad(pooled, ((0, 0), (0, 1)))[:, 1:]
    ew = p["eca_w"]
    gate = jax.nn.sigmoid(ew[0] * p_prev + ew[1] * pooled + ew[2] * p_next)
    low = ll * gate[:, None, None, :]

    hf = p["hf_w"]
    g0 = hf[0] * hl + hf[1] * lh + hf[2] * hh
    g1 = _ref_gauss_blur(g0, G3_TAPS)
    g2 = _ref_gauss_blur(g0, G5_TAPS)
    dt = p["det_w"]
    detail = dt[0] * g0 + dt[1] * (g0 - g1) + dt[2] * (g1 - g2)
    high = _ref_mm(detail, p["fa_w"]) + p["fa_b"][0]
    return low, high


def _ref_watt(y, restored, x, p, num_heads):
    B, H, W, C = y.shape
    HW = H * W
    kv = _ref_mm(y, p["w_qkv"])
    kv = _ref_dwconv3x3(kv, p["w_qkv_dw"]).reshape(B, HW, 2 * C)
    k = kv[..., :C]
    v = kv[..., C:]
    q = restored.reshape(B, HW, C)
    d = C // num_heads
    outs = []
    for h in range(num_heads):
        sl = slice(h * d, (h + 1) * d)
        qh, kh, vh = q[..., sl], k[..., sl], v[..., sl]
        qn = qh * jax.lax.rsqrt(jnp.maximum(jnp.sum(qh * qh, axis=1, keepdims=True), 1e-24))
        kn = kh * jax.lax.rsqrt(jnp.maximum(jnp.sum(kh * kh, axis=1, keepdims=True), 1e-24))
        logits = jnp.einsum("bnd,bne->bde", qn.astype(jnp.bfloat16), kn.astype(jnp.bfloat16),
                            preferred_element_type=jnp.float32) * p["temperature"][0, h]
        attn = jax.nn.softmax(logits, axis=-1)
        outs.append(jnp.einsum("bnj,bij->bni", vh.astype(jnp.bfloat16),
                               attn.astype(jnp.bfloat16),
                               preferred_element_type=jnp.float32))
    o = jnp.concatenate(outs, axis=-1)
    out = _ref_mm(o, p["w_proj"]).reshape(B, H, W, C)
    return x + out


def _ref_forward(params, x_nchw, num_heads):
    x = jnp.transpose(x_nchw, (0, 2, 3, 1))
    B, H, W, C = x.shape
    y = _ref_ln(x, params["ln1_w"], params["ln1_b"])
    ll, hl, lh, hh = dwt_nhwc(y)
    low, high = _ref_freq(ll, hl, lh, hh, params["watt_freq"])
    restored = iwt_nhwc(low, high[..., :C], high[..., C:2 * C], high[..., 2 * C:])
    x1 = _ref_watt(y, restored, x, params["watt"], num_heads)

    ll2, hl2, lh2, hh2 = dwt_nhwc(x)
    low2, high2 = _ref_freq(ll2, hl2, lh2, hh2, params["blk_freq"])
    restored2 = iwt_nhwc(low2, high2[..., :C], high2[..., C:2 * C], high2[..., 2 * C:])

    y2 = _ref_ln(x1, params["ln2_w"], params["ln2_b"])
    t = _ref_mm(y2, params["ffn"]["w_in"])
    t = _ref_dwconv3x3(t, params["ffn"]["w_dw"])
    hid = params["ffn"]["w_out"].shape[0]
    g = _gelu_tanh(t[..., :hid]) * t[..., hid:]
    x2 = x1 + _ref_mm(g, params["ffn"]["w_out"])

    fused = _ref_mm(jnp.concatenate([restored2, x2], axis=-1), params["w_fuse"])
    return jnp.transpose(fused, (0, 3, 1, 2))


if __name__ == "__main__":
    key = jax.random.PRNGKey(0)
    k_param, k_x = jax.random.split(key)

    B, C, H, W = 2, 32, 16, 16
    NUM_HEADS, EXPANSION = 4, 2.0

    params = init_params(k_param, C, NUM_HEADS, EXPANSION)
    x = jax.random.normal(k_x, (B, C, H, W), jnp.float32)   # NCHW like PyTorch

    out = jax.block_until_ready(transformer_block_forward(params, x, num_heads=NUM_HEADS))
    assert out.shape == (B, C, H, W), out.shape

    ref = jax.block_until_ready(jax.jit(_ref_forward, static_argnums=2)(params, x, NUM_HEADS))
    max_err = float(jnp.max(jnp.abs(out - ref)))
    assert max_err < 3e-2, max_err

    print("KERNEL_OK")
</pallas_src>

<mosaic_0001>
module attributes {stable_mosaic.version = 11 : i64} {
  func.func @_freq_kernel(%arg0: i32, %arg1: memref<1x8x8x32xf32, #tpu.memory_space<vmem>>, %arg2: memref<1x8x8x32xf32, #tpu.memory_space<vmem>>, %arg3: memref<1x8x8x32xf32, #tpu.memory_space<vmem>>, %arg4: memref<1x8x8x32xf32, #tpu.memory_space<vmem>>, %arg5: memref<3x32xf32, #tpu.memory_space<vmem>>, %arg6: memref<3x32xf32, #tpu.memory_space<vmem>>, %arg7: memref<3x32xf32, #tpu.memory_space<vmem>>, %arg8: memref<32x96xf32, #tpu.memory_space<vmem>>, %arg9: memref<1x96xf32, #tpu.memory_space<vmem>>, %arg10: memref<1x8x8x32xf32, #tpu.memory_space<vmem>>, %arg11: memref<1x8x8x96xf32, #tpu.memory_space<vmem>>) attributes {dimension_semantics = [#tpu.dimension_semantics<parallel>], iteration_bounds = array<i64: 2>, scalar_prefetch = 0 : i64, scratch_operands = 0 : i64, tpu.core_type = #tpu.core_type<tc>, window_params = [{transform_indices = @transform_0, window_bounds = array<i64: 1, 8, 8, 32>}, {transform_indices = @transform_1, window_bounds = array<i64: 1, 8, 8, 32>}, {transform_indices = @transform_2, window_bounds = array<i64: 1, 8, 8, 32>}, {transform_indices = @transform_3, window_bounds = array<i64: 1, 8, 8, 32>}, {pipeline_mode = #tpu.pipeline_mode<synchronous>, transform_indices = @transform_4, window_bounds = array<i64: 3, 32>}, {pipeline_mode = #tpu.pipeline_mode<synchronous>, transform_indices = @transform_5, window_bounds = array<i64: 3, 32>}, {pipeline_mode = #tpu.pipeline_mode<synchronous>, transform_indices = @transform_6, window_bounds = array<i64: 3, 32>}, {pipeline_mode = #tpu.pipeline_mode<synchronous>, transform_indices = @transform_7, window_bounds = array<i64: 32, 96>}, {pipeline_mode = #tpu.pipeline_mode<synchronous>, transform_indices = @transform_8, window_bounds = array<i64: 1, 96>}, {transform_indices = @transform_9, window_bounds = array<i64: 1, 8, 8, 32>}, {transform_indices = @transform_10, window_bounds = array<i64: 1, 8, 8, 96>}]} {
    %c0 = arith.constant 0 : index
    %c0_0 = arith.constant 0 : index
    %c0_1 = arith.constant 0 : index
    %c0_2 = arith.constant 0 : index
    %0 = vector.load %arg1[%c0, %c0_0, %c0_1, %c0_2] : memref<1x8x8x32xf32, #tpu.memory_space<vmem>>, vector<1x8x8x32xf32>
    %1 = vector.shape_cast %0 : vector<1x8x8x32xf32> to vector<8x8x32xf32>
    %c0_3 = arith.constant 0 : index
    %c0_4 = arith.constant 0 : index
    %c0_5 = arith.constant 0 : index
    %c0_6 = arith.constant 0 : index
    %2 = vector.load %arg2[%c0_3, %c0_4, %c0_5, %c0_6] : memref<1x8x8x32xf32, #tpu.memory_space<vmem>>, vector<1x8x8x32xf32>
    %3 = vector.shape_cast %2 : vector<1x8x8x32xf32> to vector<8x8x32xf32>
    %c0_7 = arith.constant 0 : index
    %c0_8 = arith.constant 0 : index
    %c0_9 = arith.constant 0 : index
    %c0_10 = arith.constant 0 : index
    %4 = vector.load %arg3[%c0_7, %c0_8, %c0_9, %c0_10] : memref<1x8x8x32xf32, #tpu.memory_space<vmem>>, vector<1x8x8x32xf32>
    %5 = vector.shape_cast %4 : vector<1x8x8x32xf32> to vector<8x8x32xf32>
    %c0_11 = arith.constant 0 : index
    %c0_12 = arith.constant 0 : index
    %c0_13 = arith.constant 0 : index
    %c0_14 = arith.constant 0 : index
    %6 = vector.load %arg4[%c0_11, %c0_12, %c0_13, %c0_14] : memref<1x8x8x32xf32, #tpu.memory_space<vmem>>, vector<1x8x8x32xf32>
    %7 = vector.shape_cast %6 : vector<1x8x8x32xf32> to vector<8x8x32xf32>
    %8 = vector.shape_cast %1 : vector<8x8x32xf32> to vector<64x32xf32>
    %cst = arith.constant dense<0.000000e+00> : vector<32xf32>
    %9 = vector.multi_reduction <add>, %8, %cst [0] : vector<64x32xf32> to vector<32xf32>
    %10 = vector.shape_cast %9 : vector<32xf32> to vector<1x32xf32>
    %cst_15 = arith.constant 6.400000e+01 : f32
    %11 = vector.broadcast %cst_15 : f32 to vector<1x32xf32>
    %12 = arith.divf %10, %11 : vector<1x32xf32>
    %cst_16 = arith.constant 0.000000e+00 : f32
    %13 = vector.broadcast %cst_16 : f32 to vector<1x1xf32>
    %14 = vector.extract_strided_slice %12 {offsets = [0, 0], sizes = [1, 31], strides = [1, 1]} : vector<1x32xf32> to vector<1x31xf32>
    %15 = tpu.concatenate %13, %14 in 1 : vector<1x1xf32>, vector<1x31xf32> -> vector<1x32xf32>
    %16 = vector.extract_strided_slice %12 {offsets = [0, 1], sizes = [1, 31], strides = [1, 1]} : vector<1x32xf32> to vector<1x31xf32>
    %17 = tpu.concatenate %16, %13 in 1 : vector<1x31xf32>, vector<1x1xf32> -> vector<1x32xf32>
    %c0_17 = arith.constant 0 : index
    %c0_18 = arith.constant 0 : index
    %18 = vector.load %arg5[%c0_17, %c0_18] : memref<3x32xf32, #tpu.memory_space<vmem>>, vector<3x32xf32>
    %19 = vector.extract_strided_slice %18 {offsets = [0, 0], sizes = [1, 32], strides = [1, 1]} : vector<3x32xf32> to vector<1x32xf32>
    %20 = arith.mulf %19, %15 : vector<1x32xf32>
    %21 = vector.extract_strided_slice %18 {offsets = [1, 0], sizes = [1, 32], strides = [1, 1]} : vector<3x32xf32> to vector<1x32xf32>
    %22 = arith.mulf %21, %12 : vector<1x32xf32>
    %23 = arith.addf %20, %22 : vector<1x32xf32>
    %24 = vector.extract_strided_slice %18 {offsets = [2, 0], sizes = [1, 32], strides = [1, 1]} : vector<3x32xf32> to vector<1x32xf32>
    %25 = arith.mulf %24, %17 : vector<1x32xf32>
    %26 = arith.addf %23, %25 : vector<1x32xf32>
    %cst_19 = arith.constant 0.000000e+00 : f32
    %27 = vector.broadcast %cst_19 : f32 to vector<1x32xf32>
    %28 = arith.subf %27, %26 : vector<1x32xf32>
    %29 = math.exp %28 : vector<1x32xf32>
    %cst_20 = arith.constant 1.000000e+00 : f32
    %30 = vector.broadcast %cst_20 : f32 to vector<1x32xf32>
    %31 = arith.addf %30, %29 : vector<1x32xf32>
    %32 = tpu.reciprocal %31 {approx = true} : vector<1x32xf32> -> vector<1x32xf32>
    %33 = vector.shape_cast %32 : vector<1x32xf32> to vector<1x1x32xf32>
    %34 = vector.broadcast %33 : vector<1x1x32xf32> to vector<8x8x32xf32>
    %35 = arith.mulf %1, %34 : vector<8x8x32xf32>
    %c0_21 = arith.constant 0 : index
    %c0_22 = arith.constant 0 : index
    %c0_23 = arith.constant 0 : index
    %c0_24 = arith.constant 0 : index
    %36 = vector.load %arg10[%c0_21, %c0_22, %c0_23, %c0_24] : memref<1x8x8x32xf32, #tpu.memory_space<vmem>>, vector<1x8x8x32xf32>
    %37 = vector.shape_cast %36 : vector<1x8x8x32xf32> to vector<8x8x32xf32>
    %38 = vector.shape_cast %35 : vector<8x8x32xf32> to vector<1x8x8x32xf32>
    tpu.vector_store %arg10[%c0_21, %c0_22, %c0_23, %c0_24], %38 {strides = array<i32>} : memref<1x8x8x32xf32, #tpu.memory_space<vmem>>, vector<1x8x8x32xf32>,
    %c0_25 = arith.constant 0 : index
    %c0_26 = arith.constant 0 : index
    %39 = vector.load %arg6[%c0_25, %c0_26] : memref<3x32xf32, #tpu.memory_space<vmem>>, vector<3x32xf32>
    %40 = vector.extract_strided_slice %39 {offsets = [0, 0], sizes = [1, 32], strides = [1, 1]} : vector<3x32xf32> to vector<1x32xf32>
    %41 = vector.shape_cast %40 : vector<1x32xf32> to vector<1x1x32xf32>
    %42 = vector.broadcast %41 : vector<1x1x32xf32> to vector<8x8x32xf32>
    %43 = arith.mulf %42, %3 : vector<8x8x32xf32>
    %44 = vector.extract_strided_slice %39 {offsets = [1, 0], sizes = [1, 32], strides = [1, 1]} : vector<3x32xf32> to vector<1x32xf32>
    %45 = vector.shape_cast %44 : vector<1x32xf32> to vector<1x1x32xf32>
    %46 = vector.broadcast %45 : vector<1x1x32xf32> to vector<8x8x32xf32>
    %47 = arith.mulf %46, %5 : vector<8x8x32xf32>
    %48 = arith.addf %43, %47 : vector<8x8x32xf32>
    %49 = vector.extract_strided_slice %39 {offsets = [2, 0], sizes = [1, 32], strides = [1, 1]} : vector<3x32xf32> to vector<1x32xf32>
    %50 = vector.shape_cast %49 : vector<1x32xf32> to vector<1x1x32xf32>
    %51 = vector.broadcast %50 : vector<1x1x32xf32> to vector<8x8x32xf32>
    %52 = arith.mulf %51, %7 : vector<8x8x32xf32>
    %53 = arith.addf %48, %52 : vector<8x8x32xf32>
    %cst_27 = arith.constant 0.000000e+00 : f32
    %54 = vector.broadcast %cst_27 : f32 to vector<1x8x32xf32>
    %55 = tpu.concatenate %54, %53, %54 in 0 : vector<1x8x32xf32>, vector<8x8x32xf32>, vector<1x8x32xf32> -> vector<10x8x32xf32>
    %56 = vector.extract_strided_slice %55 {offsets = [0, 0, 0], sizes = [8, 8, 32], strides = [1, 1, 1]} : vector<10x8x32xf32> to vector<8x8x32xf32>
    %cst_28 = arith.constant 0.319394052 : f32
    %57 = vector.broadcast %cst_28 : f32 to vector<8x8x32xf32>
    %58 = arith.mulf %57, %56 : vector<8x8x32xf32>
    %59 = vector.extract_strided_slice %55 {offsets = [1, 0, 0], sizes = [8, 8, 32], strides = [1, 1, 1]} : vector<10x8x32xf32> to vector<8x8x32xf32>
    %cst_29 = arith.constant 0.361211896 : f32
    %60 = vector.broadcast %cst_29 : f32 to vector<8x8x32xf32>
    %61 = arith.mulf %60, %59 : vector<8x8x32xf32>
    %62 = arith.addf %58, %61 : vector<8x8x32xf32>
    %63 = vector.extract_strided_slice %55 {offsets = [2, 0, 0], sizes = [8, 8, 32], strides = [1, 1, 1]} : vector<10x8x32xf32> to vector<8x8x32xf32>
    %cst_30 = arith.constant 0.319394052 : f32
    %64 = vector.broadcast %cst_30 : f32 to vector<8x8x32xf32>
    %65 = arith.mulf %64, %63 : vector<8x8x32xf32>
    %66 = arith.addf %62, %65 : vector<8x8x32xf32>
    %cst_31 = arith.constant 0.000000e+00 : f32
    %67 = vector.broadcast %cst_31 : f32 to vector<8x1x32xf32>
    %68 = tpu.concatenate %67, %66, %67 in 1 : vector<8x1x32xf32>, vector<8x8x32xf32>, vector<8x1x32xf32> -> vector<8x10x32xf32>
    %69 = vector.extract_strided_slice %68 {offsets = [0, 0, 0], sizes = [8, 8, 32], strides = [1, 1, 1]} : vector<8x10x32xf32> to vector<8x8x32xf32>
    %cst_32 = arith.constant 0.319394052 : f32
    %70 = vector.broadcast %cst_32 : f32 to vector<8x8x32xf32>
    %71 = arith.mulf %70, %69 : vector<8x8x32xf32>
    %72 = vector.extract_strided_slice %68 {offsets = [0, 1, 0], sizes = [8, 8, 32], strides = [1, 1, 1]} : vector<8x10x32xf32> to vector<8x8x32xf32>
    %cst_33 = arith.constant 0.361211896 : f32
    %73 = vector.broadcast %cst_33 : f32 to vector<8x8x32xf32>
    %74 = arith.mulf %73, %72 : vector<8x8x32xf32>
    %75 = arith.addf %71, %74 : vector<8x8x32xf32>
    %76 = vector.extract_strided_slice %68 {offsets = [0, 2, 0], sizes = [8, 8, 32], strides = [1, 1, 1]} : vector<8x10x32xf32> to vector<8x8x32xf32>
    %cst_34 = arith.constant 0.319394052 : f32
    %77 = vector.broadcast %cst_34 : f32 to vector<8x8x32xf32>
    %78 = arith.mulf %77, %76 : vector<8x8x32xf32>
    %79 = arith.addf %75, %78 : vector<8x8x32xf32>
    %cst_35 = arith.constant 0.000000e+00 : f32
    %80 = vector.broadcast %cst_35 : f32 to vector<2x8x32xf32>
    %81 = tpu.concatenate %80, %53, %80 in 0 : vector<2x8x32xf32>, vector<8x8x32xf32>, vector<2x8x32xf32> -> vector<12x8x32xf32>
    %82 = vector.extract_strided_slice %81 {offsets = [0, 0, 0], sizes = [8, 8, 32], strides = [1, 1, 1]} : vector<12x8x32xf32> to vector<8x8x32xf32>
    %cst_36 = arith.constant 0.169864252 : f32
    %83 = vector.broadcast %cst_36 : f32 to vector<8x8x32xf32>
    %84 = arith.mulf %83, %82 : vector<8x8x32xf32>
    %85 = vector.extract_strided_slice %81 {offsets = [1, 0, 0], sizes = [8, 8, 32], strides = [1, 1, 1]} : vector<12x8x32xf32> to vector<8x8x32xf32>
    %cst_37 = arith.constant 0.21433261 : f32
    %86 = vector.broadcast %cst_37 : f32 to vector<8x8x32xf32>
    %87 = arith.mulf %86, %85 : vector<8x8x32xf32>
    %88 = arith.addf %84, %87 : vector<8x8x32xf32>
    %89 = vector.extract_strided_slice %81 {offsets = [2, 0, 0], sizes = [8, 8, 32], strides = [1, 1, 1]} : vector<12x8x32xf32> to vector<8x8x32xf32>
    %cst_38 = arith.constant 0.231606275 : f32
    %90 = vector.broadcast %cst_38 : f32 to vector<8x8x32xf32>
    %91 = arith.mulf %90, %89 : vector<8x8x32xf32>
    %92 = arith.addf %88, %91 : vector<8x8x32xf32>
    %93 = vector.extract_strided_slice %81 {offsets = [3, 0, 0], sizes = [8, 8, 32], strides = [1, 1, 1]} : vector<12x8x32xf32> to vector<8x8x32xf32>
    %cst_39 = arith.constant 0.21433261 : f32
    %94 = vector.broadcast %cst_39 : f32 to vector<8x8x32xf32>
    %95 = arith.mulf %94, %93 : vector<8x8x32xf32>
    %96 = arith.addf %92, %95 : vector<8x8x32xf32>
    %97 = vector.extract_strided_slice %81 {offsets = [4, 0, 0], sizes = [8, 8, 32], strides = [1, 1, 1]} : vector<12x8x32xf32> to vector<8x8x32xf32>
    %cst_40 = arith.constant 0.169864252 : f32
    %98 = vector.broadcast %cst_40 : f32 to vector<8x8x32xf32>
    %99 = arith.mulf %98, %97 : vector<8x8x32xf32>
    %100 = arith.addf %96, %99 : vector<8x8x32xf32>
    %cst_41 = arith.constant 0.000000e+00 : f32
    %101 = vector.broadcast %cst_41 : f32 to vector<8x2x32xf32>
    %102 = tpu.concatenate %101, %100, %101 in 1 : vector<8x2x32xf32>, vector<8x8x32xf32>, vector<8x2x32xf32> -> vector<8x12x32xf32>
    %103 = vector.extract_strided_slice %102 {offsets = [0, 0, 0], sizes = [8, 8, 32], strides = [1, 1, 1]} : vector<8x12x32xf32> to vector<8x8x32xf32>
    %cst_42 = arith.constant 0.169864252 : f32
    %104 = vector.broadcast %cst_42 : f32 to vector<8x8x32xf32>
    %105 = arith.mulf %104, %103 : vector<8x8x32xf32>
    %106 = vector.extract_strided_slice %102 {offsets = [0, 1, 0], sizes = [8, 8, 32], strides = [1, 1, 1]} : vector<8x12x32xf32> to vector<8x8x32xf32>
    %cst_43 = arith.constant 0.21433261 : f32
    %107 = vector.broadcast %cst_43 : f32 to vector<8x8x32xf32>
    %108 = arith.mulf %107, %106 : vector<8x8x32xf32>
    %109 = arith.addf %105, %108 : vector<8x8x32xf32>
    %110 = vector.extract_strided_slice %102 {offsets = [0, 2, 0], sizes = [8, 8, 32], strides = [1, 1, 1]} : vector<8x12x32xf32> to vector<8x8x32xf32>
    %cst_44 = arith.constant 0.231606275 : f32
    %111 = vector.broadcast %cst_44 : f32 to vector<8x8x32xf32>
    %112 = arith.mulf %111, %110 : vector<8x8x32xf32>
    %113 = arith.addf %109, %112 : vector<8x8x32xf32>
    %114 = vector.extract_strided_slice %102 {offsets = [0, 3, 0], sizes = [8, 8, 32], strides = [1, 1, 1]} : vector<8x12x32xf32> to vector<8x8x32xf32>
    %cst_45 = arith.constant 0.21433261 : f32
    %115 = vector.broadcast %cst_45 : f32 to vector<8x8x32xf32>
    %116 = arith.mulf %115, %114 : vector<8x8x32xf32>
    %117 = arith.addf %113, %116 : vector<8x8x32xf32>
    %118 = vector.extract_strided_slice %102 {offsets = [0, 4, 0], sizes = [8, 8, 32], strides = [1, 1, 1]} : vector<8x12x32xf32> to vector<8x8x32xf32>
    %cst_46 = arith.constant 0.169864252 : f32
    %119 = vector.broadcast %cst_46 : f32 to vector<8x8x32xf32>
    %120 = arith.mulf %119, %118 : vector<8x8x32xf32>
    %121 = arith.addf %117, %120 : vector<8x8x32xf32>
    %c0_47 = arith.constant 0 : index
    %c0_48 = arith.constant 0 : index
    %122 = vector.load %arg7[%c0_47, %c0_48] : memref<3x32xf32, #tpu.memory_space<vmem>>, vector<3x32xf32>
    %123 = vector.extract_strided_slice %122 {offsets = [0, 0], sizes = [1, 32], strides = [1, 1]} : vector<3x32xf32> to vector<1x32xf32>
    %124 = vector.shape_cast %123 : vector<1x32xf32> to vector<1x1x32xf32>
    %125 = vector.broadcast %124 : vector<1x1x32xf32> to vector<8x8x32xf32>
    %126 = arith.mulf %125, %53 : vector<8x8x32xf32>
    %127 = vector.extract_strided_slice %122 {offsets = [1, 0], sizes = [1, 32], strides = [1, 1]} : vector<3x32xf32> to vector<1x32xf32>
    %128 = arith.subf %53, %79 : vector<8x8x32xf32>
    %129 = vector.shape_cast %127 : vector<1x32xf32> to vector<1x1x32xf32>
    %130 = vector.broadcast %129 : vector<1x1x32xf32> to vector<8x8x32xf32>
    %131 = arith.mulf %130, %128 : vector<8x8x32xf32>
    %132 = arith.addf %126, %131 : vector<8x8x32xf32>
    %133 = vector.extract_strided_slice %122 {offsets = [2, 0], sizes = [1, 32], strides = [1, 1]} : vector<3x32xf32> to vector<1x32xf32>
    %134 = arith.subf %79, %121 : vector<8x8x32xf32>
    %135 = vector.shape_cast %133 : vector<1x32xf32> to vector<1x1x32xf32>
    %136 = vector.broadcast %135 : vector<1x1x32xf32> to vector<8x8x32xf32>
    %137 = arith.mulf %136, %134 : vector<8x8x32xf32>
    %138 = arith.addf %132, %137 : vector<8x8x32xf32>
    %139 = vector.shape_cast %138 : vector<8x8x32xf32> to vector<64x32xf32>
    %140 = arith.truncf %139 : vector<64x32xf32> to vector<64x32xbf16>
    %c0_49 = arith.constant 0 : index
    %c0_50 = arith.constant 0 : index
    %141 = vector.load %arg8[%c0_49, %c0_50] : memref<32x96xf32, #tpu.memory_space<vmem>>, vector<32x96xf32>
    %142 = arith.truncf %141 : vector<32x96xf32> to vector<32x96xbf16>
    %cst_51 = arith.constant dense<0.000000e+00> : vector<64x96xf32>
    %143 = tpu.matmul %140, %142, %cst_51 {dimension_numbers = #tpu.dot_dimension_numbers<[1], [0], [0], [1], [0, 0, 1, 1], [], []>} : vector<64x32xbf16>, vector<32x96xbf16>, vector<64x96xf32> -> vector<64x96xf32>
    %c0_52 = arith.constant 0 : index
    %c0_53 = arith.constant 0 : index
    %144 = vector.load %arg9[%c0_52, %c0_53] : memref<1x96xf32, #tpu.memory_space<vmem>>, vector<1x96xf32>
    %145 = vector.broadcast %144 : vector<1x96xf32> to vector<64x96xf32>
    %146 = arith.addf %143, %145 : vector<64x96xf32>
    %147 = vector.shape_cast %146 : vector<64x96xf32> to vector<8x8x96xf32>
    %c0_54 = arith.constant 0 : index
    %c0_55 = arith.constant 0 : index
    %c0_56 = arith.constant 0 : index
    %c0_57 = arith.constant 0 : index
    %148 = vector.load %arg11[%c0_54, %c0_55, %c0_56, %c0_57] : memref<1x8x8x96xf32, #tpu.memory_space<vmem>>, vector<1x8x8x96xf32>
    %149 = vector.shape_cast %148 : vector<1x8x8x96xf32> to vector<8x8x96xf32>
    %150 = vector.shape_cast %147 : vector<8x8x96xf32> to vector<1x8x8x96xf32>
    tpu.vector_store %arg11[%c0_54, %c0_55, %c0_56, %c0_57], %150 {strides = array<i32>} : memref<1x8x8x96xf32, #tpu.memory_space<vmem>>, vector<1x8x8x96xf32>,
    return
  }
  func.func @transform_0(%arg0: i32) -> (i32, i32, i32, i32) {
    %c0_i32 = arith.constant 0 : i32
    %c0_i32_0 = arith.constant 0 : i32
    %c0_i32_1 = arith.constant 0 : i32
    %c0_i32_2 = arith.constant 0 : i32
    return %arg0, %c0_i32, %c0_i32_0, %c0_i32_1 : i32, i32, i32, i32
  }
  func.func @transform_1(%arg0: i32) -> (i32, i32, i32, i32) {
    %c0_i32 = arith.constant 0 : i32
    %c0_i32_0 = arith.constant 0 : i32
    %c0_i32_1 = arith.constant 0 : i32
    %c0_i32_2 = arith.constant 0 : i32
    return %arg0, %c0_i32, %c0_i32_0, %c0_i32_1 : i32, i32, i32, i32
  }
  func.func @transform_2(%arg0: i32) -> (i32, i32, i32, i32) {
    %c0_i32 = arith.constant 0 : i32
    %c0_i32_0 = arith.constant 0 : i32
    %c0_i32_1 = arith.constant 0 : i32
    %c0_i32_2 = arith.constant 0 : i32
    return %arg0, %c0_i32, %c0_i32_0, %c0_i32_1 : i32, i32, i32, i32
  }
  func.func @transform_3(%arg0: i32) -> (i32, i32, i32, i32) {
    %c0_i32 = arith.constant 0 : i32
    %c0_i32_0 = arith.constant 0 : i32
    %c0_i32_1 = arith.constant 0 : i32
    %c0_i32_2 = arith.constant 0 : i32
    return %arg0, %c0_i32, %c0_i32_0, %c0_i32_1 : i32, i32, i32, i32
  }
  func.func @transform_4(%arg0: i32) -> (i32, i32) {
    %c0_i32 = arith.constant 0 : i32
    %c0_i32_0 = arith.constant 0 : i32
    %c0_i32_1 = arith.constant 0 : i32
    return %c0_i32, %c0_i32_0 : i32, i32
  }
  func.func @transform_5(%arg0: i32) -> (i32, i32) {
    %c0_i32 = arith.constant 0 : i32
    %c0_i32_0 = arith.constant 0 : i32
    %c0_i32_1 = arith.constant 0 : i32
    return %c0_i32, %c0_i32_0 : i32, i32
  }
  func.func @transform_6(%arg0: i32) -> (i32, i32) {
    %c0_i32 = arith.constant 0 : i32
    %c0_i32_0 = arith.constant 0 : i32
    %c0_i32_1 = arith.constant 0 : i32
    return %c0_i32, %c0_i32_0 : i32, i32
  }
  func.func @transform_7(%arg0: i32) -> (i32, i32) {
    %c0_i32 = arith.constant 0 : i32
    %c0_i32_0 = arith.constant 0 : i32
    %c0_i32_1 = arith.constant 0 : i32
    return %c0_i32, %c0_i32_0 : i32, i32
  }
  func.func @transform_8(%arg0: i32) -> (i32, i32) {
    %c0_i32 = arith.constant 0 : i32
    %c0_i32_0 = arith.constant 0 : i32
    %c0_i32_1 = arith.constant 0 : i32
    return %c0_i32, %c0_i32_0 : i32, i32
  }
  func.func @transform_9(%arg0: i32) -> (i32, i32, i32, i32) {
    %c0_i32 = arith.constant 0 : i32
    %c0_i32_0 = arith.constant 0 : i32
    %c0_i32_1 = arith.constant 0 : i32
    %c0_i32_2 = arith.constant 0 : i32
    return %arg0, %c0_i32, %c0_i32_0, %c0_i32_1 : i32, i32, i32, i32
  }
  func.func @transform_10(%arg0: i32) -> (i32, i32, i32, i32) {
    %c0_i32 = arith.constant 0 : i32
    %c0_i32_0 = arith.constant 0 : i32
    %c0_i32_1 = arith.constant 0 : i32
    %c0_i32_2 = arith.constant 0 : i32
    return %arg0, %c0_i32, %c0_i32_0, %c0_i32_1 : i32, i32, i32, i32
  }
}

module attributes {stable_mosaic.version = 11 : i64} {
  func.func @_ln_kernel(%arg0: i32, %arg1: memref<1x16x16x32xf32, #tpu.memory_space<vmem>>, %arg2: memref<1x32xf32, #tpu.memory_space<vmem>>, %arg3: memref<1x32xf32, #tpu.memory_space<vmem>>, %arg4: memref<1x16x16x32xf32, #tpu.memory_space<vmem>>) attributes {dimension_semantics = [#tpu.dimension_semantics<parallel>], iteration_bounds = array<i64: 2>, scalar_prefetch = 0 : i64, scratch_operands = 0 : i64, tpu.core_type = #tpu.core_type<tc>, window_params = [{transform_indices = @transform_0, window_bounds = array<i64: 1, 16, 16, 32>}, {pipeline_mode = #tpu.pipeline_mode<synchronous>, transform_indices = @transform_1, window_bounds = array<i64: 1, 32>}, {pipeline_mode = #tpu.pipeline_mode<synchronous>, transform_indices = @transform_2, window_bounds = array<i64: 1, 32>}, {transform_indices = @transform_3, window_bounds = array<i64: 1, 16, 16, 32>}]} {
    %c0 = arith.constant 0 : index
    %c0_0 = arith.constant 0 : index
    %c0_1 = arith.constant 0 : index
    %c0_2 = arith.constant 0 : index
    %0 = vector.load %arg1[%c0, %c0_0, %c0_1, %c0_2] : memref<1x16x16x32xf32, #tpu.memory_space<vmem>>, vector<1x16x16x32xf32>
    %1 = vector.shape_cast %0 : vector<1x16x16x32xf32> to vector<16x16x32xf32>
    %2 = vector.shape_cast %1 : vector<16x16x32xf32> to vector<256x32xf32>
    %c0_3 = arith.constant 0 : index
    %c0_4 = arith.constant 0 : index
    %3 = vector.load %arg2[%c0_3, %c0_4] : memref<1x32xf32, #tpu.memory_space<vmem>>, vector<1x32xf32>
    %c0_5 = arith.constant 0 : index
    %c0_6 = arith.constant 0 : index
    %4 = vector.load %arg3[%c0_5, %c0_6] : memref<1x32xf32, #tpu.memory_space<vmem>>, vector<1x32xf32>
    %cst = arith.constant dense<0.000000e+00> : vector<256xf32>
    %5 = vector.multi_reduction <add>, %2, %cst [1] : vector<256x32xf32> to vector<256xf32>
    %6 = vector.shape_cast %5 : vector<256xf32> to vector<256x1xf32>
    %cst_7 = arith.constant 3.200000e+01 : f32
    %7 = vector.broadcast %cst_7 : f32 to vector<256x1xf32>
    %8 = arith.divf %6, %7 : vector<256x1xf32>
    %9 = vector.broadcast %8 : vector<256x1xf32> to vector<256x32xf32>
    %10 = arith.subf %2, %9 : vector<256x32xf32>
    %11 = arith.mulf %10, %10 : vector<256x32xf32>
    %cst_8 = arith.constant dense<0.000000e+00> : vector<256xf32>
    %12 = vector.multi_reduction <add>, %11, %cst_8 [1] : vector<256x32xf32> to vector<256xf32>
    %13 = vector.shape_cast %12 : vector<256xf32> to vector<256x1xf32>
    %cst_9 = arith.constant 3.200000e+01 : f32
    %14 = vector.broadcast %cst_9 : f32 to vector<256x1xf32>
    %15 = arith.divf %13, %14 : vector<256x1xf32>
    %cst_10 = arith.constant 9.99999974E-6 : f32
    %16 = vector.broadcast %cst_10 : f32 to vector<256x1xf32>
    %17 = arith.addf %15, %16 : vector<256x1xf32>
    %18 = math.rsqrt %17 : vector<256x1xf32>
    %19 = vector.broadcast %18 : vector<256x1xf32> to vector<256x32xf32>
    %20 = arith.mulf %10, %19 : vector<256x32xf32>
    %21 = vector.broadcast %3 : vector<1x32xf32> to vector<256x32xf32>
    %22 = arith.mulf %20, %21 : vector<256x32xf32>
    %23 = vector.broadcast %4 : vector<1x32xf32> to vector<256x32xf32>
    %24 = arith.addf %22, %23 : vector<256x32xf32>
    %25 = vector.shape_cast %24 : vector<256x32xf32> to vector<16x16x32xf32>
    %c0_11 = arith.constant 0 : index
    %c0_12 = arith.constant 0 : index
    %c0_13 = arith.constant 0 : index
    %c0_14 = arith.constant 0 : index
    %26 = vector.load %arg4[%c0_11, %c0_12, %c0_13, %c0_14] : memref<1x16x16x32xf32, #tpu.memory_space<vmem>>, vector<1x16x16x32xf32>
    %27 = vector.shape_cast %26 : vector<1x16x16x32xf32> to vector<16x16x32xf32>
    %28 = vector.shape_cast %25 : vector<16x16x32xf32> to vector<1x16x16x32xf32>
    tpu.vector_store %arg4[%c0_11, %c0_12, %c0_13, %c0_14], %28 {strides = array<i32>} : memref<1x16x16x32xf32, #tpu.memory_space<vmem>>, vector<1x16x16x32xf32>,
    return
  }
  func.func @transform_0(%arg0: i32) -> (i32, i32, i32, i32) {
    %c0_i32 = arith.constant 0 : i32
    %c0_i32_0 = arith.constant 0 : i32
    %c0_i32_1 = arith.constant 0 : i32
    %c0_i32_2 = arith.constant 0 : i32
    return %arg0, %c0_i32, %c0_i32_0, %c0_i32_1 : i32, i32, i32, i32
  }
  func.func @transform_1(%arg0: i32) -> (i32, i32) {
    %c0_i32 = arith.constant 0 : i32
    %c0_i32_0 = arith.constant 0 : i32
    %c0_i32_1 = arith.constant 0 : i32
    return %c0_i32, %c0_i32_0 : i32, i32
  }
  func.func @transform_2(%arg0: i32) -> (i32, i32) {
    %c0_i32 = arith.constant 0 : i32
    %c0_i32_0 = arith.constant 0 : i32
    %c0_i32_1 = arith.constant 0 : i32
    return %c0_i32, %c0_i32_0 : i32, i32
  }
  func.func @transform_3(%arg0: i32) -> (i32, i32, i32, i32) {
    %c0_i32 = arith.constant 0 : i32
    %c0_i32_0 = arith.constant 0 : i32
    %c0_i32_1 = arith.constant 0 : i32
    %c0_i32_2 = arith.constant 0 : i32
    return %arg0, %c0_i32, %c0_i32_0, %c0_i32_1 : i32, i32, i32, i32
  }
}

module attributes {stable_mosaic.version = 11 : i64} {
  func.func @_attn_kernel(%arg0: i32, %arg1: memref<1x16x16x32xf32, #tpu.memory_space<vmem>>, %arg2: memref<1x16x16x32xf32, #tpu.memory_space<vmem>>, %arg3: memref<1x32xf32, #tpu.memory_space<vmem>>, %arg4: memref<1x32xf32, #tpu.memory_space<vmem>>, %arg5: memref<32x64xf32, #tpu.memory_space<vmem>>, %arg6: memref<9x64xf32, #tpu.memory_space<vmem>>, %arg7: memref<1x32xf32, #tpu.memory_space<vmem>>, %arg8: memref<32x32xf32, #tpu.memory_space<vmem>>, %arg9: memref<32x32xf32, #tpu.memory_space<vmem>>, %arg10: memref<1x16x16x32xf32, #tpu.memory_space<vmem>>) attributes {dimension_semantics = [#tpu.dimension_semantics<parallel>], iteration_bounds = array<i64: 2>, scalar_prefetch = 0 : i64, scratch_operands = 0 : i64, tpu.core_type = #tpu.core_type<tc>, window_params = [{transform_indices = @transform_0, window_bounds = array<i64: 1, 16, 16, 32>}, {transform_indices = @transform_1, window_bounds = array<i64: 1, 16, 16, 32>}, {pipeline_mode = #tpu.pipeline_mode<synchronous>, transform_indices = @transform_2, window_bounds = array<i64: 1, 32>}, {pipeline_mode = #tpu.pipeline_mode<synchronous>, transform_indices = @transform_3, window_bounds = array<i64: 1, 32>}, {pipeline_mode = #tpu.pipeline_mode<synchronous>, transform_indices = @transform_4, window_bounds = array<i64: 32, 64>}, {pipeline_mode = #tpu.pipeline_mode<synchronous>, transform_indices = @transform_5, window_bounds = array<i64: 9, 64>}, {pipeline_mode = #tpu.pipeline_mode<synchronous>, transform_indices = @transform_6, window_bounds = array<i64: 1, 32>}, {pipeline_mode = #tpu.pipeline_mode<synchronous>, transform_indices = @transform_7, window_bounds = array<i64: 32, 32>}, {pipeline_mode = #tpu.pipeline_mode<synchronous>, transform_indices = @transform_8, window_bounds = array<i64: 32, 32>}, {transform_indices = @transform_9, window_bounds = array<i64: 1, 16, 16, 32>}]} {
    %c0 = arith.constant 0 : index
    %c0_0 = arith.constant 0 : index
    %c0_1 = arith.constant 0 : index
    %c0_2 = arith.constant 0 : index
    %0 = vector.load %arg1[%c0, %c0_0, %c0_1, %c0_2] : memref<1x16x16x32xf32, #tpu.memory_space<vmem>>, vector<1x16x16x32xf32>
    %1 = vector.shape_cast %0 : vector<1x16x16x32xf32> to vector<16x16x32xf32>
    %2 = vector.shape_cast %1 : vector<16x16x32xf32> to vector<256x32xf32>
    %c0_3 = arith.constant 0 : index
    %c0_4 = arith.constant 0 : index
    %3 = vector.load %arg3[%c0_3, %c0_4] : memref<1x32xf32, #tpu.memory_space<vmem>>, vector<1x32xf32>
    %c0_5 = arith.constant 0 : index
    %c0_6 = arith.constant 0 : index
    %4 = vector.load %arg4[%c0_5, %c0_6] : memref<1x32xf32, #tpu.memory_space<vmem>>, vector<1x32xf32>
    %cst = arith.constant dense<0.000000e+00> : vector<256xf32>
    %5 = vector.multi_reduction <add>, %2, %cst [1] : vector<256x32xf32> to vector<256xf32>
    %6 = vector.shape_cast %5 : vector<256xf32> to vector<256x1xf32>
    %cst_7 = arith.constant 3.200000e+01 : f32
    %7 = vector.broadcast %cst_7 : f32 to vector<256x1xf32>
    %8 = arith.divf %6, %7 : vector<256x1xf32>
    %9 = vector.broadcast %8 : vector<256x1xf32> to vector<256x32xf32>
    %10 = arith.subf %2, %9 : vector<256x32xf32>
    %11 = arith.mulf %10, %10 : vector<256x32xf32>
    %cst_8 = arith.constant dense<0.000000e+00> : vector<256xf32>
    %12 = vector.multi_reduction <add>, %11, %cst_8 [1] : vector<256x32xf32> to vector<256xf32>
    %13 = vector.shape_cast %12 : vector<256xf32> to vector<256x1xf32>
    %cst_9 = arith.constant 3.200000e+01 : f32
    %14 = vector.broadcast %cst_9 : f32 to vector<256x1xf32>
    %15 = arith.divf %13, %14 : vector<256x1xf32>
    %cst_10 = arith.constant 9.99999974E-6 : f32
    %16 = vector.broadcast %cst_10 : f32 to vector<256x1xf32>
    %17 = arith.addf %15, %16 : vector<256x1xf32>
    %18 = math.rsqrt %17 : vector<256x1xf32>
    %19 = vector.broadcast %18 : vector<256x1xf32> to vector<256x32xf32>
    %20 = arith.mulf %10, %19 : vector<256x32xf32>
    %21 = vector.broadcast %3 : vector<1x32xf32> to vector<256x32xf32>
    %22 = arith.mulf %20, %21 : vector<256x32xf32>
    %23 = vector.broadcast %4 : vector<1x32xf32> to vector<256x32xf32>
    %24 = arith.addf %22, %23 : vector<256x32xf32>
    %25 = arith.truncf %24 : vector<256x32xf32> to vector<256x32xbf16>
    %c0_11 = arith.constant 0 : index
    %c0_12 = arith.constant 0 : index
    %26 = vector.load %arg5[%c0_11, %c0_12] : memref<32x64xf32, #tpu.memory_space<vmem>>, vector<32x64xf32>
    %27 = arith.truncf %26 : vector<32x64xf32> to vector<32x64xbf16>
    %cst_13 = arith.constant dense<0.000000e+00> : vector<256x64xf32>
    %28 = tpu.matmul %25, %27, %cst_13 {dimension_numbers = #tpu.dot_dimension_numbers<[1], [0], [0], [1], [0, 0, 1, 1], [], []>} : vector<256x32xbf16>, vector<32x64xbf16>, vector<256x64xf32> -> vector<256x64xf32>
    %29 = vector.shape_cast %28 : vector<256x64xf32> to vector<16x16x64xf32>
    %c0_14 = arith.constant 0 : index
    %c0_15 = arith.constant 0 : index
    %30 = vector.load %arg6[%c0_14, %c0_15] : memref<9x64xf32, #tpu.memory_space<vmem>>, vector<9x64xf32>
    %cst_16 = arith.constant 0.000000e+00 : f32
    %31 = vector.broadcast %cst_16 : f32 to vector<1x16x64xf32>
    %32 = tpu.concatenate %31, %29, %31 in 0 : vector<1x16x64xf32>, vector<16x16x64xf32>, vector<1x16x64xf32> -> vector<18x16x64xf32>
    %cst_17 = arith.constant 0.000000e+00 : f32
    %33 = vector.broadcast %cst_17 : f32 to vector<18x1x64xf32>
    %34 = tpu.concatenate %33, %32, %33 in 1 : vector<18x1x64xf32>, vector<18x16x64xf32>, vector<18x1x64xf32> -> vector<18x18x64xf32>
    %35 = vector.extract_strided_slice %34 {offsets = [0, 0, 0], sizes = [16, 16, 64], strides = [1, 1, 1]} : vector<18x18x64xf32> to vector<16x16x64xf32>
    %36 = vector.extract_strided_slice %30 {offsets = [0, 0], sizes = [1, 64], strides = [1, 1]} : vector<9x64xf32> to vector<1x64xf32>
    %37 = vector.shape_cast %36 : vector<1x64xf32> to vector<1x1x64xf32>
    %38 = vector.broadcast %37 : vector<1x1x64xf32> to vector<16x16x64xf32>
    %39 = arith.mulf %35, %38 : vector<16x16x64xf32>
    %40 = vector.extract_strided_slice %34 {offsets = [0, 1, 0], sizes = [16, 16, 64], strides = [1, 1, 1]} : vector<18x18x64xf32> to vector<16x16x64xf32>
    %41 = vector.extract_strided_slice %30 {offsets = [1, 0], sizes = [1, 64], strides = [1, 1]} : vector<9x64xf32> to vector<1x64xf32>
    %42 = vector.shape_cast %41 : vector<1x64xf32> to vector<1x1x64xf32>
    %43 = vector.broadcast %42 : vector<1x1x64xf32> to vector<16x16x64xf32>
    %44 = arith.mulf %40, %43 : vector<16x16x64xf32>
    %45 = arith.addf %39, %44 : vector<16x16x64xf32>
    %46 = vector.extract_strided_slice %34 {offsets = [0, 2, 0], sizes = [16, 16, 64], strides = [1, 1, 1]} : vector<18x18x64xf32> to vector<16x16x64xf32>
    %47 = vector.extract_strided_slice %30 {offsets = [2, 0], sizes = [1, 64], strides = [1, 1]} : vector<9x64xf32> to vector<1x64xf32>
    %48 = vector.shape_cast %47 : vector<1x64xf32> to vector<1x1x64xf32>
    %49 = vector.broadcast %48 : vector<1x1x64xf32> to vector<16x16x64xf32>
    %50 = arith.mulf %46, %49 : vector<16x16x64xf32>
    %51 = arith.addf %45, %50 : vector<16x16x64xf32>
    %52 = vector.extract_strided_slice %34 {offsets = [1, 0, 0], sizes = [16, 16, 64], strides = [1, 1, 1]} : vector<18x18x64xf32> to vector<16x16x64xf32>
    %53 = vector.extract_strided_slice %30 {offsets = [3, 0], sizes = [1, 64], strides = [1, 1]} : vector<9x64xf32> to vector<1x64xf32>
    %54 = vector.shape_cast %53 : vector<1x64xf32> to vector<1x1x64xf32>
    %55 = vector.broadcast %54 : vector<1x1x64xf32> to vector<16x16x64xf32>
    %56 = arith.mulf %52, %55 : vector<16x16x64xf32>
    %57 = arith.addf %51, %56 : vector<16x16x64xf32>
    %58 = vector.extract_strided_slice %34 {offsets = [1, 1, 0], sizes = [16, 16, 64], strides = [1, 1, 1]} : vector<18x18x64xf32> to vector<16x16x64xf32>
    %59 = vector.extract_strided_slice %30 {offsets = [4, 0], sizes = [1, 64], strides = [1, 1]} : vector<9x64xf32> to vector<1x64xf32>
    %60 = vector.shape_cast %59 : vector<1x64xf32> to vector<1x1x64xf32>
    %61 = vector.broadcast %60 : vector<1x1x64xf32> to vector<16x16x64xf32>
    %62 = arith.mulf %58, %61 : vector<16x16x64xf32>
    %63 = arith.addf %57, %62 : vector<16x16x64xf32>
    %64 = vector.extract_strided_slice %34 {offsets = [1, 2, 0], sizes = [16, 16, 64], strides = [1, 1, 1]} : vector<18x18x64xf32> to vector<16x16x64xf32>
    %65 = vector.extract_strided_slice %30 {offsets = [5, 0], sizes = [1, 64], strides = [1, 1]} : vector<9x64xf32> to vector<1x64xf32>
    %66 = vector.shape_cast %65 : vector<1x64xf32> to vector<1x1x64xf32>
    %67 = vector.broadcast %66 : vector<1x1x64xf32> to vector<16x16x64xf32>
    %68 = arith.mulf %64, %67 : vector<16x16x64xf32>
    %69 = arith.addf %63, %68 : vector<16x16x64xf32>
    %70 = vector.extract_strided_slice %34 {offsets = [2, 0, 0], sizes = [16, 16, 64], strides = [1, 1, 1]} : vector<18x18x64xf32> to vector<16x16x64xf32>
    %71 = vector.extract_strided_slice %30 {offsets = [6, 0], sizes = [1, 64], strides = [1, 1]} : vector<9x64xf32> to vector<1x64xf32>
    %72 = vector.shape_cast %71 : vector<1x64xf32> to vector<1x1x64xf32>
    %73 = vector.broadcast %72 : vector<1x1x64xf32> to vector<16x16x64xf32>
    %74 = arith.mulf %70, %73 : vector<16x16x64xf32>
    %75 = arith.addf %69, %74 : vector<16x16x64xf32>
    %76 = vector.extract_strided_slice %34 {offsets = [2, 1, 0], sizes = [16, 16, 64], strides = [1, 1, 1]} : vector<18x18x64xf32> to vector<16x16x64xf32>
    %77 = vector.extract_strided_slice %30 {offsets = [7, 0], sizes = [1, 64], strides = [1, 1]} : vector<9x64xf32> to vector<1x64xf32>
    %78 = vector.shape_cast %77 : vector<1x64xf32> to vector<1x1x64xf32>
    %79 = vector.broadcast %78 : vector<1x1x64xf32> to vector<16x16x64xf32>
    %80 = arith.mulf %76, %79 : vector<16x16x64xf32>
    %81 = arith.addf %75, %80 : vector<16x16x64xf32>
    %82 = vector.extract_strided_slice %34 {offsets = [2, 2, 0], sizes = [16, 16, 64], strides = [1, 1, 1]} : vector<18x18x64xf32> to vector<16x16x64xf32>
    %83 = vector.extract_strided_slice %30 {offsets = [8, 0], sizes = [1, 64], strides = [1, 1]} : vector<9x64xf32> to vector<1x64xf32>
    %84 = vector.shape_cast %83 : vector<1x64xf32> to vector<1x1x64xf32>
    %85 = vector.broadcast %84 : vector<1x1x64xf32> to vector<16x16x64xf32>
    %86 = arith.mulf %82, %85 : vector<16x16x64xf32>
    %87 = arith.addf %81, %86 : vector<16x16x64xf32>
    %88 = vector.shape_cast %87 : vector<16x16x64xf32> to vector<256x64xf32>
    %89 = vector.extract_strided_slice %88 {offsets = [0, 0], sizes = [256, 32], strides = [1, 1]} : vector<256x64xf32> to vector<256x32xf32>
    %90 = vector.extract_strided_slice %88 {offsets = [0, 32], sizes = [256, 32], strides = [1, 1]} : vector<256x64xf32> to vector<256x32xf32>
    %c0_18 = arith.constant 0 : index
    %c0_19 = arith.constant 0 : index
    %c0_20 = arith.constant 0 : index
    %c0_21 = arith.constant 0 : index
    %91 = vector.load %arg2[%c0_18, %c0_19, %c0_20, %c0_21] : memref<1x16x16x32xf32, #tpu.memory_space<vmem>>, vector<1x16x16x32xf32>
    %92 = vector.shape_cast %91 : vector<1x16x16x32xf32> to vector<16x16x32xf32>
    %93 = vector.shape_cast %92 : vector<16x16x32xf32> to vector<256x32xf32>
    %94 = arith.mulf %93, %93 : vector<256x32xf32>
    %cst_22 = arith.constant dense<0.000000e+00> : vector<32xf32>
    %95 = vector.multi_reduction <add>, %94, %cst_22 [0] : vector<256x32xf32> to vector<32xf32>
    %96 = vector.shape_cast %95 : vector<32xf32> to vector<1x32xf32>
    %cst_23 = arith.constant 1.000000e-24 : f32
    %97 = vector.broadcast %cst_23 : f32 to vector<1x32xf32>
    %98 = arith.maximumf %96, %97 : vector<1x32xf32>
    %99 = math.rsqrt %98 : vector<1x32xf32>
    %100 = vector.broadcast %99 : vector<1x32xf32> to vector<256x32xf32>
    %101 = arith.mulf %93, %100 : vector<256x32xf32>
    %102 = arith.mulf %89, %89 : vector<256x32xf32>
    %cst_24 = arith.constant dense<0.000000e+00> : vector<32xf32>
    %103 = vector.multi_reduction <add>, %102, %cst_24 [0] : vector<256x32xf32> to vector<32xf32>
    %104 = vector.shape_cast %103 : vector<32xf32> to vector<1x32xf32>
    %cst_25 = arith.constant 1.000000e-24 : f32
    %105 = vector.broadcast %cst_25 : f32 to vector<1x32xf32>
    %106 = arith.maximumf %104, %105 : vector<1x32xf32>
    %107 = math.rsqrt %106 : vector<1x32xf32>
    %108 = vector.broadcast %107 : vector<1x32xf32> to vector<256x32xf32>
    %109 = arith.mulf %89, %108 : vector<256x32xf32>
    %c0_26 = arith.constant 0 : index
    %c0_27 = arith.constant 0 : index
    %110 = vector.load %arg7[%c0_26, %c0_27] : memref<1x32xf32, #tpu.memory_space<vmem>>, vector<1x32xf32>
    %111 = vector.broadcast %110 : vector<1x32xf32> to vector<256x32xf32>
    %112 = arith.mulf %101, %111 : vector<256x32xf32>
    %113 = arith.truncf %112 : vector<256x32xf32> to vector<256x32xbf16>
    %114 = arith.truncf %109 : vector<256x32xf32> to vector<256x32xbf16>
    %cst_28 = arith.constant dense<0.000000e+00> : vector<32x32xf32>
    %115 = tpu.matmul %113, %114, %cst_28 {dimension_numbers = #tpu.dot_dimension_numbers<[0], [0], [1], [1], [0, 1, 1, 1], [], []>} : vector<256x32xbf16>, vector<256x32xbf16>, vector<32x32xf32> -> vector<32x32xf32>
    %c0_29 = arith.constant 0 : index
    %c0_30 = arith.constant 0 : index
    %116 = vector.load %arg8[%c0_29, %c0_30] : memref<32x32xf32, #tpu.memory_space<vmem>>, vector<32x32xf32>
    %117 = arith.addf %115, %116 : vector<32x32xf32>
    %cst_31 = arith.constant dense<0xFF800000> : vector<32xf32>
    %118 = vector.multi_reduction <maximumf>, %117, %cst_31 [1] : vector<32x32xf32> to vector<32xf32>
    %119 = vector.shape_cast %118 : vector<32xf32> to vector<32x1xf32>
    %120 = vector.broadcast %119 : vector<32x1xf32> to vector<32x32xf32>
    %121 = arith.subf %117, %120 : vector<32x32xf32>
    %122 = math.exp %121 : vector<32x32xf32>
    %cst_32 = arith.constant dense<0.000000e+00> : vector<32xf32>
    %123 = vector.multi_reduction <add>, %122, %cst_32 [1] : vector<32x32xf32> to vector<32xf32>
    %124 = vector.shape_cast %123 : vector<32xf32> to vector<32x1xf32>
    %125 = tpu.reciprocal %124 {approx = true} : vector<32x1xf32> -> vector<32x1xf32>
    %126 = vector.broadcast %125 : vector<32x1xf32> to vector<32x32xf32>
    %127 = arith.mulf %122, %126 : vector<32x32xf32>
    %128 = arith.truncf %90 : vector<256x32xf32> to vector<256x32xbf16>
    %129 = arith.truncf %127 : vector<32x32xf32> to vector<32x32xbf16>
    %cst_33 = arith.constant dense<0.000000e+00> : vector<256x32xf32>
    %130 = tpu.matmul %128, %129, %cst_33 {dimension_numbers = #tpu.dot_dimension_numbers<[1], [1], [0], [0], [0, 0, 1, 0], [], []>} : vector<256x32xbf16>, vector<32x32xbf16>, vector<256x32xf32> -> vector<256x32xf32>
    %131 = arith.truncf %130 : vector<256x32xf32> to vector<256x32xbf16>
    %c0_34 = arith.constant 0 : index
    %c0_35 = arith.constant 0 : index
    %132 = vector.load %arg9[%c0_34, %c0_35] : memref<32x32xf32, #tpu.memory_space<vmem>>, vector<32x32xf32>
    %133 = arith.truncf %132 : vector<32x32xf32> to vector<32x32xbf16>
    %cst_36 = arith.constant dense<0.000000e+00> : vector<256x32xf32>
    %134 = tpu.matmul %131, %133, %cst_36 {dimension_numbers = #tpu.dot_dimension_numbers<[1], [0], [0], [1], [0, 0, 1, 1], [], []>} : vector<256x32xbf16>, vector<32x32xbf16>, vector<256x32xf32> -> vector<256x32xf32>
    %135 = arith.addf %2, %134 : vector<256x32xf32>
    %136 = vector.shape_cast %135 : vector<256x32xf32> to vector<16x16x32xf32>
    %c0_37 = arith.constant 0 : index
    %c0_38 = arith.constant 0 : index
    %c0_39 = arith.constant 0 : index
    %c0_40 = arith.constant 0 : index
    %137 = vector.load %arg10[%c0_37, %c0_38, %c0_39, %c0_40] : memref<1x16x16x32xf32, #tpu.memory_space<vmem>>, vector<1x16x16x32xf32>
    %138 = vector.shape_cast %137 : vector<1x16x16x32xf32> to vector<16x16x32xf32>
    %139 = vector.shape_cast %136 : vector<16x16x32xf32> to vector<1x16x16x32xf32>
    tpu.vector_store %arg10[%c0_37, %c0_38, %c0_39, %c0_40], %139 {strides = array<i32>} : memref<1x16x16x32xf32, #tpu.memory_space<vmem>>, vector<1x16x16x32xf32>,
    return
  }
  func.func @transform_0(%arg0: i32) -> (i32, i32, i32, i32) {
    %c0_i32 = arith.constant 0 : i32
    %c0_i32_0 = arith.constant 0 : i32
    %c0_i32_1 = arith.constant 0 : i32
    %c0_i32_2 = arith.constant 0 : i32
    return %arg0, %c0_i32, %c0_i32_0, %c0_i32_1 : i32, i32, i32, i32
  }
  func.func @transform_1(%arg0: i32) -> (i32, i32, i32, i32) {
    %c0_i32 = arith.constant 0 : i32
    %c0_i32_0 = arith.constant 0 : i32
    %c0_i32_1 = arith.constant 0 : i32
    %c0_i32_2 = arith.constant 0 : i32
    return %arg0, %c0_i32, %c0_i32_0, %c0_i32_1 : i32, i32, i32, i32
  }
  func.func @transform_2(%arg0: i32) -> (i32, i32) {
    %c0_i32 = arith.constant 0 : i32
    %c0_i32_0 = arith.constant 0 : i32
    %c0_i32_1 = arith.constant 0 : i32
    return %c0_i32, %c0_i32_0 : i32, i32
  }
  func.func @transform_3(%arg0: i32) -> (i32, i32) {
    %c0_i32 = arith.constant 0 : i32
    %c0_i32_0 = arith.constant 0 : i32
    %c0_i32_1 = arith.constant 0 : i32
    return %c0_i32, %c0_i32_0 : i32, i32
  }
  func.func @transform_4(%arg0: i32) -> (i32, i32) {
    %c0_i32 = arith.constant 0 : i32
    %c0_i32_0 = arith.constant 0 : i32
    %c0_i32_1 = arith.constant 0 : i32
    return %c0_i32, %c0_i32_0 : i32, i32
  }
  func.func @transform_5(%arg0: i32) -> (i32, i32) {
    %c0_i32 = arith.constant 0 : i32
    %c0_i32_0 = arith.constant 0 : i32
    %c0_i32_1 = arith.constant 0 : i32
    return %c0_i32, %c0_i32_0 : i32, i32
  }
  func.func @transform_6(%arg0: i32) -> (i32, i32) {
    %c0_i32 = arith.constant 0 : i32
    %c0_i32_0 = arith.constant 0 : i32
    %c0_i32_1 = arith.constant 0 : i32
    return %c0_i32, %c0_i32_0 : i32, i32
  }
  func.func @transform_7(%arg0: i32) -> (i32, i32) {
    %c0_i32 = arith.constant 0 : i32
    %c0_i32_0 = arith.constant 0 : i32
    %c0_i32_1 = arith.constant 0 : i32
    return %c0_i32, %c0_i32_0 : i32, i32
  }
  func.func @transform_8(%arg0: i32) -> (i32, i32) {
    %c0_i32 = arith.constant 0 : i32
    %c0_i32_0 = arith.constant 0 : i32
    %c0_i32_1 = arith.constant 0 : i32
    return %c0_i32, %c0_i32_0 : i32, i32
  }
  func.func @transform_9(%arg0: i32) -> (i32, i32, i32, i32) {
    %c0_i32 = arith.constant 0 : i32
    %c0_i32_0 = arith.constant 0 : i32
    %c0_i32_1 = arith.constant 0 : i32
    %c0_i32_2 = arith.constant 0 : i32
    return %arg0, %c0_i32, %c0_i32_0, %c0_i32_1 : i32, i32, i32, i32
  }
}

module attributes {stable_mosaic.version = 11 : i64} {
  func.func @_ffn_fuse_kernel(%arg0: i32, %arg1: memref<1x16x16x32xf32, #tpu.memory_space<vmem>>, %arg2: memref<1x16x16x32xf32, #tpu.memory_space<vmem>>, %arg3: memref<1x32xf32, #tpu.memory_space<vmem>>, %arg4: memref<1x32xf32, #tpu.memory_space<vmem>>, %arg5: memref<32x128xf32, #tpu.memory_space<vmem>>, %arg6: memref<9x128xf32, #tpu.memory_space<vmem>>, %arg7: memref<64x32xf32, #tpu.memory_space<vmem>>, %arg8: memref<64x32xf32, #tpu.memory_space<vmem>>, %arg9: memref<1x16x16x32xf32, #tpu.memory_space<vmem>>) attributes {dimension_semantics = [#tpu.dimension_semantics<parallel>], iteration_bounds = array<i64: 2>, scalar_prefetch = 0 : i64, scratch_operands = 0 : i64, tpu.core_type = #tpu.core_type<tc>, window_params = [{transform_indices = @transform_0, window_bounds = array<i64: 1, 16, 16, 32>}, {transform_indices = @transform_1, window_bounds = array<i64: 1, 16, 16, 32>}, {pipeline_mode = #tpu.pipeline_mode<synchronous>, transform_indices = @transform_2, window_bounds = array<i64: 1, 32>}, {pipeline_mode = #tpu.pipeline_mode<synchronous>, transform_indices = @transform_3, window_bounds = array<i64: 1, 32>}, {pipeline_mode = #tpu.pipeline_mode<synchronous>, transform_indices = @transform_4, window_bounds = array<i64: 32, 128>}, {pipeline_mode = #tpu.pipeline_mode<synchronous>, transform_indices = @transform_5, window_bounds = array<i64: 9, 128>}, {pipeline_mode = #tpu.pipeline_mode<synchronous>, transform_indices = @transform_6, window_bounds = array<i64: 64, 32>}, {pipeline_mode = #tpu.pipeline_mode<synchronous>, transform_indices = @transform_7, window_bounds = array<i64: 64, 32>}, {transform_indices = @transform_8, window_bounds = array<i64: 1, 16, 16, 32>}]} {
    %c0 = arith.constant 0 : index
    %c0_0 = arith.constant 0 : index
    %c0_1 = arith.constant 0 : index
    %c0_2 = arith.constant 0 : index
    %0 = vector.load %arg1[%c0, %c0_0, %c0_1, %c0_2] : memref<1x16x16x32xf32, #tpu.memory_space<vmem>>, vector<1x16x16x32xf32>
    %1 = vector.shape_cast %0 : vector<1x16x16x32xf32> to vector<16x16x32xf32>
    %2 = vector.shape_cast %1 : vector<16x16x32xf32> to vector<256x32xf32>
    %c0_3 = arith.constant 0 : index
    %c0_4 = arith.constant 0 : index
    %3 = vector.load %arg3[%c0_3, %c0_4] : memref<1x32xf32, #tpu.memory_space<vmem>>, vector<1x32xf32>
    %c0_5 = arith.constant 0 : index
    %c0_6 = arith.constant 0 : index
    %4 = vector.load %arg4[%c0_5, %c0_6] : memref<1x32xf32, #tpu.memory_space<vmem>>, vector<1x32xf32>
    %cst = arith.constant dense<0.000000e+00> : vector<256xf32>
    %5 = vector.multi_reduction <add>, %2, %cst [1] : vector<256x32xf32> to vector<256xf32>
    %6 = vector.shape_cast %5 : vector<256xf32> to vector<256x1xf32>
    %cst_7 = arith.constant 3.200000e+01 : f32
    %7 = vector.broadcast %cst_7 : f32 to vector<256x1xf32>
    %8 = arith.divf %6, %7 : vector<256x1xf32>
    %9 = vector.broadcast %8 : vector<256x1xf32> to vector<256x32xf32>
    %10 = arith.subf %2, %9 : vector<256x32xf32>
    %11 = arith.mulf %10, %10 : vector<256x32xf32>
    %cst_8 = arith.constant dense<0.000000e+00> : vector<256xf32>
    %12 = vector.multi_reduction <add>, %11, %cst_8 [1] : vector<256x32xf32> to vector<256xf32>
    %13 = vector.shape_cast %12 : vector<256xf32> to vector<256x1xf32>
    %cst_9 = arith.constant 3.200000e+01 : f32
    %14 = vector.broadcast %cst_9 : f32 to vector<256x1xf32>
    %15 = arith.divf %13, %14 : vector<256x1xf32>
    %cst_10 = arith.constant 9.99999974E-6 : f32
    %16 = vector.broadcast %cst_10 : f32 to vector<256x1xf32>
    %17 = arith.addf %15, %16 : vector<256x1xf32>
    %18 = math.rsqrt %17 : vector<256x1xf32>
    %19 = vector.broadcast %18 : vector<256x1xf32> to vector<256x32xf32>
    %20 = arith.mulf %10, %19 : vector<256x32xf32>
    %21 = vector.broadcast %3 : vector<1x32xf32> to vector<256x32xf32>
    %22 = arith.mulf %20, %21 : vector<256x32xf32>
    %23 = vector.broadcast %4 : vector<1x32xf32> to vector<256x32xf32>
    %24 = arith.addf %22, %23 : vector<256x32xf32>
    %25 = arith.truncf %24 : vector<256x32xf32> to vector<256x32xbf16>
    %c0_11 = arith.constant 0 : index
    %c0_12 = arith.constant 0 : index
    %26 = vector.load %arg5[%c0_11, %c0_12] : memref<32x128xf32, #tpu.memory_space<vmem>>, vector<32x128xf32>
    %27 = arith.truncf %26 : vector<32x128xf32> to vector<32x128xbf16>
    %cst_13 = arith.constant dense<0.000000e+00> : vector<256x128xf32>
    %28 = tpu.matmul %25, %27, %cst_13 {dimension_numbers = #tpu.dot_dimension_numbers<[1], [0], [0], [1], [0, 0, 1, 1], [], []>} : vector<256x32xbf16>, vector<32x128xbf16>, vector<256x128xf32> -> vector<256x128xf32>
    %29 = vector.shape_cast %28 : vector<256x128xf32> to vector<16x16x128xf32>
    %c0_14 = arith.constant 0 : index
    %c0_15 = arith.constant 0 : index
    %30 = vector.load %arg6[%c0_14, %c0_15] : memref<9x128xf32, #tpu.memory_space<vmem>>, vector<9x128xf32>
    %cst_16 = arith.constant 0.000000e+00 : f32
    %31 = vector.broadcast %cst_16 : f32 to vector<1x16x128xf32>
    %32 = tpu.concatenate %31, %29, %31 in 0 : vector<1x16x128xf32>, vector<16x16x128xf32>, vector<1x16x128xf32> -> vector<18x16x128xf32>
    %cst_17 = arith.constant 0.000000e+00 : f32
    %33 = vector.broadcast %cst_17 : f32 to vector<18x1x128xf32>
    %34 = tpu.concatenate %33, %32, %33 in 1 : vector<18x1x128xf32>, vector<18x16x128xf32>, vector<18x1x128xf32> -> vector<18x18x128xf32>
    %35 = vector.extract_strided_slice %34 {offsets = [0, 0, 0], sizes = [16, 16, 128], strides = [1, 1, 1]} : vector<18x18x128xf32> to vector<16x16x128xf32>
    %36 = vector.extract_strided_slice %30 {offsets = [0, 0], sizes = [1, 128], strides = [1, 1]} : vector<9x128xf32> to vector<1x128xf32>
    %37 = vector.shape_cast %36 : vector<1x128xf32> to vector<1x1x128xf32>
    %38 = vector.broadcast %37 : vector<1x1x128xf32> to vector<16x16x128xf32>
    %39 = arith.mulf %35, %38 : vector<16x16x128xf32>
    %40 = vector.extract_strided_slice %34 {offsets = [0, 1, 0], sizes = [16, 16, 128], strides = [1, 1, 1]} : vector<18x18x128xf32> to vector<16x16x128xf32>
    %41 = vector.extract_strided_slice %30 {offsets = [1, 0], sizes = [1, 128], strides = [1, 1]} : vector<9x128xf32> to vector<1x128xf32>
    %42 = vector.shape_cast %41 : vector<1x128xf32> to vector<1x1x128xf32>
    %43 = vector.broadcast %42 : vector<1x1x128xf32> to vector<16x16x128xf32>
    %44 = arith.mulf %40, %43 : vector<16x16x128xf32>
    %45 = arith.addf %39, %44 : vector<16x16x128xf32>
    %46 = vector.extract_strided_slice %34 {offsets = [0, 2, 0], sizes = [16, 16, 128], strides = [1, 1, 1]} : vector<18x18x128xf32> to vector<16x16x128xf32>
    %47 = vector.extract_strided_slice %30 {offsets = [2, 0], sizes = [1, 128], strides = [1, 1]} : vector<9x128xf32> to vector<1x128xf32>
    %48 = vector.shape_cast %47 : vector<1x128xf32> to vector<1x1x128xf32>
    %49 = vector.broadcast %48 : vector<1x1x128xf32> to vector<16x16x128xf32>
    %50 = arith.mulf %46, %49 : vector<16x16x128xf32>
    %51 = arith.addf %45, %50 : vector<16x16x128xf32>
    %52 = vector.extract_strided_slice %34 {offsets = [1, 0, 0], sizes = [16, 16, 128], strides = [1, 1, 1]} : vector<18x18x128xf32> to vector<16x16x128xf32>
    %53 = vector.extract_strided_slice %30 {offsets = [3, 0], sizes = [1, 128], strides = [1, 1]} : vector<9x128xf32> to vector<1x128xf32>
    %54 = vector.shape_cast %53 : vector<1x128xf32> to vector<1x1x128xf32>
    %55 = vector.broadcast %54 : vector<1x1x128xf32> to vector<16x16x128xf32>
    %56 = arith.mulf %52, %55 : vector<16x16x128xf32>
    %57 = arith.addf %51, %56 : vector<16x16x128xf32>
    %58 = vector.extract_strided_slice %34 {offsets = [1, 1, 0], sizes = [16, 16, 128], strides = [1, 1, 1]} : vector<18x18x128xf32> to vector<16x16x128xf32>
    %59 = vector.extract_strided_slice %30 {offsets = [4, 0], sizes = [1, 128], strides = [1, 1]} : vector<9x128xf32> to vector<1x128xf32>
    %60 = vector.shape_cast %59 : vector<1x128xf32> to vector<1x1x128xf32>
    %61 = vector.broadcast %60 : vector<1x1x128xf32> to vector<16x16x128xf32>
    %62 = arith.mulf %58, %61 : vector<16x16x128xf32>
    %63 = arith.addf %57, %62 : vector<16x16x128xf32>
    %64 = vector.extract_strided_slice %34 {offsets = [1, 2, 0], sizes = [16, 16, 128], strides = [1, 1, 1]} : vector<18x18x128xf32> to vector<16x16x128xf32>
    %65 = vector.extract_strided_slice %30 {offsets = [5, 0], sizes = [1, 128], strides = [1, 1]} : vector<9x128xf32> to vector<1x128xf32>
    %66 = vector.shape_cast %65 : vector<1x128xf32> to vector<1x1x128xf32>
    %67 = vector.broadcast %66 : vector<1x1x128xf32> to vector<16x16x128xf32>
    %68 = arith.mulf %64, %67 : vector<16x16x128xf32>
    %69 = arith.addf %63, %68 : vector<16x16x128xf32>
    %70 = vector.extract_strided_slice %34 {offsets = [2, 0, 0], sizes = [16, 16, 128], strides = [1, 1, 1]} : vector<18x18x128xf32> to vector<16x16x128xf32>
    %71 = vector.extract_strided_slice %30 {offsets = [6, 0], sizes = [1, 128], strides = [1, 1]} : vector<9x128xf32> to vector<1x128xf32>
    %72 = vector.shape_cast %71 : vector<1x128xf32> to vector<1x1x128xf32>
    %73 = vector.broadcast %72 : vector<1x1x128xf32> to vector<16x16x128xf32>
    %74 = arith.mulf %70, %73 : vector<16x16x128xf32>
    %75 = arith.addf %69, %74 : vector<16x16x128xf32>
    %76 = vector.extract_strided_slice %34 {offsets = [2, 1, 0], sizes = [16, 16, 128], strides = [1, 1, 1]} : vector<18x18x128xf32> to vector<16x16x128xf32>
    %77 = vector.extract_strided_slice %30 {offsets = [7, 0], sizes = [1, 128], strides = [1, 1]} : vector<9x128xf32> to vector<1x128xf32>
    %78 = vector.shape_cast %77 : vector<1x128xf32> to vector<1x1x128xf32>
    %79 = vector.broadcast %78 : vector<1x1x128xf32> to vector<16x16x128xf32>
    %80 = arith.mulf %76, %79 : vector<16x16x128xf32>
    %81 = arith.addf %75, %80 : vector<16x16x128xf32>
    %82 = vector.extract_strided_slice %34 {offsets = [2, 2, 0], sizes = [16, 16, 128], strides = [1, 1, 1]} : vector<18x18x128xf32> to vector<16x16x128xf32>
    %83 = vector.extract_strided_slice %30 {offsets = [8, 0], sizes = [1, 128], strides = [1, 1]} : vector<9x128xf32> to vector<1x128xf32>
    %84 = vector.shape_cast %83 : vector<1x128xf32> to vector<1x1x128xf32>
    %85 = vector.broadcast %84 : vector<1x1x128xf32> to vector<16x16x128xf32>
    %86 = arith.mulf %82, %85 : vector<16x16x128xf32>
    %87 = arith.addf %81, %86 : vector<16x16x128xf32>
    %88 = vector.shape_cast %87 : vector<16x16x128xf32> to vector<256x128xf32>
    %89 = vector.extract_strided_slice %88 {offsets = [0, 0], sizes = [256, 64], strides = [1, 1]} : vector<256x128xf32> to vector<256x64xf32>
    %cst_18 = arith.constant 5.000000e-01 : f32
    %90 = vector.broadcast %cst_18 : f32 to vector<256x64xf32>
    %91 = arith.mulf %90, %89 : vector<256x64xf32>
    %cst_19 = arith.constant 4.471500e-02 : f32
    %92 = vector.broadcast %cst_19 : f32 to vector<256x64xf32>
    %93 = arith.mulf %92, %89 : vector<256x64xf32>
    %94 = arith.mulf %93, %89 : vector<256x64xf32>
    %95 = arith.mulf %94, %89 : vector<256x64xf32>
    %96 = arith.addf %89, %95 : vector<256x64xf32>
    %cst_20 = arith.constant 0.797884583 : f32
    %97 = vector.broadcast %cst_20 : f32 to vector<256x64xf32>
    %98 = arith.mulf %97, %96 : vector<256x64xf32>
    %99 = math.tanh %98 : vector<256x64xf32>
    %cst_21 = arith.constant 1.000000e+00 : f32
    %100 = vector.broadcast %cst_21 : f32 to vector<256x64xf32>
    %101 = arith.addf %100, %99 : vector<256x64xf32>
    %102 = arith.mulf %91, %101 : vector<256x64xf32>
    %103 = vector.extract_strided_slice %88 {offsets = [0, 64], sizes = [256, 64], strides = [1, 1]} : vector<256x128xf32> to vector<256x64xf32>
    %104 = arith.mulf %102, %103 : vector<256x64xf32>
    %105 = arith.truncf %104 : vector<256x64xf32> to vector<256x64xbf16>
    %c0_22 = arith.constant 0 : index
    %c0_23 = arith.constant 0 : index
    %106 = vector.load %arg7[%c0_22, %c0_23] : memref<64x32xf32, #tpu.memory_space<vmem>>, vector<64x32xf32>
    %107 = arith.truncf %106 : vector<64x32xf32> to vector<64x32xbf16>
    %cst_24 = arith.constant dense<0.000000e+00> : vector<256x32xf32>
    %108 = tpu.matmul %105, %107, %cst_24 {dimension_numbers = #tpu.dot_dimension_numbers<[1], [0], [0], [1], [0, 0, 1, 1], [], []>} : vector<256x64xbf16>, vector<64x32xbf16>, vector<256x32xf32> -> vector<256x32xf32>
    %109 = arith.addf %2, %108 : vector<256x32xf32>
    %c0_25 = arith.constant 0 : index
    %c0_26 = arith.constant 0 : index
    %c0_27 = arith.constant 0 : index
    %c0_28 = arith.constant 0 : index
    %110 = vector.load %arg2[%c0_25, %c0_26, %c0_27, %c0_28] : memref<1x16x16x32xf32, #tpu.memory_space<vmem>>, vector<1x16x16x32xf32>
    %111 = vector.shape_cast %110 : vector<1x16x16x32xf32> to vector<16x16x32xf32>
    %112 = vector.shape_cast %111 : vector<16x16x32xf32> to vector<256x32xf32>
    %113 = tpu.concatenate %112, %109 in 1 : vector<256x32xf32>, vector<256x32xf32> -> vector<256x64xf32>
    %114 = arith.truncf %113 : vector<256x64xf32> to vector<256x64xbf16>
    %c0_29 = arith.constant 0 : index
    %c0_30 = arith.constant 0 : index
    %115 = vector.load %arg8[%c0_29, %c0_30] : memref<64x32xf32, #tpu.memory_space<vmem>>, vector<64x32xf32>
    %116 = arith.truncf %115 : vector<64x32xf32> to vector<64x32xbf16>
    %cst_31 = arith.constant dense<0.000000e+00> : vector<256x32xf32>
    %117 = tpu.matmul %114, %116, %cst_31 {dimension_numbers = #tpu.dot_dimension_numbers<[1], [0], [0], [1], [0, 0, 1, 1], [], []>} : vector<256x64xbf16>, vector<64x32xbf16>, vector<256x32xf32> -> vector<256x32xf32>
    %118 = vector.shape_cast %117 : vector<256x32xf32> to vector<16x16x32xf32>
    %c0_32 = arith.constant 0 : index
    %c0_33 = arith.constant 0 : index
    %c0_34 = arith.constant 0 : index
    %c0_35 = arith.constant 0 : index
    %119 = vector.load %arg9[%c0_32, %c0_33, %c0_34, %c0_35] : memref<1x16x16x32xf32, #tpu.memory_space<vmem>>, vector<1x16x16x32xf32>
    %120 = vector.shape_cast %119 : vector<1x16x16x32xf32> to vector<16x16x32xf32>
    %121 = vector.shape_cast %118 : vector<16x16x32xf32> to vector<1x16x16x32xf32>
    tpu.vector_store %arg9[%c0_32, %c0_33, %c0_34, %c0_35], %121 {strides = array<i32>} : memref<1x16x16x32xf32, #tpu.memory_space<vmem>>, vector<1x16x16x32xf32>,
    return
  }
  func.func @transform_0(%arg0: i32) -> (i32, i32, i32, i32) {
    %c0_i32 = arith.constant 0 : i32
    %c0_i32_0 = arith.constant 0 : i32
    %c0_i32_1 = arith.constant 0 : i32
    %c0_i32_2 = arith.constant 0 : i32
    return %arg0, %c0_i32, %c0_i32_0, %c0_i32_1 : i32, i32, i32, i32
  }
  func.func @transform_1(%arg0: i32) -> (i32, i32, i32, i32) {
    %c0_i32 = arith.constant 0 : i32
    %c0_i32_0 = arith.constant 0 : i32
    %c0_i32_1 = arith.constant 0 : i32
    %c0_i32_2 = arith.constant 0 : i32
    return %arg0, %c0_i32, %c0_i32_0, %c0_i32_1 : i32, i32, i32, i32
  }
  func.func @transform_2(%arg0: i32) -> (i32, i32) {
    %c0_i32 = arith.constant 0 : i32
    %c0_i32_0 = arith.constant 0 : i32
    %c0_i32_1 = arith.constant 0 : i32
    return %c0_i32, %c0_i32_0 : i32, i32
  }
  func.func @transform_3(%arg0: i32) -> (i32, i32) {
    %c0_i32 = arith.constant 0 : i32
    %c0_i32_0 = arith.constant 0 : i32
    %c0_i32_1 = arith.constant 0 : i32
    return %c0_i32, %c0_i32_0 : i32, i32
  }
  func.func @transform_4(%arg0: i32) -> (i32, i32) {
    %c0_i32 = arith.constant 0 : i32
    %c0_i32_0 = arith.constant 0 : i32
    %c0_i32_1 = arith.constant 0 : i32
    return %c0_i32, %c0_i32_0 : i32, i32
  }
  func.func @transform_5(%arg0: i32) -> (i32, i32) {
    %c0_i32 = arith.constant 0 : i32
    %c0_i32_0 = arith.constant 0 : i32
    %c0_i32_1 = arith.constant 0 : i32
    return %c0_i32, %c0_i32_0 : i32, i32
  }
  func.func @transform_6(%arg0: i32) -> (i32, i32) {
    %c0_i32 = arith.constant 0 : i32
    %c0_i32_0 = arith.constant 0 : i32
    %c0_i32_1 = arith.constant 0 : i32
    return %c0_i32, %c0_i32_0 : i32, i32
  }
  func.func @transform_7(%arg0: i32) -> (i32, i32) {
    %c0_i32 = arith.constant 0 : i32
    %c0_i32_0 = arith.constant 0 : i32
    %c0_i32_1 = arith.constant 0 : i32
    return %c0_i32, %c0_i32_0 : i32, i32
  }
  func.func @transform_8(%arg0: i32) -> (i32, i32, i32, i32) {
    %c0_i32 = arith.constant 0 : i32
    %c0_i32_0 = arith.constant 0 : i32
    %c0_i32_1 = arith.constant 0 : i32
    %c0_i32_2 = arith.constant 0 : i32
    return %arg0, %c0_i32, %c0_i32_0, %c0_i32_1 : i32, i32, i32, i32
  }
}

</mosaic_0001>

<llo_original>
// kernel: transformer_block_forward.5
$region0: #{transformer_block_forward.5}
  #allocation0 [shape = 'u32[]', space=smem, size = 0x4, offset = 0x4, fixed_abs, tag = 'smem constant byte address 0x4 - core index']
  #allocation1 [shape = 'u32[144,128]{1,0:T(1,128)}', space=vmem, size = 0x12000, scoped, tag = 'internal scratch']
  %s0 = inlined_call_operand.vmem [shape: f32[2,16,16,32], index: 0, kind: input, shape index: {}]
  %s1 = inlined_call_operand.vmem [shape: f32[1,32], index: 1, kind: input, shape index: {}]
  %s2 = inlined_call_operand.vmem [shape: f32[1,32], index: 2, kind: input, shape index: {}]
  %s3 = inlined_call_operand.vmem [shape: f32[2,16,16,32], index: 3, kind: output, shape index: {}]
  %s4 = sld [smem:[#allocation0]]
  $region45: #{transformer_block_forward.5} parent=0
    _
  %s6 = ssub.s32 1, %s4
  %s7 = scalar_select 0, %s6, %s4
  loop: start=0, step=1, limit=4
  $region2: #{transformer_block_forward.5} parent=0 // loop_pre_header
    _
  $region3: #{transformer_block_forward.5} parent=0 // loop_header
    %s9 = sphi 0, %s13
    %p10 = scmp.ge.s32.totalorder %s9, 4
    %s19 = sphi 0, %s21
    %s22 = sphi 0, %s19
    %s23 = sphi 0, %s22
    %s39 = sphi 0, %s23
    %s43 = sphi 0, %s43
    %s45 = sphi 0, %s43
    %s46 = sphi 0, %s45
    %s60 = sphi 0, %s46
    %s64 = sphi 0, %s64
    %s66 = sphi 0, %s64
    %s67 = sphi 0, %s66
    %s81 = sphi 0, %s67
    %s87 = sphi 0, %s89
    %s90 = sphi 0, %s87
    %s91 = sphi 0, %s90
    %s107 = sphi 0, %s91
  $region4: #{transformer_block_forward.5} parent=0 // loop_header_branch
    %12 = sbr.rel (%p10) target = $region8
  $region5: #{transformer_block_forward.5} parent=0 // loop_body
    %s14 = ssub.s32 %s9, 1
    %s15 = ssub.s32 %s9, 2
    %s16 = sadd.s32 %s9, 1
    %s17 = ssub.s32 %s9, %s16
    %p18 = scmp.eq.s32.totalorder %s17, 0
    %s20 = sadd.s32 %s19, 1
    %s21 = scalar_select %p18, %s19, %s20
    %p24 = pneg %p18
    %p25 = scmp.eq.s32.totalorder %s9, 1
    %p26 = por %p24, %p25
    %p27 = scmp.ne.s32.totalorder %s19, %s22
    %p28 = scmp.eq.s32.totalorder %s9, 0
    %p29 = por %p27, %p28
    %p30 = scmp.ne.s32.totalorder %s19, %s22
    %p31 = scmp.eq.s32.totalorder %s14, 1
    %p32 = por %p30, %p31
    %p33 = scmp.ne.s32.totalorder %s22, %s23
    %p34 = scmp.eq.s32.totalorder %s14, 0
    %p35 = por %p33, %p34
    %p36 = scmp.ne.s32.totalorder %s22, %s23
    %p37 = scmp.eq.s32.totalorder %s15, 1
    %p38 = por %p36, %p37
    %p40 = scmp.ne.s32.totalorder %s23, %s39
    %p41 = scmp.eq.s32.totalorder %s15, 0
    %p42 = por %p40, %p41
    %s44 = sadd.s32 %s43, 1
    %p47 = scmp.eq.s32.totalorder %s9, 1
    %p48 = scmp.ne.s32.totalorder %s43, %s45
    %p49 = scmp.eq.s32.totalorder %s9, 0
    %p50 = por %p48, %p49
    %p51 = scmp.ne.s32.totalorder %s43, %s45
    %p52 = scmp.eq.s32.totalorder %s14, 1
    %p53 = por %p51, %p52
    %p54 = scmp.ne.s32.totalorder %s45, %s46
    %p55 = scmp.eq.s32.totalorder %s14, 0
    %p56 = por %p54, %p55
    %p57 = scmp.ne.s32.totalorder %s45, %s46
    %p58 = scmp.eq.s32.totalorder %s15, 1
    %p59 = por %p57, %p58
    %p61 = scmp.ne.s32.totalorder %s46, %s60
    %p62 = scmp.eq.s32.totalorder %s15, 0
    %p63 = por %p61, %p62
    %s65 = sadd.s32 %s64, 1
    %p68 = scmp.eq.s32.totalorder %s9, 1
    %p69 = scmp.ne.s32.totalorder %s64, %s66
    %p70 = scmp.eq.s32.totalorder %s9, 0
    %p71 = por %p69, %p70
    %p72 = scmp.ne.s32.totalorder %s64, %s66
    %p73 = scmp.eq.s32.totalorder %s14, 1
    %p74 = por %p72, %p73
    %p75 = scmp.ne.s32.totalorder %s66, %s67
    %p76 = scmp.eq.s32.totalorder %s14, 0
    %p77 = por %p75, %p76
    %p78 = scmp.ne.s32.totalorder %s66, %s67
    %p79 = scmp.eq.s32.totalorder %s15, 1
    %p80 = por %p78, %p79
    %p82 = scmp.ne.s32.totalorder %s67, %s81
    %p83 = scmp.eq.s32.totalorder %s15, 0
    %p84 = por %p82, %p83
    %s85 = ssub.s32 %s9, %s16
    %p86 = scmp.eq.s32.totalorder %s85, 0
    %s88 = sadd.s32 %s87, 1
    %s89 = scalar_select %p86, %s87, %s88
    %p92 = pneg %p86
    %p93 = scmp.eq.s32.totalorder %s9, 1
    %p94 = por %p92, %p93
    %p95 = scmp.ne.s32.totalorder %s87, %s90
    %p96 = scmp.eq.s32.totalorder %s9, 0
    %p97 = por %p95, %p96
    %p98 = scmp.ne.s32.totalorder %s87, %s90
    %p99 = scmp.eq.s32.totalorder %s14, 1
    %p100 = por %p98, %p99
    %p101 = scmp.ne.s32.totalorder %s90, %s91
    %p102 = scmp.eq.s32.totalorder %s14, 0
    %p103 = por %p101, %p102
    %p104 = scmp.ne.s32.totalorder %s90, %s91
    %p105 = scmp.eq.s32.totalorder %s15, 1
    %p106 = por %p104, %p105
    %p108 = scmp.ne.s32.totalorder %s91, %s107
    %p109 = scmp.eq.s32.totalorder %s15, 0
    %p110 = por %p108, %p109
    %p111 = scmp.le.s32.totalorder 1, %s9
    %p112 = scmp.lt.s32.totalorder %s9, 3
    %p113 = pnand %p111, %p112
    %p114 = pneg %p113
    // Predicated region
    $region9: #{transformer_block_forward.5} parent=5 // pred_check
      _
    $region10: #{transformer_block_forward.5} parent=5 // pred_check_branch
      %116 = sbr.rel (%p113) target = $region12
    $region11: #{transformer_block_forward.5} parent=5 // pred_region
      %s117 = ssub.s32 %s9, 1
      // Predicated region
      $region13: #{transformer_block_forward.5} parent=11 // pred_check
        %p118 = pneg %p56
      $region14: #{transformer_block_forward.5} parent=11 // pred_check_branch
        %120 = sbr.rel (%p118) target = $region16
      $region15: #{transformer_block_forward.5} parent=11 // pred_region
        _
      $region16: #{transformer_block_forward.5} parent=11 // pred_fallthru
        _
      // Predicated region
      $region17: #{transformer_block_forward.5} parent=11 // pred_check
        %p121 = pneg %p77
      $region18: #{transformer_block_forward.5} parent=11 // pred_check_branch
        %123 = sbr.rel (%p121) target = $region20
      $region19: #{transformer_block_forward.5} parent=11 // pred_region
        _
      $region20: #{transformer_block_forward.5} parent=11 // pred_fallthru
        _
    $region12: #{transformer_block_forward.5} parent=5 // pred_fallthru
      _
    %p124 = scmp.lt.s32.totalorder %s9, 2
    // Predicated region
    $region21: #{transformer_block_forward.5} parent=5 // pred_check
      %p125 = pneg %p124
    $region22: #{transformer_block_forward.5} parent=5 // pred_check_branch
      %127 = sbr.rel (%p125) target = $region24
    $region23: #{transformer_block_forward.5} parent=5 // pred_region
      // Predicated region
      $region25: #{transformer_block_forward.5} parent=23 // pred_check
        %p128 = pneg %p29
      $region26: #{transformer_block_forward.5} parent=23 // pred_check_branch
        %130 = sbr.rel (%p128) target = $region28
      $region27: #{transformer_block_forward.5} parent=23 // pred_region
        %p131 = scmp.lt.s32.totalorder %s9, 1
        %s132 = scalar_select %p131, %s9, 1
        %s133 = smul.addr %s132, 32
        %s134 = smul.addr %s133, 8
        %s135 = scalar_lea.vmem %s0, %s134
      $region28: #{transformer_block_forward.5} parent=23 // pred_fallthru
        _
    $region24: #{transformer_block_forward.5} parent=5 // pred_fallthru
      _
    %p136 = scmp.le.s32.totalorder 1, %s9
    %p137 = scmp.lt.s32.totalorder %s9, 3
    %p138 = pnand %p136, %p137
    %p139 = pneg %p138
    // Predicated region
    $region29: #{transformer_block_forward.5} parent=5 // pred_check
      _
    $region30: #{transformer_block_forward.5} parent=5 // pred_check_branch
      %141 = sbr.rel (%p138) target = $region32
    $region31: #{transformer_block_forward.5} parent=5 // pred_region
      %s142 = ssub.s32 %s9, 1
      %p143 = scmp.lt.s32.totalorder %s14, 1
      %s144 = scalar_select %p143, %s14, 1
      %s145 = smul.addr %s144, 32
      %s146 = smul.addr %s145, 8
      %s147 = scalar_lea.vmem %s0, %s146
      %p148 = pneg %p35
      %p149 = pneg %p32
      %p150 = pneg %p56
      %p151 = pneg %p53
      %p152 = pneg %p77
      %p153 = pneg %p74
      %p154 = pneg %p103
      %p155 = pneg %p100
      %p156 = scmp.lt.s32.totalorder %s14, 1
      %s157 = scalar_select %p156, %s14, 1
      %s158 = smul.addr %s157, 32
      %s159 = smul.addr %s158, 8
      %s160 = scalar_lea.vmem %s3, %s159
      %p161 = scmp.lt.s32.totalorder %s14, 1
      %s162 = scalar_select %p161, %s14, 1
      %s163 = smul.addr %s162, 32
      %s164 = smul.addr %s163, 8
      %s165 = scalar_lea.vmem %s0, %s164
      %p166 = scmp.lt.s32.totalorder %s14, 1
      %s167 = scalar_select %p166, %s14, 1
      %s168 = smul.addr %s167, 32
      %s169 = smul.addr %s168, 8
      %s170 = scalar_lea.vmem %s3, %s169
      %v171 = vld [vmem:[%s165] sm:$0xff]
      %v172 = vld [vmem:[%s165 + $0x8] sm:$0xff]
      %v173 = vld [vmem:[%s165 + $0x10] sm:$0xff]
      %v174 = vld [vmem:[%s165 + $0x18] sm:$0xff]
      %v175 = vld [vmem:[%s165 + $0x20] sm:$0xff]
      %v176 = vld [vmem:[%s165 + $0x28] sm:$0xff]
      %v177 = vld [vmem:[%s165 + $0x30] sm:$0xff]
      %v178 = vld [vmem:[%s165 + $0x38] sm:$0xff]
      %v179 = vld [vmem:[%s165 + $0x40] sm:$0xff]
      %v180 = vld [vmem:[%s165 + $0x48] sm:$0xff]
      %v181 = vld [vmem:[%s165 + $0x50] sm:$0xff]
      %v182 = vld [vmem:[%s165 + $0x58] sm:$0xff]
      %v183 = vld [vmem:[%s165 + $0x60] sm:$0xff]
      %v184 = vld [vmem:[%s165 + $0x68] sm:$0xff]
      %v185 = vld [vmem:[%s165 + $0x70] sm:$0xff]
      %v186 = vld [vmem:[%s165 + $0x78] sm:$0xff]
      %v187 = vld [vmem:[%s165 + $0x80] sm:$0xff]
      %v188 = vld [vmem:[%s165 + $0x88] sm:$0xff]
      %v189 = vld [vmem:[%s165 + $0x90] sm:$0xff]
      %v190 = vld [vmem:[%s165 + $0x98] sm:$0xff]
      %v191 = vld [vmem:[%s165 + $0xa0] sm:$0xff]
      %v192 = vld [vmem:[%s165 + $0xa8] sm:$0xff]
      %v193 = vld [vmem:[%s165 + $0xb0] sm:$0xff]
      %v194 = vld [vmem:[%s165 + $0xb8] sm:$0xff]
      %v195 = vld [vmem:[%s165 + $0xc0] sm:$0xff]
      %v196 = vld [vmem:[%s165 + $0xc8] sm:$0xff]
      %v197 = vld [vmem:[%s165 + $0xd0] sm:$0xff]
      %v198 = vld [vmem:[%s165 + $0xd8] sm:$0xff]
      %v199 = vld [vmem:[%s165 + $0xe0] sm:$0xff]
      %v200 = vld [vmem:[%s165 + $0xe8] sm:$0xff]
      %v201 = vld [vmem:[%s165 + $0xf0] sm:$0xff]
      %v202 = vld [vmem:[%s165 + $0xf8] sm:$0xff]
      %v203 = vld [vmem:[%s1] sm:$0x1]
      %v204 = vld [vmem:[%s2] sm:$0x1]
      %vm205 = vcmask 261120
      %v206 = vsel %vm205, %v171, 0.0
      %207 = vadd.xlane.f32.xlu0 %v206
      %v208 = vpop.xlane.xlu0 %207
      %v209 = vsel %vm205, %v172, 0.0
      %210 = vadd.xlane.f32.xlu0 %v209
      %v211 = vpop.xlane.xlu0 %210
      %v212 = vsel %vm205, %v173, 0.0
      %213 = vadd.xlane.f32.xlu0 %v212
      %v214 = vpop.xlane.xlu0 %213
      %v215 = vsel %vm205, %v174, 0.0
      %216 = vadd.xlane.f32.xlu0 %v215
      %v217 = vpop.xlane.xlu0 %216
      %v218 = vsel %vm205, %v175, 0.0
      %219 = vadd.xlane.f32.xlu0 %v218
      %v220 = vpop.xlane.xlu0 %219
      %v221 = vsel %vm205, %v176, 0.0
      %222 = vadd.xlane.f32.xlu0 %v221
      %v223 = vpop.xlane.xlu0 %222
      %v224 = vsel %vm205, %v177, 0.0
      %225 = vadd.xlane.f32.xlu0 %v224
      %v226 = vpop.xlane.xlu0 %225
      %v227 = vsel %vm205, %v178, 0.0
      %228 = vadd.xlane.f32.xlu0 %v227
      %v229 = vpop.xlane.xlu0 %228
      %v230 = vsel %vm205, %v179, 0.0
      %231 = vadd.xlane.f32.xlu0 %v230
      %v232 = vpop.xlane.xlu0 %231
      %v233 = vsel %vm205, %v180, 0.0
      %234 = vadd.xlane.f32.xlu0 %v233
      %v235 = vpop.xlane.xlu0 %234
      %v236 = vsel %vm205, %v181, 0.0
      %237 = vadd.xlane.f32.xlu0 %v236
      %v238 = vpop.xlane.xlu0 %237
      %v239 = vsel %vm205, %v182, 0.0
      %240 = vadd.xlane.f32.xlu0 %v239
      %v241 = vpop.xlane.xlu0 %240
      %v242 = vsel %vm205, %v183, 0.0
      %243 = vadd.xlane.f32.xlu0 %v242
      %v244 = vpop.xlane.xlu0 %243
      %v245 = vsel %vm205, %v184, 0.0
      %246 = vadd.xlane.f32.xlu0 %v245
      %v247 = vpop.xlane.xlu0 %246
      %v248 = vsel %vm205, %v185, 0.0
      %249 = vadd.xlane.f32.xlu0 %v248
      %v250 = vpop.xlane.xlu0 %249
      %v251 = vsel %vm205, %v186, 0.0
      %252 = vadd.xlane.f32.xlu0 %v251
      %v253 = vpop.xlane.xlu0 %252
      %v254 = vsel %vm205, %v187, 0.0
      %255 = vadd.xlane.f32.xlu0 %v254
      %v256 = vpop.xlane.xlu0 %255
      %v257 = vsel %vm205, %v188, 0.0
      %258 = vadd.xlane.f32.xlu0 %v257
      %v259 = vpop.xlane.xlu0 %258
      %v260 = vsel %vm205, %v189, 0.0
      %261 = vadd.xlane.f32.xlu0 %v260
      %v262 = vpop.xlane.xlu0 %261
      %v263 = vsel %vm205, %v190, 0.0
      %264 = vadd.xlane.f32.xlu0 %v263
      %v265 = vpop.xlane.xlu0 %264
      %v266 = vsel %vm205, %v191, 0.0
      %267 = vadd.xlane.f32.xlu0 %v266
      %v268 = vpop.xlane.xlu0 %267
      %v269 = vsel %vm205, %v192, 0.0
      %270 = vadd.xlane.f32.xlu0 %v269
      %v271 = vpop.xlane.xlu0 %270
      %v272 = vsel %vm205, %v193, 0.0
      %273 = vadd.xlane.f32.xlu0 %v272
      %v274 = vpop.xlane.xlu0 %273
      %v275 = vsel %vm205, %v194, 0.0
      %276 = vadd.xlane.f32.xlu0 %v275
      %v277 = vpop.xlane.xlu0 %276
      %v278 = vsel %vm205, %v195, 0.0
      %279 = vadd.xlane.f32.xlu0 %v278
      %v280 = vpop.xlane.xlu0 %279
      %v281 = vsel %vm205, %v196, 0.0
      %282 = vadd.xlane.f32.xlu0 %v281
      %v283 = vpop.xlane.xlu0 %282
      %v284 = vsel %vm205, %v197, 0.0
      %285 = vadd.xlane.f32.xlu0 %v284
      %v286 = vpop.xlane.xlu0 %285
      %v287 = vsel %vm205, %v198, 0.0
      %288 = vadd.xlane.f32.xlu0 %v287
      %v289 = vpop.xlane.xlu0 %288
      %v290 = vsel %vm205, %v199, 0.0
      %291 = vadd.xlane.f32.xlu0 %v290
      %v292 = vpop.xlane.xlu0 %291
      %v293 = vsel %vm205, %v200, 0.0
      %294 = vadd.xlane.f32.xlu0 %v293
      %v295 = vpop.xlane.xlu0 %294
      %v296 = vsel %vm205, %v201, 0.0
      %297 = vadd.xlane.f32.xlu0 %v296
      %v298 = vpop.xlane.xlu0 %297
      %v299 = vsel %vm205, %v202, 0.0
      %300 = vadd.xlane.f32.xlu0 %v299
      %v301 = vpop.xlane.xlu0 %300
      %v302 = vrcp.pop 32.0
      %v303 = vmul.f32 %v208, %v302
      %v304 = vmul.f32 %v211, %v302
      %v305 = vmul.f32 %v214, %v302
      %v306 = vmul.f32 %v217, %v302
      %v307 = vmul.f32 %v220, %v302
      %v308 = vmul.f32 %v223, %v302
      %v309 = vmul.f32 %v226, %v302
      %v310 = vmul.f32 %v229, %v302
      %v311 = vmul.f32 %v232, %v302
      %v312 = vmul.f32 %v235, %v302
      %v313 = vmul.f32 %v238, %v302
      %v314 = vmul.f32 %v241, %v302
      %v315 = vmul.f32 %v244, %v302
      %v316 = vmul.f32 %v247, %v302
      %v317 = vmul.f32 %v250, %v302
      %v318 = vmul.f32 %v253, %v302
      %v319 = vmul.f32 %v256, %v302
      %v320 = vmul.f32 %v259, %v302
      %v321 = vmul.f32 %v262, %v302
      %v322 = vmul.f32 %v265, %v302
      %v323 = vmul.f32 %v268, %v302
      %v324 = vmul.f32 %v271, %v302
      %v325 = vmul.f32 %v274, %v302
      %v326 = vmul.f32 %v277, %v302
      %v327 = vmul.f32 %v280, %v302
      %v328 = vmul.f32 %v283, %v302
      %v329 = vmul.f32 %v286, %v302
      %v330 = vmul.f32 %v289, %v302
      %v331 = vmul.f32 %v292, %v302
      %v332 = vmul.f32 %v295, %v302
      %v333 = vmul.f32 %v298, %v302
      %v334 = vmul.f32 %v301, %v302
      %v335 = vsub.f32 %v171, %v303
      %v336 = vsub.f32 %v172, %v304
      %v337 = vsub.f32 %v173, %v305
      %v338 = vsub.f32 %v174, %v306
      %v339 = vsub.f32 %v175, %v307
      %v340 = vsub.f32 %v176, %v308
      %v341 = vsub.f32 %v177, %v309
      %v342 = vsub.f32 %v178, %v310
      %v343 = vsub.f32 %v179, %v311
      %v344 = vsub.f32 %v180, %v312
      %v345 = vsub.f32 %v181, %v313
      %v346 = vsub.f32 %v182, %v314
      %v347 = vsub.f32 %v183, %v315
      %v348 = vsub.f32 %v184, %v316
      %v349 = vsub.f32 %v185, %v317
      %v350 = vsub.f32 %v186, %v318
      %v351 = vsub.f32 %v187, %v319
      %v352 = vsub.f32 %v188, %v320
      %v353 = vsub.f32 %v189, %v321
      %v354 = vsub.f32 %v190, %v322
      %v355 = vsub.f32 %v191, %v323
      %v356 = vsub.f32 %v192, %v324
      %v357 = vsub.f32 %v193, %v325
      %v358 = vsub.f32 %v194, %v326
      %v359 = vsub.f32 %v195, %v327
      %v360 = vsub.f32 %v196, %v328
      %v361 = vsub.f32 %v197, %v329
      %v362 = vsub.f32 %v198, %v330
      %v363 = vsub.f32 %v199, %v331
      %v364 = vsub.f32 %v200, %v332
      %v365 = vsub.f32 %v201, %v333
      %v366 = vsub.f32 %v202, %v334
      %v367 = vmul.f32 %v335, %v335
      %v368 = vmul.f32 %v336, %v336
      %v369 = vmul.f32 %v337, %v337
      %v370 = vmul.f32 %v338, %v338
      %v371 = vmul.f32 %v339, %v339
      %v372 = vmul.f32 %v340, %v340
      %v373 = vmul.f32 %v341, %v341
      %v374 = vmul.f32 %v342, %v342
      %v375 = vmul.f32 %v343, %v343
      %v376 = vmul.f32 %v344, %v344
      %v377 = vmul.f32 %v345, %v345
      %v378 = vmul.f32 %v346, %v346
      %v379 = vmul.f32 %v347, %v347
      %v380 = vmul.f32 %v348, %v348
      %v381 = vmul.f32 %v349, %v349
      %v382 = vmul.f32 %v350, %v350
      %v383 = vmul.f32 %v351, %v351
      %v384 = vmul.f32 %v352, %v352
      %v385 = vmul.f32 %v353, %v353
      %v386 = vmul.f32 %v354, %v354
      %v387 = vmul.f32 %v355, %v355
      %v388 = vmul.f32 %v356, %v356
      %v389 = vmul.f32 %v357, %v357
      %v390 = vmul.f32 %v358, %v358
      %v391 = vmul.f32 %v359, %v359
      %v392 = vmul.f32 %v360, %v360
      %v393 = vmul.f32 %v361, %v361
      %v394 = vmul.f32 %v362, %v362
      %v395 = vmul.f32 %v363, %v363
      %v396 = vmul.f32 %v364, %v364
      %v397 = vmul.f32 %v365, %v365
      %v398 = vmul.f32 %v366, %v366
      %v399 = vsel %vm205, %v367, 0.0
      %400 = vadd.xlane.f32.xlu0 %v399
      %v401 = vpop.xlane.xlu0 %400
      %v402 = vsel %vm205, %v368, 0.0
      %403 = vadd.xlane.f32.xlu0 %v402
      %v404 = vpop.xlane.xlu0 %403
      %v405 = vsel %vm205, %v369, 0.0
      %406 = vadd.xlane.f32.xlu0 %v405
      %v407 = vpop.xlane.xlu0 %406
      %v408 = vsel %vm205, %v370, 0.0
      %409 = vadd.xlane.f32.xlu0 %v408
      %v410 = vpop.xlane.xlu0 %409
      %v411 = vsel %vm205, %v371, 0.0
      %412 = vadd.xlane.f32.xlu0 %v411
      %v413 = vpop.xlane.xlu0 %412
      %v414 = vsel %vm205, %v372, 0.0
      %415 = vadd.xlane.f32.xlu0 %v414
      %v416 = vpop.xlane.xlu0 %415
      %v417 = vsel %vm205, %v373, 0.0
      %418 = vadd.xlane.f32.xlu0 %v417
      %v419 = vpop.xlane.xlu0 %418
      %v420 = vsel %vm205, %v374, 0.0
      %421 = vadd.xlane.f32.xlu0 %v420
      %v422 = vpop.xlane.xlu0 %421
      %v423 = vsel %vm205, %v375, 0.0
      %424 = vadd.xlane.f32.xlu0 %v423
      %v425 = vpop.xlane.xlu0 %424
      %v426 = vsel %vm205, %v376, 0.0
      %427 = vadd.xlane.f32.xlu0 %v426
      %v428 = vpop.xlane.xlu0 %427
      %v429 = vsel %vm205, %v377, 0.0
      %430 = vadd.xlane.f32.xlu0 %v429
      %v431 = vpop.xlane.xlu0 %430
      %v432 = vsel %vm205, %v378, 0.0
      %433 = vadd.xlane.f32.xlu0 %v432
      %v434 = vpop.xlane.xlu0 %433
      %v435 = vsel %vm205, %v379, 0.0
      %436 = vadd.xlane.f32.xlu0 %v435
      %v437 = vpop.xlane.xlu0 %436
      %v438 = vsel %vm205, %v380, 0.0
      %439 = vadd.xlane.f32.xlu0 %v438
      %v440 = vpop.xlane.xlu0 %439
      %v441 = vsel %vm205, %v381, 0.0
      %442 = vadd.xlane.f32.xlu0 %v441
      %v443 = vpop.xlane.xlu0 %442
      %v444 = vsel %vm205, %v382, 0.0
      %445 = vadd.xlane.f32.xlu0 %v444
      %v446 = vpop.xlane.xlu0 %445
      %v447 = vsel %vm205, %v383, 0.0
      %448 = vadd.xlane.f32.xlu0 %v447
      %v449 = vpop.xlane.xlu0 %448
      %v450 = vsel %vm205, %v384, 0.0
      %451 = vadd.xlane.f32.xlu0 %v450
      %v452 = vpop.xlane.xlu0 %451
      %v453 = vsel %vm205, %v385, 0.0
      %454 = vadd.xlane.f32.xlu0 %v453
      %v455 = vpop.xlane.xlu0 %454
      %v456 = vsel %vm205, %v386, 0.0
      %457 = vadd.xlane.f32.xlu0 %v456
      %v458 = vpop.xlane.xlu0 %457
      %v459 = vsel %vm205, %v387, 0.0
      %460 = vadd.xlane.f32.xlu0 %v459
      %v461 = vpop.xlane.xlu0 %460
      %v462 = vsel %vm205, %v388, 0.0
      %463 = vadd.xlane.f32.xlu0 %v462
      %v464 = vpop.xlane.xlu0 %463
      %v465 = vsel %vm205, %v389, 0.0
      %466 = vadd.xlane.f32.xlu0 %v465
      %v467 = vpop.xlane.xlu0 %466
      %v468 = vsel %vm205, %v390, 0.0
      %469 = vadd.xlane.f32.xlu0 %v468
      %v470 = vpop.xlane.xlu0 %469
      %v471 = vsel %vm205, %v391, 0.0
      %472 = vadd.xlane.f32.xlu0 %v471
      %v473 = vpop.xlane.xlu0 %472
      %v474 = vsel %vm205, %v392, 0.0
      %475 = vadd.xlane.f32.xlu0 %v474
      %v476 = vpop.xlane.xlu0 %475
      %v477 = vsel %vm205, %v393, 0.0
      %478 = vadd.xlane.f32.xlu0 %v477
      %v479 = vpop.xlane.xlu0 %478
      %v480 = vsel %vm205, %v394, 0.0
      %481 = vadd.xlane.f32.xlu0 %v480
      %v482 = vpop.xlane.xlu0 %481
      %v483 = vsel %vm205, %v395, 0.0
      %484 = vadd.xlane.f32.xlu0 %v483
      %v485 = vpop.xlane.xlu0 %484
      %v486 = vsel %vm205, %v396, 0.0
      %487 = vadd.xlane.f32.xlu0 %v486
      %v488 = vpop.xlane.xlu0 %487
      %v489 = vsel %vm205, %v397, 0.0
      %490 = vadd.xlane.f32.xlu0 %v489
      %v491 = vpop.xlane.xlu0 %490
      %v492 = vsel %vm205, %v398, 0.0
      %493 = vadd.xlane.f32.xlu0 %v492
      %v494 = vpop.xlane.xlu0 %493
      %v495 = vmul.f32 %v401, %v302
      %v496 = vmul.f32 %v404, %v302
      %v497 = vmul.f32 %v407, %v302
      %v498 = vmul.f32 %v410, %v302
      %v499 = vmul.f32 %v413, %v302
      %v500 = vmul.f32 %v416, %v302
      %v501 = vmul.f32 %v419, %v302
      %v502 = vmul.f32 %v422, %v302
      %v503 = vmul.f32 %v425, %v302
      %v504 = vmul.f32 %v428, %v302
      %v505 = vmul.f32 %v431, %v302
      %v506 = vmul.f32 %v434, %v302
      %v507 = vmul.f32 %v437, %v302
      %v508 = vmul.f32 %v440, %v302
      %v509 = vmul.f32 %v443, %v302
      %v510 = vmul.f32 %v446, %v302
      %v511 = vmul.f32 %v449, %v302
      %v512 = vmul.f32 %v452, %v302
      %v513 = vmul.f32 %v455, %v302
      %v514 = vmul.f32 %v458, %v302
      %v515 = vmul.f32 %v461, %v302
      %v516 = vmul.f32 %v464, %v302
      %v517 = vmul.f32 %v467, %v302
      %v518 = vmul.f32 %v470, %v302
      %v519 = vmul.f32 %v473, %v302
      %v520 = vmul.f32 %v476, %v302
      %v521 = vmul.f32 %v479, %v302
      %v522 = vmul.f32 %v482, %v302
      %v523 = vmul.f32 %v485, %v302
      %v524 = vmul.f32 %v488, %v302
      %v525 = vmul.f32 %v491, %v302
      %v526 = vmul.f32 %v494, %v302
      %v527 = vadd.f32 %v495, 1e-05
      %v528 = vadd.f32 %v496, 1e-05
      %v529 = vadd.f32 %v497, 1e-05
      %v530 = vadd.f32 %v498, 1e-05
      %v531 = vadd.f32 %v499, 1e-05
      %v532 = vadd.f32 %v500, 1e-05
      %v533 = vadd.f32 %v501, 1e-05
      %v534 = vadd.f32 %v502, 1e-05
      %v535 = vadd.f32 %v503, 1e-05
      %v536 = vadd.f32 %v504, 1e-05
      %v537 = vadd.f32 %v505, 1e-05
      %v538 = vadd.f32 %v506, 1e-05
      %v539 = vadd.f32 %v507, 1e-05
      %v540 = vadd.f32 %v508, 1e-05
      %v541 = vadd.f32 %v509, 1e-05
      %v542 = vadd.f32 %v510, 1e-05
      %v543 = vadd.f32 %v511, 1e-05
      %v544 = vadd.f32 %v512, 1e-05
      %v545 = vadd.f32 %v513, 1e-05
      %v546 = vadd.f32 %v514, 1e-05
      %v547 = vadd.f32 %v515, 1e-05
      %v548 = vadd.f32 %v516, 1e-05
      %v549 = vadd.f32 %v517, 1e-05
      %v550 = vadd.f32 %v518, 1e-05
      %v551 = vadd.f32 %v519, 1e-05
      %v552 = vadd.f32 %v520, 1e-05
      %v553 = vadd.f32 %v521, 1e-05
      %v554 = vadd.f32 %v522, 1e-05
      %v555 = vadd.f32 %v523, 1e-05
      %v556 = vadd.f32 %v524, 1e-05
      %v557 = vadd.f32 %v525, 1e-05
      %v558 = vadd.f32 %v526, 1e-05
      %v559 = vrsqrt.pop %v527
      %v560 = vrsqrt.pop %v528
      %v561 = vrsqrt.pop %v529
      %v562 = vrsqrt.pop %v530
      %v563 = vrsqrt.pop %v531
      %v564 = vrsqrt.pop %v532
      %v565 = vrsqrt.pop %v533
      %v566 = vrsqrt.pop %v534
      %v567 = vrsqrt.pop %v535
      %v568 = vrsqrt.pop %v536
      %v569 = vrsqrt.pop %v537
      %v570 = vrsqrt.pop %v538
      %v571 = vrsqrt.pop %v539
      %v572 = vrsqrt.pop %v540
      %v573 = vrsqrt.pop %v541
      %v574 = vrsqrt.pop %v542
      %v575 = vrsqrt.pop %v543
      %v576 = vrsqrt.pop %v544
      %v577 = vrsqrt.pop %v545
      %v578 = vrsqrt.pop %v546
      %v579 = vrsqrt.pop %v547
      %v580 = vrsqrt.pop %v548
      %v581 = vrsqrt.pop %v549
      %v582 = vrsqrt.pop %v550
      %v583 = vrsqrt.pop %v551
      %v584 = vrsqrt.pop %v552
      %v585 = vrsqrt.pop %v553
      %v586 = vrsqrt.pop %v554
      %v587 = vrsqrt.pop %v555
      %v588 = vrsqrt.pop %v556
      %v589 = vrsqrt.pop %v557
      %v590 = vrsqrt.pop %v558
      %v591 = vmul.f32 %v335, %v559
      %v592 = vmul.f32 %v336, %v560
      %v593 = vmul.f32 %v337, %v561
      %v594 = vmul.f32 %v338, %v562
      %v595 = vmul.f32 %v339, %v563
      %v596 = vmul.f32 %v340, %v564
      %v597 = vmul.f32 %v341, %v565
      %v598 = vmul.f32 %v342, %v566
      %v599 = vmul.f32 %v343, %v567
      %v600 = vmul.f32 %v344, %v568
      %v601 = vmul.f32 %v345, %v569
      %v602 = vmul.f32 %v346, %v570
      %v603 = vmul.f32 %v347, %v571
      %v604 = vmul.f32 %v348, %v572
      %v605 = vmul.f32 %v349, %v573
      %v606 = vmul.f32 %v350, %v574
      %v607 = vmul.f32 %v351, %v575
      %v608 = vmul.f32 %v352, %v576
      %v609 = vmul.f32 %v353, %v577
      %v610 = vmul.f32 %v354, %v578
      %v611 = vmul.f32 %v355, %v579
      %v612 = vmul.f32 %v356, %v580
      %v613 = vmul.f32 %v357, %v581
      %v614 = vmul.f32 %v358, %v582
      %v615 = vmul.f32 %v359, %v583
      %v616 = vmul.f32 %v360, %v584
      %v617 = vmul.f32 %v361, %v585
      %v618 = vmul.f32 %v362, %v586
      %v619 = vmul.f32 %v363, %v587
      %v620 = vmul.f32 %v364, %v588
      %v621 = vmul.f32 %v365, %v589
      %v622 = vmul.f32 %v366, %v590
      %v624 = vlaneseq
      %v625 = vshrl.u32 %v624, 7
      %v626 = vsub.s32 0, %v625
      %v627 = vrot.slane %v203, %v626
      %v629 = vmul.f32 %v591, %v627
      %v630 = vmul.f32 %v592, %v627
      %v631 = vmul.f32 %v593, %v627
      %v632 = vmul.f32 %v594, %v627
      %v633 = vmul.f32 %v595, %v627
      %v634 = vmul.f32 %v596, %v627
      %v635 = vmul.f32 %v597, %v627
      %v636 = vmul.f32 %v598, %v627
      %v637 = vmul.f32 %v599, %v627
      %v638 = vmul.f32 %v600, %v627
      %v639 = vmul.f32 %v601, %v627
      %v640 = vmul.f32 %v602, %v627
      %v641 = vmul.f32 %v603, %v627
      %v642 = vmul.f32 %v604, %v627
      %v643 = vmul.f32 %v605, %v627
      %v644 = vmul.f32 %v606, %v627
      %v645 = vmul.f32 %v607, %v627
      %v646 = vmul.f32 %v608, %v627
      %v647 = vmul.f32 %v609, %v627
      %v648 = vmul.f32 %v610, %v627
      %v649 = vmul.f32 %v611, %v627
      %v650 = vmul.f32 %v612, %v627
      %v651 = vmul.f32 %v613, %v627
      %v652 = vmul.f32 %v614, %v627
      %v653 = vmul.f32 %v615, %v627
      %v654 = vmul.f32 %v616, %v627
      %v655 = vmul.f32 %v617, %v627
      %v656 = vmul.f32 %v618, %v627
      %v657 = vmul.f32 %v619, %v627
      %v658 = vmul.f32 %v620, %v627
      %v659 = vmul.f32 %v621, %v627
      %v660 = vmul.f32 %v622, %v627
      %v662 = vlaneseq
      %v663 = vshrl.u32 %v662, 7
      %v664 = vsub.s32 0, %v663
      %v665 = vrot.slane %v204, %v664
      %v667 = vadd.f32 %v629, %v665
      %v668 = vadd.f32 %v630, %v665
      %v669 = vadd.f32 %v631, %v665
      %v670 = vadd.f32 %v632, %v665
      %v671 = vadd.f32 %v633, %v665
      %v672 = vadd.f32 %v634, %v665
      %v673 = vadd.f32 %v635, %v665
      %v674 = vadd.f32 %v636, %v665
      %v675 = vadd.f32 %v637, %v665
      %v676 = vadd.f32 %v638, %v665
      %v677 = vadd.f32 %v639, %v665
      %v678 = vadd.f32 %v640, %v665
      %v679 = vadd.f32 %v641, %v665
      %v680 = vadd.f32 %v642, %v665
      %v681 = vadd.f32 %v643, %v665
      %v682 = vadd.f32 %v644, %v665
      %v683 = vadd.f32 %v645, %v665
      %v684 = vadd.f32 %v646, %v665
      %v685 = vadd.f32 %v647, %v665
      %v686 = vadd.f32 %v648, %v665
      %v687 = vadd.f32 %v649, %v665
      %v688 = vadd.f32 %v650, %v665
      %v689 = vadd.f32 %v651, %v665
      %v690 = vadd.f32 %v652, %v665
      %v691 = vadd.f32 %v653, %v665
      %v692 = vadd.f32 %v654, %v665
      %v693 = vadd.f32 %v655, %v665
      %v694 = vadd.f32 %v656, %v665
      %v695 = vadd.f32 %v657, %v665
      %v696 = vadd.f32 %v658, %v665
      %v697 = vadd.f32 %v659, %v665
      %v698 = vadd.f32 %v660, %v665
      %699 = vst.msk [vmem:[%s170] sm:$0xff] %vm205, %v667
      %700 = vst.msk [vmem:[%s170 + $0x8] sm:$0xff] %vm205, %v668
      %701 = vst.msk [vmem:[%s170 + $0x10] sm:$0xff] %vm205, %v669
      %702 = vst.msk [vmem:[%s170 + $0x18] sm:$0xff] %vm205, %v670
      %703 = vst.msk [vmem:[%s170 + $0x20] sm:$0xff] %vm205, %v671
      %704 = vst.msk [vmem:[%s170 + $0x28] sm:$0xff] %vm205, %v672
      %705 = vst.msk [vmem:[%s170 + $0x30] sm:$0xff] %vm205, %v673
      %706 = vst.msk [vmem:[%s170 + $0x38] sm:$0xff] %vm205, %v674
      %707 = vst.msk [vmem:[%s170 + $0x40] sm:$0xff] %vm205, %v675
      %708 = vst.msk [vmem:[%s170 + $0x48] sm:$0xff] %vm205, %v676
      %709 = vst.msk [vmem:[%s170 + $0x50] sm:$0xff] %vm205, %v677
      %710 = vst.msk [vmem:[%s170 + $0x58] sm:$0xff] %vm205, %v678
      %711 = vst.msk [vmem:[%s170 + $0x60] sm:$0xff] %vm205, %v679
      %712 = vst.msk [vmem:[%s170 + $0x68] sm:$0xff] %vm205, %v680
      %713 = vst.msk [vmem:[%s170 + $0x70] sm:$0xff] %vm205, %v681
      %714 = vst.msk [vmem:[%s170 + $0x78] sm:$0xff] %vm205, %v682
      %715 = vst.msk [vmem:[%s170 + $0x80] sm:$0xff] %vm205, %v683
      %716 = vst.msk [vmem:[%s170 + $0x88] sm:$0xff] %vm205, %v684
      %717 = vst.msk [vmem:[%s170 + $0x90] sm:$0xff] %vm205, %v685
      %718 = vst.msk [vmem:[%s170 + $0x98] sm:$0xff] %vm205, %v686
      %719 = vst.msk [vmem:[%s170 + $0xa0] sm:$0xff] %vm205, %v687
      %720 = vst.msk [vmem:[%s170 + $0xa8] sm:$0xff] %vm205, %v688
      %721 = vst.msk [vmem:[%s170 + $0xb0] sm:$0xff] %vm205, %v689
      %722 = vst.msk [vmem:[%s170 + $0xb8] sm:$0xff] %vm205, %v690
      %723 = vst.msk [vmem:[%s170 + $0xc0] sm:$0xff] %vm205, %v691
      %724 = vst.msk [vmem:[%s170 + $0xc8] sm:$0xff] %vm205, %v692
      %725 = vst.msk [vmem:[%s170 + $0xd0] sm:$0xff] %vm205, %v693
      %726 = vst.msk [vmem:[%s170 + $0xd8] sm:$0xff] %vm205, %v694
      %727 = vst.msk [vmem:[%s170 + $0xe0] sm:$0xff] %vm205, %v695
      %728 = vst.msk [vmem:[%s170 + $0xe8] sm:$0xff] %vm205, %v696
      %729 = vst.msk [vmem:[%s170 + $0xf0] sm:$0xff] %vm205, %v697
      %730 = vst.msk [vmem:[%s170 + $0xf8] sm:$0xff] %vm205, %v698
      %p731 = scmp.lt.s32.totalorder %s14, 1
      %s732 = scalar_select %p731, %s14, 1
      %s733 = smul.addr %s732, 32
      %s734 = smul.addr %s733, 8
      %s735 = scalar_lea.vmem %s3, %s734
      // Predicated region
      $region33: #{transformer_block_forward.5} parent=31 // pred_check
        %p736 = pneg %p100
      $region34: #{transformer_block_forward.5} parent=31 // pred_check_branch
        %738 = sbr.rel (%p736) target = $region36
      $region35: #{transformer_block_forward.5} parent=31 // pred_region
        _
      $region36: #{transformer_block_forward.5} parent=31 // pred_fallthru
        _
    $region32: #{transformer_block_forward.5} parent=5 // pred_fallthru
      _
    %p739 = scmp.le.s32.totalorder 2, %s9
    // Predicated region
    $region37: #{transformer_block_forward.5} parent=5 // pred_check
      %p740 = pneg %p739
    $region38: #{transformer_block_forward.5} parent=5 // pred_check_branch
      %742 = sbr.rel (%p740) target = $region40
    $region39: #{transformer_block_forward.5} parent=5 // pred_region
      %s743 = ssub.s32 %s9, 2
      // Predicated region
      $region41: #{transformer_block_forward.5} parent=39 // pred_check
        %p744 = pneg %p106
      $region42: #{transformer_block_forward.5} parent=39 // pred_check_branch
        %746 = sbr.rel (%p744) target = $region44
      $region43: #{transformer_block_forward.5} parent=39 // pred_region
        %p747 = scmp.lt.s32.totalorder %s15, 1
        %s748 = scalar_select %p747, %s15, 1
        %s749 = smul.addr %s748, 32
        %s750 = smul.addr %s749, 8
        %s751 = scalar_lea.vmem %s3, %s750
      $region44: #{transformer_block_forward.5} parent=39 // pred_fallthru
        _
    $region40: #{transformer_block_forward.5} parent=5 // pred_fallthru
      _
  $region6: #{transformer_block_forward.5} parent=0 // loop_footer
    %s13 = sadd.s32 1, %s9
  $region7: #{transformer_block_forward.5} parent=0 // loop_footer_branch
    %8 = sbr.rel target = $region3
  $region8: #{transformer_block_forward.5} parent=0 // loop_exit
    _

// kernel: transformer_block_forward.8
$region0: #{transformer_block_forward.8}
  #allocation0 [shape = 'u32[]', space=smem, size = 0x4, offset = 0x4, fixed_abs, tag = 'smem constant byte address 0x4 - core index']
  #allocation1 [shape = 'u32[144,128]{1,0:T(1,128)}', space=vmem, size = 0x12000, scoped, tag = 'internal scratch']
  %s0 = inlined_call_operand.vmem [shape: f32[2,8,8,32], index: 0, kind: input, shape index: {}]
  %s1 = inlined_call_operand.vmem [shape: f32[2,8,8,32], index: 1, kind: input, shape index: {}]
  %s2 = inlined_call_operand.vmem [shape: f32[2,8,8,32], index: 2, kind: input, shape index: {}]
  %s3 = inlined_call_operand.vmem [shape: f32[2,8,8,32], index: 3, kind: input, shape index: {}]
  %s4 = inlined_call_operand.vmem [shape: f32[3,32], index: 4, kind: input, shape index: {}]
  %s5 = inlined_call_operand.vmem [shape: f32[3,32], index: 5, kind: input, shape index: {}]
  %s6 = inlined_call_operand.vmem [shape: f32[3,32], index: 6, kind: input, shape index: {}]
  %s7 = inlined_call_operand.vmem [shape: f32[32,96], index: 7, kind: input, shape index: {}]
  %s8 = inlined_call_operand.vmem [shape: f32[1,96], index: 8, kind: input, shape index: {}]
  %s9 = inlined_call_operand.vmem [shape: f32[2,8,8,32], index: 9, kind: output, shape index: {0}]
  %s10 = inlined_call_operand.vmem [shape: f32[2,8,8,96], index: 10, kind: output, shape index: {1}]
  %11 = xla_tuple %s9, %s10
  %s12 = sld [smem:[#allocation0]]
  $region77: #{transformer_block_forward.8} parent=0
    _
  %s14 = ssub.s32 1, %s12
  %s15 = scalar_select 0, %s14, %s12
  loop: start=0, step=1, limit=4
  $region2: #{transformer_block_forward.8} parent=0 // loop_pre_header
    _
  $region3: #{transformer_block_forward.8} parent=0 // loop_header
    %s17 = sphi 0, %s21
    %p18 = scmp.ge.s32.totalorder %s17, 4
    %s27 = sphi 0, %s29
    %s30 = sphi 0, %s27
    %s31 = sphi 0, %s30
    %s47 = sphi 0, %s31
    %s53 = sphi 0, %s55
    %s56 = sphi 0, %s53
    %s57 = sphi 0, %s56
    %s73 = sphi 0, %s57
    %s79 = sphi 0, %s81
    %s82 = sphi 0, %s79
    %s83 = sphi 0, %s82
    %s99 = sphi 0, %s83
    %s105 = sphi 0, %s107
    %s108 = sphi 0, %s105
    %s109 = sphi 0, %s108
    %s125 = sphi 0, %s109
    %s129 = sphi 0, %s129
    %s131 = sphi 0, %s129
    %s132 = sphi 0, %s131
    %s146 = sphi 0, %s132
    %s150 = sphi 0, %s150
    %s152 = sphi 0, %s150
    %s153 = sphi 0, %s152
    %s167 = sphi 0, %s153
    %s171 = sphi 0, %s171
    %s173 = sphi 0, %s171
    %s174 = sphi 0, %s173
    %s188 = sphi 0, %s174
    %s192 = sphi 0, %s192
    %s194 = sphi 0, %s192
    %s195 = sphi 0, %s194
    %s209 = sphi 0, %s195
    %s213 = sphi 0, %s213
    %s215 = sphi 0, %s213
    %s216 = sphi 0, %s215
    %s230 = sphi 0, %s216
    %s236 = sphi 0, %s238
    %s239 = sphi 0, %s236
    %s240 = sphi 0, %s239
    %s256 = sphi 0, %s240
    %s262 = sphi 0, %s264
    %s265 = sphi 0, %s262
    %s266 = sphi 0, %s265
    %s282 = sphi 0, %s266
  $region4: #{transformer_block_forward.8} parent=0 // loop_header_branch
    %20 = sbr.rel (%p18) target = $region8
  $region5: #{transformer_block_forward.8} parent=0 // loop_body
    %s22 = ssub.s32 %s17, 1
    %s23 = ssub.s32 %s17, 2
    %s24 = sadd.s32 %s17, 1
    %s25 = ssub.s32 %s17, %s24
    %p26 = scmp.eq.s32.totalorder %s25, 0
    %s28 = sadd.s32 %s27, 1
    %s29 = scalar_select %p26, %s27, %s28
    %p32 = pneg %p26
    %p33 = scmp.eq.s32.totalorder %s17, 1
    %p34 = por %p32, %p33
    %p35 = scmp.ne.s32.totalorder %s27, %s30
    %p36 = scmp.eq.s32.totalorder %s17, 0
    %p37 = por %p35, %p36
    %p38 = scmp.ne.s32.totalorder %s27, %s30
    %p39 = scmp.eq.s32.totalorder %s22, 1
    %p40 = por %p38, %p39
    %p41 = scmp.ne.s32.totalorder %s30, %s31
    %p42 = scmp.eq.s32.totalorder %s22, 0
    %p43 = por %p41, %p42
    %p44 = scmp.ne.s32.totalorder %s30, %s31
    %p45 = scmp.eq.s32.totalorder %s23, 1
    %p46 = por %p44, %p45
    %p48 = scmp.ne.s32.totalorder %s31, %s47
    %p49 = scmp.eq.s32.totalorder %s23, 0
    %p50 = por %p48, %p49
    %s51 = ssub.s32 %s17, %s24
    %p52 = scmp.eq.s32.totalorder %s51, 0
    %s54 = sadd.s32 %s53, 1
    %s55 = scalar_select %p52, %s53, %s54
    %p58 = pneg %p52
    %p59 = scmp.eq.s32.totalorder %s17, 1
    %p60 = por %p58, %p59
    %p61 = scmp.ne.s32.totalorder %s53, %s56
    %p62 = scmp.eq.s32.totalorder %s17, 0
    %p63 = por %p61, %p62
    %p64 = scmp.ne.s32.totalorder %s53, %s56
    %p65 = scmp.eq.s32.totalorder %s22, 1
    %p66 = por %p64, %p65
    %p67 = scmp.ne.s32.totalorder %s56, %s57
    %p68 = scmp.eq.s32.totalorder %s22, 0
    %p69 = por %p67, %p68
    %p70 = scmp.ne.s32.totalorder %s56, %s57
    %p71 = scmp.eq.s32.totalorder %s23, 1
    %p72 = por %p70, %p71
    %p74 = scmp.ne.s32.totalorder %s57, %s73
    %p75 = scmp.eq.s32.totalorder %s23, 0
    %p76 = por %p74, %p75
    %s77 = ssub.s32 %s17, %s24
    %p78 = scmp.eq.s32.totalorder %s77, 0
    %s80 = sadd.s32 %s79, 1
    %s81 = scalar_select %p78, %s79, %s80
    %p84 = pneg %p78
    %p85 = scmp.eq.s32.totalorder %s17, 1
    %p86 = por %p84, %p85
    %p87 = scmp.ne.s32.totalorder %s79, %s82
    %p88 = scmp.eq.s32.totalorder %s17, 0
    %p89 = por %p87, %p88
    %p90 = scmp.ne.s32.totalorder %s79, %s82
    %p91 = scmp.eq.s32.totalorder %s22, 1
    %p92 = por %p90, %p91
    %p93 = scmp.ne.s32.totalorder %s82, %s83
    %p94 = scmp.eq.s32.totalorder %s22, 0
    %p95 = por %p93, %p94
    %p96 = scmp.ne.s32.totalorder %s82, %s83
    %p97 = scmp.eq.s32.totalorder %s23, 1
    %p98 = por %p96, %p97
    %p100 = scmp.ne.s32.totalorder %s83, %s99
    %p101 = scmp.eq.s32.totalorder %s23, 0
    %p102 = por %p100, %p101
    %s103 = ssub.s32 %s17, %s24
    %p104 = scmp.eq.s32.totalorder %s103, 0
    %s106 = sadd.s32 %s105, 1
    %s107 = scalar_select %p104, %s105, %s106
    %p110 = pneg %p104
    %p111 = scmp.eq.s32.totalorder %s17, 1
    %p112 = por %p110, %p111
    %p113 = scmp.ne.s32.totalorder %s105, %s108
    %p114 = scmp.eq.s32.totalorder %s17, 0
    %p115 = por %p113, %p114
    %p116 = scmp.ne.s32.totalorder %s105, %s108
    %p117 = scmp.eq.s32.totalorder %s22, 1
    %p118 = por %p116, %p117
    %p119 = scmp.ne.s32.totalorder %s108, %s109
    %p120 = scmp.eq.s32.totalorder %s22, 0
    %p121 = por %p119, %p120
    %p122 = scmp.ne.s32.totalorder %s108, %s109
    %p123 = scmp.eq.s32.totalorder %s23, 1
    %p124 = por %p122, %p123
    %p126 = scmp.ne.s32.totalorder %s109, %s125
    %p127 = scmp.eq.s32.totalorder %s23, 0
    %p128 = por %p126, %p127
    %s130 = sadd.s32 %s129, 1
    %p133 = scmp.eq.s32.totalorder %s17, 1
    %p134 = scmp.ne.s32.totalorder %s129, %s131
    %p135 = scmp.eq.s32.totalorder %s17, 0
    %p136 = por %p134, %p135
    %p137 = scmp.ne.s32.totalorder %s129, %s131
    %p138 = scmp.eq.s32.totalorder %s22, 1
    %p139 = por %p137, %p138
    %p140 = scmp.ne.s32.totalorder %s131, %s132
    %p141 = scmp.eq.s32.totalorder %s22, 0
    %p142 = por %p140, %p141
    %p143 = scmp.ne.s32.totalorder %s131, %s132
    %p144 = scmp.eq.s32.totalorder %s23, 1
    %p145 = por %p143, %p144
    %p147 = scmp.ne.s32.totalorder %s132, %s146
    %p148 = scmp.eq.s32.totalorder %s23, 0
    %p149 = por %p147, %p148
    %s151 = sadd.s32 %s150, 1
    %p154 = scmp.eq.s32.totalorder %s17, 1
    %p155 = scmp.ne.s32.totalorder %s150, %s152
    %p156 = scmp.eq.s32.totalorder %s17, 0
    %p157 = por %p155, %p156
    %p158 = scmp.ne.s32.totalorder %s150, %s152
    %p159 = scmp.eq.s32.totalorder %s22, 1
    %p160 = por %p158, %p159
    %p161 = scmp.ne.s32.totalorder %s152, %s153
    %p162 = scmp.eq.s32.totalorder %s22, 0
    %p163 = por %p161, %p162
    %p164 = scmp.ne.s32.totalorder %s152, %s153
    %p165 = scmp.eq.s32.totalorder %s23, 1
    %p166 = por %p164, %p165
    %p168 = scmp.ne.s32.totalorder %s153, %s167
    %p169 = scmp.eq.s32.totalorder %s23, 0
    %p170 = por %p168, %p169
    %s172 = sadd.s32 %s171, 1
    %p175 = scmp.eq.s32.totalorder %s17, 1
    %p176 = scmp.ne.s32.totalorder %s171, %s173
    %p177 = scmp.eq.s32.totalorder %s17, 0
    %p178 = por %p176, %p177
    %p179 = scmp.ne.s32.totalorder %s171, %s173
    %p180 = scmp.eq.s32.totalorder %s22, 1
    %p181 = por %p179, %p180
    %p182 = scmp.ne.s32.totalorder %s173, %s174
    %p183 = scmp.eq.s32.totalorder %s22, 0
    %p184 = por %p182, %p183
    %p185 = scmp.ne.s32.totalorder %s173, %s174
    %p186 = scmp.eq.s32.totalorder %s23, 1
    %p187 = por %p185, %p186
    %p189 = scmp.ne.s32.totalorder %s174, %s188
    %p190 = scmp.eq.s32.totalorder %s23, 0
    %p191 = por %p189, %p190
    %s193 = sadd.s32 %s192, 1
    %p196 = scmp.eq.s32.totalorder %s17, 1
    %p197 = scmp.ne.s32.totalorder %s192, %s194
    %p198 = scmp.eq.s32.totalorder %s17, 0
    %p199 = por %p197, %p198
    %p200 = scmp.ne.s32.totalorder %s192, %s194
    %p201 = scmp.eq.s32.totalorder %s22, 1
    %p202 = por %p200, %p201
    %p203 = scmp.ne.s32.totalorder %s194, %s195
    %p204 = scmp.eq.s32.totalorder %s22, 0
    %p205 = por %p203, %p204
    %p206 = scmp.ne.s32.totalorder %s194, %s195
    %p207 = scmp.eq.s32.totalorder %s23, 1
    %p208 = por %p206, %p207
    %p210 = scmp.ne.s32.totalorder %s195, %s209
    %p211 = scmp.eq.s32.totalorder %s23, 0
    %p212 = por %p210, %p211
    %s214 = sadd.s32 %s213, 1
    %p217 = scmp.eq.s32.totalorder %s17, 1
    %p218 = scmp.ne.s32.totalorder %s213, %s215
    %p219 = scmp.eq.s32.totalorder %s17, 0
    %p220 = por %p218, %p219
    %p221 = scmp.ne.s32.totalorder %s213, %s215
    %p222 = scmp.eq.s32.totalorder %s22, 1
    %p223 = por %p221, %p222
    %p224 = scmp.ne.s32.totalorder %s215, %s216
    %p225 = scmp.eq.s32.totalorder %s22, 0
    %p226 = por %p224, %p225
    %p227 = scmp.ne.s32.totalorder %s215, %s216
    %p228 = scmp.eq.s32.totalorder %s23, 1
    %p229 = por %p227, %p228
    %p231 = scmp.ne.s32.totalorder %s216, %s230
    %p232 = scmp.eq.s32.totalorder %s23, 0
    %p233 = por %p231, %p232
    %s234 = ssub.s32 %s17, %s24
    %p235 = scmp.eq.s32.totalorder %s234, 0
    %s237 = sadd.s32 %s236, 1
    %s238 = scalar_select %p235, %s236, %s237
    %p241 = pneg %p235
    %p242 = scmp.eq.s32.totalorder %s17, 1
    %p243 = por %p241, %p242
    %p244 = scmp.ne.s32.totalorder %s236, %s239
    %p245 = scmp.eq.s32.totalorder %s17, 0
    %p246 = por %p244, %p245
    %p247 = scmp.ne.s32.totalorder %s236, %s239
    %p248 = scmp.eq.s32.totalorder %s22, 1
    %p249 = por %p247, %p248
    %p250 = scmp.ne.s32.totalorder %s239, %s240
    %p251 = scmp.eq.s32.totalorder %s22, 0
    %p252 = por %p250, %p251
    %p253 = scmp.ne.s32.totalorder %s239, %s240
    %p254 = scmp.eq.s32.totalorder %s23, 1
    %p255 = por %p253, %p254
    %p257 = scmp.ne.s32.totalorder %s240, %s256
    %p258 = scmp.eq.s32.totalorder %s23, 0
    %p259 = por %p257, %p258
    %s260 = ssub.s32 %s17, %s24
    %p261 = scmp.eq.s32.totalorder %s260, 0
    %s263 = sadd.s32 %s262, 1
    %s264 = scalar_select %p261, %s262, %s263
    %p267 = pneg %p261
    %p268 = scmp.eq.s32.totalorder %s17, 1
    %p269 = por %p267, %p268
    %p270 = scmp.ne.s32.totalorder %s262, %s265
    %p271 = scmp.eq.s32.totalorder %s17, 0
    %p272 = por %p270, %p271
    %p273 = scmp.ne.s32.totalorder %s262, %s265
    %p274 = scmp.eq.s32.totalorder %s22, 1
    %p275 = por %p273, %p274
    %p276 = scmp.ne.s32.totalorder %s265, %s266
    %p277 = scmp.eq.s32.totalorder %s22, 0
    %p278 = por %p276, %p277
    %p279 = scmp.ne.s32.totalorder %s265, %s266
    %p280 = scmp.eq.s32.totalorder %s23, 1
    %p281 = por %p279, %p280
    %p283 = scmp.ne.s32.totalorder %s266, %s282
    %p284 = scmp.eq.s32.totalorder %s23, 0
    %p285 = por %p283, %p284
    %p286 = scmp.le.s32.totalorder 1, %s17
    %p287 = scmp.lt.s32.totalorder %s17, 3
    %p288 = pnand %p286, %p287
    %p289 = pneg %p288
    // Predicated region
    $region9: #{transformer_block_forward.8} parent=5 // pred_check
      _
    $region10: #{transformer_block_forward.8} parent=5 // pred_check_branch
      %291 = sbr.rel (%p288) target = $region12
    $region11: #{transformer_block_forward.8} parent=5 // pred_region
      %s292 = ssub.s32 %s17, 1
      // Predicated region
      $region13: #{transformer_block_forward.8} parent=11 // pred_check
        %p293 = pneg %p142
      $region14: #{transformer_block_forward.8} parent=11 // pred_check_branch
        %295 = sbr.rel (%p293) target = $region16
      $region15: #{transformer_block_forward.8} parent=11 // pred_region
        _
      $region16: #{transformer_block_forward.8} parent=11 // pred_fallthru
        _
      // Predicated region
      $region17: #{transformer_block_forward.8} parent=11 // pred_check
        %p296 = pneg %p163
      $region18: #{transformer_block_forward.8} parent=11 // pred_check_branch
        %298 = sbr.rel (%p296) target = $region20
      $region19: #{transformer_block_forward.8} parent=11 // pred_region
        _
      $region20: #{transformer_block_forward.8} parent=11 // pred_fallthru
        _
      // Predicated region
      $region21: #{transformer_block_forward.8} parent=11 // pred_check
        %p299 = pneg %p184
      $region22: #{transformer_block_forward.8} parent=11 // pred_check_branch
        %301 = sbr.rel (%p299) target = $region24
      $region23: #{transformer_block_forward.8} parent=11 // pred_region
        _
      $region24: #{transformer_block_forward.8} parent=11 // pred_fallthru
        _
      // Predicated region
      $region25: #{transformer_block_forward.8} parent=11 // pred_check
        %p302 = pneg %p205
      $region26: #{transformer_block_forward.8} parent=11 // pred_check_branch
        %304 = sbr.rel (%p302) target = $region28
      $region27: #{transformer_block_forward.8} parent=11 // pred_region
        _
      $region28: #{transformer_block_forward.8} parent=11 // pred_fallthru
        _
      // Predicated region
      $region29: #{transformer_block_forward.8} parent=11 // pred_check
        %p305 = pneg %p226
      $region30: #{transformer_block_forward.8} parent=11 // pred_check_branch
        %307 = sbr.rel (%p305) target = $region32
      $region31: #{transformer_block_forward.8} parent=11 // pred_region
        _
      $region32: #{transformer_block_forward.8} parent=11 // pred_fallthru
        _
    $region12: #{transformer_block_forward.8} parent=5 // pred_fallthru
      _
    %p308 = scmp.lt.s32.totalorder %s17, 2
    // Predicated region
    $region33: #{transformer_block_forward.8} parent=5 // pred_check
      %p309 = pneg %p308
    $region34: #{transformer_block_forward.8} parent=5 // pred_check_branch
      %311 = sbr.rel (%p309) target = $region36
    $region35: #{transformer_block_forward.8} parent=5 // pred_region
      // Predicated region
      $region37: #{transformer_block_forward.8} parent=35 // pred_check
        %p312 = pneg %p37
      $region38: #{transformer_block_forward.8} parent=35 // pred_check_branch
        %314 = sbr.rel (%p312) target = $region40
      $region39: #{transformer_block_forward.8} parent=35 // pred_region
        %p315 = scmp.lt.s32.totalorder %s17, 1
        %s316 = scalar_select %p315, %s17, 1
        %s317 = smul.addr %s316, 8
        %s318 = smul.addr %s317, 8
        %s319 = scalar_lea.vmem %s0, %s318
      $region40: #{transformer_block_forward.8} parent=35 // pred_fallthru
        _
      // Predicated region
      $region41: #{transformer_block_forward.8} parent=35 // pred_check
        %p320 = pneg %p63
      $region42: #{transformer_block_forward.8} parent=35 // pred_check_branch
        %322 = sbr.rel (%p320) target = $region44
      $region43: #{transformer_block_forward.8} parent=35 // pred_region
        %p323 = scmp.lt.s32.totalorder %s17, 1
        %s324 = scalar_select %p323, %s17, 1
        %s325 = smul.addr %s324, 8
        %s326 = smul.addr %s325, 8
        %s327 = scalar_lea.vmem %s1, %s326
      $region44: #{transformer_block_forward.8} parent=35 // pred_fallthru
        _
      // Predicated region
      $region45: #{transformer_block_forward.8} parent=35 // pred_check
        %p328 = pneg %p89
      $region46: #{transformer_block_forward.8} parent=35 // pred_check_branch
        %330 = sbr.rel (%p328) target = $region48
      $region47: #{transformer_block_forward.8} parent=35 // pred_region
        %p331 = scmp.lt.s32.totalorder %s17, 1
        %s332 = scalar_select %p331, %s17, 1
        %s333 = smul.addr %s332, 8
        %s334 = smul.addr %s333, 8
        %s335 = scalar_lea.vmem %s2, %s334
      $region48: #{transformer_block_forward.8} parent=35 // pred_fallthru
        _
      // Predicated region
      $region49: #{transformer_block_forward.8} parent=35 // pred_check
        %p336 = pneg %p115
      $region50: #{transformer_block_forward.8} parent=35 // pred_check_branch
        %338 = sbr.rel (%p336) target = $region52
      $region51: #{transformer_block_forward.8} parent=35 // pred_region
        %p339 = scmp.lt.s32.totalorder %s17, 1
        %s340 = scalar_select %p339, %s17, 1
        %s341 = smul.addr %s340, 8
        %s342 = smul.addr %s341, 8
        %s343 = scalar_lea.vmem %s3, %s342
      $region52: #{transformer_block_forward.8} parent=35 // pred_fallthru
        _
    $region36: #{transformer_block_forward.8} parent=5 // pred_fallthru
      _
    %p344 = scmp.le.s32.totalorder 1, %s17
    %p345 = scmp.lt.s32.totalorder %s17, 3
    %p346 = pnand %p344, %p345
    %p347 = pneg %p346
    // Predicated region
    $region53: #{transformer_block_forward.8} parent=5 // pred_check
      _
    $region54: #{transformer_block_forward.8} parent=5 // pred_check_branch
      %349 = sbr.rel (%p346) target = $region56
    $region55: #{transformer_block_forward.8} parent=5 // pred_region
      %s350 = ssub.s32 %s17, 1
      %p351 = scmp.lt.s32.totalorder %s22, 1
      %s352 = scalar_select %p351, %s22, 1
      %s353 = smul.addr %s352, 8
      %s354 = smul.addr %s353, 8
      %s355 = scalar_lea.vmem %s0, %s354
      %p356 = pneg %p43
      %p357 = pneg %p40
      %p358 = scmp.lt.s32.totalorder %s22, 1
      %s359 = scalar_select %p358, %s22, 1
      %s360 = smul.addr %s359, 8
      %s361 = smul.addr %s360, 8
      %s362 = scalar_lea.vmem %s1, %s361
      %p363 = pneg %p69
      %p364 = pneg %p66
      %p365 = scmp.lt.s32.totalorder %s22, 1
      %s366 = scalar_select %p365, %s22, 1
      %s367 = smul.addr %s366, 8
      %s368 = smul.addr %s367, 8
      %s369 = scalar_lea.vmem %s2, %s368
      %p370 = pneg %p95
      %p371 = pneg %p92
      %p372 = scmp.lt.s32.totalorder %s22, 1
      %s373 = scalar_select %p372, %s22, 1
      %s374 = smul.addr %s373, 8
      %s375 = smul.addr %s374, 8
      %s376 = scalar_lea.vmem %s3, %s375
      %p377 = pneg %p121
      %p378 = pneg %p118
      %p379 = pneg %p142
      %p380 = pneg %p139
      %p381 = pneg %p163
      %p382 = pneg %p160
      %p383 = pneg %p184
      %p384 = pneg %p181
      %p385 = pneg %p205
      %p386 = pneg %p202
      %p387 = pneg %p226
      %p388 = pneg %p223
      %p389 = pneg %p252
      %p390 = pneg %p249
      %p391 = scmp.lt.s32.totalorder %s22, 1
      %s392 = scalar_select %p391, %s22, 1
      %s393 = smul.addr %s392, 8
      %s394 = smul.addr %s393, 8
      %s395 = scalar_lea.vmem %s9, %s394
      %p396 = pneg %p278
      %p397 = pneg %p275
      %p398 = scmp.lt.s32.totalorder %s22, 1
      %s399 = scalar_select %p398, %s22, 1
      %s400 = smul.addr %s399, 8
      %s401 = smul.addr %s400, 8
      %s402 = scalar_lea.vmem %s10, %s401
      %p403 = scmp.lt.s32.totalorder %s22, 1
      %s404 = scalar_select %p403, %s22, 1
      %s405 = smul.addr %s404, 8
      %s406 = smul.addr %s405, 8
      %s407 = scalar_lea.vmem %s0, %s406
      %p408 = scmp.lt.s32.totalorder %s22, 1
      %s409 = scalar_select %p408, %s22, 1
      %s410 = smul.addr %s409, 8
      %s411 = smul.addr %s410, 8
      %s412 = scalar_lea.vmem %s1, %s411
      %p413 = scmp.lt.s32.totalorder %s22, 1
      %s414 = scalar_select %p413, %s22, 1
      %s415 = smul.addr %s414, 8
      %s416 = smul.addr %s415, 8
      %s417 = scalar_lea.vmem %s2, %s416
      %p418 = scmp.lt.s32.totalorder %s22, 1
      %s419 = scalar_select %p418, %s22, 1
      %s420 = smul.addr %s419, 8
      %s421 = smul.addr %s420, 8
      %s422 = scalar_lea.vmem %s3, %s421
      %p423 = scmp.lt.s32.totalorder %s22, 1
      %s424 = scalar_select %p423, %s22, 1
      %s425 = smul.addr %s424, 8
      %s426 = smul.addr %s425, 8
      %s427 = scalar_lea.vmem %s9, %s426
      %p428 = scmp.lt.s32.totalorder %s22, 1
      %s429 = scalar_select %p428, %s22, 1
      %s430 = smul.addr %s429, 8
      %s431 = smul.addr %s430, 8
      %s432 = scalar_lea.vmem %s10, %s431
      %v434 = vld [vmem:[%s407] sm:$0xff]
      %v435 = vld [vmem:[%s407 + $0x8] sm:$0xff]
      %v436 = vld [vmem:[%s407 + $0x10] sm:$0xff]
      %v437 = vld [vmem:[%s407 + $0x18] sm:$0xff]
      %v438 = vld [vmem:[%s407 + $0x20] sm:$0xff]
      %v439 = vld [vmem:[%s407 + $0x28] sm:$0xff]
      %v440 = vld [vmem:[%s407 + $0x30] sm:$0xff]
      %v441 = vld [vmem:[%s407 + $0x38] sm:$0xff]
      %v442 = vld [vmem:[%s412] sm:$0xff]
      %v443 = vld [vmem:[%s412 + $0x8] sm:$0xff]
      %v444 = vld [vmem:[%s412 + $0x10] sm:$0xff]
      %v445 = vld [vmem:[%s412 + $0x18] sm:$0xff]
      %v446 = vld [vmem:[%s412 + $0x20] sm:$0xff]
      %v447 = vld [vmem:[%s412 + $0x28] sm:$0xff]
      %v448 = vld [vmem:[%s412 + $0x30] sm:$0xff]
      %v449 = vld [vmem:[%s412 + $0x38] sm:$0xff]
      %v450 = vld [vmem:[%s417] sm:$0xff]
      %v451 = vld [vmem:[%s417 + $0x8] sm:$0xff]
      %v452 = vld [vmem:[%s417 + $0x10] sm:$0xff]
      %v453 = vld [vmem:[%s417 + $0x18] sm:$0xff]
      %v454 = vld [vmem:[%s417 + $0x20] sm:$0xff]
      %v455 = vld [vmem:[%s417 + $0x28] sm:$0xff]
      %v456 = vld [vmem:[%s417 + $0x30] sm:$0xff]
      %v457 = vld [vmem:[%s417 + $0x38] sm:$0xff]
      %v458 = vld [vmem:[%s422] sm:$0xff]
      %v459 = vld [vmem:[%s422 + $0x8] sm:$0xff]
      %v460 = vld [vmem:[%s422 + $0x10] sm:$0xff]
      %v461 = vld [vmem:[%s422 + $0x18] sm:$0xff]
      %v462 = vld [vmem:[%s422 + $0x20] sm:$0xff]
      %v463 = vld [vmem:[%s422 + $0x28] sm:$0xff]
      %v464 = vld [vmem:[%s422 + $0x30] sm:$0xff]
      %v465 = vld [vmem:[%s422 + $0x38] sm:$0xff]
      %vm466 = vcmask 261120
      %v467 = vsel %vm466, %v434, 0.0
      %v468 = vsel %vm466, %v435, 0.0
      %v469 = vadd.f32 %v467, %v468
      %v470 = vsel %vm466, %v436, 0.0
      %v471 = vadd.f32 %v469, %v470
      %v472 = vsel %vm466, %v437, 0.0
      %v473 = vadd.f32 %v471, %v472
      %v474 = vsel %vm466, %v438, 0.0
      %v475 = vadd.f32 %v473, %v474
      %v476 = vsel %vm466, %v439, 0.0
      %v477 = vadd.f32 %v475, %v476
      %v478 = vsel %vm466, %v440, 0.0
      %v479 = vadd.f32 %v477, %v478
      %v480 = vsel %vm466, %v441, 0.0
      %v481 = vadd.f32 %v479, %v480
      %v482 = vrot.slane %v481, 4
      %v483 = vadd.f32 %v481, %v482
      %v484 = vrot.slane %v483, 2
      %v485 = vadd.f32 %v483, %v484
      %v486 = vrot.slane %v485, 1
      %v487 = vadd.f32 %v485, %v486
      %v488 = vrcp.pop 64.0
      %v489 = vmul.f32 %v487, %v488
      %491 = vrot.lane.b32.xlu0 %v489, 1
      %v492 = vpop.permute.xlu0 %491
      %vm494 = vcmask 7168
      %v495 = vsel %vm494, 0.0, %v492
      %496 = vrot.lane.b32.xlu0 %v489, 127
      %v497 = vpop.permute.xlu0 %496
      %vm499 = vcmask 252928
      %v500 = vsel %vm499, %v497, 0.0
      %v501 = vld [vmem:[%s4] sm:$0x7]
      %v502 = vmul.f32 %v501, %v495
      %v503 = vmul.f32 %v501, %v489
      %v505 = vrot.slane %v503, 1
      %v507 = vadd.f32 %v502, %v505
      %v509 = vrot.slane %v500, 6
      %v511 = vmul.f32 %v501, %v509
      %v513 = vrot.slane %v511, 2
      %v515 = vadd.f32 %v507, %v513
      %v516 = vsub.f32 0.0, %v515
      %v517 = vmul.f32 %v516, 1.442695
      %v518 = vpow.pop %v517
      %v519 = vadd.f32 %v518, 1.0
      %v520 = vrcp.pop %v519
      %v521 = vlaneseq
      %v522 = vshrl.u32 %v521, 7
      %v523 = vsub.s32 0, %v522
      %v524 = vrot.slane %v520, %v523
      %v525 = vmul.f32 %v434, %v524
      %v526 = vmul.f32 %v435, %v524
      %v527 = vmul.f32 %v436, %v524
      %v528 = vmul.f32 %v437, %v524
      %v529 = vmul.f32 %v438, %v524
      %v530 = vmul.f32 %v439, %v524
      %v531 = vmul.f32 %v440, %v524
      %v532 = vmul.f32 %v441, %v524
      %533 = vst.msk [vmem:[%s427] sm:$0xff] %vm466, %v525
      %534 = vst.msk [vmem:[%s427 + $0x8] sm:$0xff] %vm466, %v526
      %535 = vst.msk [vmem:[%s427 + $0x10] sm:$0xff] %vm466, %v527
      %536 = vst.msk [vmem:[%s427 + $0x18] sm:$0xff] %vm466, %v528
      %537 = vst.msk [vmem:[%s427 + $0x20] sm:$0xff] %vm466, %v529
      %538 = vst.msk [vmem:[%s427 + $0x28] sm:$0xff] %vm466, %v530
      %539 = vst.msk [vmem:[%s427 + $0x30] sm:$0xff] %vm466, %v531
      %540 = vst.msk [vmem:[%s427 + $0x38] sm:$0xff] %vm466, %v532
      %v541 = vld [vmem:[%s5] sm:$0x7]
      %v542 = vlaneseq
      %v543 = vshrl.u32 %v542, 7
      %v544 = vsub.s32 0, %v543
      %v545 = vrot.slane %v541, %v544
      %v546 = vmul.f32 %v545, %v442
      %v547 = vmul.f32 %v545, %v443
      %v548 = vmul.f32 %v545, %v444
      %v549 = vmul.f32 %v545, %v445
      %v550 = vmul.f32 %v545, %v446
      %v551 = vmul.f32 %v545, %v447
      %v552 = vmul.f32 %v545, %v448
      %v553 = vmul.f32 %v545, %v449
      %v554 = vlaneseq
      %v555 = vshrl.u32 %v554, 7
      %v556 = vsub.s32 1, %v555
      %v557 = vrot.slane %v541, %v556
      %v558 = vmul.f32 %v557, %v450
      %v559 = vmul.f32 %v557, %v451
      %v560 = vmul.f32 %v557, %v452
      %v561 = vmul.f32 %v557, %v453
      %v562 = vmul.f32 %v557, %v454
      %v563 = vmul.f32 %v557, %v455
      %v564 = vmul.f32 %v557, %v456
      %v565 = vmul.f32 %v557, %v457
      %v566 = vadd.f32 %v546, %v558
      %v567 = vadd.f32 %v547, %v559
      %v568 = vadd.f32 %v548, %v560
      %v569 = vadd.f32 %v549, %v561
      %v570 = vadd.f32 %v550, %v562
      %v571 = vadd.f32 %v551, %v563
      %v572 = vadd.f32 %v552, %v564
      %v573 = vadd.f32 %v553, %v565
      %v574 = vlaneseq
      %v575 = vshrl.u32 %v574, 7
      %v576 = vsub.s32 2, %v575
      %v577 = vrot.slane %v541, %v576
      %v578 = vmul.f32 %v577, %v458
      %v579 = vmul.f32 %v577, %v459
      %v580 = vmul.f32 %v577, %v460
      %v581 = vmul.f32 %v577, %v461
      %v582 = vmul.f32 %v577, %v462
      %v583 = vmul.f32 %v577, %v463
      %v584 = vmul.f32 %v577, %v464
      %v585 = vmul.f32 %v577, %v465
      %v586 = vadd.f32 %v566, %v578
      %v587 = vadd.f32 %v567, %v579
      %v588 = vadd.f32 %v568, %v580
      %v589 = vadd.f32 %v569, %v581
      %v590 = vadd.f32 %v570, %v582
      %v591 = vadd.f32 %v571, %v583
      %v592 = vadd.f32 %v572, %v584
      %v593 = vadd.f32 %v573, %v585
      %v594 = vmul.f32 %v586, 0.31939405
      %v595 = vmul.f32 %v587, 0.31939405
      %v596 = vmul.f32 %v588, 0.31939405
      %v597 = vmul.f32 %v589, 0.31939405
      %v598 = vmul.f32 %v590, 0.31939405
      %v599 = vmul.f32 %v591, 0.31939405
      %v600 = vmul.f32 %v592, 0.31939405
      %v601 = vmul.f32 %v586, 0.3612119
      %v602 = vmul.f32 %v587, 0.3612119
      %v603 = vmul.f32 %v588, 0.3612119
      %v604 = vmul.f32 %v589, 0.3612119
      %v605 = vmul.f32 %v590, 0.3612119
      %v606 = vmul.f32 %v591, 0.3612119
      %v607 = vmul.f32 %v592, 0.3612119
      %v608 = vmul.f32 %v593, 0.3612119
      %v609 = vadd.f32 %v601, 0.0
      %v610 = vadd.f32 %v594, %v602
      %v611 = vadd.f32 %v595, %v603
      %v612 = vadd.f32 %v596, %v604
      %v613 = vadd.f32 %v597, %v605
      %v614 = vadd.f32 %v598, %v606
      %v615 = vadd.f32 %v599, %v607
      %v616 = vadd.f32 %v600, %v608
      %v617 = vmul.f32 %v593, 0.31939405
      %v618 = vadd.f32 %v609, %v595
      %v619 = vadd.f32 %v610, %v596
      %v620 = vadd.f32 %v611, %v597
      %v621 = vadd.f32 %v612, %v598
      %v622 = vadd.f32 %v613, %v599
      %v623 = vadd.f32 %v614, %v600
      %v624 = vadd.f32 %v615, %v617
      %v625 = vadd.f32 %v616, 0.0
      %v634 = vrot.slane %v618, 7
      %v635 = vrot.slane %v619, 7
      %v636 = vrot.slane %v620, 7
      %v637 = vrot.slane %v621, 7
      %v638 = vrot.slane %v622, 7
      %v639 = vrot.slane %v623, 7
      %v640 = vrot.slane %v624, 7
      %v641 = vrot.slane %v625, 7
      %vm650 = vcmask 1040384
      %v651 = vsel %vm650, 0.0, %v634
      %v652 = vsel %vm650, 0.0, %v635
      %v653 = vsel %vm650, 0.0, %v636
      %v654 = vsel %vm650, 0.0, %v637
      %v655 = vsel %vm650, 0.0, %v638
      %v656 = vsel %vm650, 0.0, %v639
      %v657 = vsel %vm650, 0.0, %v640
      %v658 = vsel %vm650, 0.0, %v641
      %v659 = vsel %vm650, %v634, 0.0
      %v660 = vsel %vm650, %v635, 0.0
      %v661 = vsel %vm650, %v636, 0.0
      %v662 = vsel %vm650, %v637, 0.0
      %v663 = vsel %vm650, %v638, 0.0
      %v664 = vsel %vm650, %v639, 0.0
      %v665 = vsel %vm650, %v640, 0.0
      %v666 = vsel %vm650, %v641, 0.0
      %v667 = vmul.f32 %v651, 0.31939405
      %v668 = vmul.f32 %v652, 0.31939405
      %v669 = vmul.f32 %v653, 0.31939405
      %v670 = vmul.f32 %v654, 0.31939405
      %v671 = vmul.f32 %v655, 0.31939405
      %v672 = vmul.f32 %v656, 0.31939405
      %v673 = vmul.f32 %v657, 0.31939405
      %v674 = vmul.f32 %v658, 0.31939405
      %v675 = vmul.f32 %v651, 0.3612119
      %v676 = vmul.f32 %v659, 0.3612119
      %v677 = vmul.f32 %v652, 0.3612119
      %v678 = vmul.f32 %v660, 0.3612119
      %v679 = vmul.f32 %v653, 0.3612119
      %v680 = vmul.f32 %v661, 0.3612119
      %v681 = vmul.f32 %v654, 0.3612119
      %v682 = vmul.f32 %v662, 0.3612119
      %v683 = vmul.f32 %v655, 0.3612119
      %v684 = vmul.f32 %v663, 0.3612119
      %v685 = vmul.f32 %v656, 0.3612119
      %v686 = vmul.f32 %v664, 0.3612119
      %v687 = vmul.f32 %v657, 0.3612119
      %v688 = vmul.f32 %v665, 0.3612119
      %v689 = vmul.f32 %v658, 0.3612119
      %v690 = vmul.f32 %v666, 0.3612119
      %vm707 = vcmask 1046528
      %v708 = vrot.slane %v675, 1
      %v709 = vrot.slane %v676, 1
      %v710 = vsel %vm707, %v708, %v709
      %v711 = vrot.slane %v677, 1
      %v712 = vrot.slane %v678, 1
      %v713 = vsel %vm707, %v711, %v712
      %v714 = vrot.slane %v679, 1
      %v715 = vrot.slane %v680, 1
      %v716 = vsel %vm707, %v714, %v715
      %v717 = vrot.slane %v681, 1
      %v718 = vrot.slane %v682, 1
      %v719 = vsel %vm707, %v717, %v718
      %v720 = vrot.slane %v683, 1
      %v721 = vrot.slane %v684, 1
      %v722 = vsel %vm707, %v720, %v721
      %v723 = vrot.slane %v685, 1
      %v724 = vrot.slane %v686, 1
      %v725 = vsel %vm707, %v723, %v724
      %v726 = vrot.slane %v687, 1
      %v727 = vrot.slane %v688, 1
      %v728 = vsel %vm707, %v726, %v727
      %v729 = vrot.slane %v689, 1
      %v730 = vrot.slane %v690, 1
      %v731 = vsel %vm707, %v729, %v730
      %v740 = vadd.f32 %v667, %v710
      %v741 = vadd.f32 %v668, %v713
      %v742 = vadd.f32 %v669, %v716
      %v743 = vadd.f32 %v670, %v719
      %v744 = vadd.f32 %v671, %v722
      %v745 = vadd.f32 %v672, %v725
      %v746 = vadd.f32 %v673, %v728
      %v747 = vadd.f32 %v674, %v731
      %v748 = vmul.f32 %v659, 0.31939405
      %v749 = vmul.f32 %v660, 0.31939405
      %v750 = vmul.f32 %v661, 0.31939405
      %v751 = vmul.f32 %v662, 0.31939405
      %v752 = vmul.f32 %v663, 0.31939405
      %v753 = vmul.f32 %v664, 0.31939405
      %v754 = vmul.f32 %v665, 0.31939405
      %v755 = vmul.f32 %v666, 0.31939405
      %vm772 = vcmask 1045504
      %v773 = vrot.slane %v667, 2
      %v774 = vrot.slane %v748, 2
      %v775 = vsel %vm772, %v773, %v774
      %v776 = vrot.slane %v668, 2
      %v777 = vrot.slane %v749, 2
      %v778 = vsel %vm772, %v776, %v777
      %v779 = vrot.slane %v669, 2
      %v780 = vrot.slane %v750, 2
      %v781 = vsel %vm772, %v779, %v780
      %v782 = vrot.slane %v670, 2
      %v783 = vrot.slane %v751, 2
      %v784 = vsel %vm772, %v782, %v783
      %v785 = vrot.slane %v671, 2
      %v786 = vrot.slane %v752, 2
      %v787 = vsel %vm772, %v785, %v786
      %v788 = vrot.slane %v672, 2
      %v789 = vrot.slane %v753, 2
      %v790 = vsel %vm772, %v788, %v789
      %v791 = vrot.slane %v673, 2
      %v792 = vrot.slane %v754, 2
      %v793 = vsel %vm772, %v791, %v792
      %v794 = vrot.slane %v674, 2
      %v795 = vrot.slane %v755, 2
      %v796 = vsel %vm772, %v794, %v795
      %v805 = vadd.f32 %v740, %v775
      %v806 = vadd.f32 %v741, %v778
      %v807 = vadd.f32 %v742, %v781
      %v808 = vadd.f32 %v743, %v784
      %v809 = vadd.f32 %v744, %v787
      %v810 = vadd.f32 %v745, %v790
      %v811 = vadd.f32 %v746, %v793
      %v812 = vadd.f32 %v747, %v796
      %v813 = vmul.f32 %v586, 0.16986425
      %v814 = vmul.f32 %v587, 0.16986425
      %v815 = vmul.f32 %v588, 0.16986425
      %v816 = vmul.f32 %v589, 0.16986425
      %v817 = vmul.f32 %v590, 0.16986425
      %v818 = vmul.f32 %v591, 0.16986425
      %v819 = vmul.f32 %v586, 0.21433261
      %v820 = vmul.f32 %v587, 0.21433261
      %v821 = vmul.f32 %v588, 0.21433261
      %v822 = vmul.f32 %v589, 0.21433261
      %v823 = vmul.f32 %v590, 0.21433261
      %v824 = vmul.f32 %v591, 0.21433261
      %v825 = vmul.f32 %v592, 0.21433261
      %v826 = vadd.f32 %v819, 0.0
      %v827 = vadd.f32 %v813, %v820
      %v828 = vadd.f32 %v814, %v821
      %v829 = vadd.f32 %v815, %v822
      %v830 = vadd.f32 %v816, %v823
      %v831 = vadd.f32 %v817, %v824
      %v832 = vadd.f32 %v818, %v825
      %v833 = vmul.f32 %v586, 0.23160627
      %v834 = vmul.f32 %v587, 0.23160627
      %v835 = vmul.f32 %v588, 0.23160627
      %v836 = vmul.f32 %v589, 0.23160627
      %v837 = vmul.f32 %v590, 0.23160627
      %v838 = vmul.f32 %v591, 0.23160627
      %v839 = vmul.f32 %v592, 0.23160627
      %v840 = vmul.f32 %v593, 0.23160627
      %v841 = vadd.f32 %v833, 0.0
      %v842 = vadd.f32 %v826, %v834
      %v843 = vadd.f32 %v827, %v835
      %v844 = vadd.f32 %v828, %v836
      %v845 = vadd.f32 %v829, %v837
      %v846 = vadd.f32 %v830, %v838
      %v847 = vadd.f32 %v831, %v839
      %v848 = vadd.f32 %v832, %v840
      %v849 = vmul.f32 %v593, 0.21433261
      %v850 = vadd.f32 %v841, %v820
      %v851 = vadd.f32 %v842, %v821
      %v852 = vadd.f32 %v843, %v822
      %v853 = vadd.f32 %v844, %v823
      %v854 = vadd.f32 %v845, %v824
      %v855 = vadd.f32 %v846, %v825
      %v856 = vadd.f32 %v847, %v849
      %v857 = vadd.f32 %v848, 0.0
      %v858 = vmul.f32 %v592, 0.16986425
      %v859 = vmul.f32 %v593, 0.16986425
      %v860 = vadd.f32 %v850, %v815
      %v861 = vadd.f32 %v851, %v816
      %v862 = vadd.f32 %v852, %v817
      %v863 = vadd.f32 %v853, %v818
      %v864 = vadd.f32 %v854, %v858
      %v865 = vadd.f32 %v855, %v859
      %v866 = vadd.f32 %v856, 0.0
      %v867 = vadd.f32 %v857, 0.0
      %v876 = vrot.slane %v860, 6
      %v877 = vrot.slane %v861, 6
      %v878 = vrot.slane %v862, 6
      %v879 = vrot.slane %v863, 6
      %v880 = vrot.slane %v864, 6
      %v881 = vrot.slane %v865, 6
      %v882 = vrot.slane %v866, 6
      %v883 = vrot.slane %v867, 6
      %vm892 = vcmask 1041408
      %v893 = vsel %vm892, 0.0, %v876
      %v894 = vsel %vm892, 0.0, %v877
      %v895 = vsel %vm892, 0.0, %v878
      %v896 = vsel %vm892, 0.0, %v879
      %v897 = vsel %vm892, 0.0, %v880
      %v898 = vsel %vm892, 0.0, %v881
      %v899 = vsel %vm892, 0.0, %v882
      %v900 = vsel %vm892, 0.0, %v883
      %v901 = vsel %vm892, %v876, 0.0
      %v902 = vsel %vm892, %v877, 0.0
      %v903 = vsel %vm892, %v878, 0.0
      %v904 = vsel %vm892, %v879, 0.0
      %v905 = vsel %vm892, %v880, 0.0
      %v906 = vsel %vm892, %v881, 0.0
      %v907 = vsel %vm892, %v882, 0.0
      %v908 = vsel %vm892, %v883, 0.0
      %v909 = vmul.f32 %v893, 0.16986425
      %v910 = vmul.f32 %v894, 0.16986425
      %v911 = vmul.f32 %v895, 0.16986425
      %v912 = vmul.f32 %v896, 0.16986425
      %v913 = vmul.f32 %v897, 0.16986425
      %v914 = vmul.f32 %v898, 0.16986425
      %v915 = vmul.f32 %v899, 0.16986425
      %v916 = vmul.f32 %v900, 0.16986425
      %v917 = vmul.f32 %v893, 0.21433261
      %v918 = vmul.f32 %v901, 0.21433261
      %v919 = vmul.f32 %v894, 0.21433261
      %v920 = vmul.f32 %v902, 0.21433261
      %v921 = vmul.f32 %v895, 0.21433261
      %v922 = vmul.f32 %v903, 0.21433261
      %v923 = vmul.f32 %v896, 0.21433261
      %v924 = vmul.f32 %v904, 0.21433261
      %v925 = vmul.f32 %v897, 0.21433261
      %v926 = vmul.f32 %v905, 0.21433261
      %v927 = vmul.f32 %v898, 0.21433261
      %v928 = vmul.f32 %v906, 0.21433261
      %v929 = vmul.f32 %v899, 0.21433261
      %v930 = vmul.f32 %v907, 0.21433261
      %v931 = vmul.f32 %v900, 0.21433261
      %v932 = vmul.f32 %v908, 0.21433261
      %v949 = vrot.slane %v917, 1
      %v950 = vrot.slane %v918, 1
      %v951 = vsel %vm707, %v949, %v950
      %v952 = vrot.slane %v919, 1
      %v953 = vrot.slane %v920, 1
      %v954 = vsel %vm707, %v952, %v953
      %v955 = vrot.slane %v921, 1
      %v956 = vrot.slane %v922, 1
      %v957 = vsel %vm707, %v955, %v956
      %v958 = vrot.slane %v923, 1
      %v959 = vrot.slane %v924, 1
      %v960 = vsel %vm707, %v958, %v959
      %v961 = vrot.slane %v925, 1
      %v962 = vrot.slane %v926, 1
      %v963 = vsel %vm707, %v961, %v962
      %v964 = vrot.slane %v927, 1
      %v965 = vrot.slane %v928, 1
      %v966 = vsel %vm707, %v964, %v965
      %v967 = vrot.slane %v929, 1
      %v968 = vrot.slane %v930, 1
      %v969 = vsel %vm707, %v967, %v968
      %v970 = vrot.slane %v931, 1
      %v971 = vrot.slane %v932, 1
      %v972 = vsel %vm707, %v970, %v971
      %v981 = vadd.f32 %v909, %v951
      %v982 = vadd.f32 %v910, %v954
      %v983 = vadd.f32 %v911, %v957
      %v984 = vadd.f32 %v912, %v960
      %v985 = vadd.f32 %v913, %v963
      %v986 = vadd.f32 %v914, %v966
      %v987 = vadd.f32 %v915, %v969
      %v988 = vadd.f32 %v916, %v972
      %v989 = vmul.f32 %v893, 0.23160627
      %v990 = vmul.f32 %v901, 0.23160627
      %v991 = vmul.f32 %v894, 0.23160627
      %v992 = vmul.f32 %v902, 0.23160627
      %v993 = vmul.f32 %v895, 0.23160627
      %v994 = vmul.f32 %v903, 0.23160627
      %v995 = vmul.f32 %v896, 0.23160627
      %v996 = vmul.f32 %v904, 0.23160627
      %v997 = vmul.f32 %v897, 0.23160627
      %v998 = vmul.f32 %v905, 0.23160627
      %v999 = vmul.f32 %v898, 0.23160627
      %v1000 = vmul.f32 %v906, 0.23160627
      %v1001 = vmul.f32 %v899, 0.23160627
      %v1002 = vmul.f32 %v907, 0.23160627
      %v1003 = vmul.f32 %v900, 0.23160627
      %v1004 = vmul.f32 %v908, 0.23160627
      %v1021 = vrot.slane %v989, 2
      %v1022 = vrot.slane %v990, 2
      %v1023 = vsel %vm772, %v1021, %v1022
      %v1024 = vrot.slane %v991, 2
      %v1025 = vrot.slane %v992, 2
      %v1026 = vsel %vm772, %v1024, %v1025
      %v1027 = vrot.slane %v993, 2
      %v1028 = vrot.slane %v994, 2
      %v1029 = vsel %vm772, %v1027, %v1028
      %v1030 = vrot.slane %v995, 2
      %v1031 = vrot.slane %v996, 2
      %v1032 = vsel %vm772, %v1030, %v1031
      %v1033 = vrot.slane %v997, 2
      %v1034 = vrot.slane %v998, 2
      %v1035 = vsel %vm772, %v1033, %v1034
      %v1036 = vrot.slane %v999, 2
      %v1037 = vrot.slane %v1000, 2
      %v1038 = vsel %vm772, %v1036, %v1037
      %v1039 = vrot.slane %v1001, 2
      %v1040 = vrot.slane %v1002, 2
      %v1041 = vsel %vm772, %v1039, %v1040
      %v1042 = vrot.slane %v1003, 2
      %v1043 = vrot.slane %v1004, 2
      %v1044 = vsel %vm772, %v1042, %v1043
      %v1053 = vadd.f32 %v981, %v1023
      %v1054 = vadd.f32 %v982, %v1026
      %v1055 = vadd.f32 %v983, %v1029
      %v1056 = vadd.f32 %v984, %v1032
      %v1057 = vadd.f32 %v985, %v1035
      %v1058 = vadd.f32 %v986, %v1038
      %v1059 = vadd.f32 %v987, %v1041
      %v1060 = vadd.f32 %v988, %v1044
      %vm1061 = vcmask 1044480
      %v1062 = vrot.slane %v917, 3
      %v1063 = vrot.slane %v918, 3
      %v1064 = vsel %vm1061, %v1062, %v1063
      %v1065 = vrot.slane %v919, 3
      %v1066 = vrot.slane %v920, 3
      %v1067 = vsel %vm1061, %v1065, %v1066
      %v1068 = vrot.slane %v921, 3
      %v1069 = vrot.slane %v922, 3
      %v1070 = vsel %vm1061, %v1068, %v1069
      %v1071 = vrot.slane %v923, 3
      %v1072 = vrot.slane %v924, 3
      %v1073 = vsel %vm1061, %v1071, %v1072
      %v1074 = vrot.slane %v925, 3
      %v1075 = vrot.slane %v926, 3
      %v1076 = vsel %vm1061, %v1074, %v1075
      %v1077 = vrot.slane %v927, 3
      %v1078 = vrot.slane %v928, 3
      %v1079 = vsel %vm1061, %v1077, %v1078
      %v1080 = vrot.slane %v929, 3
      %v1081 = vrot.slane %v930, 3
      %v1082 = vsel %vm1061, %v1080, %v1081
      %v1083 = vrot.slane %v931, 3
      %v1084 = vrot.slane %v932, 3
      %v1085 = vsel %vm1061, %v1083, %v1084
      %v1094 = vadd.f32 %v1053, %v1064
      %v1095 = vadd.f32 %v1054, %v1067
      %v1096 = vadd.f32 %v1055, %v1070
      %v1097 = vadd.f32 %v1056, %v1073
      %v1098 = vadd.f32 %v1057, %v1076
      %v1099 = vadd.f32 %v1058, %v1079
      %v1100 = vadd.f32 %v1059, %v1082
      %v1101 = vadd.f32 %v1060, %v1085
      %v1102 = vmul.f32 %v901, 0.16986425
      %v1103 = vmul.f32 %v902, 0.16986425
      %v1104 = vmul.f32 %v903, 0.16986425
      %v1105 = vmul.f32 %v904, 0.16986425
      %v1106 = vmul.f32 %v905, 0.16986425
      %v1107 = vmul.f32 %v906, 0.16986425
      %v1108 = vmul.f32 %v907, 0.16986425
      %v1109 = vmul.f32 %v908, 0.16986425
      %vm1126 = vcmask 1043456
      %v1127 = vrot.slane %v909, 4
      %v1128 = vrot.slane %v1102, 4
      %v1129 = vsel %vm1126, %v1127, %v1128
      %v1130 = vrot.slane %v910, 4
      %v1131 = vrot.slane %v1103, 4
      %v1132 = vsel %vm1126, %v1130, %v1131
      %v1133 = vrot.slane %v911, 4
      %v1134 = vrot.slane %v1104, 4
      %v1135 = vsel %vm1126, %v1133, %v1134
      %v1136 = vrot.slane %v912, 4
      %v1137 = vrot.slane %v1105, 4
      %v1138 = vsel %vm1126, %v1136, %v1137
      %v1139 = vrot.slane %v913, 4
      %v1140 = vrot.slane %v1106, 4
      %v1141 = vsel %vm1126, %v1139, %v1140
      %v1142 = vrot.slane %v914, 4
      %v1143 = vrot.slane %v1107, 4
      %v1144 = vsel %vm1126, %v1142, %v1143
      %v1145 = vrot.slane %v915, 4
      %v1146 = vrot.slane %v1108, 4
      %v1147 = vsel %vm1126, %v1145, %v1146
      %v1148 = vrot.slane %v916, 4
      %v1149 = vrot.slane %v1109, 4
      %v1150 = vsel %vm1126, %v1148, %v1149
      %v1159 = vadd.f32 %v1094, %v1129
      %v1160 = vadd.f32 %v1095, %v1132
      %v1161 = vadd.f32 %v1096, %v1135
      %v1162 = vadd.f32 %v1097, %v1138
      %v1163 = vadd.f32 %v1098, %v1141
      %v1164 = vadd.f32 %v1099, %v1144
      %v1165 = vadd.f32 %v1100, %v1147
      %v1166 = vadd.f32 %v1101, %v1150
      %v1167 = vld [vmem:[%s6] sm:$0x7]
      %v1168 = vlaneseq
      %v1169 = vshrl.u32 %v1168, 7
      %v1170 = vsub.s32 0, %v1169
      %v1171 = vrot.slane %v1167, %v1170
      %v1172 = vmul.f32 %v1171, %v586
      %v1173 = vmul.f32 %v1171, %v587
      %v1174 = vmul.f32 %v1171, %v588
      %v1175 = vmul.f32 %v1171, %v589
      %v1176 = vmul.f32 %v1171, %v590
      %v1177 = vmul.f32 %v1171, %v591
      %v1178 = vmul.f32 %v1171, %v592
      %v1179 = vmul.f32 %v1171, %v593
      %v1180 = vsub.f32 %v586, %v805
      %v1181 = vsub.f32 %v587, %v806
      %v1182 = vsub.f32 %v588, %v807
      %v1183 = vsub.f32 %v589, %v808
      %v1184 = vsub.f32 %v590, %v809
      %v1185 = vsub.f32 %v591, %v810
      %v1186 = vsub.f32 %v592, %v811
      %v1187 = vsub.f32 %v593, %v812
      %v1188 = vlaneseq
      %v1189 = vshrl.u32 %v1188, 7
      %v1190 = vsub.s32 1, %v1189
      %v1191 = vrot.slane %v1167, %v1190
      %v1192 = vmul.f32 %v1191, %v1180
      %v1193 = vmul.f32 %v1191, %v1181
      %v1194 = vmul.f32 %v1191, %v1182
      %v1195 = vmul.f32 %v1191, %v1183
      %v1196 = vmul.f32 %v1191, %v1184
      %v1197 = vmul.f32 %v1191, %v1185
      %v1198 = vmul.f32 %v1191, %v1186
      %v1199 = vmul.f32 %v1191, %v1187
      %v1200 = vadd.f32 %v1172, %v1192
      %v1201 = vadd.f32 %v1173, %v1193
      %v1202 = vadd.f32 %v1174, %v1194
      %v1203 = vadd.f32 %v1175, %v1195
      %v1204 = vadd.f32 %v1176, %v1196
      %v1205 = vadd.f32 %v1177, %v1197
      %v1206 = vadd.f32 %v1178, %v1198
      %v1207 = vadd.f32 %v1179, %v1199
      %v1208 = vsub.f32 %v805, %v1159
      %v1209 = vsub.f32 %v806, %v1160
      %v1210 = vsub.f32 %v807, %v1161
      %v1211 = vsub.f32 %v808, %v1162
      %v1212 = vsub.f32 %v809, %v1163
      %v1213 = vsub.f32 %v810, %v1164
      %v1214 = vsub.f32 %v811, %v1165
      %v1215 = vsub.f32 %v812, %v1166
      %v1216 = vlaneseq
      %v1217 = vshrl.u32 %v1216, 7
      %v1218 = vsub.s32 2, %v1217
      %v1219 = vrot.slane %v1167, %v1218
      %v1220 = vmul.f32 %v1219, %v1208
      %v1221 = vmul.f32 %v1219, %v1209
      %v1222 = vmul.f32 %v1219, %v1210
      %v1223 = vmul.f32 %v1219, %v1211
      %v1224 = vmul.f32 %v1219, %v1212
      %v1225 = vmul.f32 %v1219, %v1213
      %v1226 = vmul.f32 %v1219, %v1214
      %v1227 = vmul.f32 %v1219, %v1215
      %v1228 = vadd.f32 %v1200, %v1220
      %v1229 = vadd.f32 %v1201, %v1221
      %v1230 = vadd.f32 %v1202, %v1222
      %v1231 = vadd.f32 %v1203, %v1223
      %v1232 = vadd.f32 %v1204, %v1224
      %v1233 = vadd.f32 %v1205, %v1225
      %v1234 = vadd.f32 %v1206, %v1226
      %v1235 = vadd.f32 %v1207, %v1227
      %v1236 = vpack.c.bf16 %v1229, %v1228
      %v1237 = vpack.c.bf16 %v1231, %v1230
      %v1238 = vpack.c.bf16 %v1233, %v1232
      %v1239 = vpack.c.bf16 %v1235, %v1234
      %v1240 = vld [vmem:[%s7] sm:$0xff]
      %v1241 = vld [vmem:[%s7 + $0x8] sm:$0xff]
      %v1242 = vld [vmem:[%s7 + $0x10] sm:$0xff]
      %v1243 = vld [vmem:[%s7 + $0x18] sm:$0xff]
      %v1244 = vpack.c.bf16 %v1241, %v1240
      %v1245 = vpack.c.bf16 %v1243, %v1242
      %v1246 = vld [vmem:[%s8] sm:$0x1]
      %v1248 = vlaneseq
      %v1249 = vshrl.u32 %v1248, 7
      %v1250 = vsub.s32 0, %v1249
      %v1251 = vrot.slane %v1246, %v1250
      %v1254 = vsel %vm466, %v1236, 0
      %v1257 = vsel %vm466, %v1237, 0
      %v1260 = vsel %vm466, %v1238, 0
      %v1263 = vsel %vm466, %v1239, 0
      %1265 = vmatprep.subr.bf16.mxu0 0
      %1266 = vmatpush1.bf16.msra.mxu0 0
      %1267 = vmatprep.subr.bf16.mxu0 0
      %1268 = vmatpush1.bf16.msra.mxu0 0
      %1269 = vmatprep.subr.bf16.mxu0 0
      %1270 = vmatpush1.bf16.msra.mxu0 0
      %1271 = vmatprep.subr.bf16.mxu0 0
      %1272 = vmatpush1.bf16.msra.mxu0 0
      %1273 = vmatprep.subr.bf16.mxu0 0
      %1274 = vmatpush1.bf16.msra.mxu0 0
      %1275 = vmatprep.subr.bf16.mxu0 0
      %1276 = vmatpush1.bf16.msra.mxu0 0
      %1277 = vmatprep.subr.bf16.mxu0 0
      %1278 = vmatpush1.bf16.msra.mxu0 %v1245
      %1279 = vmatprep.subr.bf16.mxu0 0
      %1280 = vmatpush1.bf16.msra.mxu0 %v1244
      %1281 = vmatprep.subr.bf16.mxu0 0
      %1282 = vmatpush2.bf16.msra.mxu0 0
      %1283 = vmatprep.subr.bf16.mxu0 0
      %1284 = vmatpush2.bf16.msra.mxu0 0
      %1285 = vmatprep.subr.bf16.mxu0 0
      %1286 = vmatpush2.bf16.msra.mxu0 0
      %1287 = vmatprep.subr.bf16.mxu0 0
      %1288 = vmatpush2.bf16.msra.mxu0 0
      %1289 = vmatprep.subr.bf16.mxu0 0
      %1290 = vmatpush2.bf16.msra.mxu0 0
      %1291 = vmatprep.subr.bf16.mxu0 0
      %1292 = vmatpush2.bf16.msra.mxu0 0
      %1293 = vmatprep.subr.bf16.mxu0 0
      %1294 = vmatpush2.bf16.msra.mxu0 0
      %1295 = vmatprep.subr.bf16.mxu0 0
      %1296 = vmatpush2.bf16.msra.mxu0 0
      %1297 = vmatprep.mubr.bf16.mxu0 0
      %1298 = vmatmul.mubr.bf16.gmra.mxu0 %v1254
      %v1299 = vpop.f32.mrf.mxu0
      %v1300 = vadd.f32 %v1251, %v1299
      %v1301 = vpop.f32.mrf.mxu0
      %v1302 = vpop.f32.mrf.mxu0
      %v1303 = vadd.f32 %v1251, %v1302
      %v1304 = vpop.f32.mrf.mxu0
      %1305 = vmatprep.mubr.bf16.mxu0 0
      %1306 = vmatmul.mubr.bf16.gmra.mxu0 %v1257
      %v1307 = vpop.f32.mrf.mxu0
      %v1308 = vadd.f32 %v1251, %v1307
      %v1309 = vpop.f32.mrf.mxu0
      %v1310 = vpop.f32.mrf.mxu0
      %v1311 = vadd.f32 %v1251, %v1310
      %v1312 = vpop.f32.mrf.mxu0
      %1313 = vmatprep.mubr.bf16.mxu0 0
      %1314 = vmatmul.mubr.bf16.gmra.mxu0 %v1260
      %v1315 = vpop.f32.mrf.mxu0
      %v1316 = vadd.f32 %v1251, %v1315
      %v1317 = vpop.f32.mrf.mxu0
      %v1318 = vpop.f32.mrf.mxu0
      %v1319 = vadd.f32 %v1251, %v1318
      %v1320 = vpop.f32.mrf.mxu0
      %1321 = vmatprep.mubr.bf16.mxu0 0
      %1322 = vmatmul.mubr.bf16.gmra.mxu0 %v1263
      %v1323 = vpop.f32.mrf.mxu0
      %v1324 = vadd.f32 %v1251, %v1323
      %v1325 = vpop.f32.mrf.mxu0
      %v1326 = vpop.f32.mrf.mxu0
      %v1327 = vadd.f32 %v1251, %v1326
      %v1328 = vpop.f32.mrf.mxu0
      %1329 = vdwg.mxu0
      %vm1330 = vcmask 785408
      %1331 = vst.msk [vmem:[%s432] sm:$0xff] %vm1330, %v1300
      %1332 = vst.msk [vmem:[%s432 + $0x8] sm:$0xff] %vm1330, %v1303
      %1333 = vst.msk [vmem:[%s432 + $0x10] sm:$0xff] %vm1330, %v1308
      %1334 = vst.msk [vmem:[%s432 + $0x18] sm:$0xff] %vm1330, %v1311
      %1335 = vst.msk [vmem:[%s432 + $0x20] sm:$0xff] %vm1330, %v1316
      %1336 = vst.msk [vmem:[%s432 + $0x28] sm:$0xff] %vm1330, %v1319
      %1337 = vst.msk [vmem:[%s432 + $0x30] sm:$0xff] %vm1330, %v1324
      %1338 = vst.msk [vmem:[%s432 + $0x38] sm:$0xff] %vm1330, %v1327
      %p1339 = scmp.lt.s32.totalorder %s22, 1
      %s1340 = scalar_select %p1339, %s22, 1
      %s1341 = smul.addr %s1340, 8
      %s1342 = smul.addr %s1341, 8
      %s1343 = scalar_lea.vmem %s9, %s1342
      %p1344 = scmp.lt.s32.totalorder %s22, 1
      %s1345 = scalar_select %p1344, %s22, 1
      %s1346 = smul.addr %s1345, 8
      %s1347 = smul.addr %s1346, 8
      %s1348 = scalar_lea.vmem %s10, %s1347
      // Predicated region
      $region57: #{transformer_block_forward.8} parent=55 // pred_check
        %p1349 = pneg %p249
      $region58: #{transformer_block_forward.8} parent=55 // pred_check_branch
        %1351 = sbr.rel (%p1349) target = $region60
      $region59: #{transformer_block_forward.8} parent=55 // pred_region
        _
      $region60: #{transformer_block_forward.8} parent=55 // pred_fallthru
        _
      // Predicated region
      $region61: #{transformer_block_forward.8} parent=55 // pred_check
        %p1352 = pneg %p275
      $region62: #{transformer_block_forward.8} parent=55 // pred_check_branch
        %1354 = sbr.rel (%p1352) target = $region64
      $region63: #{transformer_block_forward.8} parent=55 // pred_region
        _
      $region64: #{transformer_block_forward.8} parent=55 // pred_fallthru
        _
    $region56: #{transformer_block_forward.8} parent=5 // pred_fallthru
      _
    %p1355 = scmp.le.s32.totalorder 2, %s17
    // Predicated region
    $region65: #{transformer_block_forward.8} parent=5 // pred_check
      %p1356 = pneg %p1355
    $region66: #{transformer_block_forward.8} parent=5 // pred_check_branch
      %1358 = sbr.rel (%p1356) target = $region68
    $region67: #{transformer_block_forward.8} parent=5 // pred_region
      %s1359 = ssub.s32 %s17, 2
      // Predicated region
      $region69: #{transformer_block_forward.8} parent=67 // pred_check
        %p1360 = pneg %p255
      $region70: #{transformer_block_forward.8} parent=67 // pred_check_branch
        %1362 = sbr.rel (%p1360) target = $region72
      $region71: #{transformer_block_forward.8} parent=67 // pred_region
        %p1363 = scmp.lt.s32.totalorder %s23, 1
        %s1364 = scalar_select %p1363, %s23, 1
        %s1365 = smul.addr %s1364, 8
        %s1366 = smul.addr %s1365, 8
        %s1367 = scalar_lea.vmem %s9, %s1366
      $region72: #{transformer_block_forward.8} parent=67 // pred_fallthru
        _
      // Predicated region
      $region73: #{transformer_block_forward.8} parent=67 // pred_check
        %p1368 = pneg %p281
      $region74: #{transformer_block_forward.8} parent=67 // pred_check_branch
        %1370 = sbr.rel (%p1368) target = $region76
      $region75: #{transformer_block_forward.8} parent=67 // pred_region
        %p1371 = scmp.lt.s32.totalorder %s23, 1
        %s1372 = scalar_select %p1371, %s23, 1
        %s1373 = smul.addr %s1372, 8
        %s1374 = smul.addr %s1373, 8
        %s1375 = scalar_lea.vmem %s10, %s1374
      $region76: #{transformer_block_forward.8} parent=67 // pred_fallthru
        _
    $region68: #{transformer_block_forward.8} parent=5 // pred_fallthru
      _
  $region6: #{transformer_block_forward.8} parent=0 // loop_footer
    %s21 = sadd.s32 1, %s17
  $region7: #{transformer_block_forward.8} parent=0 // loop_footer_branch
    %16 = sbr.rel target = $region3
  $region8: #{transformer_block_forward.8} parent=0 // loop_exit
    _

// kernel: transformer_block_forward.7
$region0: #{transformer_block_forward.7}
  #allocation0 [shape = 'u32[]', space=smem, size = 0x4, offset = 0x4, fixed_abs, tag = 'smem constant byte address 0x4 - core index']
  #allocation1 [shape = 'u32[144,128]{1,0:T(1,128)}', space=vmem, size = 0x12000, scoped, tag = 'internal scratch']
  %s0 = inlined_call_operand.vmem [shape: f32[2,16,16,32], index: 0, kind: input, shape index: {}]
  %s1 = inlined_call_operand.vmem [shape: f32[2,16,16,32], index: 1, kind: input, shape index: {}]
  %s2 = inlined_call_operand.vmem [shape: f32[1,32], index: 2, kind: input, shape index: {}]
  %s3 = inlined_call_operand.vmem [shape: f32[1,32], index: 3, kind: input, shape index: {}]
  %s4 = inlined_call_operand.vmem [shape: f32[32,64], index: 4, kind: input, shape index: {}]
  %s5 = inlined_call_operand.vmem [shape: f32[9,64], index: 5, kind: input, shape index: {}]
  %s6 = inlined_call_operand.vmem [shape: f32[1,32], index: 6, kind: input, shape index: {}]
  %s7 = inlined_call_operand.vmem [shape: f32[32,32], index: 7, kind: input, shape index: {}]
  %s8 = inlined_call_operand.vmem [shape: f32[32,32], index: 8, kind: input, shape index: {}]
  %s9 = inlined_call_operand.vmem [shape: f32[2,16,16,32], index: 9, kind: output, shape index: {}]
  %s10 = sld [smem:[#allocation0]]
  $region69: #{transformer_block_forward.7} parent=0
    _
  %s12 = ssub.s32 1, %s10
  %s13 = scalar_select 0, %s12, %s10
  loop: start=0, step=1, limit=4
  $region2: #{transformer_block_forward.7} parent=0 // loop_pre_header
    _
  $region3: #{transformer_block_forward.7} parent=0 // loop_header
    %s15 = sphi 0, %s19
    %p16 = scmp.ge.s32.totalorder %s15, 4
    %s25 = sphi 0, %s27
    %s28 = sphi 0, %s25
    %s29 = sphi 0, %s28
    %s45 = sphi 0, %s29
    %s51 = sphi 0, %s53
    %s54 = sphi 0, %s51
    %s55 = sphi 0, %s54
    %s71 = sphi 0, %s55
    %s75 = sphi 0, %s75
    %s77 = sphi 0, %s75
    %s78 = sphi 0, %s77
    %s92 = sphi 0, %s78
    %s96 = sphi 0, %s96
    %s98 = sphi 0, %s96
    %s99 = sphi 0, %s98
    %s113 = sphi 0, %s99
    %s117 = sphi 0, %s117
    %s119 = sphi 0, %s117
    %s120 = sphi 0, %s119
    %s134 = sphi 0, %s120
    %s138 = sphi 0, %s138
    %s140 = sphi 0, %s138
    %s141 = sphi 0, %s140
    %s155 = sphi 0, %s141
    %s159 = sphi 0, %s159
    %s161 = sphi 0, %s159
    %s162 = sphi 0, %s161
    %s176 = sphi 0, %s162
    %s180 = sphi 0, %s180
    %s182 = sphi 0, %s180
    %s183 = sphi 0, %s182
    %s197 = sphi 0, %s183
    %s201 = sphi 0, %s201
    %s203 = sphi 0, %s201
    %s204 = sphi 0, %s203
    %s218 = sphi 0, %s204
    %s224 = sphi 0, %s226
    %s227 = sphi 0, %s224
    %s228 = sphi 0, %s227
    %s244 = sphi 0, %s228
  $region4: #{transformer_block_forward.7} parent=0 // loop_header_branch
    %18 = sbr.rel (%p16) target = $region8
  $region5: #{transformer_block_forward.7} parent=0 // loop_body
    %s20 = ssub.s32 %s15, 1
    %s21 = ssub.s32 %s15, 2
    %s22 = sadd.s32 %s15, 1
    %s23 = ssub.s32 %s15, %s22
    %p24 = scmp.eq.s32.totalorder %s23, 0
    %s26 = sadd.s32 %s25, 1
    %s27 = scalar_select %p24, %s25, %s26
    %p30 = pneg %p24
    %p31 = scmp.eq.s32.totalorder %s15, 1
    %p32 = por %p30, %p31
    %p33 = scmp.ne.s32.totalorder %s25, %s28
    %p34 = scmp.eq.s32.totalorder %s15, 0
    %p35 = por %p33, %p34
    %p36 = scmp.ne.s32.totalorder %s25, %s28
    %p37 = scmp.eq.s32.totalorder %s20, 1
    %p38 = por %p36, %p37
    %p39 = scmp.ne.s32.totalorder %s28, %s29
    %p40 = scmp.eq.s32.totalorder %s20, 0
    %p41 = por %p39, %p40
    %p42 = scmp.ne.s32.totalorder %s28, %s29
    %p43 = scmp.eq.s32.totalorder %s21, 1
    %p44 = por %p42, %p43
    %p46 = scmp.ne.s32.totalorder %s29, %s45
    %p47 = scmp.eq.s32.totalorder %s21, 0
    %p48 = por %p46, %p47
    %s49 = ssub.s32 %s15, %s22
    %p50 = scmp.eq.s32.totalorder %s49, 0
    %s52 = sadd.s32 %s51, 1
    %s53 = scalar_select %p50, %s51, %s52
    %p56 = pneg %p50
    %p57 = scmp.eq.s32.totalorder %s15, 1
    %p58 = por %p56, %p57
    %p59 = scmp.ne.s32.totalorder %s51, %s54
    %p60 = scmp.eq.s32.totalorder %s15, 0
    %p61 = por %p59, %p60
    %p62 = scmp.ne.s32.totalorder %s51, %s54
    %p63 = scmp.eq.s32.totalorder %s20, 1
    %p64 = por %p62, %p63
    %p65 = scmp.ne.s32.totalorder %s54, %s55
    %p66 = scmp.eq.s32.totalorder %s20, 0
    %p67 = por %p65, %p66
    %p68 = scmp.ne.s32.totalorder %s54, %s55
    %p69 = scmp.eq.s32.totalorder %s21, 1
    %p70 = por %p68, %p69
    %p72 = scmp.ne.s32.totalorder %s55, %s71
    %p73 = scmp.eq.s32.totalorder %s21, 0
    %p74 = por %p72, %p73
    %s76 = sadd.s32 %s75, 1
    %p79 = scmp.eq.s32.totalorder %s15, 1
    %p80 = scmp.ne.s32.totalorder %s75, %s77
    %p81 = scmp.eq.s32.totalorder %s15, 0
    %p82 = por %p80, %p81
    %p83 = scmp.ne.s32.totalorder %s75, %s77
    %p84 = scmp.eq.s32.totalorder %s20, 1
    %p85 = por %p83, %p84
    %p86 = scmp.ne.s32.totalorder %s77, %s78
    %p87 = scmp.eq.s32.totalorder %s20, 0
    %p88 = por %p86, %p87
    %p89 = scmp.ne.s32.totalorder %s77, %s78
    %p90 = scmp.eq.s32.totalorder %s21, 1
    %p91 = por %p89, %p90
    %p93 = scmp.ne.s32.totalorder %s78, %s92
    %p94 = scmp.eq.s32.totalorder %s21, 0
    %p95 = por %p93, %p94
    %s97 = sadd.s32 %s96, 1
    %p100 = scmp.eq.s32.totalorder %s15, 1
    %p101 = scmp.ne.s32.totalorder %s96, %s98
    %p102 = scmp.eq.s32.totalorder %s15, 0
    %p103 = por %p101, %p102
    %p104 = scmp.ne.s32.totalorder %s96, %s98
    %p105 = scmp.eq.s32.totalorder %s20, 1
    %p106 = por %p104, %p105
    %p107 = scmp.ne.s32.totalorder %s98, %s99
    %p108 = scmp.eq.s32.totalorder %s20, 0
    %p109 = por %p107, %p108
    %p110 = scmp.ne.s32.totalorder %s98, %s99
    %p111 = scmp.eq.s32.totalorder %s21, 1
    %p112 = por %p110, %p111
    %p114 = scmp.ne.s32.totalorder %s99, %s113
    %p115 = scmp.eq.s32.totalorder %s21, 0
    %p116 = por %p114, %p115
    %s118 = sadd.s32 %s117, 1
    %p121 = scmp.eq.s32.totalorder %s15, 1
    %p122 = scmp.ne.s32.totalorder %s117, %s119
    %p123 = scmp.eq.s32.totalorder %s15, 0
    %p124 = por %p122, %p123
    %p125 = scmp.ne.s32.totalorder %s117, %s119
    %p126 = scmp.eq.s32.totalorder %s20, 1
    %p127 = por %p125, %p126
    %p128 = scmp.ne.s32.totalorder %s119, %s120
    %p129 = scmp.eq.s32.totalorder %s20, 0
    %p130 = por %p128, %p129
    %p131 = scmp.ne.s32.totalorder %s119, %s120
    %p132 = scmp.eq.s32.totalorder %s21, 1
    %p133 = por %p131, %p132
    %p135 = scmp.ne.s32.totalorder %s120, %s134
    %p136 = scmp.eq.s32.totalorder %s21, 0
    %p137 = por %p135, %p136
    %s139 = sadd.s32 %s138, 1
    %p142 = scmp.eq.s32.totalorder %s15, 1
    %p143 = scmp.ne.s32.totalorder %s138, %s140
    %p144 = scmp.eq.s32.totalorder %s15, 0
    %p145 = por %p143, %p144
    %p146 = scmp.ne.s32.totalorder %s138, %s140
    %p147 = scmp.eq.s32.totalorder %s20, 1
    %p148 = por %p146, %p147
    %p149 = scmp.ne.s32.totalorder %s140, %s141
    %p150 = scmp.eq.s32.totalorder %s20, 0
    %p151 = por %p149, %p150
    %p152 = scmp.ne.s32.totalorder %s140, %s141
    %p153 = scmp.eq.s32.totalorder %s21, 1
    %p154 = por %p152, %p153
    %p156 = scmp.ne.s32.totalorder %s141, %s155
    %p157 = scmp.eq.s32.totalorder %s21, 0
    %p158 = por %p156, %p157
    %s160 = sadd.s32 %s159, 1
    %p163 = scmp.eq.s32.totalorder %s15, 1
    %p164 = scmp.ne.s32.totalorder %s159, %s161
    %p165 = scmp.eq.s32.totalorder %s15, 0
    %p166 = por %p164, %p165
    %p167 = scmp.ne.s32.totalorder %s159, %s161
    %p168 = scmp.eq.s32.totalorder %s20, 1
    %p169 = por %p167, %p168
    %p170 = scmp.ne.s32.totalorder %s161, %s162
    %p171 = scmp.eq.s32.totalorder %s20, 0
    %p172 = por %p170, %p171
    %p173 = scmp.ne.s32.totalorder %s161, %s162
    %p174 = scmp.eq.s32.totalorder %s21, 1
    %p175 = por %p173, %p174
    %p177 = scmp.ne.s32.totalorder %s162, %s176
    %p178 = scmp.eq.s32.totalorder %s21, 0
    %p179 = por %p177, %p178
    %s181 = sadd.s32 %s180, 1
    %p184 = scmp.eq.s32.totalorder %s15, 1
    %p185 = scmp.ne.s32.totalorder %s180, %s182
    %p186 = scmp.eq.s32.totalorder %s15, 0
    %p187 = por %p185, %p186
    %p188 = scmp.ne.s32.totalorder %s180, %s182
    %p189 = scmp.eq.s32.totalorder %s20, 1
    %p190 = por %p188, %p189
    %p191 = scmp.ne.s32.totalorder %s182, %s183
    %p192 = scmp.eq.s32.totalorder %s20, 0
    %p193 = por %p191, %p192
    %p194 = scmp.ne.s32.totalorder %s182, %s183
    %p195 = scmp.eq.s32.totalorder %s21, 1
    %p196 = por %p194, %p195
    %p198 = scmp.ne.s32.totalorder %s183, %s197
    %p199 = scmp.eq.s32.totalorder %s21, 0
    %p200 = por %p198, %p199
    %s202 = sadd.s32 %s201, 1
    %p205 = scmp.eq.s32.totalorder %s15, 1
    %p206 = scmp.ne.s32.totalorder %s201, %s203
    %p207 = scmp.eq.s32.totalorder %s15, 0
    %p208 = por %p206, %p207
    %p209 = scmp.ne.s32.totalorder %s201, %s203
    %p210 = scmp.eq.s32.totalorder %s20, 1
    %p211 = por %p209, %p210
    %p212 = scmp.ne.s32.totalorder %s203, %s204
    %p213 = scmp.eq.s32.totalorder %s20, 0
    %p214 = por %p212, %p213
    %p215 = scmp.ne.s32.totalorder %s203, %s204
    %p216 = scmp.eq.s32.totalorder %s21, 1
    %p217 = por %p215, %p216
    %p219 = scmp.ne.s32.totalorder %s204, %s218
    %p220 = scmp.eq.s32.totalorder %s21, 0
    %p221 = por %p219, %p220
    %s222 = ssub.s32 %s15, %s22
    %p223 = scmp.eq.s32.totalorder %s222, 0
    %s225 = sadd.s32 %s224, 1
    %s226 = scalar_select %p223, %s224, %s225
    %p229 = pneg %p223
    %p230 = scmp.eq.s32.totalorder %s15, 1
    %p231 = por %p229, %p230
    %p232 = scmp.ne.s32.totalorder %s224, %s227
    %p233 = scmp.eq.s32.totalorder %s15, 0
    %p234 = por %p232, %p233
    %p235 = scmp.ne.s32.totalorder %s224, %s227
    %p236 = scmp.eq.s32.totalorder %s20, 1
    %p237 = por %p235, %p236
    %p238 = scmp.ne.s32.totalorder %s227, %s228
    %p239 = scmp.eq.s32.totalorder %s20, 0
    %p240 = por %p238, %p239
    %p241 = scmp.ne.s32.totalorder %s227, %s228
    %p242 = scmp.eq.s32.totalorder %s21, 1
    %p243 = por %p241, %p242
    %p245 = scmp.ne.s32.totalorder %s228, %s244
    %p246 = scmp.eq.s32.totalorder %s21, 0
    %p247 = por %p245, %p246
    %p248 = scmp.le.s32.totalorder 1, %s15
    %p249 = scmp.lt.s32.totalorder %s15, 3
    %p250 = pnand %p248, %p249
    %p251 = pneg %p250
    // Predicated region
    $region9: #{transformer_block_forward.7} parent=5 // pred_check
      _
    $region10: #{transformer_block_forward.7} parent=5 // pred_check_branch
      %253 = sbr.rel (%p250) target = $region12
    $region11: #{transformer_block_forward.7} parent=5 // pred_region
      %s254 = ssub.s32 %s15, 1
      // Predicated region
      $region13: #{transformer_block_forward.7} parent=11 // pred_check
        %p255 = pneg %p88
      $region14: #{transformer_block_forward.7} parent=11 // pred_check_branch
        %257 = sbr.rel (%p255) target = $region16
      $region15: #{transformer_block_forward.7} parent=11 // pred_region
        _
      $region16: #{transformer_block_forward.7} parent=11 // pred_fallthru
        _
      // Predicated region
      $region17: #{transformer_block_forward.7} parent=11 // pred_check
        %p258 = pneg %p109
      $region18: #{transformer_block_forward.7} parent=11 // pred_check_branch
        %260 = sbr.rel (%p258) target = $region20
      $region19: #{transformer_block_forward.7} parent=11 // pred_region
        _
      $region20: #{transformer_block_forward.7} parent=11 // pred_fallthru
        _
      // Predicated region
      $region21: #{transformer_block_forward.7} parent=11 // pred_check
        %p261 = pneg %p130
      $region22: #{transformer_block_forward.7} parent=11 // pred_check_branch
        %263 = sbr.rel (%p261) target = $region24
      $region23: #{transformer_block_forward.7} parent=11 // pred_region
        _
      $region24: #{transformer_block_forward.7} parent=11 // pred_fallthru
        _
      // Predicated region
      $region25: #{transformer_block_forward.7} parent=11 // pred_check
        %p264 = pneg %p151
      $region26: #{transformer_block_forward.7} parent=11 // pred_check_branch
        %266 = sbr.rel (%p264) target = $region28
      $region27: #{transformer_block_forward.7} parent=11 // pred_region
        _
      $region28: #{transformer_block_forward.7} parent=11 // pred_fallthru
        _
      // Predicated region
      $region29: #{transformer_block_forward.7} parent=11 // pred_check
        %p267 = pneg %p172
      $region30: #{transformer_block_forward.7} parent=11 // pred_check_branch
        %269 = sbr.rel (%p267) target = $region32
      $region31: #{transformer_block_forward.7} parent=11 // pred_region
        _
      $region32: #{transformer_block_forward.7} parent=11 // pred_fallthru
        _
      // Predicated region
      $region33: #{transformer_block_forward.7} parent=11 // pred_check
        %p270 = pneg %p193
      $region34: #{transformer_block_forward.7} parent=11 // pred_check_branch
        %272 = sbr.rel (%p270) target = $region36
      $region35: #{transformer_block_forward.7} parent=11 // pred_region
        _
      $region36: #{transformer_block_forward.7} parent=11 // pred_fallthru
        _
      // Predicated region
      $region37: #{transformer_block_forward.7} parent=11 // pred_check
        %p273 = pneg %p214
      $region38: #{transformer_block_forward.7} parent=11 // pred_check_branch
        %275 = sbr.rel (%p273) target = $region40
      $region39: #{transformer_block_forward.7} parent=11 // pred_region
        _
      $region40: #{transformer_block_forward.7} parent=11 // pred_fallthru
        _
    $region12: #{transformer_block_forward.7} parent=5 // pred_fallthru
      _
    %p276 = scmp.lt.s32.totalorder %s15, 2
    // Predicated region
    $region41: #{transformer_block_forward.7} parent=5 // pred_check
      %p277 = pneg %p276
    $region42: #{transformer_block_forward.7} parent=5 // pred_check_branch
      %279 = sbr.rel (%p277) target = $region44
    $region43: #{transformer_block_forward.7} parent=5 // pred_region
      // Predicated region
      $region45: #{transformer_block_forward.7} parent=43 // pred_check
        %p280 = pneg %p35
      $region46: #{transformer_block_forward.7} parent=43 // pred_check_branch
        %282 = sbr.rel (%p280) target = $region48
      $region47: #{transformer_block_forward.7} parent=43 // pred_region
        %p283 = scmp.lt.s32.totalorder %s15, 1
        %s284 = scalar_select %p283, %s15, 1
        %s285 = smul.addr %s284, 32
        %s286 = smul.addr %s285, 8
        %s287 = scalar_lea.vmem %s0, %s286
      $region48: #{transformer_block_forward.7} parent=43 // pred_fallthru
        _
      // Predicated region
      $region49: #{transformer_block_forward.7} parent=43 // pred_check
        %p288 = pneg %p61
      $region50: #{transformer_block_forward.7} parent=43 // pred_check_branch
        %290 = sbr.rel (%p288) target = $region52
      $region51: #{transformer_block_forward.7} parent=43 // pred_region
        %p291 = scmp.lt.s32.totalorder %s15, 1
        %s292 = scalar_select %p291, %s15, 1
        %s293 = smul.addr %s292, 32
        %s294 = smul.addr %s293, 8
        %s295 = scalar_lea.vmem %s1, %s294
      $region52: #{transformer_block_forward.7} parent=43 // pred_fallthru
        _
    $region44: #{transformer_block_forward.7} parent=5 // pred_fallthru
      _
    %p296 = scmp.le.s32.totalorder 1, %s15
    %p297 = scmp.lt.s32.totalorder %s15, 3
    %p298 = pnand %p296, %p297
    %p299 = pneg %p298
    // Predicated region
    $region53: #{transformer_block_forward.7} parent=5 // pred_check
      _
    $region54: #{transformer_block_forward.7} parent=5 // pred_check_branch
      %301 = sbr.rel (%p298) target = $region56
    $region55: #{transformer_block_forward.7} parent=5 // pred_region
      %s302 = ssub.s32 %s15, 1
      %p303 = scmp.lt.s32.totalorder %s20, 1
      %s304 = scalar_select %p303, %s20, 1
      %s305 = smul.addr %s304, 32
      %s306 = smul.addr %s305, 8
      %s307 = scalar_lea.vmem %s0, %s306
      %p308 = pneg %p41
      %p309 = pneg %p38
      %p310 = scmp.lt.s32.totalorder %s20, 1
      %s311 = scalar_select %p310, %s20, 1
      %s312 = smul.addr %s311, 32
      %s313 = smul.addr %s312, 8
      %s314 = scalar_lea.vmem %s1, %s313
      %p315 = pneg %p67
      %p316 = pneg %p64
      %p317 = pneg %p88
      %p318 = pneg %p85
      %p319 = pneg %p109
      %p320 = pneg %p106
      %p321 = pneg %p130
      %p322 = pneg %p127
      %p323 = pneg %p151
      %p324 = pneg %p148
      %p325 = pneg %p172
      %p326 = pneg %p169
      %p327 = pneg %p193
      %p328 = pneg %p190
      %p329 = pneg %p214
      %p330 = pneg %p211
      %p331 = pneg %p240
      %p332 = pneg %p237
      %p333 = scmp.lt.s32.totalorder %s20, 1
      %s334 = scalar_select %p333, %s20, 1
      %s335 = smul.addr %s334, 32
      %s336 = smul.addr %s335, 8
      %s337 = scalar_lea.vmem %s9, %s336
      %p338 = scmp.lt.s32.totalorder %s20, 1
      %s339 = scalar_select %p338, %s20, 1
      %s340 = smul.addr %s339, 32
      %s341 = smul.addr %s340, 8
      %s342 = scalar_lea.vmem %s0, %s341
      %p343 = scmp.lt.s32.totalorder %s20, 1
      %s344 = scalar_select %p343, %s20, 1
      %s345 = smul.addr %s344, 32
      %s346 = smul.addr %s345, 8
      %s347 = scalar_lea.vmem %s1, %s346
      %p348 = scmp.lt.s32.totalorder %s20, 1
      %s349 = scalar_select %p348, %s20, 1
      %s350 = smul.addr %s349, 32
      %s351 = smul.addr %s350, 8
      %s352 = scalar_lea.vmem %s9, %s351
      %v354 = vld [vmem:[%s342] sm:$0xff]
      %v355 = vld [vmem:[%s342 + $0x8] sm:$0xff]
      %v356 = vld [vmem:[%s342 + $0x10] sm:$0xff]
      %v357 = vld [vmem:[%s342 + $0x18] sm:$0xff]
      %v358 = vld [vmem:[%s342 + $0x20] sm:$0xff]
      %v359 = vld [vmem:[%s342 + $0x28] sm:$0xff]
      %v360 = vld [vmem:[%s342 + $0x30] sm:$0xff]
      %v361 = vld [vmem:[%s342 + $0x38] sm:$0xff]
      %v362 = vld [vmem:[%s342 + $0x40] sm:$0xff]
      %v363 = vld [vmem:[%s342 + $0x48] sm:$0xff]
      %v364 = vld [vmem:[%s342 + $0x50] sm:$0xff]
      %v365 = vld [vmem:[%s342 + $0x58] sm:$0xff]
      %v366 = vld [vmem:[%s342 + $0x60] sm:$0xff]
      %v367 = vld [vmem:[%s342 + $0x68] sm:$0xff]
      %v368 = vld [vmem:[%s342 + $0x70] sm:$0xff]
      %v369 = vld [vmem:[%s342 + $0x78] sm:$0xff]
      %v370 = vld [vmem:[%s342 + $0x80] sm:$0xff]
      %v371 = vld [vmem:[%s342 + $0x88] sm:$0xff]
      %v372 = vld [vmem:[%s342 + $0x90] sm:$0xff]
      %v373 = vld [vmem:[%s342 + $0x98] sm:$0xff]
      %v374 = vld [vmem:[%s342 + $0xa0] sm:$0xff]
      %v375 = vld [vmem:[%s342 + $0xa8] sm:$0xff]
      %v376 = vld [vmem:[%s342 + $0xb0] sm:$0xff]
      %v377 = vld [vmem:[%s342 + $0xb8] sm:$0xff]
      %v378 = vld [vmem:[%s342 + $0xc0] sm:$0xff]
      %v379 = vld [vmem:[%s342 + $0xc8] sm:$0xff]
      %v380 = vld [vmem:[%s342 + $0xd0] sm:$0xff]
      %v381 = vld [vmem:[%s342 + $0xd8] sm:$0xff]
      %v382 = vld [vmem:[%s342 + $0xe0] sm:$0xff]
      %v383 = vld [vmem:[%s342 + $0xe8] sm:$0xff]
      %v384 = vld [vmem:[%s342 + $0xf0] sm:$0xff]
      %v385 = vld [vmem:[%s342 + $0xf8] sm:$0xff]
      %v386 = vld [vmem:[%s2] sm:$0x1]
      %v387 = vld [vmem:[%s3] sm:$0x1]
      %vm388 = vcmask 261120
      %v389 = vsel %vm388, %v354, 0.0
      %390 = vadd.xlane.f32.xlu0 %v389
      %v391 = vpop.xlane.xlu0 %390
      %v392 = vsel %vm388, %v355, 0.0
      %393 = vadd.xlane.f32.xlu0 %v392
      %v394 = vpop.xlane.xlu0 %393
      %v395 = vsel %vm388, %v356, 0.0
      %396 = vadd.xlane.f32.xlu0 %v395
      %v397 = vpop.xlane.xlu0 %396
      %v398 = vsel %vm388, %v357, 0.0
      %399 = vadd.xlane.f32.xlu0 %v398
      %v400 = vpop.xlane.xlu0 %399
      %v401 = vsel %vm388, %v358, 0.0
      %402 = vadd.xlane.f32.xlu0 %v401
      %v403 = vpop.xlane.xlu0 %402
      %v404 = vsel %vm388, %v359, 0.0
      %405 = vadd.xlane.f32.xlu0 %v404
      %v406 = vpop.xlane.xlu0 %405
      %v407 = vsel %vm388, %v360, 0.0
      %408 = vadd.xlane.f32.xlu0 %v407
      %v409 = vpop.xlane.xlu0 %408
      %v410 = vsel %vm388, %v361, 0.0
      %411 = vadd.xlane.f32.xlu0 %v410
      %v412 = vpop.xlane.xlu0 %411
      %v413 = vsel %vm388, %v362, 0.0
      %414 = vadd.xlane.f32.xlu0 %v413
      %v415 = vpop.xlane.xlu0 %414
      %v416 = vsel %vm388, %v363, 0.0
      %417 = vadd.xlane.f32.xlu0 %v416
      %v418 = vpop.xlane.xlu0 %417
      %v419 = vsel %vm388, %v364, 0.0
      %420 = vadd.xlane.f32.xlu0 %v419
      %v421 = vpop.xlane.xlu0 %420
      %v422 = vsel %vm388, %v365, 0.0
      %423 = vadd.xlane.f32.xlu0 %v422
      %v424 = vpop.xlane.xlu0 %423
      %v425 = vsel %vm388, %v366, 0.0
      %426 = vadd.xlane.f32.xlu0 %v425
      %v427 = vpop.xlane.xlu0 %426
      %v428 = vsel %vm388, %v367, 0.0
      %429 = vadd.xlane.f32.xlu0 %v428
      %v430 = vpop.xlane.xlu0 %429
      %v431 = vsel %vm388, %v368, 0.0
      %432 = vadd.xlane.f32.xlu0 %v431
      %v433 = vpop.xlane.xlu0 %432
      %v434 = vsel %vm388, %v369, 0.0
      %435 = vadd.xlane.f32.xlu0 %v434
      %v436 = vpop.xlane.xlu0 %435
      %v437 = vsel %vm388, %v370, 0.0
      %438 = vadd.xlane.f32.xlu0 %v437
      %v439 = vpop.xlane.xlu0 %438
      %v440 = vsel %vm388, %v371, 0.0
      %441 = vadd.xlane.f32.xlu0 %v440
      %v442 = vpop.xlane.xlu0 %441
      %v443 = vsel %vm388, %v372, 0.0
      %444 = vadd.xlane.f32.xlu0 %v443
      %v445 = vpop.xlane.xlu0 %444
      %v446 = vsel %vm388, %v373, 0.0
      %447 = vadd.xlane.f32.xlu0 %v446
      %v448 = vpop.xlane.xlu0 %447
      %v449 = vsel %vm388, %v374, 0.0
      %450 = vadd.xlane.f32.xlu0 %v449
      %v451 = vpop.xlane.xlu0 %450
      %v452 = vsel %vm388, %v375, 0.0
      %453 = vadd.xlane.f32.xlu0 %v452
      %v454 = vpop.xlane.xlu0 %453
      %v455 = vsel %vm388, %v376, 0.0
      %456 = vadd.xlane.f32.xlu0 %v455
      %v457 = vpop.xlane.xlu0 %456
      %v458 = vsel %vm388, %v377, 0.0
      %459 = vadd.xlane.f32.xlu0 %v458
      %v460 = vpop.xlane.xlu0 %459
      %v461 = vsel %vm388, %v378, 0.0
      %462 = vadd.xlane.f32.xlu0 %v461
      %v463 = vpop.xlane.xlu0 %462
      %v464 = vsel %vm388, %v379, 0.0
      %465 = vadd.xlane.f32.xlu0 %v464
      %v466 = vpop.xlane.xlu0 %465
      %v467 = vsel %vm388, %v380, 0.0
      %468 = vadd.xlane.f32.xlu0 %v467
      %v469 = vpop.xlane.xlu0 %468
      %v470 = vsel %vm388, %v381, 0.0
      %471 = vadd.xlane.f32.xlu0 %v470
      %v472 = vpop.xlane.xlu0 %471
      %v473 = vsel %vm388, %v382, 0.0
      %474 = vadd.xlane.f32.xlu0 %v473
      %v475 = vpop.xlane.xlu0 %474
      %v476 = vsel %vm388, %v383, 0.0
      %477 = vadd.xlane.f32.xlu0 %v476
      %v478 = vpop.xlane.xlu0 %477
      %v479 = vsel %vm388, %v384, 0.0
      %480 = vadd.xlane.f32.xlu0 %v479
      %v481 = vpop.xlane.xlu0 %480
      %v482 = vsel %vm388, %v385, 0.0
      %483 = vadd.xlane.f32.xlu0 %v482
      %v484 = vpop.xlane.xlu0 %483
      %v485 = vrcp.pop 32.0
      %v486 = vmul.f32 %v391, %v485
      %v487 = vmul.f32 %v394, %v485
      %v488 = vmul.f32 %v397, %v485
      %v489 = vmul.f32 %v400, %v485
      %v490 = vmul.f32 %v403, %v485
      %v491 = vmul.f32 %v406, %v485
      %v492 = vmul.f32 %v409, %v485
      %v493 = vmul.f32 %v412, %v485
      %v494 = vmul.f32 %v415, %v485
      %v495 = vmul.f32 %v418, %v485
      %v496 = vmul.f32 %v421, %v485
      %v497 = vmul.f32 %v424, %v485
      %v498 = vmul.f32 %v427, %v485
      %v499 = vmul.f32 %v430, %v485
      %v500 = vmul.f32 %v433, %v485
      %v501 = vmul.f32 %v436, %v485
      %v502 = vmul.f32 %v439, %v485
      %v503 = vmul.f32 %v442, %v485
      %v504 = vmul.f32 %v445, %v485
      %v505 = vmul.f32 %v448, %v485
      %v506 = vmul.f32 %v451, %v485
      %v507 = vmul.f32 %v454, %v485
      %v508 = vmul.f32 %v457, %v485
      %v509 = vmul.f32 %v460, %v485
      %v510 = vmul.f32 %v463, %v485
      %v511 = vmul.f32 %v466, %v485
      %v512 = vmul.f32 %v469, %v485
      %v513 = vmul.f32 %v472, %v485
      %v514 = vmul.f32 %v475, %v485
      %v515 = vmul.f32 %v478, %v485
      %v516 = vmul.f32 %v481, %v485
      %v517 = vmul.f32 %v484, %v485
      %v518 = vsub.f32 %v354, %v486
      %v519 = vsub.f32 %v355, %v487
      %v520 = vsub.f32 %v356, %v488
      %v521 = vsub.f32 %v357, %v489
      %v522 = vsub.f32 %v358, %v490
      %v523 = vsub.f32 %v359, %v491
      %v524 = vsub.f32 %v360, %v492
      %v525 = vsub.f32 %v361, %v493
      %v526 = vsub.f32 %v362, %v494
      %v527 = vsub.f32 %v363, %v495
      %v528 = vsub.f32 %v364, %v496
      %v529 = vsub.f32 %v365, %v497
      %v530 = vsub.f32 %v366, %v498
      %v531 = vsub.f32 %v367, %v499
      %v532 = vsub.f32 %v368, %v500
      %v533 = vsub.f32 %v369, %v501
      %v534 = vsub.f32 %v370, %v502
      %v535 = vsub.f32 %v371, %v503
      %v536 = vsub.f32 %v372, %v504
      %v537 = vsub.f32 %v373, %v505
      %v538 = vsub.f32 %v374, %v506
      %v539 = vsub.f32 %v375, %v507
      %v540 = vsub.f32 %v376, %v508
      %v541 = vsub.f32 %v377, %v509
      %v542 = vsub.f32 %v378, %v510
      %v543 = vsub.f32 %v379, %v511
      %v544 = vsub.f32 %v380, %v512
      %v545 = vsub.f32 %v381, %v513
      %v546 = vsub.f32 %v382, %v514
      %v547 = vsub.f32 %v383, %v515
      %v548 = vsub.f32 %v384, %v516
      %v549 = vsub.f32 %v385, %v517
      %v550 = vmul.f32 %v518, %v518
      %v551 = vmul.f32 %v519, %v519
      %v552 = vmul.f32 %v520, %v520
      %v553 = vmul.f32 %v521, %v521
      %v554 = vmul.f32 %v522, %v522
      %v555 = vmul.f32 %v523, %v523
      %v556 = vmul.f32 %v524, %v524
      %v557 = vmul.f32 %v525, %v525
      %v558 = vmul.f32 %v526, %v526
      %v559 = vmul.f32 %v527, %v527
      %v560 = vmul.f32 %v528, %v528
      %v561 = vmul.f32 %v529, %v529
      %v562 = vmul.f32 %v530, %v530
      %v563 = vmul.f32 %v531, %v531
      %v564 = vmul.f32 %v532, %v532
      %v565 = vmul.f32 %v533, %v533
      %v566 = vmul.f32 %v534, %v534
      %v567 = vmul.f32 %v535, %v535
      %v568 = vmul.f32 %v536, %v536
      %v569 = vmul.f32 %v537, %v537
      %v570 = vmul.f32 %v538, %v538
      %v571 = vmul.f32 %v539, %v539
      %v572 = vmul.f32 %v540, %v540
      %v573 = vmul.f32 %v541, %v541
      %v574 = vmul.f32 %v542, %v542
      %v575 = vmul.f32 %v543, %v543
      %v576 = vmul.f32 %v544, %v544
      %v577 = vmul.f32 %v545, %v545
      %v578 = vmul.f32 %v546, %v546
      %v579 = vmul.f32 %v547, %v547
      %v580 = vmul.f32 %v548, %v548
      %v581 = vmul.f32 %v549, %v549
      %v582 = vsel %vm388, %v550, 0.0
      %583 = vadd.xlane.f32.xlu0 %v582
      %v584 = vpop.xlane.xlu0 %583
      %v585 = vsel %vm388, %v551, 0.0
      %586 = vadd.xlane.f32.xlu0 %v585
      %v587 = vpop.xlane.xlu0 %586
      %v588 = vsel %vm388, %v552, 0.0
      %589 = vadd.xlane.f32.xlu0 %v588
      %v590 = vpop.xlane.xlu0 %589
      %v591 = vsel %vm388, %v553, 0.0
      %592 = vadd.xlane.f32.xlu0 %v591
      %v593 = vpop.xlane.xlu0 %592
      %v594 = vsel %vm388, %v554, 0.0
      %595 = vadd.xlane.f32.xlu0 %v594
      %v596 = vpop.xlane.xlu0 %595
      %v597 = vsel %vm388, %v555, 0.0
      %598 = vadd.xlane.f32.xlu0 %v597
      %v599 = vpop.xlane.xlu0 %598
      %v600 = vsel %vm388, %v556, 0.0
      %601 = vadd.xlane.f32.xlu0 %v600
      %v602 = vpop.xlane.xlu0 %601
      %v603 = vsel %vm388, %v557, 0.0
      %604 = vadd.xlane.f32.xlu0 %v603
      %v605 = vpop.xlane.xlu0 %604
      %v606 = vsel %vm388, %v558, 0.0
      %607 = vadd.xlane.f32.xlu0 %v606
      %v608 = vpop.xlane.xlu0 %607
      %v609 = vsel %vm388, %v559, 0.0
      %610 = vadd.xlane.f32.xlu0 %v609
      %v611 = vpop.xlane.xlu0 %610
      %v612 = vsel %vm388, %v560, 0.0
      %613 = vadd.xlane.f32.xlu0 %v612
      %v614 = vpop.xlane.xlu0 %613
      %v615 = vsel %vm388, %v561, 0.0
      %616 = vadd.xlane.f32.xlu0 %v615
      %v617 = vpop.xlane.xlu0 %616
      %v618 = vsel %vm388, %v562, 0.0
      %619 = vadd.xlane.f32.xlu0 %v618
      %v620 = vpop.xlane.xlu0 %619
      %v621 = vsel %vm388, %v563, 0.0
      %622 = vadd.xlane.f32.xlu0 %v621
      %v623 = vpop.xlane.xlu0 %622
      %v624 = vsel %vm388, %v564, 0.0
      %625 = vadd.xlane.f32.xlu0 %v624
      %v626 = vpop.xlane.xlu0 %625
      %v627 = vsel %vm388, %v565, 0.0
      %628 = vadd.xlane.f32.xlu0 %v627
      %v629 = vpop.xlane.xlu0 %628
      %v630 = vsel %vm388, %v566, 0.0
      %631 = vadd.xlane.f32.xlu0 %v630
      %v632 = vpop.xlane.xlu0 %631
      %v633 = vsel %vm388, %v567, 0.0
      %634 = vadd.xlane.f32.xlu0 %v633
      %v635 = vpop.xlane.xlu0 %634
      %v636 = vsel %vm388, %v568, 0.0
      %637 = vadd.xlane.f32.xlu0 %v636
      %v638 = vpop.xlane.xlu0 %637
      %v639 = vsel %vm388, %v569, 0.0
      %640 = vadd.xlane.f32.xlu0 %v639
      %v641 = vpop.xlane.xlu0 %640
      %v642 = vsel %vm388, %v570, 0.0
      %643 = vadd.xlane.f32.xlu0 %v642
      %v644 = vpop.xlane.xlu0 %643
      %v645 = vsel %vm388, %v571, 0.0
      %646 = vadd.xlane.f32.xlu0 %v645
      %v647 = vpop.xlane.xlu0 %646
      %v648 = vsel %vm388, %v572, 0.0
      %649 = vadd.xlane.f32.xlu0 %v648
      %v650 = vpop.xlane.xlu0 %649
      %v651 = vsel %vm388, %v573, 0.0
      %652 = vadd.xlane.f32.xlu0 %v651
      %v653 = vpop.xlane.xlu0 %652
      %v654 = vsel %vm388, %v574, 0.0
      %655 = vadd.xlane.f32.xlu0 %v654
      %v656 = vpop.xlane.xlu0 %655
      %v657 = vsel %vm388, %v575, 0.0
      %658 = vadd.xlane.f32.xlu0 %v657
      %v659 = vpop.xlane.xlu0 %658
      %v660 = vsel %vm388, %v576, 0.0
      %661 = vadd.xlane.f32.xlu0 %v660
      %v662 = vpop.xlane.xlu0 %661
      %v663 = vsel %vm388, %v577, 0.0
      %664 = vadd.xlane.f32.xlu0 %v663
      %v665 = vpop.xlane.xlu0 %664
      %v666 = vsel %vm388, %v578, 0.0
      %667 = vadd.xlane.f32.xlu0 %v666
      %v668 = vpop.xlane.xlu0 %667
      %v669 = vsel %vm388, %v579, 0.0
      %670 = vadd.xlane.f32.xlu0 %v669
      %v671 = vpop.xlane.xlu0 %670
      %v672 = vsel %vm388, %v580, 0.0
      %673 = vadd.xlane.f32.xlu0 %v672
      %v674 = vpop.xlane.xlu0 %673
      %v675 = vsel %vm388, %v581, 0.0
      %676 = vadd.xlane.f32.xlu0 %v675
      %v677 = vpop.xlane.xlu0 %676
      %v678 = vmul.f32 %v584, %v485
      %v679 = vmul.f32 %v587, %v485
      %v680 = vmul.f32 %v590, %v485
      %v681 = vmul.f32 %v593, %v485
      %v682 = vmul.f32 %v596, %v485
      %v683 = vmul.f32 %v599, %v485
      %v684 = vmul.f32 %v602, %v485
      %v685 = vmul.f32 %v605, %v485
      %v686 = vmul.f32 %v608, %v485
      %v687 = vmul.f32 %v611, %v485
      %v688 = vmul.f32 %v614, %v485
      %v689 = vmul.f32 %v617, %v485
      %v690 = vmul.f32 %v620, %v485
      %v691 = vmul.f32 %v623, %v485
      %v692 = vmul.f32 %v626, %v485
      %v693 = vmul.f32 %v629, %v485
      %v694 = vmul.f32 %v632, %v485
      %v695 = vmul.f32 %v635, %v485
      %v696 = vmul.f32 %v638, %v485
      %v697 = vmul.f32 %v641, %v485
      %v698 = vmul.f32 %v644, %v485
      %v699 = vmul.f32 %v647, %v485
      %v700 = vmul.f32 %v650, %v485
      %v701 = vmul.f32 %v653, %v485
      %v702 = vmul.f32 %v656, %v485
      %v703 = vmul.f32 %v659, %v485
      %v704 = vmul.f32 %v662, %v485
      %v705 = vmul.f32 %v665, %v485
      %v706 = vmul.f32 %v668, %v485
      %v707 = vmul.f32 %v671, %v485
      %v708 = vmul.f32 %v674, %v485
      %v709 = vmul.f32 %v677, %v485
      %v710 = vadd.f32 %v678, 1e-05
      %v711 = vadd.f32 %v679, 1e-05
      %v712 = vadd.f32 %v680, 1e-05
      %v713 = vadd.f32 %v681, 1e-05
      %v714 = vadd.f32 %v682, 1e-05
      %v715 = vadd.f32 %v683, 1e-05
      %v716 = vadd.f32 %v684, 1e-05
      %v717 = vadd.f32 %v685, 1e-05
      %v718 = vadd.f32 %v686, 1e-05
      %v719 = vadd.f32 %v687, 1e-05
      %v720 = vadd.f32 %v688, 1e-05
      %v721 = vadd.f32 %v689, 1e-05
      %v722 = vadd.f32 %v690, 1e-05
      %v723 = vadd.f32 %v691, 1e-05
      %v724 = vadd.f32 %v692, 1e-05
      %v725 = vadd.f32 %v693, 1e-05
      %v726 = vadd.f32 %v694, 1e-05
      %v727 = vadd.f32 %v695, 1e-05
      %v728 = vadd.f32 %v696, 1e-05
      %v729 = vadd.f32 %v697, 1e-05
      %v730 = vadd.f32 %v698, 1e-05
      %v731 = vadd.f32 %v699, 1e-05
      %v732 = vadd.f32 %v700, 1e-05
      %v733 = vadd.f32 %v701, 1e-05
      %v734 = vadd.f32 %v702, 1e-05
      %v735 = vadd.f32 %v703, 1e-05
      %v736 = vadd.f32 %v704, 1e-05
      %v737 = vadd.f32 %v705, 1e-05
      %v738 = vadd.f32 %v706, 1e-05
      %v739 = vadd.f32 %v707, 1e-05
      %v740 = vadd.f32 %v708, 1e-05
      %v741 = vadd.f32 %v709, 1e-05
      %v742 = vrsqrt.pop %v710
      %v743 = vrsqrt.pop %v711
      %v744 = vrsqrt.pop %v712
      %v745 = vrsqrt.pop %v713
      %v746 = vrsqrt.pop %v714
      %v747 = vrsqrt.pop %v715
      %v748 = vrsqrt.pop %v716
      %v749 = vrsqrt.pop %v717
      %v750 = vrsqrt.pop %v718
      %v751 = vrsqrt.pop %v719
      %v752 = vrsqrt.pop %v720
      %v753 = vrsqrt.pop %v721
      %v754 = vrsqrt.pop %v722
      %v755 = vrsqrt.pop %v723
      %v756 = vrsqrt.pop %v724
      %v757 = vrsqrt.pop %v725
      %v758 = vrsqrt.pop %v726
      %v759 = vrsqrt.pop %v727
      %v760 = vrsqrt.pop %v728
      %v761 = vrsqrt.pop %v729
      %v762 = vrsqrt.pop %v730
      %v763 = vrsqrt.pop %v731
      %v764 = vrsqrt.pop %v732
      %v765 = vrsqrt.pop %v733
      %v766 = vrsqrt.pop %v734
      %v767 = vrsqrt.pop %v735
      %v768 = vrsqrt.pop %v736
      %v769 = vrsqrt.pop %v737
      %v770 = vrsqrt.pop %v738
      %v771 = vrsqrt.pop %v739
      %v772 = vrsqrt.pop %v740
      %v773 = vrsqrt.pop %v741
      %v774 = vmul.f32 %v518, %v742
      %v775 = vmul.f32 %v519, %v743
      %v776 = vmul.f32 %v520, %v744
      %v777 = vmul.f32 %v521, %v745
      %v778 = vmul.f32 %v522, %v746
      %v779 = vmul.f32 %v523, %v747
      %v780 = vmul.f32 %v524, %v748
      %v781 = vmul.f32 %v525, %v749
      %v782 = vmul.f32 %v526, %v750
      %v783 = vmul.f32 %v527, %v751
      %v784 = vmul.f32 %v528, %v752
      %v785 = vmul.f32 %v529, %v753
      %v786 = vmul.f32 %v530, %v754
      %v787 = vmul.f32 %v531, %v755
      %v788 = vmul.f32 %v532, %v756
      %v789 = vmul.f32 %v533, %v757
      %v790 = vmul.f32 %v534, %v758
      %v791 = vmul.f32 %v535, %v759
      %v792 = vmul.f32 %v536, %v760
      %v793 = vmul.f32 %v537, %v761
      %v794 = vmul.f32 %v538, %v762
      %v795 = vmul.f32 %v539, %v763
      %v796 = vmul.f32 %v540, %v764
      %v797 = vmul.f32 %v541, %v765
      %v798 = vmul.f32 %v542, %v766
      %v799 = vmul.f32 %v543, %v767
      %v800 = vmul.f32 %v544, %v768
      %v801 = vmul.f32 %v545, %v769
      %v802 = vmul.f32 %v546, %v770
      %v803 = vmul.f32 %v547, %v771
      %v804 = vmul.f32 %v548, %v772
      %v805 = vmul.f32 %v549, %v773
      %v807 = vlaneseq
      %v808 = vshrl.u32 %v807, 7
      %v809 = vsub.s32 0, %v808
      %v810 = vrot.slane %v386, %v809
      %v812 = vmul.f32 %v774, %v810
      %v813 = vmul.f32 %v775, %v810
      %v814 = vmul.f32 %v776, %v810
      %v815 = vmul.f32 %v777, %v810
      %v816 = vmul.f32 %v778, %v810
      %v817 = vmul.f32 %v779, %v810
      %v818 = vmul.f32 %v780, %v810
      %v819 = vmul.f32 %v781, %v810
      %v820 = vmul.f32 %v782, %v810
      %v821 = vmul.f32 %v783, %v810
      %v822 = vmul.f32 %v784, %v810
      %v823 = vmul.f32 %v785, %v810
      %v824 = vmul.f32 %v786, %v810
      %v825 = vmul.f32 %v787, %v810
      %v826 = vmul.f32 %v788, %v810
      %v827 = vmul.f32 %v789, %v810
      %v828 = vmul.f32 %v790, %v810
      %v829 = vmul.f32 %v791, %v810
      %v830 = vmul.f32 %v792, %v810
      %v831 = vmul.f32 %v793, %v810
      %v832 = vmul.f32 %v794, %v810
      %v833 = vmul.f32 %v795, %v810
      %v834 = vmul.f32 %v796, %v810
      %v835 = vmul.f32 %v797, %v810
      %v836 = vmul.f32 %v798, %v810
      %v837 = vmul.f32 %v799, %v810
      %v838 = vmul.f32 %v800, %v810
      %v839 = vmul.f32 %v801, %v810
      %v840 = vmul.f32 %v802, %v810
      %v841 = vmul.f32 %v803, %v810
      %v842 = vmul.f32 %v804, %v810
      %v843 = vmul.f32 %v805, %v810
      %v845 = vlaneseq
      %v846 = vshrl.u32 %v845, 7
      %v847 = vsub.s32 0, %v846
      %v848 = vrot.slane %v387, %v847
      %v850 = vadd.f32 %v812, %v848
      %v851 = vadd.f32 %v813, %v848
      %v852 = vadd.f32 %v814, %v848
      %v853 = vadd.f32 %v815, %v848
      %v854 = vadd.f32 %v816, %v848
      %v855 = vadd.f32 %v817, %v848
      %v856 = vadd.f32 %v818, %v848
      %v857 = vadd.f32 %v819, %v848
      %v858 = vadd.f32 %v820, %v848
      %v859 = vadd.f32 %v821, %v848
      %v860 = vadd.f32 %v822, %v848
      %v861 = vadd.f32 %v823, %v848
      %v862 = vadd.f32 %v824, %v848
      %v863 = vadd.f32 %v825, %v848
      %v864 = vadd.f32 %v826, %v848
      %v865 = vadd.f32 %v827, %v848
      %v866 = vadd.f32 %v828, %v848
      %v867 = vadd.f32 %v829, %v848
      %v868 = vadd.f32 %v830, %v848
      %v869 = vadd.f32 %v831, %v848
      %v870 = vadd.f32 %v832, %v848
      %v871 = vadd.f32 %v833, %v848
      %v872 = vadd.f32 %v834, %v848
      %v873 = vadd.f32 %v835, %v848
      %v874 = vadd.f32 %v836, %v848
      %v875 = vadd.f32 %v837, %v848
      %v876 = vadd.f32 %v838, %v848
      %v877 = vadd.f32 %v839, %v848
      %v878 = vadd.f32 %v840, %v848
      %v879 = vadd.f32 %v841, %v848
      %v880 = vadd.f32 %v842, %v848
      %v881 = vadd.f32 %v843, %v848
      %v882 = vpack.c.bf16 %v851, %v850
      %v883 = vpack.c.bf16 %v853, %v852
      %v884 = vpack.c.bf16 %v855, %v854
      %v885 = vpack.c.bf16 %v857, %v856
      %v886 = vpack.c.bf16 %v859, %v858
      %v887 = vpack.c.bf16 %v861, %v860
      %v888 = vpack.c.bf16 %v863, %v862
      %v889 = vpack.c.bf16 %v865, %v864
      %v890 = vpack.c.bf16 %v867, %v866
      %v891 = vpack.c.bf16 %v869, %v868
      %v892 = vpack.c.bf16 %v871, %v870
      %v893 = vpack.c.bf16 %v873, %v872
      %v894 = vpack.c.bf16 %v875, %v874
      %v895 = vpack.c.bf16 %v877, %v876
      %v896 = vpack.c.bf16 %v879, %v878
      %v897 = vpack.c.bf16 %v881, %v880
      %v898 = vld [vmem:[%s4] sm:$0xff]
      %v899 = vld [vmem:[%s4 + $0x8] sm:$0xff]
      %v900 = vld [vmem:[%s4 + $0x10] sm:$0xff]
      %v901 = vld [vmem:[%s4 + $0x18] sm:$0xff]
      %v902 = vpack.c.bf16 %v899, %v898
      %v903 = vpack.c.bf16 %v901, %v900
      %v905 = vsel %vm388, %v882, 0
      %v908 = vsel %vm388, %v883, 0
      %v911 = vsel %vm388, %v884, 0
      %v914 = vsel %vm388, %v885, 0
      %v917 = vsel %vm388, %v886, 0
      %v920 = vsel %vm388, %v887, 0
      %v923 = vsel %vm388, %v888, 0
      %v926 = vsel %vm388, %v889, 0
      %v929 = vsel %vm388, %v890, 0
      %v932 = vsel %vm388, %v891, 0
      %v935 = vsel %vm388, %v892, 0
      %v938 = vsel %vm388, %v893, 0
      %v941 = vsel %vm388, %v894, 0
      %v944 = vsel %vm388, %v895, 0
      %v947 = vsel %vm388, %v896, 0
      %v950 = vsel %vm388, %v897, 0
      %952 = vmatprep.subr.bf16.mxu0 0
      %953 = vmatpush1.bf16.msra.mxu0 0
      %954 = vmatprep.subr.bf16.mxu0 0
      %955 = vmatpush1.bf16.msra.mxu0 0
      %956 = vmatprep.subr.bf16.mxu0 0
      %957 = vmatpush1.bf16.msra.mxu0 0
      %958 = vmatprep.subr.bf16.mxu0 0
      %959 = vmatpush1.bf16.msra.mxu0 0
      %960 = vmatprep.subr.bf16.mxu0 0
      %961 = vmatpush1.bf16.msra.mxu0 0
      %962 = vmatprep.subr.bf16.mxu0 0
      %963 = vmatpush1.bf16.msra.mxu0 0
      %964 = vmatprep.subr.bf16.mxu0 0
      %965 = vmatpush1.bf16.msra.mxu0 %v903
      %966 = vmatprep.subr.bf16.mxu0 0
      %967 = vmatpush1.bf16.msra.mxu0 %v902
      %968 = vmatprep.subr.bf16.mxu0 0
      %969 = vmatpush2.bf16.msra.mxu0 0
      %970 = vmatprep.subr.bf16.mxu0 0
      %971 = vmatpush2.bf16.msra.mxu0 0
      %972 = vmatprep.subr.bf16.mxu0 0
      %973 = vmatpush2.bf16.msra.mxu0 0
      %974 = vmatprep.subr.bf16.mxu0 0
      %975 = vmatpush2.bf16.msra.mxu0 0
      %976 = vmatprep.subr.bf16.mxu0 0
      %977 = vmatpush2.bf16.msra.mxu0 0
      %978 = vmatprep.subr.bf16.mxu0 0
      %979 = vmatpush2.bf16.msra.mxu0 0
      %980 = vmatprep.subr.bf16.mxu0 0
      %981 = vmatpush2.bf16.msra.mxu0 0
      %982 = vmatprep.subr.bf16.mxu0 0
      %983 = vmatpush2.bf16.msra.mxu0 0
      %984 = vmatprep.mubr.bf16.mxu0 0
      %985 = vmatmul.mubr.bf16.gmra.mxu0 %v905
      %v986 = vpop.f32.mrf.mxu0
      %v987 = vadd.f32 0.0, %v986
      %v988 = vpop.f32.mrf.mxu0
      %v989 = vpop.f32.mrf.mxu0
      %v990 = vadd.f32 0.0, %v989
      %v991 = vpop.f32.mrf.mxu0
      %992 = vmatprep.mubr.bf16.mxu0 0
      %993 = vmatmul.mubr.bf16.gmra.mxu0 %v908
      %v994 = vpop.f32.mrf.mxu0
      %v995 = vadd.f32 0.0, %v994
      %v996 = vpop.f32.mrf.mxu0
      %v997 = vpop.f32.mrf.mxu0
      %v998 = vadd.f32 0.0, %v997
      %v999 = vpop.f32.mrf.mxu0
      %1000 = vmatprep.mubr.bf16.mxu0 0
      %1001 = vmatmul.mubr.bf16.gmra.mxu0 %v911
      %v1002 = vpop.f32.mrf.mxu0
      %v1003 = vadd.f32 0.0, %v1002
      %v1004 = vpop.f32.mrf.mxu0
      %v1005 = vpop.f32.mrf.mxu0
      %v1006 = vadd.f32 0.0, %v1005
      %v1007 = vpop.f32.mrf.mxu0
      %1008 = vmatprep.mubr.bf16.mxu0 0
      %1009 = vmatmul.mubr.bf16.gmra.mxu0 %v914
      %v1010 = vpop.f32.mrf.mxu0
      %v1011 = vadd.f32 0.0, %v1010
      %v1012 = vpop.f32.mrf.mxu0
      %v1013 = vpop.f32.mrf.mxu0
      %v1014 = vadd.f32 0.0, %v1013
      %v1015 = vpop.f32.mrf.mxu0
      %1016 = vmatprep.mubr.bf16.mxu0 0
      %1017 = vmatmul.mubr.bf16.gmra.mxu0 %v917
      %v1018 = vpop.f32.mrf.mxu0
      %v1019 = vadd.f32 0.0, %v1018
      %v1020 = vpop.f32.mrf.mxu0
      %v1021 = vpop.f32.mrf.mxu0
      %v1022 = vadd.f32 0.0, %v1021
      %v1023 = vpop.f32.mrf.mxu0
      %1024 = vmatprep.mubr.bf16.mxu0 0
      %1025 = vmatmul.mubr.bf16.gmra.mxu0 %v920
      %v1026 = vpop.f32.mrf.mxu0
      %v1027 = vadd.f32 0.0, %v1026
      %v1028 = vpop.f32.mrf.mxu0
      %v1029 = vpop.f32.mrf.mxu0
      %v1030 = vadd.f32 0.0, %v1029
      %v1031 = vpop.f32.mrf.mxu0
      %1032 = vmatprep.mubr.bf16.mxu0 0
      %1033 = vmatmul.mubr.bf16.gmra.mxu0 %v923
      %v1034 = vpop.f32.mrf.mxu0
      %v1035 = vadd.f32 0.0, %v1034
      %v1036 = vpop.f32.mrf.mxu0
      %v1037 = vpop.f32.mrf.mxu0
      %v1038 = vadd.f32 0.0, %v1037
      %v1039 = vpop.f32.mrf.mxu0
      %1040 = vmatprep.mubr.bf16.mxu0 0
      %1041 = vmatmul.mubr.bf16.gmra.mxu0 %v926
      %v1042 = vpop.f32.mrf.mxu0
      %v1043 = vadd.f32 0.0, %v1042
      %v1044 = vpop.f32.mrf.mxu0
      %v1045 = vpop.f32.mrf.mxu0
      %v1046 = vadd.f32 0.0, %v1045
      %v1047 = vpop.f32.mrf.mxu0
      %1048 = vmatprep.mubr.bf16.mxu0 0
      %1049 = vmatmul.mubr.bf16.gmra.mxu0 %v929
      %v1050 = vpop.f32.mrf.mxu0
      %v1051 = vadd.f32 0.0, %v1050
      %v1052 = vpop.f32.mrf.mxu0
      %v1053 = vpop.f32.mrf.mxu0
      %v1054 = vadd.f32 0.0, %v1053
      %v1055 = vpop.f32.mrf.mxu0
      %1056 = vmatprep.mubr.bf16.mxu0 0
      %1057 = vmatmul.mubr.bf16.gmra.mxu0 %v932
      %v1058 = vpop.f32.mrf.mxu0
      %v1059 = vadd.f32 0.0, %v1058
      %v1060 = vpop.f32.mrf.mxu0
      %v1061 = vpop.f32.mrf.mxu0
      %v1062 = vadd.f32 0.0, %v1061
      %v1063 = vpop.f32.mrf.mxu0
      %1064 = vmatprep.mubr.bf16.mxu0 0
      %1065 = vmatmul.mubr.bf16.gmra.mxu0 %v935
      %v1066 = vpop.f32.mrf.mxu0
      %v1067 = vadd.f32 0.0, %v1066
      %v1068 = vpop.f32.mrf.mxu0
      %v1069 = vpop.f32.mrf.mxu0
      %v1070 = vadd.f32 0.0, %v1069
      %v1071 = vpop.f32.mrf.mxu0
      %1072 = vmatprep.mubr.bf16.mxu0 0
      %1073 = vmatmul.mubr.bf16.gmra.mxu0 %v938
      %v1074 = vpop.f32.mrf.mxu0
      %v1075 = vadd.f32 0.0, %v1074
      %v1076 = vpop.f32.mrf.mxu0
      %v1077 = vpop.f32.mrf.mxu0
      %v1078 = vadd.f32 0.0, %v1077
      %v1079 = vpop.f32.mrf.mxu0
      %1080 = vmatprep.mubr.bf16.mxu0 0
      %1081 = vmatmul.mubr.bf16.gmra.mxu0 %v941
      %v1082 = vpop.f32.mrf.mxu0
      %v1083 = vadd.f32 0.0, %v1082
      %v1084 = vpop.f32.mrf.mxu0
      %v1085 = vpop.f32.mrf.mxu0
      %v1086 = vadd.f32 0.0, %v1085
      %v1087 = vpop.f32.mrf.mxu0
      %1088 = vmatprep.mubr.bf16.mxu0 0
      %1089 = vmatmul.mubr.bf16.gmra.mxu0 %v944
      %v1090 = vpop.f32.mrf.mxu0
      %v1091 = vadd.f32 0.0, %v1090
      %v1092 = vpop.f32.mrf.mxu0
      %v1093 = vpop.f32.mrf.mxu0
      %v1094 = vadd.f32 0.0, %v1093
      %v1095 = vpop.f32.mrf.mxu0
      %1096 = vmatprep.mubr.bf16.mxu0 0
      %1097 = vmatmul.mubr.bf16.gmra.mxu0 %v947
      %v1098 = vpop.f32.mrf.mxu0
      %v1099 = vadd.f32 0.0, %v1098
      %v1100 = vpop.f32.mrf.mxu0
      %v1101 = vpop.f32.mrf.mxu0
      %v1102 = vadd.f32 0.0, %v1101
      %v1103 = vpop.f32.mrf.mxu0
      %1104 = vmatprep.mubr.bf16.mxu0 0
      %1105 = vmatmul.mubr.bf16.gmra.mxu0 %v950
      %v1106 = vpop.f32.mrf.mxu0
      %v1107 = vadd.f32 0.0, %v1106
      %v1108 = vpop.f32.mrf.mxu0
      %v1109 = vpop.f32.mrf.mxu0
      %v1110 = vadd.f32 0.0, %v1109
      %v1111 = vpop.f32.mrf.mxu0
      %1112 = vdwg.mxu0
      %v1113 = vld [vmem:[%s5] sm:$0xff]
      %v1114 = vld [vmem:[%s5 + $0x8] sm:$0x1]
      %vm1148 = vcmask 1040384
      %v1149 = vrot.slane 0.0, 7
      %v1150 = vsel %vm1148, %v1149, %v1149
      %v1151 = vrot.slane %v987, 7
      %v1152 = vrot.slane %v990, 7
      %v1153 = vsel %vm1148, %v1151, %v1152
      %v1154 = vrot.slane %v995, 7
      %v1155 = vrot.slane %v998, 7
      %v1156 = vsel %vm1148, %v1154, %v1155
      %v1157 = vrot.slane %v1003, 7
      %v1158 = vrot.slane %v1006, 7
      %v1159 = vsel %vm1148, %v1157, %v1158
      %v1160 = vrot.slane %v1011, 7
      %v1161 = vrot.slane %v1014, 7
      %v1162 = vsel %vm1148, %v1160, %v1161
      %v1163 = vrot.slane %v1019, 7
      %v1164 = vrot.slane %v1022, 7
      %v1165 = vsel %vm1148, %v1163, %v1164
      %v1166 = vrot.slane %v1027, 7
      %v1167 = vrot.slane %v1030, 7
      %v1168 = vsel %vm1148, %v1166, %v1167
      %v1169 = vrot.slane %v1035, 7
      %v1170 = vrot.slane %v1038, 7
      %v1171 = vsel %vm1148, %v1169, %v1170
      %v1172 = vrot.slane %v1043, 7
      %v1173 = vrot.slane %v1046, 7
      %v1174 = vsel %vm1148, %v1172, %v1173
      %v1175 = vrot.slane %v1051, 7
      %v1176 = vrot.slane %v1054, 7
      %v1177 = vsel %vm1148, %v1175, %v1176
      %v1178 = vrot.slane %v1059, 7
      %v1179 = vrot.slane %v1062, 7
      %v1180 = vsel %vm1148, %v1178, %v1179
      %v1181 = vrot.slane %v1067, 7
      %v1182 = vrot.slane %v1070, 7
      %v1183 = vsel %vm1148, %v1181, %v1182
      %v1184 = vrot.slane %v1075, 7
      %v1185 = vrot.slane %v1078, 7
      %v1186 = vsel %vm1148, %v1184, %v1185
      %v1187 = vrot.slane %v1083, 7
      %v1188 = vrot.slane %v1086, 7
      %v1189 = vsel %vm1148, %v1187, %v1188
      %v1190 = vrot.slane %v1091, 7
      %v1191 = vrot.slane %v1094, 7
      %v1192 = vsel %vm1148, %v1190, %v1191
      %v1193 = vrot.slane %v1099, 7
      %v1194 = vrot.slane %v1102, 7
      %v1195 = vsel %vm1148, %v1193, %v1194
      %v1196 = vrot.slane %v1107, 7
      %v1197 = vrot.slane %v1110, 7
      %v1198 = vsel %vm1148, %v1196, %v1197
      %v1249 = vsel %vm1148, 0.0, %v1149
      %v1250 = vsel %vm1148, 0.0, %v1151
      %v1251 = vsel %vm1148, 0.0, %v1154
      %v1252 = vsel %vm1148, 0.0, %v1157
      %v1253 = vsel %vm1148, 0.0, %v1160
      %v1254 = vsel %vm1148, 0.0, %v1163
      %v1255 = vsel %vm1148, 0.0, %v1166
      %v1256 = vsel %vm1148, 0.0, %v1169
      %v1257 = vsel %vm1148, 0.0, %v1172
      %v1258 = vsel %vm1148, 0.0, %v1175
      %v1259 = vsel %vm1148, 0.0, %v1178
      %v1260 = vsel %vm1148, 0.0, %v1181
      %v1261 = vsel %vm1148, 0.0, %v1184
      %v1262 = vsel %vm1148, 0.0, %v1187
      %v1263 = vsel %vm1148, 0.0, %v1190
      %v1264 = vsel %vm1148, 0.0, %v1193
      %v1265 = vsel %vm1148, 0.0, %v1196
      %v1266 = vsel %vm1148, %v1149, 0.0
      %v1267 = vsel %vm1148, %v1152, 0.0
      %v1268 = vsel %vm1148, %v1155, 0.0
      %v1269 = vsel %vm1148, %v1158, 0.0
      %v1270 = vsel %vm1148, %v1161, 0.0
      %v1271 = vsel %vm1148, %v1164, 0.0
      %v1272 = vsel %vm1148, %v1167, 0.0
      %v1273 = vsel %vm1148, %v1170, 0.0
      %v1274 = vsel %vm1148, %v1173, 0.0
      %v1275 = vsel %vm1148, %v1176, 0.0
      %v1276 = vsel %vm1148, %v1179, 0.0
      %v1277 = vsel %vm1148, %v1182, 0.0
      %v1278 = vsel %vm1148, %v1185, 0.0
      %v1279 = vsel %vm1148, %v1188, 0.0
      %v1280 = vsel %vm1148, %v1191, 0.0
      %v1281 = vsel %vm1148, %v1194, 0.0
      %v1282 = vsel %vm1148, %v1197, 0.0
      %v1283 = vlaneseq
      %v1284 = vshrl.u32 %v1283, 7
      %v1285 = vsub.s32 0, %v1284
      %v1286 = vrot.slane %v1113, %v1285
      %v1287 = vmul.f32 %v1249, %v1286
      %v1288 = vmul.f32 %v1150, %v1286
      %v1289 = vmul.f32 %v1250, %v1286
      %v1290 = vmul.f32 %v1153, %v1286
      %v1291 = vmul.f32 %v1251, %v1286
      %v1292 = vmul.f32 %v1156, %v1286
      %v1293 = vmul.f32 %v1252, %v1286
      %v1294 = vmul.f32 %v1159, %v1286
      %v1295 = vmul.f32 %v1253, %v1286
      %v1296 = vmul.f32 %v1162, %v1286
      %v1297 = vmul.f32 %v1254, %v1286
      %v1298 = vmul.f32 %v1165, %v1286
      %v1299 = vmul.f32 %v1255, %v1286
      %v1300 = vmul.f32 %v1168, %v1286
      %v1301 = vmul.f32 %v1256, %v1286
      %v1302 = vmul.f32 %v1171, %v1286
      %v1303 = vmul.f32 %v1257, %v1286
      %v1304 = vmul.f32 %v1174, %v1286
      %v1305 = vmul.f32 %v1258, %v1286
      %v1306 = vmul.f32 %v1177, %v1286
      %v1307 = vmul.f32 %v1259, %v1286
      %v1308 = vmul.f32 %v1180, %v1286
      %v1309 = vmul.f32 %v1260, %v1286
      %v1310 = vmul.f32 %v1183, %v1286
      %v1311 = vmul.f32 %v1261, %v1286
      %v1312 = vmul.f32 %v1186, %v1286
      %v1313 = vmul.f32 %v1262, %v1286
      %v1314 = vmul.f32 %v1189, %v1286
      %v1315 = vmul.f32 %v1263, %v1286
      %v1316 = vmul.f32 %v1192, %v1286
      %v1317 = vmul.f32 %v1264, %v1286
      %v1318 = vmul.f32 %v1195, %v1286
      %v1319 = vlaneseq
      %v1320 = vshrl.u32 %v1319, 7
      %v1321 = vsub.s32 1, %v1320
      %v1322 = vrot.slane %v1113, %v1321
      %v1323 = vmul.f32 %v1249, %v1322
      %v1324 = vmul.f32 %v1150, %v1322
      %v1325 = vmul.f32 %v1266, %v1322
      %v1326 = vmul.f32 %v1250, %v1322
      %v1327 = vmul.f32 %v1153, %v1322
      %v1328 = vmul.f32 %v1267, %v1322
      %v1329 = vmul.f32 %v1251, %v1322
      %v1330 = vmul.f32 %v1156, %v1322
      %v1331 = vmul.f32 %v1268, %v1322
      %v1332 = vmul.f32 %v1252, %v1322
      %v1333 = vmul.f32 %v1159, %v1322
      %v1334 = vmul.f32 %v1269, %v1322
      %v1335 = vmul.f32 %v1253, %v1322
      %v1336 = vmul.f32 %v1162, %v1322
      %v1337 = vmul.f32 %v1270, %v1322
      %v1338 = vmul.f32 %v1254, %v1322
      %v1339 = vmul.f32 %v1165, %v1322
      %v1340 = vmul.f32 %v1271, %v1322
      %v1341 = vmul.f32 %v1255, %v1322
      %v1342 = vmul.f32 %v1168, %v1322
      %v1343 = vmul.f32 %v1272, %v1322
      %v1344 = vmul.f32 %v1256, %v1322
      %v1345 = vmul.f32 %v1171, %v1322
      %v1346 = vmul.f32 %v1273, %v1322
      %v1347 = vmul.f32 %v1257, %v1322
      %v1348 = vmul.f32 %v1174, %v1322
      %v1349 = vmul.f32 %v1274, %v1322
      %v1350 = vmul.f32 %v1258, %v1322
      %v1351 = vmul.f32 %v1177, %v1322
      %v1352 = vmul.f32 %v1275, %v1322
      %v1353 = vmul.f32 %v1259, %v1322
      %v1354 = vmul.f32 %v1180, %v1322
      %v1355 = vmul.f32 %v1276, %v1322
      %v1356 = vmul.f32 %v1260, %v1322
      %v1357 = vmul.f32 %v1183, %v1322
      %v1358 = vmul.f32 %v1277, %v1322
      %v1359 = vmul.f32 %v1261, %v1322
      %v1360 = vmul.f32 %v1186, %v1322
      %v1361 = vmul.f32 %v1278, %v1322
      %v1362 = vmul.f32 %v1262, %v1322
      %v1363 = vmul.f32 %v1189, %v1322
      %v1364 = vmul.f32 %v1279, %v1322
      %v1365 = vmul.f32 %v1263, %v1322
      %v1366 = vmul.f32 %v1192, %v1322
      %v1367 = vmul.f32 %v1280, %v1322
      %v1368 = vmul.f32 %v1264, %v1322
      %v1369 = vmul.f32 %v1195, %v1322
      %v1370 = vmul.f32 %v1281, %v1322
      %vm1419 = vcmask 1046528
      %v1420 = vrot.slane %v1323, 1
      %v1421 = vrot.slane %v1324, 1
      %v1422 = vsel %vm1419, %v1420, %v1421
      %v1423 = vrot.slane %v1325, 1
      %v1424 = vsel %vm1419, %v1421, %v1423
      %v1425 = vrot.slane %v1326, 1
      %v1426 = vrot.slane %v1327, 1
      %v1427 = vsel %vm1419, %v1425, %v1426
      %v1428 = vrot.slane %v1328, 1
      %v1429 = vsel %vm1419, %v1426, %v1428
      %v1430 = vrot.slane %v1329, 1
      %v1431 = vrot.slane %v1330, 1
      %v1432 = vsel %vm1419, %v1430, %v1431
      %v1433 = vrot.slane %v1331, 1
      %v1434 = vsel %vm1419, %v1431, %v1433
      %v1435 = vrot.slane %v1332, 1
      %v1436 = vrot.slane %v1333, 1
      %v1437 = vsel %vm1419, %v1435, %v1436
      %v1438 = vrot.slane %v1334, 1
      %v1439 = vsel %vm1419, %v1436, %v1438
      %v1440 = vrot.slane %v1335, 1
      %v1441 = vrot.slane %v1336, 1
      %v1442 = vsel %vm1419, %v1440, %v1441
      %v1443 = vrot.slane %v1337, 1
      %v1444 = vsel %vm1419, %v1441, %v1443
      %v1445 = vrot.slane %v1338, 1
      %v1446 = vrot.slane %v1339, 1
      %v1447 = vsel %vm1419, %v1445, %v1446
      %v1448 = vrot.slane %v1340, 1
      %v1449 = vsel %vm1419, %v1446, %v1448
      %v1450 = vrot.slane %v1341, 1
      %v1451 = vrot.slane %v1342, 1
      %v1452 = vsel %vm1419, %v1450, %v1451
      %v1453 = vrot.slane %v1343, 1
      %v1454 = vsel %vm1419, %v1451, %v1453
      %v1455 = vrot.slane %v1344, 1
      %v1456 = vrot.slane %v1345, 1
      %v1457 = vsel %vm1419, %v1455, %v1456
      %v1458 = vrot.slane %v1346, 1
      %v1459 = vsel %vm1419, %v1456, %v1458
      %v1460 = vrot.slane %v1347, 1
      %v1461 = vrot.slane %v1348, 1
      %v1462 = vsel %vm1419, %v1460, %v1461
      %v1463 = vrot.slane %v1349, 1
      %v1464 = vsel %vm1419, %v1461, %v1463
      %v1465 = vrot.slane %v1350, 1
      %v1466 = vrot.slane %v1351, 1
      %v1467 = vsel %vm1419, %v1465, %v1466
      %v1468 = vrot.slane %v1352, 1
      %v1469 = vsel %vm1419, %v1466, %v1468
      %v1470 = vrot.slane %v1353, 1
      %v1471 = vrot.slane %v1354, 1
      %v1472 = vsel %vm1419, %v1470, %v1471
      %v1473 = vrot.slane %v1355, 1
      %v1474 = vsel %vm1419, %v1471, %v1473
      %v1475 = vrot.slane %v1356, 1
      %v1476 = vrot.slane %v1357, 1
      %v1477 = vsel %vm1419, %v1475, %v1476
      %v1478 = vrot.slane %v1358, 1
      %v1479 = vsel %vm1419, %v1476, %v1478
      %v1480 = vrot.slane %v1359, 1
      %v1481 = vrot.slane %v1360, 1
      %v1482 = vsel %vm1419, %v1480, %v1481
      %v1483 = vrot.slane %v1361, 1
      %v1484 = vsel %vm1419, %v1481, %v1483
      %v1485 = vrot.slane %v1362, 1
      %v1486 = vrot.slane %v1363, 1
      %v1487 = vsel %vm1419, %v1485, %v1486
      %v1488 = vrot.slane %v1364, 1
      %v1489 = vsel %vm1419, %v1486, %v1488
      %v1490 = vrot.slane %v1365, 1
      %v1491 = vrot.slane %v1366, 1
      %v1492 = vsel %vm1419, %v1490, %v1491
      %v1493 = vrot.slane %v1367, 1
      %v1494 = vsel %vm1419, %v1491, %v1493
      %v1495 = vrot.slane %v1368, 1
      %v1496 = vrot.slane %v1369, 1
      %v1497 = vsel %vm1419, %v1495, %v1496
      %v1498 = vrot.slane %v1370, 1
      %v1499 = vsel %vm1419, %v1496, %v1498
      %v1532 = vadd.f32 %v1287, %v1422
      %v1533 = vadd.f32 %v1288, %v1424
      %v1534 = vadd.f32 %v1289, %v1427
      %v1535 = vadd.f32 %v1290, %v1429
      %v1536 = vadd.f32 %v1291, %v1432
      %v1537 = vadd.f32 %v1292, %v1434
      %v1538 = vadd.f32 %v1293, %v1437
      %v1539 = vadd.f32 %v1294, %v1439
      %v1540 = vadd.f32 %v1295, %v1442
      %v1541 = vadd.f32 %v1296, %v1444
      %v1542 = vadd.f32 %v1297, %v1447
      %v1543 = vadd.f32 %v1298, %v1449
      %v1544 = vadd.f32 %v1299, %v1452
      %v1545 = vadd.f32 %v1300, %v1454
      %v1546 = vadd.f32 %v1301, %v1457
      %v1547 = vadd.f32 %v1302, %v1459
      %v1548 = vadd.f32 %v1303, %v1462
      %v1549 = vadd.f32 %v1304, %v1464
      %v1550 = vadd.f32 %v1305, %v1467
      %v1551 = vadd.f32 %v1306, %v1469
      %v1552 = vadd.f32 %v1307, %v1472
      %v1553 = vadd.f32 %v1308, %v1474
      %v1554 = vadd.f32 %v1309, %v1477
      %v1555 = vadd.f32 %v1310, %v1479
      %v1556 = vadd.f32 %v1311, %v1482
      %v1557 = vadd.f32 %v1312, %v1484
      %v1558 = vadd.f32 %v1313, %v1487
      %v1559 = vadd.f32 %v1314, %v1489
      %v1560 = vadd.f32 %v1315, %v1492
      %v1561 = vadd.f32 %v1316, %v1494
      %v1562 = vadd.f32 %v1317, %v1497
      %v1563 = vadd.f32 %v1318, %v1499
      %v1564 = vlaneseq
      %v1565 = vshrl.u32 %v1564, 7
      %v1566 = vsub.s32 2, %v1565
      %v1567 = vrot.slane %v1113, %v1566
      %v1568 = vmul.f32 %v1249, %v1567
      %v1569 = vmul.f32 %v1150, %v1567
      %v1570 = vmul.f32 %v1266, %v1567
      %v1571 = vmul.f32 %v1250, %v1567
      %v1572 = vmul.f32 %v1153, %v1567
      %v1573 = vmul.f32 %v1267, %v1567
      %v1574 = vmul.f32 %v1251, %v1567
      %v1575 = vmul.f32 %v1156, %v1567
      %v1576 = vmul.f32 %v1268, %v1567
      %v1577 = vmul.f32 %v1252, %v1567
      %v1578 = vmul.f32 %v1159, %v1567
      %v1579 = vmul.f32 %v1269, %v1567
      %v1580 = vmul.f32 %v1253, %v1567
      %v1581 = vmul.f32 %v1162, %v1567
      %v1582 = vmul.f32 %v1270, %v1567
      %v1583 = vmul.f32 %v1254, %v1567
      %v1584 = vmul.f32 %v1165, %v1567
      %v1585 = vmul.f32 %v1271, %v1567
      %v1586 = vmul.f32 %v1255, %v1567
      %v1587 = vmul.f32 %v1168, %v1567
      %v1588 = vmul.f32 %v1272, %v1567
      %v1589 = vmul.f32 %v1256, %v1567
      %v1590 = vmul.f32 %v1171, %v1567
      %v1591 = vmul.f32 %v1273, %v1567
      %v1592 = vmul.f32 %v1257, %v1567
      %v1593 = vmul.f32 %v1174, %v1567
      %v1594 = vmul.f32 %v1274, %v1567
      %v1595 = vmul.f32 %v1258, %v1567
      %v1596 = vmul.f32 %v1177, %v1567
      %v1597 = vmul.f32 %v1275, %v1567
      %v1598 = vmul.f32 %v1259, %v1567
      %v1599 = vmul.f32 %v1180, %v1567
      %v1600 = vmul.f32 %v1276, %v1567
      %v1601 = vmul.f32 %v1260, %v1567
      %v1602 = vmul.f32 %v1183, %v1567
      %v1603 = vmul.f32 %v1277, %v1567
      %v1604 = vmul.f32 %v1261, %v1567
      %v1605 = vmul.f32 %v1186, %v1567
      %v1606 = vmul.f32 %v1278, %v1567
      %v1607 = vmul.f32 %v1262, %v1567
      %v1608 = vmul.f32 %v1189, %v1567
      %v1609 = vmul.f32 %v1279, %v1567
      %v1610 = vmul.f32 %v1263, %v1567
      %v1611 = vmul.f32 %v1192, %v1567
      %v1612 = vmul.f32 %v1280, %v1567
      %v1613 = vmul.f32 %v1264, %v1567
      %v1614 = vmul.f32 %v1195, %v1567
      %v1615 = vmul.f32 %v1281, %v1567
      %vm1664 = vcmask 1045504
      %v1665 = vrot.slane %v1568, 2
      %v1666 = vrot.slane %v1569, 2
      %v1667 = vsel %vm1664, %v1665, %v1666
      %v1668 = vrot.slane %v1570, 2
      %v1669 = vsel %vm1664, %v1666, %v1668
      %v1670 = vrot.slane %v1571, 2
      %v1671 = vrot.slane %v1572, 2
      %v1672 = vsel %vm1664, %v1670, %v1671
      %v1673 = vrot.slane %v1573, 2
      %v1674 = vsel %vm1664, %v1671, %v1673
      %v1675 = vrot.slane %v1574, 2
      %v1676 = vrot.slane %v1575, 2
      %v1677 = vsel %vm1664, %v1675, %v1676
      %v1678 = vrot.slane %v1576, 2
      %v1679 = vsel %vm1664, %v1676, %v1678
      %v1680 = vrot.slane %v1577, 2
      %v1681 = vrot.slane %v1578, 2
      %v1682 = vsel %vm1664, %v1680, %v1681
      %v1683 = vrot.slane %v1579, 2
      %v1684 = vsel %vm1664, %v1681, %v1683
      %v1685 = vrot.slane %v1580, 2
      %v1686 = vrot.slane %v1581, 2
      %v1687 = vsel %vm1664, %v1685, %v1686
      %v1688 = vrot.slane %v1582, 2
      %v1689 = vsel %vm1664, %v1686, %v1688
      %v1690 = vrot.slane %v1583, 2
      %v1691 = vrot.slane %v1584, 2
      %v1692 = vsel %vm1664, %v1690, %v1691
      %v1693 = vrot.slane %v1585, 2
      %v1694 = vsel %vm1664, %v1691, %v1693
      %v1695 = vrot.slane %v1586, 2
      %v1696 = vrot.slane %v1587, 2
      %v1697 = vsel %vm1664, %v1695, %v1696
      %v1698 = vrot.slane %v1588, 2
      %v1699 = vsel %vm1664, %v1696, %v1698
      %v1700 = vrot.slane %v1589, 2
      %v1701 = vrot.slane %v1590, 2
      %v1702 = vsel %vm1664, %v1700, %v1701
      %v1703 = vrot.slane %v1591, 2
      %v1704 = vsel %vm1664, %v1701, %v1703
      %v1705 = vrot.slane %v1592, 2
      %v1706 = vrot.slane %v1593, 2
      %v1707 = vsel %vm1664, %v1705, %v1706
      %v1708 = vrot.slane %v1594, 2
      %v1709 = vsel %vm1664, %v1706, %v1708
      %v1710 = vrot.slane %v1595, 2
      %v1711 = vrot.slane %v1596, 2
      %v1712 = vsel %vm1664, %v1710, %v1711
      %v1713 = vrot.slane %v1597, 2
      %v1714 = vsel %vm1664, %v1711, %v1713
      %v1715 = vrot.slane %v1598, 2
      %v1716 = vrot.slane %v1599, 2
      %v1717 = vsel %vm1664, %v1715, %v1716
      %v1718 = vrot.slane %v1600, 2
      %v1719 = vsel %vm1664, %v1716, %v1718
      %v1720 = vrot.slane %v1601, 2
      %v1721 = vrot.slane %v1602, 2
      %v1722 = vsel %vm1664, %v1720, %v1721
      %v1723 = vrot.slane %v1603, 2
      %v1724 = vsel %vm1664, %v1721, %v1723
      %v1725 = vrot.slane %v1604, 2
      %v1726 = vrot.slane %v1605, 2
      %v1727 = vsel %vm1664, %v1725, %v1726
      %v1728 = vrot.slane %v1606, 2
      %v1729 = vsel %vm1664, %v1726, %v1728
      %v1730 = vrot.slane %v1607, 2
      %v1731 = vrot.slane %v1608, 2
      %v1732 = vsel %vm1664, %v1730, %v1731
      %v1733 = vrot.slane %v1609, 2
      %v1734 = vsel %vm1664, %v1731, %v1733
      %v1735 = vrot.slane %v1610, 2
      %v1736 = vrot.slane %v1611, 2
      %v1737 = vsel %vm1664, %v1735, %v1736
      %v1738 = vrot.slane %v1612, 2
      %v1739 = vsel %vm1664, %v1736, %v1738
      %v1740 = vrot.slane %v1613, 2
      %v1741 = vrot.slane %v1614, 2
      %v1742 = vsel %vm1664, %v1740, %v1741
      %v1743 = vrot.slane %v1615, 2
      %v1744 = vsel %vm1664, %v1741, %v1743
      %v1777 = vadd.f32 %v1532, %v1667
      %v1778 = vadd.f32 %v1533, %v1669
      %v1779 = vadd.f32 %v1534, %v1672
      %v1780 = vadd.f32 %v1535, %v1674
      %v1781 = vadd.f32 %v1536, %v1677
      %v1782 = vadd.f32 %v1537, %v1679
      %v1783 = vadd.f32 %v1538, %v1682
      %v1784 = vadd.f32 %v1539, %v1684
      %v1785 = vadd.f32 %v1540, %v1687
      %v1786 = vadd.f32 %v1541, %v1689
      %v1787 = vadd.f32 %v1542, %v1692
      %v1788 = vadd.f32 %v1543, %v1694
      %v1789 = vadd.f32 %v1544, %v1697
      %v1790 = vadd.f32 %v1545, %v1699
      %v1791 = vadd.f32 %v1546, %v1702
      %v1792 = vadd.f32 %v1547, %v1704
      %v1793 = vadd.f32 %v1548, %v1707
      %v1794 = vadd.f32 %v1549, %v1709
      %v1795 = vadd.f32 %v1550, %v1712
      %v1796 = vadd.f32 %v1551, %v1714
      %v1797 = vadd.f32 %v1552, %v1717
      %v1798 = vadd.f32 %v1553, %v1719
      %v1799 = vadd.f32 %v1554, %v1722
      %v1800 = vadd.f32 %v1555, %v1724
      %v1801 = vadd.f32 %v1556, %v1727
      %v1802 = vadd.f32 %v1557, %v1729
      %v1803 = vadd.f32 %v1558, %v1732
      %v1804 = vadd.f32 %v1559, %v1734
      %v1805 = vadd.f32 %v1560, %v1737
      %v1806 = vadd.f32 %v1561, %v1739
      %v1807 = vadd.f32 %v1562, %v1742
      %v1808 = vadd.f32 %v1563, %v1744
      %v1809 = vlaneseq
      %v1810 = vshrl.u32 %v1809, 7
      %v1811 = vsub.s32 3, %v1810
      %v1812 = vrot.slane %v1113, %v1811
      %v1813 = vmul.f32 %v1250, %v1812
      %v1814 = vmul.f32 %v1153, %v1812
      %v1815 = vmul.f32 %v1251, %v1812
      %v1816 = vmul.f32 %v1156, %v1812
      %v1817 = vmul.f32 %v1252, %v1812
      %v1818 = vmul.f32 %v1159, %v1812
      %v1819 = vmul.f32 %v1253, %v1812
      %v1820 = vmul.f32 %v1162, %v1812
      %v1821 = vmul.f32 %v1254, %v1812
      %v1822 = vmul.f32 %v1165, %v1812
      %v1823 = vmul.f32 %v1255, %v1812
      %v1824 = vmul.f32 %v1168, %v1812
      %v1825 = vmul.f32 %v1256, %v1812
      %v1826 = vmul.f32 %v1171, %v1812
      %v1827 = vmul.f32 %v1257, %v1812
      %v1828 = vmul.f32 %v1174, %v1812
      %v1829 = vmul.f32 %v1258, %v1812
      %v1830 = vmul.f32 %v1177, %v1812
      %v1831 = vmul.f32 %v1259, %v1812
      %v1832 = vmul.f32 %v1180, %v1812
      %v1833 = vmul.f32 %v1260, %v1812
      %v1834 = vmul.f32 %v1183, %v1812
      %v1835 = vmul.f32 %v1261, %v1812
      %v1836 = vmul.f32 %v1186, %v1812
      %v1837 = vmul.f32 %v1262, %v1812
      %v1838 = vmul.f32 %v1189, %v1812
      %v1839 = vmul.f32 %v1263, %v1812
      %v1840 = vmul.f32 %v1192, %v1812
      %v1841 = vmul.f32 %v1264, %v1812
      %v1842 = vmul.f32 %v1195, %v1812
      %v1843 = vmul.f32 %v1265, %v1812
      %v1844 = vmul.f32 %v1198, %v1812
      %v1845 = vadd.f32 %v1777, %v1813
      %v1846 = vadd.f32 %v1778, %v1814
      %v1847 = vadd.f32 %v1779, %v1815
      %v1848 = vadd.f32 %v1780, %v1816
      %v1849 = vadd.f32 %v1781, %v1817
      %v1850 = vadd.f32 %v1782, %v1818
      %v1851 = vadd.f32 %v1783, %v1819
      %v1852 = vadd.f32 %v1784, %v1820
      %v1853 = vadd.f32 %v1785, %v1821
      %v1854 = vadd.f32 %v1786, %v1822
      %v1855 = vadd.f32 %v1787, %v1823
      %v1856 = vadd.f32 %v1788, %v1824
      %v1857 = vadd.f32 %v1789, %v1825
      %v1858 = vadd.f32 %v1790, %v1826
      %v1859 = vadd.f32 %v1791, %v1827
      %v1860 = vadd.f32 %v1792, %v1828
      %v1861 = vadd.f32 %v1793, %v1829
      %v1862 = vadd.f32 %v1794, %v1830
      %v1863 = vadd.f32 %v1795, %v1831
      %v1864 = vadd.f32 %v1796, %v1832
      %v1865 = vadd.f32 %v1797, %v1833
      %v1866 = vadd.f32 %v1798, %v1834
      %v1867 = vadd.f32 %v1799, %v1835
      %v1868 = vadd.f32 %v1800, %v1836
      %v1869 = vadd.f32 %v1801, %v1837
      %v1870 = vadd.f32 %v1802, %v1838
      %v1871 = vadd.f32 %v1803, %v1839
      %v1872 = vadd.f32 %v1804, %v1840
      %v1873 = vadd.f32 %v1805, %v1841
      %v1874 = vadd.f32 %v1806, %v1842
      %v1875 = vadd.f32 %v1807, %v1843
      %v1876 = vadd.f32 %v1808, %v1844
      %v1877 = vlaneseq
      %v1878 = vshrl.u32 %v1877, 7
      %v1879 = vsub.s32 4, %v1878
      %v1880 = vrot.slane %v1113, %v1879
      %v1881 = vmul.f32 %v1250, %v1880
      %v1882 = vmul.f32 %v1153, %v1880
      %v1883 = vmul.f32 %v1267, %v1880
      %v1884 = vmul.f32 %v1251, %v1880
      %v1885 = vmul.f32 %v1156, %v1880
      %v1886 = vmul.f32 %v1268, %v1880
      %v1887 = vmul.f32 %v1252, %v1880
      %v1888 = vmul.f32 %v1159, %v1880
      %v1889 = vmul.f32 %v1269, %v1880
      %v1890 = vmul.f32 %v1253, %v1880
      %v1891 = vmul.f32 %v1162, %v1880
      %v1892 = vmul.f32 %v1270, %v1880
      %v1893 = vmul.f32 %v1254, %v1880
      %v1894 = vmul.f32 %v1165, %v1880
      %v1895 = vmul.f32 %v1271, %v1880
      %v1896 = vmul.f32 %v1255, %v1880
      %v1897 = vmul.f32 %v1168, %v1880
      %v1898 = vmul.f32 %v1272, %v1880
      %v1899 = vmul.f32 %v1256, %v1880
      %v1900 = vmul.f32 %v1171, %v1880
      %v1901 = vmul.f32 %v1273, %v1880
      %v1902 = vmul.f32 %v1257, %v1880
      %v1903 = vmul.f32 %v1174, %v1880
      %v1904 = vmul.f32 %v1274, %v1880
      %v1905 = vmul.f32 %v1258, %v1880
      %v1906 = vmul.f32 %v1177, %v1880
      %v1907 = vmul.f32 %v1275, %v1880
      %v1908 = vmul.f32 %v1259, %v1880
      %v1909 = vmul.f32 %v1180, %v1880
      %v1910 = vmul.f32 %v1276, %v1880
      %v1911 = vmul.f32 %v1260, %v1880
      %v1912 = vmul.f32 %v1183, %v1880
      %v1913 = vmul.f32 %v1277, %v1880
      %v1914 = vmul.f32 %v1261, %v1880
      %v1915 = vmul.f32 %v1186, %v1880
      %v1916 = vmul.f32 %v1278, %v1880
      %v1917 = vmul.f32 %v1262, %v1880
      %v1918 = vmul.f32 %v1189, %v1880
      %v1919 = vmul.f32 %v1279, %v1880
      %v1920 = vmul.f32 %v1263, %v1880
      %v1921 = vmul.f32 %v1192, %v1880
      %v1922 = vmul.f32 %v1280, %v1880
      %v1923 = vmul.f32 %v1264, %v1880
      %v1924 = vmul.f32 %v1195, %v1880
      %v1925 = vmul.f32 %v1281, %v1880
      %v1926 = vmul.f32 %v1265, %v1880
      %v1927 = vmul.f32 %v1198, %v1880
      %v1928 = vmul.f32 %v1282, %v1880
      %v1977 = vrot.slane %v1881, 1
      %v1978 = vrot.slane %v1882, 1
      %v1979 = vsel %vm1419, %v1977, %v1978
      %v1980 = vrot.slane %v1883, 1
      %v1981 = vsel %vm1419, %v1978, %v1980
      %v1982 = vrot.slane %v1884, 1
      %v1983 = vrot.slane %v1885, 1
      %v1984 = vsel %vm1419, %v1982, %v1983
      %v1985 = vrot.slane %v1886, 1
      %v1986 = vsel %vm1419, %v1983, %v1985
      %v1987 = vrot.slane %v1887, 1
      %v1988 = vrot.slane %v1888, 1
      %v1989 = vsel %vm1419, %v1987, %v1988
      %v1990 = vrot.slane %v1889, 1
      %v1991 = vsel %vm1419, %v1988, %v1990
      %v1992 = vrot.slane %v1890, 1
      %v1993 = vrot.slane %v1891, 1
      %v1994 = vsel %vm1419, %v1992, %v1993
      %v1995 = vrot.slane %v1892, 1
      %v1996 = vsel %vm1419, %v1993, %v1995
      %v1997 = vrot.slane %v1893, 1
      %v1998 = vrot.slane %v1894, 1
      %v1999 = vsel %vm1419, %v1997, %v1998
      %v2000 = vrot.slane %v1895, 1
      %v2001 = vsel %vm1419, %v1998, %v2000
      %v2002 = vrot.slane %v1896, 1
      %v2003 = vrot.slane %v1897, 1
      %v2004 = vsel %vm1419, %v2002, %v2003
      %v2005 = vrot.slane %v1898, 1
      %v2006 = vsel %vm1419, %v2003, %v2005
      %v2007 = vrot.slane %v1899, 1
      %v2008 = vrot.slane %v1900, 1
      %v2009 = vsel %vm1419, %v2007, %v2008
      %v2010 = vrot.slane %v1901, 1
      %v2011 = vsel %vm1419, %v2008, %v2010
      %v2012 = vrot.slane %v1902, 1
      %v2013 = vrot.slane %v1903, 1
      %v2014 = vsel %vm1419, %v2012, %v2013
      %v2015 = vrot.slane %v1904, 1
      %v2016 = vsel %vm1419, %v2013, %v2015
      %v2017 = vrot.slane %v1905, 1
      %v2018 = vrot.slane %v1906, 1
      %v2019 = vsel %vm1419, %v2017, %v2018
      %v2020 = vrot.slane %v1907, 1
      %v2021 = vsel %vm1419, %v2018, %v2020
      %v2022 = vrot.slane %v1908, 1
      %v2023 = vrot.slane %v1909, 1
      %v2024 = vsel %vm1419, %v2022, %v2023
      %v2025 = vrot.slane %v1910, 1
      %v2026 = vsel %vm1419, %v2023, %v2025
      %v2027 = vrot.slane %v1911, 1
      %v2028 = vrot.slane %v1912, 1
      %v2029 = vsel %vm1419, %v2027, %v2028
      %v2030 = vrot.slane %v1913, 1
      %v2031 = vsel %vm1419, %v2028, %v2030
      %v2032 = vrot.slane %v1914, 1
      %v2033 = vrot.slane %v1915, 1
      %v2034 = vsel %vm1419, %v2032, %v2033
      %v2035 = vrot.slane %v1916, 1
      %v2036 = vsel %vm1419, %v2033, %v2035
      %v2037 = vrot.slane %v1917, 1
      %v2038 = vrot.slane %v1918, 1
      %v2039 = vsel %vm1419, %v2037, %v2038
      %v2040 = vrot.slane %v1919, 1
      %v2041 = vsel %vm1419, %v2038, %v2040
      %v2042 = vrot.slane %v1920, 1
      %v2043 = vrot.slane %v1921, 1
      %v2044 = vsel %vm1419, %v2042, %v2043
      %v2045 = vrot.slane %v1922, 1
      %v2046 = vsel %vm1419, %v2043, %v2045
      %v2047 = vrot.slane %v1923, 1
      %v2048 = vrot.slane %v1924, 1
      %v2049 = vsel %vm1419, %v2047, %v2048
      %v2050 = vrot.slane %v1925, 1
      %v2051 = vsel %vm1419, %v2048, %v2050
      %v2052 = vrot.slane %v1926, 1
      %v2053 = vrot.slane %v1927, 1
      %v2054 = vsel %vm1419, %v2052, %v2053
      %v2055 = vrot.slane %v1928, 1
      %v2056 = vsel %vm1419, %v2053, %v2055
      %v2089 = vadd.f32 %v1845, %v1979
      %v2090 = vadd.f32 %v1846, %v1981
      %v2091 = vadd.f32 %v1847, %v1984
      %v2092 = vadd.f32 %v1848, %v1986
      %v2093 = vadd.f32 %v1849, %v1989
      %v2094 = vadd.f32 %v1850, %v1991
      %v2095 = vadd.f32 %v1851, %v1994
      %v2096 = vadd.f32 %v1852, %v1996
      %v2097 = vadd.f32 %v1853, %v1999
      %v2098 = vadd.f32 %v1854, %v2001
      %v2099 = vadd.f32 %v1855, %v2004
      %v2100 = vadd.f32 %v1856, %v2006
      %v2101 = vadd.f32 %v1857, %v2009
      %v2102 = vadd.f32 %v1858, %v2011
      %v2103 = vadd.f32 %v1859, %v2014
      %v2104 = vadd.f32 %v1860, %v2016
      %v2105 = vadd.f32 %v1861, %v2019
      %v2106 = vadd.f32 %v1862, %v2021
      %v2107 = vadd.f32 %v1863, %v2024
      %v2108 = vadd.f32 %v1864, %v2026
      %v2109 = vadd.f32 %v1865, %v2029
      %v2110 = vadd.f32 %v1866, %v2031
      %v2111 = vadd.f32 %v1867, %v2034
      %v2112 = vadd.f32 %v1868, %v2036
      %v2113 = vadd.f32 %v1869, %v2039
      %v2114 = vadd.f32 %v1870, %v2041
      %v2115 = vadd.f32 %v1871, %v2044
      %v2116 = vadd.f32 %v1872, %v2046
      %v2117 = vadd.f32 %v1873, %v2049
      %v2118 = vadd.f32 %v1874, %v2051
      %v2119 = vadd.f32 %v1875, %v2054
      %v2120 = vadd.f32 %v1876, %v2056
      %v2121 = vlaneseq
      %v2122 = vshrl.u32 %v2121, 7
      %v2123 = vsub.s32 5, %v2122
      %v2124 = vrot.slane %v1113, %v2123
      %v2125 = vmul.f32 %v1250, %v2124
      %v2126 = vmul.f32 %v1153, %v2124
      %v2127 = vmul.f32 %v1267, %v2124
      %v2128 = vmul.f32 %v1251, %v2124
      %v2129 = vmul.f32 %v1156, %v2124
      %v2130 = vmul.f32 %v1268, %v2124
      %v2131 = vmul.f32 %v1252, %v2124
      %v2132 = vmul.f32 %v1159, %v2124
      %v2133 = vmul.f32 %v1269, %v2124
      %v2134 = vmul.f32 %v1253, %v2124
      %v2135 = vmul.f32 %v1162, %v2124
      %v2136 = vmul.f32 %v1270, %v2124
      %v2137 = vmul.f32 %v1254, %v2124
      %v2138 = vmul.f32 %v1165, %v2124
      %v2139 = vmul.f32 %v1271, %v2124
      %v2140 = vmul.f32 %v1255, %v2124
      %v2141 = vmul.f32 %v1168, %v2124
      %v2142 = vmul.f32 %v1272, %v2124
      %v2143 = vmul.f32 %v1256, %v2124
      %v2144 = vmul.f32 %v1171, %v2124
      %v2145 = vmul.f32 %v1273, %v2124
      %v2146 = vmul.f32 %v1257, %v2124
      %v2147 = vmul.f32 %v1174, %v2124
      %v2148 = vmul.f32 %v1274, %v2124
      %v2149 = vmul.f32 %v1258, %v2124
      %v2150 = vmul.f32 %v1177, %v2124
      %v2151 = vmul.f32 %v1275, %v2124
      %v2152 = vmul.f32 %v1259, %v2124
      %v2153 = vmul.f32 %v1180, %v2124
      %v2154 = vmul.f32 %v1276, %v2124
      %v2155 = vmul.f32 %v1260, %v2124
      %v2156 = vmul.f32 %v1183, %v2124
      %v2157 = vmul.f32 %v1277, %v2124
      %v2158 = vmul.f32 %v1261, %v2124
      %v2159 = vmul.f32 %v1186, %v2124
      %v2160 = vmul.f32 %v1278, %v2124
      %v2161 = vmul.f32 %v1262, %v2124
      %v2162 = vmul.f32 %v1189, %v2124
      %v2163 = vmul.f32 %v1279, %v2124
      %v2164 = vmul.f32 %v1263, %v2124
      %v2165 = vmul.f32 %v1192, %v2124
      %v2166 = vmul.f32 %v1280, %v2124
      %v2167 = vmul.f32 %v1264, %v2124
      %v2168 = vmul.f32 %v1195, %v2124
      %v2169 = vmul.f32 %v1281, %v2124
      %v2170 = vmul.f32 %v1265, %v2124
      %v2171 = vmul.f32 %v1198, %v2124
      %v2172 = vmul.f32 %v1282, %v2124
      %v2221 = vrot.slane %v2125, 2
      %v2222 = vrot.slane %v2126, 2
      %v2223 = vsel %vm1664, %v2221, %v2222
      %v2224 = vrot.slane %v2127, 2
      %v2225 = vsel %vm1664, %v2222, %v2224
      %v2226 = vrot.slane %v2128, 2
      %v2227 = vrot.slane %v2129, 2
      %v2228 = vsel %vm1664, %v2226, %v2227
      %v2229 = vrot.slane %v2130, 2
      %v2230 = vsel %vm1664, %v2227, %v2229
      %v2231 = vrot.slane %v2131, 2
      %v2232 = vrot.slane %v2132, 2
      %v2233 = vsel %vm1664, %v2231, %v2232
      %v2234 = vrot.slane %v2133, 2
      %v2235 = vsel %vm1664, %v2232, %v2234
      %v2236 = vrot.slane %v2134, 2
      %v2237 = vrot.slane %v2135, 2
      %v2238 = vsel %vm1664, %v2236, %v2237
      %v2239 = vrot.slane %v2136, 2
      %v2240 = vsel %vm1664, %v2237, %v2239
      %v2241 = vrot.slane %v2137, 2
      %v2242 = vrot.slane %v2138, 2
      %v2243 = vsel %vm1664, %v2241, %v2242
      %v2244 = vrot.slane %v2139, 2
      %v2245 = vsel %vm1664, %v2242, %v2244
      %v2246 = vrot.slane %v2140, 2
      %v2247 = vrot.slane %v2141, 2
      %v2248 = vsel %vm1664, %v2246, %v2247
      %v2249 = vrot.slane %v2142, 2
      %v2250 = vsel %vm1664, %v2247, %v2249
      %v2251 = vrot.slane %v2143, 2
      %v2252 = vrot.slane %v2144, 2
      %v2253 = vsel %vm1664, %v2251, %v2252
      %v2254 = vrot.slane %v2145, 2
      %v2255 = vsel %vm1664, %v2252, %v2254
      %v2256 = vrot.slane %v2146, 2
      %v2257 = vrot.slane %v2147, 2
      %v2258 = vsel %vm1664, %v2256, %v2257
      %v2259 = vrot.slane %v2148, 2
      %v2260 = vsel %vm1664, %v2257, %v2259
      %v2261 = vrot.slane %v2149, 2
      %v2262 = vrot.slane %v2150, 2
      %v2263 = vsel %vm1664, %v2261, %v2262
      %v2264 = vrot.slane %v2151, 2
      %v2265 = vsel %vm1664, %v2262, %v2264
      %v2266 = vrot.slane %v2152, 2
      %v2267 = vrot.slane %v2153, 2
      %v2268 = vsel %vm1664, %v2266, %v2267
      %v2269 = vrot.slane %v2154, 2
      %v2270 = vsel %vm1664, %v2267, %v2269
      %v2271 = vrot.slane %v2155, 2
      %v2272 = vrot.slane %v2156, 2
      %v2273 = vsel %vm1664, %v2271, %v2272
      %v2274 = vrot.slane %v2157, 2
      %v2275 = vsel %vm1664, %v2272, %v2274
      %v2276 = vrot.slane %v2158, 2
      %v2277 = vrot.slane %v2159, 2
      %v2278 = vsel %vm1664, %v2276, %v2277
      %v2279 = vrot.slane %v2160, 2
      %v2280 = vsel %vm1664, %v2277, %v2279
      %v2281 = vrot.slane %v2161, 2
      %v2282 = vrot.slane %v2162, 2
      %v2283 = vsel %vm1664, %v2281, %v2282
      %v2284 = vrot.slane %v2163, 2
      %v2285 = vsel %vm1664, %v2282, %v2284
      %v2286 = vrot.slane %v2164, 2
      %v2287 = vrot.slane %v2165, 2
      %v2288 = vsel %vm1664, %v2286, %v2287
      %v2289 = vrot.slane %v2166, 2
      %v2290 = vsel %vm1664, %v2287, %v2289
      %v2291 = vrot.slane %v2167, 2
      %v2292 = vrot.slane %v2168, 2
      %v2293 = vsel %vm1664, %v2291, %v2292
      %v2294 = vrot.slane %v2169, 2
      %v2295 = vsel %vm1664, %v2292, %v2294
      %v2296 = vrot.slane %v2170, 2
      %v2297 = vrot.slane %v2171, 2
      %v2298 = vsel %vm1664, %v2296, %v2297
      %v2299 = vrot.slane %v2172, 2
      %v2300 = vsel %vm1664, %v2297, %v2299
      %v2333 = vadd.f32 %v2089, %v2223
      %v2334 = vadd.f32 %v2090, %v2225
      %v2335 = vadd.f32 %v2091, %v2228
      %v2336 = vadd.f32 %v2092, %v2230
      %v2337 = vadd.f32 %v2093, %v2233
      %v2338 = vadd.f32 %v2094, %v2235
      %v2339 = vadd.f32 %v2095, %v2238
      %v2340 = vadd.f32 %v2096, %v2240
      %v2341 = vadd.f32 %v2097, %v2243
      %v2342 = vadd.f32 %v2098, %v2245
      %v2343 = vadd.f32 %v2099, %v2248
      %v2344 = vadd.f32 %v2100, %v2250
      %v2345 = vadd.f32 %v2101, %v2253
      %v2346 = vadd.f32 %v2102, %v2255
      %v2347 = vadd.f32 %v2103, %v2258
      %v2348 = vadd.f32 %v2104, %v2260
      %v2349 = vadd.f32 %v2105, %v2263
      %v2350 = vadd.f32 %v2106, %v2265
      %v2351 = vadd.f32 %v2107, %v2268
      %v2352 = vadd.f32 %v2108, %v2270
      %v2353 = vadd.f32 %v2109, %v2273
      %v2354 = vadd.f32 %v2110, %v2275
      %v2355 = vadd.f32 %v2111, %v2278
      %v2356 = vadd.f32 %v2112, %v2280
      %v2357 = vadd.f32 %v2113, %v2283
      %v2358 = vadd.f32 %v2114, %v2285
      %v2359 = vadd.f32 %v2115, %v2288
      %v2360 = vadd.f32 %v2116, %v2290
      %v2361 = vadd.f32 %v2117, %v2293
      %v2362 = vadd.f32 %v2118, %v2295
      %v2363 = vadd.f32 %v2119, %v2298
      %v2364 = vadd.f32 %v2120, %v2300
      %v2365 = vlaneseq
      %v2366 = vshrl.u32 %v2365, 7
      %v2367 = vsub.s32 6, %v2366
      %v2368 = vrot.slane %v1113, %v2367
      %v2369 = vmul.f32 %v1251, %v2368
      %v2370 = vmul.f32 %v1156, %v2368
      %v2371 = vmul.f32 %v1252, %v2368
      %v2372 = vmul.f32 %v1159, %v2368
      %v2373 = vmul.f32 %v1253, %v2368
      %v2374 = vmul.f32 %v1162, %v2368
      %v2375 = vmul.f32 %v1254, %v2368
      %v2376 = vmul.f32 %v1165, %v2368
      %v2377 = vmul.f32 %v1255, %v2368
      %v2378 = vmul.f32 %v1168, %v2368
      %v2379 = vmul.f32 %v1256, %v2368
      %v2380 = vmul.f32 %v1171, %v2368
      %v2381 = vmul.f32 %v1257, %v2368
      %v2382 = vmul.f32 %v1174, %v2368
      %v2383 = vmul.f32 %v1258, %v2368
      %v2384 = vmul.f32 %v1177, %v2368
      %v2385 = vmul.f32 %v1259, %v2368
      %v2386 = vmul.f32 %v1180, %v2368
      %v2387 = vmul.f32 %v1260, %v2368
      %v2388 = vmul.f32 %v1183, %v2368
      %v2389 = vmul.f32 %v1261, %v2368
      %v2390 = vmul.f32 %v1186, %v2368
      %v2391 = vmul.f32 %v1262, %v2368
      %v2392 = vmul.f32 %v1189, %v2368
      %v2393 = vmul.f32 %v1263, %v2368
      %v2394 = vmul.f32 %v1192, %v2368
      %v2395 = vmul.f32 %v1264, %v2368
      %v2396 = vmul.f32 %v1195, %v2368
      %v2397 = vmul.f32 %v1265, %v2368
      %v2398 = vmul.f32 %v1198, %v2368
      %v2399 = vmul.f32 %v1249, %v2368
      %v2400 = vmul.f32 %v1150, %v2368
      %v2401 = vadd.f32 %v2333, %v2369
      %v2402 = vadd.f32 %v2334, %v2370
      %v2403 = vadd.f32 %v2335, %v2371
      %v2404 = vadd.f32 %v2336, %v2372
      %v2405 = vadd.f32 %v2337, %v2373
      %v2406 = vadd.f32 %v2338, %v2374
      %v2407 = vadd.f32 %v2339, %v2375
      %v2408 = vadd.f32 %v2340, %v2376
      %v2409 = vadd.f32 %v2341, %v2377
      %v2410 = vadd.f32 %v2342, %v2378
      %v2411 = vadd.f32 %v2343, %v2379
      %v2412 = vadd.f32 %v2344, %v2380
      %v2413 = vadd.f32 %v2345, %v2381
      %v2414 = vadd.f32 %v2346, %v2382
      %v2415 = vadd.f32 %v2347, %v2383
      %v2416 = vadd.f32 %v2348, %v2384
      %v2417 = vadd.f32 %v2349, %v2385
      %v2418 = vadd.f32 %v2350, %v2386
      %v2419 = vadd.f32 %v2351, %v2387
      %v2420 = vadd.f32 %v2352, %v2388
      %v2421 = vadd.f32 %v2353, %v2389
      %v2422 = vadd.f32 %v2354, %v2390
      %v2423 = vadd.f32 %v2355, %v2391
      %v2424 = vadd.f32 %v2356, %v2392
      %v2425 = vadd.f32 %v2357, %v2393
      %v2426 = vadd.f32 %v2358, %v2394
      %v2427 = vadd.f32 %v2359, %v2395
      %v2428 = vadd.f32 %v2360, %v2396
      %v2429 = vadd.f32 %v2361, %v2397
      %v2430 = vadd.f32 %v2362, %v2398
      %v2431 = vadd.f32 %v2363, %v2399
      %v2432 = vadd.f32 %v2364, %v2400
      %v2433 = vlaneseq
      %v2434 = vshrl.u32 %v2433, 7
      %v2435 = vsub.s32 7, %v2434
      %v2436 = vrot.slane %v1113, %v2435
      %v2437 = vmul.f32 %v1251, %v2436
      %v2438 = vmul.f32 %v1156, %v2436
      %v2439 = vmul.f32 %v1268, %v2436
      %v2440 = vmul.f32 %v1252, %v2436
      %v2441 = vmul.f32 %v1159, %v2436
      %v2442 = vmul.f32 %v1269, %v2436
      %v2443 = vmul.f32 %v1253, %v2436
      %v2444 = vmul.f32 %v1162, %v2436
      %v2445 = vmul.f32 %v1270, %v2436
      %v2446 = vmul.f32 %v1254, %v2436
      %v2447 = vmul.f32 %v1165, %v2436
      %v2448 = vmul.f32 %v1271, %v2436
      %v2449 = vmul.f32 %v1255, %v2436
      %v2450 = vmul.f32 %v1168, %v2436
      %v2451 = vmul.f32 %v1272, %v2436
      %v2452 = vmul.f32 %v1256, %v2436
      %v2453 = vmul.f32 %v1171, %v2436
      %v2454 = vmul.f32 %v1273, %v2436
      %v2455 = vmul.f32 %v1257, %v2436
      %v2456 = vmul.f32 %v1174, %v2436
      %v2457 = vmul.f32 %v1274, %v2436
      %v2458 = vmul.f32 %v1258, %v2436
      %v2459 = vmul.f32 %v1177, %v2436
      %v2460 = vmul.f32 %v1275, %v2436
      %v2461 = vmul.f32 %v1259, %v2436
      %v2462 = vmul.f32 %v1180, %v2436
      %v2463 = vmul.f32 %v1276, %v2436
      %v2464 = vmul.f32 %v1260, %v2436
      %v2465 = vmul.f32 %v1183, %v2436
      %v2466 = vmul.f32 %v1277, %v2436
      %v2467 = vmul.f32 %v1261, %v2436
      %v2468 = vmul.f32 %v1186, %v2436
      %v2469 = vmul.f32 %v1278, %v2436
      %v2470 = vmul.f32 %v1262, %v2436
      %v2471 = vmul.f32 %v1189, %v2436
      %v2472 = vmul.f32 %v1279, %v2436
      %v2473 = vmul.f32 %v1263, %v2436
      %v2474 = vmul.f32 %v1192, %v2436
      %v2475 = vmul.f32 %v1280, %v2436
      %v2476 = vmul.f32 %v1264, %v2436
      %v2477 = vmul.f32 %v1195, %v2436
      %v2478 = vmul.f32 %v1281, %v2436
      %v2479 = vmul.f32 %v1265, %v2436
      %v2480 = vmul.f32 %v1198, %v2436
      %v2481 = vmul.f32 %v1282, %v2436
      %v2482 = vmul.f32 %v1249, %v2436
      %v2483 = vmul.f32 %v1150, %v2436
      %v2484 = vmul.f32 %v1266, %v2436
      %v2533 = vrot.slane %v2437, 1
      %v2534 = vrot.slane %v2438, 1
      %v2535 = vsel %vm1419, %v2533, %v2534
      %v2536 = vrot.slane %v2439, 1
      %v2537 = vsel %vm1419, %v2534, %v2536
      %v2538 = vrot.slane %v2440, 1
      %v2539 = vrot.slane %v2441, 1
      %v2540 = vsel %vm1419, %v2538, %v2539
      %v2541 = vrot.slane %v2442, 1
      %v2542 = vsel %vm1419, %v2539, %v2541
      %v2543 = vrot.slane %v2443, 1
      %v2544 = vrot.slane %v2444, 1
      %v2545 = vsel %vm1419, %v2543, %v2544
      %v2546 = vrot.slane %v2445, 1
      %v2547 = vsel %vm1419, %v2544, %v2546
      %v2548 = vrot.slane %v2446, 1
      %v2549 = vrot.slane %v2447, 1
      %v2550 = vsel %vm1419, %v2548, %v2549
      %v2551 = vrot.slane %v2448, 1
      %v2552 = vsel %vm1419, %v2549, %v2551
      %v2553 = vrot.slane %v2449, 1
      %v2554 = vrot.slane %v2450, 1
      %v2555 = vsel %vm1419, %v2553, %v2554
      %v2556 = vrot.slane %v2451, 1
      %v2557 = vsel %vm1419, %v2554, %v2556
      %v2558 = vrot.slane %v2452, 1
      %v2559 = vrot.slane %v2453, 1
      %v2560 = vsel %vm1419, %v2558, %v2559
      %v2561 = vrot.slane %v2454, 1
      %v2562 = vsel %vm1419, %v2559, %v2561
      %v2563 = vrot.slane %v2455, 1
      %v2564 = vrot.slane %v2456, 1
      %v2565 = vsel %vm1419, %v2563, %v2564
      %v2566 = vrot.slane %v2457, 1
      %v2567 = vsel %vm1419, %v2564, %v2566
      %v2568 = vrot.slane %v2458, 1
      %v2569 = vrot.slane %v2459, 1
      %v2570 = vsel %vm1419, %v2568, %v2569
      %v2571 = vrot.slane %v2460, 1
      %v2572 = vsel %vm1419, %v2569, %v2571
      %v2573 = vrot.slane %v2461, 1
      %v2574 = vrot.slane %v2462, 1
      %v2575 = vsel %vm1419, %v2573, %v2574
      %v2576 = vrot.slane %v2463, 1
      %v2577 = vsel %vm1419, %v2574, %v2576
      %v2578 = vrot.slane %v2464, 1
      %v2579 = vrot.slane %v2465, 1
      %v2580 = vsel %vm1419, %v2578, %v2579
      %v2581 = vrot.slane %v2466, 1
      %v2582 = vsel %vm1419, %v2579, %v2581
      %v2583 = vrot.slane %v2467, 1
      %v2584 = vrot.slane %v2468, 1
      %v2585 = vsel %vm1419, %v2583, %v2584
      %v2586 = vrot.slane %v2469, 1
      %v2587 = vsel %vm1419, %v2584, %v2586
      %v2588 = vrot.slane %v2470, 1
      %v2589 = vrot.slane %v2471, 1
      %v2590 = vsel %vm1419, %v2588, %v2589
      %v2591 = vrot.slane %v2472, 1
      %v2592 = vsel %vm1419, %v2589, %v2591
      %v2593 = vrot.slane %v2473, 1
      %v2594 = vrot.slane %v2474, 1
      %v2595 = vsel %vm1419, %v2593, %v2594
      %v2596 = vrot.slane %v2475, 1
      %v2597 = vsel %vm1419, %v2594, %v2596
      %v2598 = vrot.slane %v2476, 1
      %v2599 = vrot.slane %v2477, 1
      %v2600 = vsel %vm1419, %v2598, %v2599
      %v2601 = vrot.slane %v2478, 1
      %v2602 = vsel %vm1419, %v2599, %v2601
      %v2603 = vrot.slane %v2479, 1
      %v2604 = vrot.slane %v2480, 1
      %v2605 = vsel %vm1419, %v2603, %v2604
      %v2606 = vrot.slane %v2481, 1
      %v2607 = vsel %vm1419, %v2604, %v2606
      %v2608 = vrot.slane %v2482, 1
      %v2609 = vrot.slane %v2483, 1
      %v2610 = vsel %vm1419, %v2608, %v2609
      %v2611 = vrot.slane %v2484, 1
      %v2612 = vsel %vm1419, %v2609, %v2611
      %v2645 = vadd.f32 %v2401, %v2535
      %v2646 = vadd.f32 %v2402, %v2537
      %v2647 = vadd.f32 %v2403, %v2540
      %v2648 = vadd.f32 %v2404, %v2542
      %v2649 = vadd.f32 %v2405, %v2545
      %v2650 = vadd.f32 %v2406, %v2547
      %v2651 = vadd.f32 %v2407, %v2550
      %v2652 = vadd.f32 %v2408, %v2552
      %v2653 = vadd.f32 %v2409, %v2555
      %v2654 = vadd.f32 %v2410, %v2557
      %v2655 = vadd.f32 %v2411, %v2560
      %v2656 = vadd.f32 %v2412, %v2562
      %v2657 = vadd.f32 %v2413, %v2565
      %v2658 = vadd.f32 %v2414, %v2567
      %v2659 = vadd.f32 %v2415, %v2570
      %v2660 = vadd.f32 %v2416, %v2572
      %v2661 = vadd.f32 %v2417, %v2575
      %v2662 = vadd.f32 %v2418, %v2577
      %v2663 = vadd.f32 %v2419, %v2580
      %v2664 = vadd.f32 %v2420, %v2582
      %v2665 = vadd.f32 %v2421, %v2585
      %v2666 = vadd.f32 %v2422, %v2587
      %v2667 = vadd.f32 %v2423, %v2590
      %v2668 = vadd.f32 %v2424, %v2592
      %v2669 = vadd.f32 %v2425, %v2595
      %v2670 = vadd.f32 %v2426, %v2597
      %v2671 = vadd.f32 %v2427, %v2600
      %v2672 = vadd.f32 %v2428, %v2602
      %v2673 = vadd.f32 %v2429, %v2605
      %v2674 = vadd.f32 %v2430, %v2607
      %v2675 = vadd.f32 %v2431, %v2610
      %v2676 = vadd.f32 %v2432, %v2612
      %v2677 = vlaneseq
      %v2678 = vshrl.u32 %v2677, 7
      %v2679 = vsub.s32 0, %v2678
      %v2680 = vrot.slane %v1114, %v2679
      %v2681 = vmul.f32 %v1251, %v2680
      %v2682 = vmul.f32 %v1156, %v2680
      %v2683 = vmul.f32 %v1268, %v2680
      %v2684 = vmul.f32 %v1252, %v2680
      %v2685 = vmul.f32 %v1159, %v2680
      %v2686 = vmul.f32 %v1269, %v2680
      %v2687 = vmul.f32 %v1253, %v2680
      %v2688 = vmul.f32 %v1162, %v2680
      %v2689 = vmul.f32 %v1270, %v2680
      %v2690 = vmul.f32 %v1254, %v2680
      %v2691 = vmul.f32 %v1165, %v2680
      %v2692 = vmul.f32 %v1271, %v2680
      %v2693 = vmul.f32 %v1255, %v2680
      %v2694 = vmul.f32 %v1168, %v2680
      %v2695 = vmul.f32 %v1272, %v2680
      %v2696 = vmul.f32 %v1256, %v2680
      %v2697 = vmul.f32 %v1171, %v2680
      %v2698 = vmul.f32 %v1273, %v2680
      %v2699 = vmul.f32 %v1257, %v2680
      %v2700 = vmul.f32 %v1174, %v2680
      %v2701 = vmul.f32 %v1274, %v2680
      %v2702 = vmul.f32 %v1258, %v2680
      %v2703 = vmul.f32 %v1177, %v2680
      %v2704 = vmul.f32 %v1275, %v2680
      %v2705 = vmul.f32 %v1259, %v2680
      %v2706 = vmul.f32 %v1180, %v2680
      %v2707 = vmul.f32 %v1276, %v2680
      %v2708 = vmul.f32 %v1260, %v2680
      %v2709 = vmul.f32 %v1183, %v2680
      %v2710 = vmul.f32 %v1277, %v2680
      %v2711 = vmul.f32 %v1261, %v2680
      %v2712 = vmul.f32 %v1186, %v2680
      %v2713 = vmul.f32 %v1278, %v2680
      %v2714 = vmul.f32 %v1262, %v2680
      %v2715 = vmul.f32 %v1189, %v2680
      %v2716 = vmul.f32 %v1279, %v2680
      %v2717 = vmul.f32 %v1263, %v2680
      %v2718 = vmul.f32 %v1192, %v2680
      %v2719 = vmul.f32 %v1280, %v2680
      %v2720 = vmul.f32 %v1264, %v2680
      %v2721 = vmul.f32 %v1195, %v2680
      %v2722 = vmul.f32 %v1281, %v2680
      %v2723 = vmul.f32 %v1265, %v2680
      %v2724 = vmul.f32 %v1198, %v2680
      %v2725 = vmul.f32 %v1282, %v2680
      %v2726 = vmul.f32 %v1249, %v2680
      %v2727 = vmul.f32 %v1150, %v2680
      %v2728 = vmul.f32 %v1266, %v2680
      %v2777 = vrot.slane %v2681, 2
      %v2778 = vrot.slane %v2682, 2
      %v2779 = vsel %vm1664, %v2777, %v2778
      %v2780 = vrot.slane %v2683, 2
      %v2781 = vsel %vm1664, %v2778, %v2780
      %v2782 = vrot.slane %v2684, 2
      %v2783 = vrot.slane %v2685, 2
      %v2784 = vsel %vm1664, %v2782, %v2783
      %v2785 = vrot.slane %v2686, 2
      %v2786 = vsel %vm1664, %v2783, %v2785
      %v2787 = vrot.slane %v2687, 2
      %v2788 = vrot.slane %v2688, 2
      %v2789 = vsel %vm1664, %v2787, %v2788
      %v2790 = vrot.slane %v2689, 2
      %v2791 = vsel %vm1664, %v2788, %v2790
      %v2792 = vrot.slane %v2690, 2
      %v2793 = vrot.slane %v2691, 2
      %v2794 = vsel %vm1664, %v2792, %v2793
      %v2795 = vrot.slane %v2692, 2
      %v2796 = vsel %vm1664, %v2793, %v2795
      %v2797 = vrot.slane %v2693, 2
      %v2798 = vrot.slane %v2694, 2
      %v2799 = vsel %vm1664, %v2797, %v2798
      %v2800 = vrot.slane %v2695, 2
      %v2801 = vsel %vm1664, %v2798, %v2800
      %v2802 = vrot.slane %v2696, 2
      %v2803 = vrot.slane %v2697, 2
      %v2804 = vsel %vm1664, %v2802, %v2803
      %v2805 = vrot.slane %v2698, 2
      %v2806 = vsel %vm1664, %v2803, %v2805
      %v2807 = vrot.slane %v2699, 2
      %v2808 = vrot.slane %v2700, 2
      %v2809 = vsel %vm1664, %v2807, %v2808
      %v2810 = vrot.slane %v2701, 2
      %v2811 = vsel %vm1664, %v2808, %v2810
      %v2812 = vrot.slane %v2702, 2
      %v2813 = vrot.slane %v2703, 2
      %v2814 = vsel %vm1664, %v2812, %v2813
      %v2815 = vrot.slane %v2704, 2
      %v2816 = vsel %vm1664, %v2813, %v2815
      %v2817 = vrot.slane %v2705, 2
      %v2818 = vrot.slane %v2706, 2
      %v2819 = vsel %vm1664, %v2817, %v2818
      %v2820 = vrot.slane %v2707, 2
      %v2821 = vsel %vm1664, %v2818, %v2820
      %v2822 = vrot.slane %v2708, 2
      %v2823 = vrot.slane %v2709, 2
      %v2824 = vsel %vm1664, %v2822, %v2823
      %v2825 = vrot.slane %v2710, 2
      %v2826 = vsel %vm1664, %v2823, %v2825
      %v2827 = vrot.slane %v2711, 2
      %v2828 = vrot.slane %v2712, 2
      %v2829 = vsel %vm1664, %v2827, %v2828
      %v2830 = vrot.slane %v2713, 2
      %v2831 = vsel %vm1664, %v2828, %v2830
      %v2832 = vrot.slane %v2714, 2
      %v2833 = vrot.slane %v2715, 2
      %v2834 = vsel %vm1664, %v2832, %v2833
      %v2835 = vrot.slane %v2716, 2
      %v2836 = vsel %vm1664, %v2833, %v2835
      %v2837 = vrot.slane %v2717, 2
      %v2838 = vrot.slane %v2718, 2
      %v2839 = vsel %vm1664, %v2837, %v2838
      %v2840 = vrot.slane %v2719, 2
      %v2841 = vsel %vm1664, %v2838, %v2840
      %v2842 = vrot.slane %v2720, 2
      %v2843 = vrot.slane %v2721, 2
      %v2844 = vsel %vm1664, %v2842, %v2843
      %v2845 = vrot.slane %v2722, 2
      %v2846 = vsel %vm1664, %v2843, %v2845
      %v2847 = vrot.slane %v2723, 2
      %v2848 = vrot.slane %v2724, 2
      %v2849 = vsel %vm1664, %v2847, %v2848
      %v2850 = vrot.slane %v2725, 2
      %v2851 = vsel %vm1664, %v2848, %v2850
      %v2852 = vrot.slane %v2726, 2
      %v2853 = vrot.slane %v2727, 2
      %v2854 = vsel %vm1664, %v2852, %v2853
      %v2855 = vrot.slane %v2728, 2
      %v2856 = vsel %vm1664, %v2853, %v2855
      %v2889 = vadd.f32 %v2645, %v2779
      %v2890 = vadd.f32 %v2646, %v2781
      %v2891 = vadd.f32 %v2647, %v2784
      %v2892 = vadd.f32 %v2648, %v2786
      %v2893 = vadd.f32 %v2649, %v2789
      %v2894 = vadd.f32 %v2650, %v2791
      %v2895 = vadd.f32 %v2651, %v2794
      %v2896 = vadd.f32 %v2652, %v2796
      %v2897 = vadd.f32 %v2653, %v2799
      %v2898 = vadd.f32 %v2654, %v2801
      %v2899 = vadd.f32 %v2655, %v2804
      %v2900 = vadd.f32 %v2656, %v2806
      %v2901 = vadd.f32 %v2657, %v2809
      %v2902 = vadd.f32 %v2658, %v2811
      %v2903 = vadd.f32 %v2659, %v2814
      %v2904 = vadd.f32 %v2660, %v2816
      %v2905 = vadd.f32 %v2661, %v2819
      %v2906 = vadd.f32 %v2662, %v2821
      %v2907 = vadd.f32 %v2663, %v2824
      %v2908 = vadd.f32 %v2664, %v2826
      %v2909 = vadd.f32 %v2665, %v2829
      %v2910 = vadd.f32 %v2666, %v2831
      %v2911 = vadd.f32 %v2667, %v2834
      %v2912 = vadd.f32 %v2668, %v2836
      %v2913 = vadd.f32 %v2669, %v2839
      %v2914 = vadd.f32 %v2670, %v2841
      %v2915 = vadd.f32 %v2671, %v2844
      %v2916 = vadd.f32 %v2672, %v2846
      %v2917 = vadd.f32 %v2673, %v2849
      %v2918 = vadd.f32 %v2674, %v2851
      %v2919 = vadd.f32 %v2675, %v2854
      %v2920 = vadd.f32 %v2676, %v2856
      %v2921 = vld [vmem:[%s347] sm:$0xff]
      %v2922 = vld [vmem:[%s347 + $0x8] sm:$0xff]
      %v2923 = vld [vmem:[%s347 + $0x10] sm:$0xff]
      %v2924 = vld [vmem:[%s347 + $0x18] sm:$0xff]
      %v2925 = vld [vmem:[%s347 + $0x20] sm:$0xff]
      %v2926 = vld [vmem:[%s347 + $0x28] sm:$0xff]
      %v2927 = vld [vmem:[%s347 + $0x30] sm:$0xff]
      %v2928 = vld [vmem:[%s347 + $0x38] sm:$0xff]
      %v2929 = vld [vmem:[%s347 + $0x40] sm:$0xff]
      %v2930 = vld [vmem:[%s347 + $0x48] sm:$0xff]
      %v2931 = vld [vmem:[%s347 + $0x50] sm:$0xff]
      %v2932 = vld [vmem:[%s347 + $0x58] sm:$0xff]
      %v2933 = vld [vmem:[%s347 + $0x60] sm:$0xff]
      %v2934 = vld [vmem:[%s347 + $0x68] sm:$0xff]
      %v2935 = vld [vmem:[%s347 + $0x70] sm:$0xff]
      %v2936 = vld [vmem:[%s347 + $0x78] sm:$0xff]
      %v2937 = vld [vmem:[%s347 + $0x80] sm:$0xff]
      %v2938 = vld [vmem:[%s347 + $0x88] sm:$0xff]
      %v2939 = vld [vmem:[%s347 + $0x90] sm:$0xff]
      %v2940 = vld [vmem:[%s347 + $0x98] sm:$0xff]
      %v2941 = vld [vmem:[%s347 + $0xa0] sm:$0xff]
      %v2942 = vld [vmem:[%s347 + $0xa8] sm:$0xff]
      %v2943 = vld [vmem:[%s347 + $0xb0] sm:$0xff]
      %v2944 = vld [vmem:[%s347 + $0xb8] sm:$0xff]
      %v2945 = vld [vmem:[%s347 + $0xc0] sm:$0xff]
      %v2946 = vld [vmem:[%s347 + $0xc8] sm:$0xff]
      %v2947 = vld [vmem:[%s347 + $0xd0] sm:$0xff]
      %v2948 = vld [vmem:[%s347 + $0xd8] sm:$0xff]
      %v2949 = vld [vmem:[%s347 + $0xe0] sm:$0xff]
      %v2950 = vld [vmem:[%s347 + $0xe8] sm:$0xff]
      %v2951 = vld [vmem:[%s347 + $0xf0] sm:$0xff]
      %v2952 = vld [vmem:[%s347 + $0xf8] sm:$0xff]
      %v2953 = vmul.f32 %v2921, %v2921
      %v2954 = vmul.f32 %v2922, %v2922
      %v2955 = vmul.f32 %v2923, %v2923
      %v2956 = vmul.f32 %v2924, %v2924
      %v2957 = vmul.f32 %v2925, %v2925
      %v2958 = vmul.f32 %v2926, %v2926
      %v2959 = vmul.f32 %v2927, %v2927
      %v2960 = vmul.f32 %v2928, %v2928
      %v2961 = vmul.f32 %v2929, %v2929
      %v2962 = vmul.f32 %v2930, %v2930
      %v2963 = vmul.f32 %v2931, %v2931
      %v2964 = vmul.f32 %v2932, %v2932
      %v2965 = vmul.f32 %v2933, %v2933
      %v2966 = vmul.f32 %v2934, %v2934
      %v2967 = vmul.f32 %v2935, %v2935
      %v2968 = vmul.f32 %v2936, %v2936
      %v2969 = vmul.f32 %v2937, %v2937
      %v2970 = vmul.f32 %v2938, %v2938
      %v2971 = vmul.f32 %v2939, %v2939
      %v2972 = vmul.f32 %v2940, %v2940
      %v2973 = vmul.f32 %v2941, %v2941
      %v2974 = vmul.f32 %v2942, %v2942
      %v2975 = vmul.f32 %v2943, %v2943
      %v2976 = vmul.f32 %v2944, %v2944
      %v2977 = vmul.f32 %v2945, %v2945
      %v2978 = vmul.f32 %v2946, %v2946
      %v2979 = vmul.f32 %v2947, %v2947
      %v2980 = vmul.f32 %v2948, %v2948
      %v2981 = vmul.f32 %v2949, %v2949
      %v2982 = vmul.f32 %v2950, %v2950
      %v2983 = vmul.f32 %v2951, %v2951
      %v2984 = vmul.f32 %v2952, %v2952
      %v2985 = vsel %vm388, %v2953, 0.0
      %v2986 = vsel %vm388, %v2954, 0.0
      %v2987 = vadd.f32 %v2985, %v2986
      %v2988 = vsel %vm388, %v2955, 0.0
      %v2989 = vadd.f32 %v2987, %v2988
      %v2990 = vsel %vm388, %v2956, 0.0
      %v2991 = vadd.f32 %v2989, %v2990
      %v2992 = vsel %vm388, %v2957, 0.0
      %v2993 = vadd.f32 %v2991, %v2992
      %v2994 = vsel %vm388, %v2958, 0.0
      %v2995 = vadd.f32 %v2993, %v2994
      %v2996 = vsel %vm388, %v2959, 0.0
      %v2997 = vadd.f32 %v2995, %v2996
      %v2998 = vsel %vm388, %v2960, 0.0
      %v2999 = vadd.f32 %v2997, %v2998
      %v3000 = vsel %vm388, %v2961, 0.0
      %v3001 = vadd.f32 %v2999, %v3000
      %v3002 = vsel %vm388, %v2962, 0.0
      %v3003 = vadd.f32 %v3001, %v3002
      %v3004 = vsel %vm388, %v2963, 0.0
      %v3005 = vadd.f32 %v3003, %v3004
      %v3006 = vsel %vm388, %v2964, 0.0
      %v3007 = vadd.f32 %v3005, %v3006
      %v3008 = vsel %vm388, %v2965, 0.0
      %v3009 = vadd.f32 %v3007, %v3008
      %v3010 = vsel %vm388, %v2966, 0.0
      %v3011 = vadd.f32 %v3009, %v3010
      %v3012 = vsel %vm388, %v2967, 0.0
      %v3013 = vadd.f32 %v3011, %v3012
      %v3014 = vsel %vm388, %v2968, 0.0
      %v3015 = vadd.f32 %v3013, %v3014
      %v3016 = vsel %vm388, %v2969, 0.0
      %v3017 = vadd.f32 %v3015, %v3016
      %v3018 = vsel %vm388, %v2970, 0.0
      %v3019 = vadd.f32 %v3017, %v3018
      %v3020 = vsel %vm388, %v2971, 0.0
      %v3021 = vadd.f32 %v3019, %v3020
      %v3022 = vsel %vm388, %v2972, 0.0
      %v3023 = vadd.f32 %v3021, %v3022
      %v3024 = vsel %vm388, %v2973, 0.0
      %v3025 = vadd.f32 %v3023, %v3024
      %v3026 = vsel %vm388, %v2974, 0.0
      %v3027 = vadd.f32 %v3025, %v3026
      %v3028 = vsel %vm388, %v2975, 0.0
      %v3029 = vadd.f32 %v3027, %v3028
      %v3030 = vsel %vm388, %v2976, 0.0
      %v3031 = vadd.f32 %v3029, %v3030
      %v3032 = vsel %vm388, %v2977, 0.0
      %v3033 = vadd.f32 %v3031, %v3032
      %v3034 = vsel %vm388, %v2978, 0.0
      %v3035 = vadd.f32 %v3033, %v3034
      %v3036 = vsel %vm388, %v2979, 0.0
      %v3037 = vadd.f32 %v3035, %v3036
      %v3038 = vsel %vm388, %v2980, 0.0
      %v3039 = vadd.f32 %v3037, %v3038
      %v3040 = vsel %vm388, %v2981, 0.0
      %v3041 = vadd.f32 %v3039, %v3040
      %v3042 = vsel %vm388, %v2982, 0.0
      %v3043 = vadd.f32 %v3041, %v3042
      %v3044 = vsel %vm388, %v2983, 0.0
      %v3045 = vadd.f32 %v3043, %v3044
      %v3046 = vsel %vm388, %v2984, 0.0
      %v3047 = vadd.f32 %v3045, %v3046
      %v3048 = vrot.slane %v3047, 4
      %v3049 = vadd.f32 %v3047, %v3048
      %v3050 = vrot.slane %v3049, 2
      %v3051 = vadd.f32 %v3049, %v3050
      %v3052 = vrot.slane %v3051, 1
      %v3053 = vadd.f32 %v3051, %v3052
      %v3054 = vmax.f32 %v3053, 1e-24
      %v3055 = vrsqrt.pop %v3054
      %v3056 = vmul.f32 %v2921, %v3055
      %v3057 = vmul.f32 %v2922, %v3055
      %v3058 = vmul.f32 %v2923, %v3055
      %v3059 = vmul.f32 %v2924, %v3055
      %v3060 = vmul.f32 %v2925, %v3055
      %v3061 = vmul.f32 %v2926, %v3055
      %v3062 = vmul.f32 %v2927, %v3055
      %v3063 = vmul.f32 %v2928, %v3055
      %v3064 = vmul.f32 %v2929, %v3055
      %v3065 = vmul.f32 %v2930, %v3055
      %v3066 = vmul.f32 %v2931, %v3055
      %v3067 = vmul.f32 %v2932, %v3055
      %v3068 = vmul.f32 %v2933, %v3055
      %v3069 = vmul.f32 %v2934, %v3055
      %v3070 = vmul.f32 %v2935, %v3055
      %v3071 = vmul.f32 %v2936, %v3055
      %v3072 = vmul.f32 %v2937, %v3055
      %v3073 = vmul.f32 %v2938, %v3055
      %v3074 = vmul.f32 %v2939, %v3055
      %v3075 = vmul.f32 %v2940, %v3055
      %v3076 = vmul.f32 %v2941, %v3055
      %v3077 = vmul.f32 %v2942, %v3055
      %v3078 = vmul.f32 %v2943, %v3055
      %v3079 = vmul.f32 %v2944, %v3055
      %v3080 = vmul.f32 %v2945, %v3055
      %v3081 = vmul.f32 %v2946, %v3055
      %v3082 = vmul.f32 %v2947, %v3055
      %v3083 = vmul.f32 %v2948, %v3055
      %v3084 = vmul.f32 %v2949, %v3055
      %v3085 = vmul.f32 %v2950, %v3055
      %v3086 = vmul.f32 %v2951, %v3055
      %v3087 = vmul.f32 %v2952, %v3055
      %v3088 = vmul.f32 %v2889, %v2889
      %v3089 = vmul.f32 %v2890, %v2890
      %v3090 = vmul.f32 %v2891, %v2891
      %v3091 = vmul.f32 %v2892, %v2892
      %v3092 = vmul.f32 %v2893, %v2893
      %v3093 = vmul.f32 %v2894, %v2894
      %v3094 = vmul.f32 %v2895, %v2895
      %v3095 = vmul.f32 %v2896, %v2896
      %v3096 = vmul.f32 %v2897, %v2897
      %v3097 = vmul.f32 %v2898, %v2898
      %v3098 = vmul.f32 %v2899, %v2899
      %v3099 = vmul.f32 %v2900, %v2900
      %v3100 = vmul.f32 %v2901, %v2901
      %v3101 = vmul.f32 %v2902, %v2902
      %v3102 = vmul.f32 %v2903, %v2903
      %v3103 = vmul.f32 %v2904, %v2904
      %v3104 = vmul.f32 %v2905, %v2905
      %v3105 = vmul.f32 %v2906, %v2906
      %v3106 = vmul.f32 %v2907, %v2907
      %v3107 = vmul.f32 %v2908, %v2908
      %v3108 = vmul.f32 %v2909, %v2909
      %v3109 = vmul.f32 %v2910, %v2910
      %v3110 = vmul.f32 %v2911, %v2911
      %v3111 = vmul.f32 %v2912, %v2912
      %v3112 = vmul.f32 %v2913, %v2913
      %v3113 = vmul.f32 %v2914, %v2914
      %v3114 = vmul.f32 %v2915, %v2915
      %v3115 = vmul.f32 %v2916, %v2916
      %v3116 = vmul.f32 %v2917, %v2917
      %v3117 = vmul.f32 %v2918, %v2918
      %v3118 = vmul.f32 %v2919, %v2919
      %v3119 = vmul.f32 %v2920, %v2920
      %v3120 = vsel %vm388, %v3088, 0.0
      %v3121 = vsel %vm388, %v3089, 0.0
      %v3122 = vadd.f32 %v3120, %v3121
      %v3123 = vsel %vm388, %v3090, 0.0
      %v3124 = vadd.f32 %v3122, %v3123
      %v3125 = vsel %vm388, %v3091, 0.0
      %v3126 = vadd.f32 %v3124, %v3125
      %v3127 = vsel %vm388, %v3092, 0.0
      %v3128 = vadd.f32 %v3126, %v3127
      %v3129 = vsel %vm388, %v3093, 0.0
      %v3130 = vadd.f32 %v3128, %v3129
      %v3131 = vsel %vm388, %v3094, 0.0
      %v3132 = vadd.f32 %v3130, %v3131
      %v3133 = vsel %vm388, %v3095, 0.0
      %v3134 = vadd.f32 %v3132, %v3133
      %v3135 = vsel %vm388, %v3096, 0.0
      %v3136 = vadd.f32 %v3134, %v3135
      %v3137 = vsel %vm388, %v3097, 0.0
      %v3138 = vadd.f32 %v3136, %v3137
      %v3139 = vsel %vm388, %v3098, 0.0
      %v3140 = vadd.f32 %v3138, %v3139
      %v3141 = vsel %vm388, %v3099, 0.0
      %v3142 = vadd.f32 %v3140, %v3141
      %v3143 = vsel %vm388, %v3100, 0.0
      %v3144 = vadd.f32 %v3142, %v3143
      %v3145 = vsel %vm388, %v3101, 0.0
      %v3146 = vadd.f32 %v3144, %v3145
      %v3147 = vsel %vm388, %v3102, 0.0
      %v3148 = vadd.f32 %v3146, %v3147
      %v3149 = vsel %vm388, %v3103, 0.0
      %v3150 = vadd.f32 %v3148, %v3149
      %v3151 = vsel %vm388, %v3104, 0.0
      %v3152 = vadd.f32 %v3150, %v3151
      %v3153 = vsel %vm388, %v3105, 0.0
      %v3154 = vadd.f32 %v3152, %v3153
      %v3155 = vsel %vm388, %v3106, 0.0
      %v3156 = vadd.f32 %v3154, %v3155
      %v3157 = vsel %vm388, %v3107, 0.0
      %v3158 = vadd.f32 %v3156, %v3157
      %v3159 = vsel %vm388, %v3108, 0.0
      %v3160 = vadd.f32 %v3158, %v3159
      %v3161 = vsel %vm388, %v3109, 0.0
      %v3162 = vadd.f32 %v3160, %v3161
      %v3163 = vsel %vm388, %v3110, 0.0
      %v3164 = vadd.f32 %v3162, %v3163
      %v3165 = vsel %vm388, %v3111, 0.0
      %v3166 = vadd.f32 %v3164, %v3165
      %v3167 = vsel %vm388, %v3112, 0.0
      %v3168 = vadd.f32 %v3166, %v3167
      %v3169 = vsel %vm388, %v3113, 0.0
      %v3170 = vadd.f32 %v3168, %v3169
      %v3171 = vsel %vm388, %v3114, 0.0
      %v3172 = vadd.f32 %v3170, %v3171
      %v3173 = vsel %vm388, %v3115, 0.0
      %v3174 = vadd.f32 %v3172, %v3173
      %v3175 = vsel %vm388, %v3116, 0.0
      %v3176 = vadd.f32 %v3174, %v3175
      %v3177 = vsel %vm388, %v3117, 0.0
      %v3178 = vadd.f32 %v3176, %v3177
      %v3179 = vsel %vm388, %v3118, 0.0
      %v3180 = vadd.f32 %v3178, %v3179
      %v3181 = vsel %vm388, %v3119, 0.0
      %v3182 = vadd.f32 %v3180, %v3181
      %v3183 = vrot.slane %v3182, 4
      %v3184 = vadd.f32 %v3182, %v3183
      %v3185 = vrot.slane %v3184, 2
      %v3186 = vadd.f32 %v3184, %v3185
      %v3187 = vrot.slane %v3186, 1
      %v3188 = vadd.f32 %v3186, %v3187
      %v3189 = vmax.f32 %v3188, 1e-24
      %v3190 = vrsqrt.pop %v3189
      %v3191 = vmul.f32 %v2889, %v3190
      %v3192 = vmul.f32 %v2890, %v3190
      %v3193 = vmul.f32 %v2891, %v3190
      %v3194 = vmul.f32 %v2892, %v3190
      %v3195 = vmul.f32 %v2893, %v3190
      %v3196 = vmul.f32 %v2894, %v3190
      %v3197 = vmul.f32 %v2895, %v3190
      %v3198 = vmul.f32 %v2896, %v3190
      %v3199 = vmul.f32 %v2897, %v3190
      %v3200 = vmul.f32 %v2898, %v3190
      %v3201 = vmul.f32 %v2899, %v3190
      %v3202 = vmul.f32 %v2900, %v3190
      %v3203 = vmul.f32 %v2901, %v3190
      %v3204 = vmul.f32 %v2902, %v3190
      %v3205 = vmul.f32 %v2903, %v3190
      %v3206 = vmul.f32 %v2904, %v3190
      %v3207 = vmul.f32 %v2905, %v3190
      %v3208 = vmul.f32 %v2906, %v3190
      %v3209 = vmul.f32 %v2907, %v3190
      %v3210 = vmul.f32 %v2908, %v3190
      %v3211 = vmul.f32 %v2909, %v3190
      %v3212 = vmul.f32 %v2910, %v3190
      %v3213 = vmul.f32 %v2911, %v3190
      %v3214 = vmul.f32 %v2912, %v3190
      %v3215 = vmul.f32 %v2913, %v3190
      %v3216 = vmul.f32 %v2914, %v3190
      %v3217 = vmul.f32 %v2915, %v3190
      %v3218 = vmul.f32 %v2916, %v3190
      %v3219 = vmul.f32 %v2917, %v3190
      %v3220 = vmul.f32 %v2918, %v3190
      %v3221 = vmul.f32 %v2919, %v3190
      %v3222 = vmul.f32 %v2920, %v3190
      %v3223 = vld [vmem:[%s6] sm:$0x1]
      %v3225 = vlaneseq
      %v3226 = vshrl.u32 %v3225, 7
      %v3227 = vsub.s32 0, %v3226
      %v3228 = vrot.slane %v3223, %v3227
      %v3230 = vmul.f32 %v3056, %v3228
      %v3231 = vmul.f32 %v3057, %v3228
      %v3232 = vmul.f32 %v3058, %v3228
      %v3233 = vmul.f32 %v3059, %v3228
      %v3234 = vmul.f32 %v3060, %v3228
      %v3235 = vmul.f32 %v3061, %v3228
      %v3236 = vmul.f32 %v3062, %v3228
      %v3237 = vmul.f32 %v3063, %v3228
      %v3238 = vmul.f32 %v3064, %v3228
      %v3239 = vmul.f32 %v3065, %v3228
      %v3240 = vmul.f32 %v3066, %v3228
      %v3241 = vmul.f32 %v3067, %v3228
      %v3242 = vmul.f32 %v3068, %v3228
      %v3243 = vmul.f32 %v3069, %v3228
      %v3244 = vmul.f32 %v3070, %v3228
      %v3245 = vmul.f32 %v3071, %v3228
      %v3246 = vmul.f32 %v3072, %v3228
      %v3247 = vmul.f32 %v3073, %v3228
      %v3248 = vmul.f32 %v3074, %v3228
      %v3249 = vmul.f32 %v3075, %v3228
      %v3250 = vmul.f32 %v3076, %v3228
      %v3251 = vmul.f32 %v3077, %v3228
      %v3252 = vmul.f32 %v3078, %v3228
      %v3253 = vmul.f32 %v3079, %v3228
      %v3254 = vmul.f32 %v3080, %v3228
      %v3255 = vmul.f32 %v3081, %v3228
      %v3256 = vmul.f32 %v3082, %v3228
      %v3257 = vmul.f32 %v3083, %v3228
      %v3258 = vmul.f32 %v3084, %v3228
      %v3259 = vmul.f32 %v3085, %v3228
      %v3260 = vmul.f32 %v3086, %v3228
      %v3261 = vmul.f32 %v3087, %v3228
      %v3262 = vpack.c.bf16 %v3231, %v3230
      %v3263 = vpack.c.bf16 %v3233, %v3232
      %v3264 = vpack.c.bf16 %v3235, %v3234
      %v3265 = vpack.c.bf16 %v3237, %v3236
      %v3266 = vpack.c.bf16 %v3239, %v3238
      %v3267 = vpack.c.bf16 %v3241, %v3240
      %v3268 = vpack.c.bf16 %v3243, %v3242
      %v3269 = vpack.c.bf16 %v3245, %v3244
      %v3270 = vpack.c.bf16 %v3247, %v3246
      %v3271 = vpack.c.bf16 %v3249, %v3248
      %v3272 = vpack.c.bf16 %v3251, %v3250
      %v3273 = vpack.c.bf16 %v3253, %v3252
      %v3274 = vpack.c.bf16 %v3255, %v3254
      %v3275 = vpack.c.bf16 %v3257, %v3256
      %v3276 = vpack.c.bf16 %v3259, %v3258
      %v3277 = vpack.c.bf16 %v3261, %v3260
      %v3278 = vpack.c.bf16 %v3192, %v3191
      %v3279 = vpack.c.bf16 %v3194, %v3193
      %v3280 = vpack.c.bf16 %v3196, %v3195
      %v3281 = vpack.c.bf16 %v3198, %v3197
      %v3282 = vpack.c.bf16 %v3200, %v3199
      %v3283 = vpack.c.bf16 %v3202, %v3201
      %v3284 = vpack.c.bf16 %v3204, %v3203
      %v3285 = vpack.c.bf16 %v3206, %v3205
      %v3286 = vpack.c.bf16 %v3208, %v3207
      %v3287 = vpack.c.bf16 %v3210, %v3209
      %v3288 = vpack.c.bf16 %v3212, %v3211
      %v3289 = vpack.c.bf16 %v3214, %v3213
      %v3290 = vpack.c.bf16 %v3216, %v3215
      %v3291 = vpack.c.bf16 %v3218, %v3217
      %v3292 = vpack.c.bf16 %v3220, %v3219
      %v3293 = vpack.c.bf16 %v3222, %v3221
      %v3294 = vld [vmem:[%s7] sm:$0xff]
      %v3295 = vld [vmem:[%s7 + $0x8] sm:$0xff]
      %v3296 = vld [vmem:[%s7 + $0x10] sm:$0xff]
      %v3297 = vld [vmem:[%s7 + $0x18] sm:$0xff]
      %3298 = vxpose.xlu0.c.b16.start [1/8] %v3262, 128
      %3299 = vxpose.xlu0.c.b16.cont [2/8] %v3263, 128
      %3300 = vxpose.xlu0.c.b16.cont [3/8] %v3264, 128
      %3301 = vxpose.xlu0.c.b16.cont [4/8] %v3265, 128
      %3302 = vxpose.xlu0.c.b16.cont [5/8] %v3266, 128
      %3303 = vxpose.xlu0.c.b16.cont [6/8] %v3267, 128
      %3304 = vxpose.xlu0.c.b16.cont [7/8] %v3268, 128
      %3305 = vxpose.xlu0.c.b16.end [8/8] %v3269, 128
      %v3306 = vpop.trf.xlu0
      %v3307 = vpop.trf.xlu0
      %v3308 = vpop.trf.xlu0
      %v3309 = vpop.trf.xlu0
      %v3310 = vpop.trf.xlu0
      %v3311 = vpop.trf.xlu0
      %v3312 = vpop.trf.xlu0
      %v3313 = vpop.trf.xlu0
      %3314 = vxpose.xlu0.c.b16.start [1/8] %v3270, 128
      %3315 = vxpose.xlu0.c.b16.cont [2/8] %v3271, 128
      %3316 = vxpose.xlu0.c.b16.cont [3/8] %v3272, 128
      %3317 = vxpose.xlu0.c.b16.cont [4/8] %v3273, 128
      %3318 = vxpose.xlu0.c.b16.cont [5/8] %v3274, 128
      %3319 = vxpose.xlu0.c.b16.cont [6/8] %v3275, 128
      %3320 = vxpose.xlu0.c.b16.cont [7/8] %v3276, 128
      %3321 = vxpose.xlu0.c.b16.end [8/8] %v3277, 128
      %v3322 = vpop.trf.xlu0
      %v3323 = vpop.trf.xlu0
      %v3324 = vpop.trf.xlu0
      %v3325 = vpop.trf.xlu0
      %v3326 = vpop.trf.xlu0
      %v3327 = vpop.trf.xlu0
      %v3328 = vpop.trf.xlu0
      %v3329 = vpop.trf.xlu0
      %3330 = vmatprep.subr.bf16.mxu0 0
      %3331 = vmatpush1.bf16.msra.mxu0 %v3285
      %3332 = vmatprep.subr.bf16.mxu0 0
      %3333 = vmatpush1.bf16.msra.mxu0 %v3284
      %3334 = vmatprep.subr.bf16.mxu0 0
      %3335 = vmatpush1.bf16.msra.mxu0 %v3283
      %3336 = vmatprep.subr.bf16.mxu0 0
      %3337 = vmatpush1.bf16.msra.mxu0 %v3282
      %3338 = vmatprep.subr.bf16.mxu0 0
      %3339 = vmatpush1.bf16.msra.mxu0 %v3281
      %3340 = vmatprep.subr.bf16.mxu0 0
      %3341 = vmatpush1.bf16.msra.mxu0 %v3280
      %3342 = vmatprep.subr.bf16.mxu0 0
      %3343 = vmatpush1.bf16.msra.mxu0 %v3279
      %3344 = vmatprep.subr.bf16.mxu0 0
      %3345 = vmatpush1.bf16.msra.mxu0 %v3278
      %3346 = vmatprep.subr.bf16.mxu0 0
      %3347 = vmatpush2.bf16.msra.mxu0 %v3293
      %3348 = vmatprep.subr.bf16.mxu0 0
      %3349 = vmatpush2.bf16.msra.mxu0 %v3292
      %3350 = vmatprep.subr.bf16.mxu0 0
      %3351 = vmatpush2.bf16.msra.mxu0 %v3291
      %3352 = vmatprep.subr.bf16.mxu0 0
      %3353 = vmatpush2.bf16.msra.mxu0 %v3290
      %3354 = vmatprep.subr.bf16.mxu0 0
      %3355 = vmatpush2.bf16.msra.mxu0 %v3289
      %3356 = vmatprep.subr.bf16.mxu0 0
      %3357 = vmatpush2.bf16.msra.mxu0 %v3288
      %3358 = vmatprep.subr.bf16.mxu0 0
      %3359 = vmatpush2.bf16.msra.mxu0 %v3287
      %3360 = vmatprep.subr.bf16.mxu0 0
      %3361 = vmatpush2.bf16.msra.mxu0 %v3286
      %3362 = vmatprep.mubr.bf16.mxu0 %v3322
      %3363 = vmatmul.mubr.bf16.gmra.mxu0 %v3306
      %v3364 = vpop.f32.mrf.mxu0
      %v3365 = vadd.f32 %v3294, %v3364
      %v3366 = vpop.f32.mrf.mxu0
      %v3367 = vpop.f32.mrf.mxu0
      %v3368 = vadd.f32 %v3295, %v3367
      %v3369 = vpop.f32.mrf.mxu0
      %3370 = vmatprep.mubr.bf16.mxu0 %v3323
      %3371 = vmatmul.mubr.bf16.gmra.mxu0 %v3307
      %v3372 = vpop.f32.mrf.mxu0
      %v3373 = vadd.f32 %v3296, %v3372
      %v3374 = vpop.f32.mrf.mxu0
      %v3375 = vpop.f32.mrf.mxu0
      %v3376 = vadd.f32 %v3297, %v3375
      %v3377 = vpop.f32.mrf.mxu0
      %3378 = vdwg.mxu0
      %v3379 = vsel %vm388, %v3365, -inf
      %3380 = vmax.xlane.f32.xlu0 %v3379
      %v3381 = vpop.xlane.xlu0 %3380
      %v3382 = vsel %vm388, %v3368, -inf
      %3383 = vmax.xlane.f32.xlu0 %v3382
      %v3384 = vpop.xlane.xlu0 %3383
      %v3385 = vsel %vm388, %v3373, -inf
      %3386 = vmax.xlane.f32.xlu0 %v3385
      %v3387 = vpop.xlane.xlu0 %3386
      %v3388 = vsel %vm388, %v3376, -inf
      %3389 = vmax.xlane.f32.xlu0 %v3388
      %v3390 = vpop.xlane.xlu0 %3389
      %v3391 = vsub.f32 %v3365, %v3381
      %v3392 = vsub.f32 %v3368, %v3384
      %v3393 = vsub.f32 %v3373, %v3387
      %v3394 = vsub.f32 %v3376, %v3390
      %v3395 = vmul.f32 %v3391, 1.442695
      %v3396 = vpow.pop %v3395
      %v3397 = vmul.f32 %v3392, 1.442695
      %v3398 = vpow.pop %v3397
      %v3399 = vmul.f32 %v3393, 1.442695
      %v3400 = vpow.pop %v3399
      %v3401 = vmul.f32 %v3394, 1.442695
      %v3402 = vpow.pop %v3401
      %v3403 = vsel %vm388, %v3396, 0.0
      %3404 = vadd.xlane.f32.xlu0 %v3403
      %v3405 = vpop.xlane.xlu0 %3404
      %v3406 = vsel %vm388, %v3398, 0.0
      %3407 = vadd.xlane.f32.xlu0 %v3406
      %v3408 = vpop.xlane.xlu0 %3407
      %v3409 = vsel %vm388, %v3400, 0.0
      %3410 = vadd.xlane.f32.xlu0 %v3409
      %v3411 = vpop.xlane.xlu0 %3410
      %v3412 = vsel %vm388, %v3402, 0.0
      %3413 = vadd.xlane.f32.xlu0 %v3412
      %v3414 = vpop.xlane.xlu0 %3413
      %v3415 = vrcp.pop %v3405
      %v3416 = vrcp.pop %v3408
      %v3417 = vrcp.pop %v3411
      %v3418 = vrcp.pop %v3414
      %v3419 = vmul.f32 %v3396, %v3415
      %v3420 = vmul.f32 %v3398, %v3416
      %v3421 = vmul.f32 %v3400, %v3417
      %v3422 = vmul.f32 %v3402, %v3418
      %v3423 = vpack.c.bf16 %v2890, %v2889
      %v3424 = vpack.c.bf16 %v2892, %v2891
      %v3425 = vpack.c.bf16 %v2894, %v2893
      %v3426 = vpack.c.bf16 %v2896, %v2895
      %v3427 = vpack.c.bf16 %v2898, %v2897
      %v3428 = vpack.c.bf16 %v2900, %v2899
      %v3429 = vpack.c.bf16 %v2902, %v2901
      %v3430 = vpack.c.bf16 %v2904, %v2903
      %v3431 = vpack.c.bf16 %v2906, %v2905
      %v3432 = vpack.c.bf16 %v2908, %v2907
      %v3433 = vpack.c.bf16 %v2910, %v2909
      %v3434 = vpack.c.bf16 %v2912, %v2911
      %v3435 = vpack.c.bf16 %v2914, %v2913
      %v3436 = vpack.c.bf16 %v2916, %v2915
      %v3437 = vpack.c.bf16 %v2918, %v2917
      %v3438 = vpack.c.bf16 %v2920, %v2919
      %v3439 = vpack.c.bf16 %v3420, %v3419
      %v3440 = vpack.c.bf16 %v3422, %v3421
      %3457 = vrot.lane.b32.xlu0 %v3423, 96
      %v3458 = vpop.permute.xlu0 %3457
      %3459 = vrot.lane.b32.xlu0 %v3424, 96
      %v3460 = vpop.permute.xlu0 %3459
      %3461 = vrot.lane.b32.xlu0 %v3425, 96
      %v3462 = vpop.permute.xlu0 %3461
      %3463 = vrot.lane.b32.xlu0 %v3426, 96
      %v3464 = vpop.permute.xlu0 %3463
      %3465 = vrot.lane.b32.xlu0 %v3427, 96
      %v3466 = vpop.permute.xlu0 %3465
      %3467 = vrot.lane.b32.xlu0 %v3428, 96
      %v3468 = vpop.permute.xlu0 %3467
      %3469 = vrot.lane.b32.xlu0 %v3429, 96
      %v3470 = vpop.permute.xlu0 %3469
      %3471 = vrot.lane.b32.xlu0 %v3430, 96
      %v3472 = vpop.permute.xlu0 %3471
      %3473 = vrot.lane.b32.xlu0 %v3431, 96
      %v3474 = vpop.permute.xlu0 %3473
      %3475 = vrot.lane.b32.xlu0 %v3432, 96
      %v3476 = vpop.permute.xlu0 %3475
      %3477 = vrot.lane.b32.xlu0 %v3433, 96
      %v3478 = vpop.permute.xlu0 %3477
      %3479 = vrot.lane.b32.xlu0 %v3434, 96
      %v3480 = vpop.permute.xlu0 %3479
      %3481 = vrot.lane.b32.xlu0 %v3435, 96
      %v3482 = vpop.permute.xlu0 %3481
      %3483 = vrot.lane.b32.xlu0 %v3436, 96
      %v3484 = vpop.permute.xlu0 %3483
      %3485 = vrot.lane.b32.xlu0 %v3437, 96
      %v3486 = vpop.permute.xlu0 %3485
      %3487 = vrot.lane.b32.xlu0 %v3438, 96
      %v3488 = vpop.permute.xlu0 %3487
      %v3490 = vsel %vm388, %v3458, 0
      %v3493 = vsel %vm388, %v3460, 0
      %v3496 = vsel %vm388, %v3462, 0
      %v3499 = vsel %vm388, %v3464, 0
      %v3502 = vsel %vm388, %v3466, 0
      %v3505 = vsel %vm388, %v3468, 0
      %v3508 = vsel %vm388, %v3470, 0
      %v3511 = vsel %vm388, %v3472, 0
      %v3514 = vsel %vm388, %v3474, 0
      %v3517 = vsel %vm388, %v3476, 0
      %v3520 = vsel %vm388, %v3478, 0
      %v3523 = vsel %vm388, %v3480, 0
      %v3526 = vsel %vm388, %v3482, 0
      %v3529 = vsel %vm388, %v3484, 0
      %v3532 = vsel %vm388, %v3486, 0
      %v3535 = vsel %vm388, %v3488, 0
      %v3538 = vsel %vm388, %v3439, 0
      %v3541 = vsel %vm388, %v3440, 0
      %3543 = vmatprep.subr.bf16.mxu0 0
      %3544 = vmatpush1.bf16.xpose.msra.mxu0 0
      %3545 = vmatprep.subr.bf16.mxu0 0
      %3546 = vmatpush1.bf16.xpose.msra.mxu0 0
      %3547 = vmatprep.subr.bf16.mxu0 0
      %3548 = vmatpush1.bf16.xpose.msra.mxu0 0
      %3549 = vmatprep.subr.bf16.mxu0 0
      %3550 = vmatpush1.bf16.xpose.msra.mxu0 0
      %3551 = vmatprep.subr.bf16.mxu0 0
      %3552 = vmatpush1.bf16.xpose.msra.mxu0 0
      %3553 = vmatprep.subr.bf16.mxu0 0
      %3554 = vmatpush1.bf16.xpose.msra.mxu0 0
      %3555 = vmatprep.subr.bf16.mxu0 0
      %3556 = vmatpush1.bf16.xpose.msra.mxu0 %v3541
      %3557 = vmatprep.subr.bf16.mxu0 0
      %3558 = vmatpush1.bf16.xpose.msra.mxu0 %v3538
      %3559 = vmatprep.subr.bf16.mxu0 0
      %3560 = vmatpush2.bf16.xpose.msra.mxu0 0
      %3561 = vmatprep.subr.bf16.mxu0 0
      %3562 = vmatpush2.bf16.xpose.msra.mxu0 0
      %3563 = vmatprep.subr.bf16.mxu0 0
      %3564 = vmatpush2.bf16.xpose.msra.mxu0 0
      %3565 = vmatprep.subr.bf16.mxu0 0
      %3566 = vmatpush2.bf16.xpose.msra.mxu0 0
      %3567 = vmatprep.subr.bf16.mxu0 0
      %3568 = vmatpush2.bf16.xpose.msra.mxu0 0
      %3569 = vmatprep.subr.bf16.mxu0 0
      %3570 = vmatpush2.bf16.xpose.msra.mxu0 0
      %3571 = vmatprep.subr.bf16.mxu0 0
      %3572 = vmatpush2.bf16.xpose.msra.mxu0 0
      %3573 = vmatprep.subr.bf16.mxu0 0
      %3574 = vmatpush2.bf16.xpose.msra.mxu0 0
      %3575 = vmatprep.mubr.bf16.mxu0 0
      %3576 = vmatmul.mubr.bf16.gmra.mxu0 %v3490
      %v3577 = vpop.f32.mrf.mxu0
      %v3578 = vadd.f32 0.0, %v3577
      %v3579 = vpop.f32.mrf.mxu0
      %v3580 = vpop.f32.mrf.mxu0
      %v3581 = vadd.f32 0.0, %v3580
      %v3582 = vpop.f32.mrf.mxu0
      %3583 = vmatprep.mubr.bf16.mxu0 0
      %3584 = vmatmul.mubr.bf16.gmra.mxu0 %v3493
      %v3585 = vpop.f32.mrf.mxu0
      %v3586 = vadd.f32 0.0, %v3585
      %v3587 = vpop.f32.mrf.mxu0
      %v3588 = vpop.f32.mrf.mxu0
      %v3589 = vadd.f32 0.0, %v3588
      %v3590 = vpop.f32.mrf.mxu0
      %3591 = vmatprep.mubr.bf16.mxu0 0
      %3592 = vmatmul.mubr.bf16.gmra.mxu0 %v3496
      %v3593 = vpop.f32.mrf.mxu0
      %v3594 = vadd.f32 0.0, %v3593
      %v3595 = vpop.f32.mrf.mxu0
      %v3596 = vpop.f32.mrf.mxu0
      %v3597 = vadd.f32 0.0, %v3596
      %v3598 = vpop.f32.mrf.mxu0
      %3599 = vmatprep.mubr.bf16.mxu0 0
      %3600 = vmatmul.mubr.bf16.gmra.mxu0 %v3499
      %v3601 = vpop.f32.mrf.mxu0
      %v3602 = vadd.f32 0.0, %v3601
      %v3603 = vpop.f32.mrf.mxu0
      %v3604 = vpop.f32.mrf.mxu0
      %v3605 = vadd.f32 0.0, %v3604
      %v3606 = vpop.f32.mrf.mxu0
      %3607 = vmatprep.mubr.bf16.mxu0 0
      %3608 = vmatmul.mubr.bf16.gmra.mxu0 %v3502
      %v3609 = vpop.f32.mrf.mxu0
      %v3610 = vadd.f32 0.0, %v3609
      %v3611 = vpop.f32.mrf.mxu0
      %v3612 = vpop.f32.mrf.mxu0
      %v3613 = vadd.f32 0.0, %v3612
      %v3614 = vpop.f32.mrf.mxu0
      %3615 = vmatprep.mubr.bf16.mxu0 0
      %3616 = vmatmul.mubr.bf16.gmra.mxu0 %v3505
      %v3617 = vpop.f32.mrf.mxu0
      %v3618 = vadd.f32 0.0, %v3617
      %v3619 = vpop.f32.mrf.mxu0
      %v3620 = vpop.f32.mrf.mxu0
      %v3621 = vadd.f32 0.0, %v3620
      %v3622 = vpop.f32.mrf.mxu0
      %3623 = vmatprep.mubr.bf16.mxu0 0
      %3624 = vmatmul.mubr.bf16.gmra.mxu0 %v3508
      %v3625 = vpop.f32.mrf.mxu0
      %v3626 = vadd.f32 0.0, %v3625
      %v3627 = vpop.f32.mrf.mxu0
      %v3628 = vpop.f32.mrf.mxu0
      %v3629 = vadd.f32 0.0, %v3628
      %v3630 = vpop.f32.mrf.mxu0
      %3631 = vmatprep.mubr.bf16.mxu0 0
      %3632 = vmatmul.mubr.bf16.gmra.mxu0 %v3511
      %v3633 = vpop.f32.mrf.mxu0
      %v3634 = vadd.f32 0.0, %v3633
      %v3635 = vpop.f32.mrf.mxu0
      %v3636 = vpop.f32.mrf.mxu0
      %v3637 = vadd.f32 0.0, %v3636
      %v3638 = vpop.f32.mrf.mxu0
      %3639 = vmatprep.mubr.bf16.mxu0 0
      %3640 = vmatmul.mubr.bf16.gmra.mxu0 %v3514
      %v3641 = vpop.f32.mrf.mxu0
      %v3642 = vadd.f32 0.0, %v3641
      %v3643 = vpop.f32.mrf.mxu0
      %v3644 = vpop.f32.mrf.mxu0
      %v3645 = vadd.f32 0.0, %v3644
      %v3646 = vpop.f32.mrf.mxu0
      %3647 = vmatprep.mubr.bf16.mxu0 0
      %3648 = vmatmul.mubr.bf16.gmra.mxu0 %v3517
      %v3649 = vpop.f32.mrf.mxu0
      %v3650 = vadd.f32 0.0, %v3649
      %v3651 = vpop.f32.mrf.mxu0
      %v3652 = vpop.f32.mrf.mxu0
      %v3653 = vadd.f32 0.0, %v3652
      %v3654 = vpop.f32.mrf.mxu0
      %3655 = vmatprep.mubr.bf16.mxu0 0
      %3656 = vmatmul.mubr.bf16.gmra.mxu0 %v3520
      %v3657 = vpop.f32.mrf.mxu0
      %v3658 = vadd.f32 0.0, %v3657
      %v3659 = vpop.f32.mrf.mxu0
      %v3660 = vpop.f32.mrf.mxu0
      %v3661 = vadd.f32 0.0, %v3660
      %v3662 = vpop.f32.mrf.mxu0
      %3663 = vmatprep.mubr.bf16.mxu0 0
      %3664 = vmatmul.mubr.bf16.gmra.mxu0 %v3523
      %v3665 = vpop.f32.mrf.mxu0
      %v3666 = vadd.f32 0.0, %v3665
      %v3667 = vpop.f32.mrf.mxu0
      %v3668 = vpop.f32.mrf.mxu0
      %v3669 = vadd.f32 0.0, %v3668
      %v3670 = vpop.f32.mrf.mxu0
      %3671 = vmatprep.mubr.bf16.mxu0 0
      %3672 = vmatmul.mubr.bf16.gmra.mxu0 %v3526
      %v3673 = vpop.f32.mrf.mxu0
      %v3674 = vadd.f32 0.0, %v3673
      %v3675 = vpop.f32.mrf.mxu0
      %v3676 = vpop.f32.mrf.mxu0
      %v3677 = vadd.f32 0.0, %v3676
      %v3678 = vpop.f32.mrf.mxu0
      %3679 = vmatprep.mubr.bf16.mxu0 0
      %3680 = vmatmul.mubr.bf16.gmra.mxu0 %v3529
      %v3681 = vpop.f32.mrf.mxu0
      %v3682 = vadd.f32 0.0, %v3681
      %v3683 = vpop.f32.mrf.mxu0
      %v3684 = vpop.f32.mrf.mxu0
      %v3685 = vadd.f32 0.0, %v3684
      %v3686 = vpop.f32.mrf.mxu0
      %3687 = vmatprep.mubr.bf16.mxu0 0
      %3688 = vmatmul.mubr.bf16.gmra.mxu0 %v3532
      %v3689 = vpop.f32.mrf.mxu0
      %v3690 = vadd.f32 0.0, %v3689
      %v3691 = vpop.f32.mrf.mxu0
      %v3692 = vpop.f32.mrf.mxu0
      %v3693 = vadd.f32 0.0, %v3692
      %v3694 = vpop.f32.mrf.mxu0
      %3695 = vmatprep.mubr.bf16.mxu0 0
      %3696 = vmatmul.mubr.bf16.gmra.mxu0 %v3535
      %v3697 = vpop.f32.mrf.mxu0
      %v3698 = vadd.f32 0.0, %v3697
      %v3699 = vpop.f32.mrf.mxu0
      %v3700 = vpop.f32.mrf.mxu0
      %v3701 = vadd.f32 0.0, %v3700
      %v3702 = vpop.f32.mrf.mxu0
      %3703 = vdwg.mxu0
      %v3704 = vpack.c.bf16 %v3581, %v3578
      %v3705 = vpack.c.bf16 %v3589, %v3586
      %v3706 = vpack.c.bf16 %v3597, %v3594
      %v3707 = vpack.c.bf16 %v3605, %v3602
      %v3708 = vpack.c.bf16 %v3613, %v3610
      %v3709 = vpack.c.bf16 %v3621, %v3618
      %v3710 = vpack.c.bf16 %v3629, %v3626
      %v3711 = vpack.c.bf16 %v3637, %v3634
      %v3712 = vpack.c.bf16 %v3645, %v3642
      %v3713 = vpack.c.bf16 %v3653, %v3650
      %v3714 = vpack.c.bf16 %v3661, %v3658
      %v3715 = vpack.c.bf16 %v3669, %v3666
      %v3716 = vpack.c.bf16 %v3677, %v3674
      %v3717 = vpack.c.bf16 %v3685, %v3682
      %v3718 = vpack.c.bf16 %v3693, %v3690
      %v3719 = vpack.c.bf16 %v3701, %v3698
      %v3720 = vld [vmem:[%s8] sm:$0xff]
      %v3721 = vld [vmem:[%s8 + $0x8] sm:$0xff]
      %v3722 = vld [vmem:[%s8 + $0x10] sm:$0xff]
      %v3723 = vld [vmem:[%s8 + $0x18] sm:$0xff]
      %v3724 = vpack.c.bf16 %v3721, %v3720
      %v3725 = vpack.c.bf16 %v3723, %v3722
      %v3727 = vsel %vm388, %v3704, 0
      %v3730 = vsel %vm388, %v3705, 0
      %v3733 = vsel %vm388, %v3706, 0
      %v3736 = vsel %vm388, %v3707, 0
      %v3739 = vsel %vm388, %v3708, 0
      %v3742 = vsel %vm388, %v3709, 0
      %v3745 = vsel %vm388, %v3710, 0
      %v3748 = vsel %vm388, %v3711, 0
      %v3751 = vsel %vm388, %v3712, 0
      %v3754 = vsel %vm388, %v3713, 0
      %v3757 = vsel %vm388, %v3714, 0
      %v3760 = vsel %vm388, %v3715, 0
      %v3763 = vsel %vm388, %v3716, 0
      %v3766 = vsel %vm388, %v3717, 0
      %v3769 = vsel %vm388, %v3718, 0
      %v3772 = vsel %vm388, %v3719, 0
      %3774 = vmatprep.subr.bf16.mxu0 0
      %3775 = vmatpush1.bf16.msra.mxu0 0
      %3776 = vmatprep.subr.bf16.mxu0 0
      %3777 = vmatpush1.bf16.msra.mxu0 0
      %3778 = vmatprep.subr.bf16.mxu0 0
      %3779 = vmatpush1.bf16.msra.mxu0 0
      %3780 = vmatprep.subr.bf16.mxu0 0
      %3781 = vmatpush1.bf16.msra.mxu0 0
      %3782 = vmatprep.subr.bf16.mxu0 0
      %3783 = vmatpush1.bf16.msra.mxu0 0
      %3784 = vmatprep.subr.bf16.mxu0 0
      %3785 = vmatpush1.bf16.msra.mxu0 0
      %3786 = vmatprep.subr.bf16.mxu0 0
      %3787 = vmatpush1.bf16.msra.mxu0 %v3725
      %3788 = vmatprep.subr.bf16.mxu0 0
      %3789 = vmatpush1.bf16.msra.mxu0 %v3724
      %3790 = vmatprep.subr.bf16.mxu0 0
      %3791 = vmatpush2.bf16.msra.mxu0 0
      %3792 = vmatprep.subr.bf16.mxu0 0
      %3793 = vmatpush2.bf16.msra.mxu0 0
      %3794 = vmatprep.subr.bf16.mxu0 0
      %3795 = vmatpush2.bf16.msra.mxu0 0
      %3796 = vmatprep.subr.bf16.mxu0 0
      %3797 = vmatpush2.bf16.msra.mxu0 0
      %3798 = vmatprep.subr.bf16.mxu0 0
      %3799 = vmatpush2.bf16.msra.mxu0 0
      %3800 = vmatprep.subr.bf16.mxu0 0
      %3801 = vmatpush2.bf16.msra.mxu0 0
      %3802 = vmatprep.subr.bf16.mxu0 0
      %3803 = vmatpush2.bf16.msra.mxu0 0
      %3804 = vmatprep.subr.bf16.mxu0 0
      %3805 = vmatpush2.bf16.msra.mxu0 0
      %3806 = vmatprep.mubr.bf16.mxu0 0
      %3807 = vmatmul.mubr.bf16.gmra.mxu0 %v3727
      %v3808 = vpop.f32.mrf.mxu0
      %v3809 = vadd.f32 0.0, %v3808
      %v3810 = vpop.f32.mrf.mxu0
      %v3811 = vpop.f32.mrf.mxu0
      %v3812 = vadd.f32 0.0, %v3811
      %v3813 = vpop.f32.mrf.mxu0
      %3814 = vmatprep.mubr.bf16.mxu0 0
      %3815 = vmatmul.mubr.bf16.gmra.mxu0 %v3730
      %v3816 = vpop.f32.mrf.mxu0
      %v3817 = vadd.f32 0.0, %v3816
      %v3818 = vpop.f32.mrf.mxu0
      %v3819 = vpop.f32.mrf.mxu0
      %v3820 = vadd.f32 0.0, %v3819
      %v3821 = vpop.f32.mrf.mxu0
      %3822 = vmatprep.mubr.bf16.mxu0 0
      %3823 = vmatmul.mubr.bf16.gmra.mxu0 %v3733
      %v3824 = vpop.f32.mrf.mxu0
      %v3825 = vadd.f32 0.0, %v3824
      %v3826 = vpop.f32.mrf.mxu0
      %v3827 = vpop.f32.mrf.mxu0
      %v3828 = vadd.f32 0.0, %v3827
      %v3829 = vpop.f32.mrf.mxu0
      %3830 = vmatprep.mubr.bf16.mxu0 0
      %3831 = vmatmul.mubr.bf16.gmra.mxu0 %v3736
      %v3832 = vpop.f32.mrf.mxu0
      %v3833 = vadd.f32 0.0, %v3832
      %v3834 = vpop.f32.mrf.mxu0
      %v3835 = vpop.f32.mrf.mxu0
      %v3836 = vadd.f32 0.0, %v3835
      %v3837 = vpop.f32.mrf.mxu0
      %3838 = vmatprep.mubr.bf16.mxu0 0
      %3839 = vmatmul.mubr.bf16.gmra.mxu0 %v3739
      %v3840 = vpop.f32.mrf.mxu0
      %v3841 = vadd.f32 0.0, %v3840
      %v3842 = vpop.f32.mrf.mxu0
      %v3843 = vpop.f32.mrf.mxu0
      %v3844 = vadd.f32 0.0, %v3843
      %v3845 = vpop.f32.mrf.mxu0
      %3846 = vmatprep.mubr.bf16.mxu0 0
      %3847 = vmatmul.mubr.bf16.gmra.mxu0 %v3742
      %v3848 = vpop.f32.mrf.mxu0
      %v3849 = vadd.f32 0.0, %v3848
      %v3850 = vpop.f32.mrf.mxu0
      %v3851 = vpop.f32.mrf.mxu0
      %v3852 = vadd.f32 0.0, %v3851
      %v3853 = vpop.f32.mrf.mxu0
      %3854 = vmatprep.mubr.bf16.mxu0 0
      %3855 = vmatmul.mubr.bf16.gmra.mxu0 %v3745
      %v3856 = vpop.f32.mrf.mxu0
      %v3857 = vadd.f32 0.0, %v3856
      %v3858 = vpop.f32.mrf.mxu0
      %v3859 = vpop.f32.mrf.mxu0
      %v3860 = vadd.f32 0.0, %v3859
      %v3861 = vpop.f32.mrf.mxu0
      %3862 = vmatprep.mubr.bf16.mxu0 0
      %3863 = vmatmul.mubr.bf16.gmra.mxu0 %v3748
      %v3864 = vpop.f32.mrf.mxu0
      %v3865 = vadd.f32 0.0, %v3864
      %v3866 = vpop.f32.mrf.mxu0
      %v3867 = vpop.f32.mrf.mxu0
      %v3868 = vadd.f32 0.0, %v3867
      %v3869 = vpop.f32.mrf.mxu0
      %3870 = vmatprep.mubr.bf16.mxu0 0
      %3871 = vmatmul.mubr.bf16.gmra.mxu0 %v3751
      %v3872 = vpop.f32.mrf.mxu0
      %v3873 = vadd.f32 0.0, %v3872
      %v3874 = vpop.f32.mrf.mxu0
      %v3875 = vpop.f32.mrf.mxu0
      %v3876 = vadd.f32 0.0, %v3875
      %v3877 = vpop.f32.mrf.mxu0
      %3878 = vmatprep.mubr.bf16.mxu0 0
      %3879 = vmatmul.mubr.bf16.gmra.mxu0 %v3754
      %v3880 = vpop.f32.mrf.mxu0
      %v3881 = vadd.f32 0.0, %v3880
      %v3882 = vpop.f32.mrf.mxu0
      %v3883 = vpop.f32.mrf.mxu0
      %v3884 = vadd.f32 0.0, %v3883
      %v3885 = vpop.f32.mrf.mxu0
      %3886 = vmatprep.mubr.bf16.mxu0 0
      %3887 = vmatmul.mubr.bf16.gmra.mxu0 %v3757
      %v3888 = vpop.f32.mrf.mxu0
      %v3889 = vadd.f32 0.0, %v3888
      %v3890 = vpop.f32.mrf.mxu0
      %v3891 = vpop.f32.mrf.mxu0
      %v3892 = vadd.f32 0.0, %v3891
      %v3893 = vpop.f32.mrf.mxu0
      %3894 = vmatprep.mubr.bf16.mxu0 0
      %3895 = vmatmul.mubr.bf16.gmra.mxu0 %v3760
      %v3896 = vpop.f32.mrf.mxu0
      %v3897 = vadd.f32 0.0, %v3896
      %v3898 = vpop.f32.mrf.mxu0
      %v3899 = vpop.f32.mrf.mxu0
      %v3900 = vadd.f32 0.0, %v3899
      %v3901 = vpop.f32.mrf.mxu0
      %3902 = vmatprep.mubr.bf16.mxu0 0
      %3903 = vmatmul.mubr.bf16.gmra.mxu0 %v3763
      %v3904 = vpop.f32.mrf.mxu0
      %v3905 = vadd.f32 0.0, %v3904
      %v3906 = vpop.f32.mrf.mxu0
      %v3907 = vpop.f32.mrf.mxu0
      %v3908 = vadd.f32 0.0, %v3907
      %v3909 = vpop.f32.mrf.mxu0
      %3910 = vmatprep.mubr.bf16.mxu0 0
      %3911 = vmatmul.mubr.bf16.gmra.mxu0 %v3766
      %v3912 = vpop.f32.mrf.mxu0
      %v3913 = vadd.f32 0.0, %v3912
      %v3914 = vpop.f32.mrf.mxu0
      %v3915 = vpop.f32.mrf.mxu0
      %v3916 = vadd.f32 0.0, %v3915
      %v3917 = vpop.f32.mrf.mxu0
      %3918 = vmatprep.mubr.bf16.mxu0 0
      %3919 = vmatmul.mubr.bf16.gmra.mxu0 %v3769
      %v3920 = vpop.f32.mrf.mxu0
      %v3921 = vadd.f32 0.0, %v3920
      %v3922 = vpop.f32.mrf.mxu0
      %v3923 = vpop.f32.mrf.mxu0
      %v3924 = vadd.f32 0.0, %v3923
      %v3925 = vpop.f32.mrf.mxu0
      %3926 = vmatprep.mubr.bf16.mxu0 0
      %3927 = vmatmul.mubr.bf16.gmra.mxu0 %v3772
      %v3928 = vpop.f32.mrf.mxu0
      %v3929 = vadd.f32 0.0, %v3928
      %v3930 = vpop.f32.mrf.mxu0
      %v3931 = vpop.f32.mrf.mxu0
      %v3932 = vadd.f32 0.0, %v3931
      %v3933 = vpop.f32.mrf.mxu0
      %3934 = vdwg.mxu0
      %v3935 = vadd.f32 %v354, %v3809
      %v3936 = vadd.f32 %v355, %v3812
      %v3937 = vadd.f32 %v356, %v3817
      %v3938 = vadd.f32 %v357, %v3820
      %v3939 = vadd.f32 %v358, %v3825
      %v3940 = vadd.f32 %v359, %v3828
      %v3941 = vadd.f32 %v360, %v3833
      %v3942 = vadd.f32 %v361, %v3836
      %v3943 = vadd.f32 %v362, %v3841
      %v3944 = vadd.f32 %v363, %v3844
      %v3945 = vadd.f32 %v364, %v3849
      %v3946 = vadd.f32 %v365, %v3852
      %v3947 = vadd.f32 %v366, %v3857
      %v3948 = vadd.f32 %v367, %v3860
      %v3949 = vadd.f32 %v368, %v3865
      %v3950 = vadd.f32 %v369, %v3868
      %v3951 = vadd.f32 %v370, %v3873
      %v3952 = vadd.f32 %v371, %v3876
      %v3953 = vadd.f32 %v372, %v3881
      %v3954 = vadd.f32 %v373, %v3884
      %v3955 = vadd.f32 %v374, %v3889
      %v3956 = vadd.f32 %v375, %v3892
      %v3957 = vadd.f32 %v376, %v3897
      %v3958 = vadd.f32 %v377, %v3900
      %v3959 = vadd.f32 %v378, %v3905
      %v3960 = vadd.f32 %v379, %v3908
      %v3961 = vadd.f32 %v380, %v3913
      %v3962 = vadd.f32 %v381, %v3916
      %v3963 = vadd.f32 %v382, %v3921
      %v3964 = vadd.f32 %v383, %v3924
      %v3965 = vadd.f32 %v384, %v3929
      %v3966 = vadd.f32 %v385, %v3932
      %3967 = vst.msk [vmem:[%s352] sm:$0xff] %vm388, %v3935
      %3968 = vst.msk [vmem:[%s352 + $0x8] sm:$0xff] %vm388, %v3936
      %3969 = vst.msk [vmem:[%s352 + $0x10] sm:$0xff] %vm388, %v3937
      %3970 = vst.msk [vmem:[%s352 + $0x18] sm:$0xff] %vm388, %v3938
      %3971 = vst.msk [vmem:[%s352 + $0x20] sm:$0xff] %vm388, %v3939
      %3972 = vst.msk [vmem:[%s352 + $0x28] sm:$0xff] %vm388, %v3940
      %3973 = vst.msk [vmem:[%s352 + $0x30] sm:$0xff] %vm388, %v3941
      %3974 = vst.msk [vmem:[%s352 + $0x38] sm:$0xff] %vm388, %v3942
      %3975 = vst.msk [vmem:[%s352 + $0x40] sm:$0xff] %vm388, %v3943
      %3976 = vst.msk [vmem:[%s352 + $0x48] sm:$0xff] %vm388, %v3944
      %3977 = vst.msk [vmem:[%s352 + $0x50] sm:$0xff] %vm388, %v3945
      %3978 = vst.msk [vmem:[%s352 + $0x58] sm:$0xff] %vm388, %v3946
      %3979 = vst.msk [vmem:[%s352 + $0x60] sm:$0xff] %vm388, %v3947
      %3980 = vst.msk [vmem:[%s352 + $0x68] sm:$0xff] %vm388, %v3948
      %3981 = vst.msk [vmem:[%s352 + $0x70] sm:$0xff] %vm388, %v3949
      %3982 = vst.msk [vmem:[%s352 + $0x78] sm:$0xff] %vm388, %v3950
      %3983 = vst.msk [vmem:[%s352 + $0x80] sm:$0xff] %vm388, %v3951
      %3984 = vst.msk [vmem:[%s352 + $0x88] sm:$0xff] %vm388, %v3952
      %3985 = vst.msk [vmem:[%s352 + $0x90] sm:$0xff] %vm388, %v3953
      %3986 = vst.msk [vmem:[%s352 + $0x98] sm:$0xff] %vm388, %v3954
      %3987 = vst.msk [vmem:[%s352 + $0xa0] sm:$0xff] %vm388, %v3955
      %3988 = vst.msk [vmem:[%s352 + $0xa8] sm:$0xff] %vm388, %v3956
      %3989 = vst.msk [vmem:[%s352 + $0xb0] sm:$0xff] %vm388, %v3957
      %3990 = vst.msk [vmem:[%s352 + $0xb8] sm:$0xff] %vm388, %v3958
      %3991 = vst.msk [vmem:[%s352 + $0xc0] sm:$0xff] %vm388, %v3959
      %3992 = vst.msk [vmem:[%s352 + $0xc8] sm:$0xff] %vm388, %v3960
      %3993 = vst.msk [vmem:[%s352 + $0xd0] sm:$0xff] %vm388, %v3961
      %3994 = vst.msk [vmem:[%s352 + $0xd8] sm:$0xff] %vm388, %v3962
      %3995 = vst.msk [vmem:[%s352 + $0xe0] sm:$0xff] %vm388, %v3963
      %3996 = vst.msk [vmem:[%s352 + $0xe8] sm:$0xff] %vm388, %v3964
      %3997 = vst.msk [vmem:[%s352 + $0xf0] sm:$0xff] %vm388, %v3965
      %3998 = vst.msk [vmem:[%s352 + $0xf8] sm:$0xff] %vm388, %v3966
      %p3999 = scmp.lt.s32.totalorder %s20, 1
      %s4000 = scalar_select %p3999, %s20, 1
      %s4001 = smul.addr %s4000, 32
      %s4002 = smul.addr %s4001, 8
      %s4003 = scalar_lea.vmem %s9, %s4002
      // Predicated region
      $region57: #{transformer_block_forward.7} parent=55 // pred_check
        %p4004 = pneg %p237
      $region58: #{transformer_block_forward.7} parent=55 // pred_check_branch
        %4006 = sbr.rel (%p4004) target = $region60
      $region59: #{transformer_block_forward.7} parent=55 // pred_region
        _
      $region60: #{transformer_block_forward.7} parent=55 // pred_fallthru
        _
    $region56: #{transformer_block_forward.7} parent=5 // pred_fallthru
      _
    %p4007 = scmp.le.s32.totalorder 2, %s15
    // Predicated region
    $region61: #{transformer_block_forward.7} parent=5 // pred_check
      %p4008 = pneg %p4007
    $region62: #{transformer_block_forward.7} parent=5 // pred_check_branch
      %4010 = sbr.rel (%p4008) target = $region64
    $region63: #{transformer_block_forward.7} parent=5 // pred_region
      %s4011 = ssub.s32 %s15, 2
      // Predicated region
      $region65: #{transformer_block_forward.7} parent=63 // pred_check
        %p4012 = pneg %p243
      $region66: #{transformer_block_forward.7} parent=63 // pred_check_branch
        %4014 = sbr.rel (%p4012) target = $region68
      $region67: #{transformer_block_forward.7} parent=63 // pred_region
        %p4015 = scmp.lt.s32.totalorder %s21, 1
        %s4016 = scalar_select %p4015, %s21, 1
        %s4017 = smul.addr %s4016, 32
        %s4018 = smul.addr %s4017, 8
        %s4019 = scalar_lea.vmem %s9, %s4018
      $region68: #{transformer_block_forward.7} parent=63 // pred_fallthru
        _
    $region64: #{transformer_block_forward.7} parent=5 // pred_fallthru
      _
  $region6: #{transformer_block_forward.7} parent=0 // loop_footer
    %s19 = sadd.s32 1, %s15
  $region7: #{transformer_block_forward.7} parent=0 // loop_footer_branch
    %14 = sbr.rel target = $region3
  $region8: #{transformer_block_forward.7} parent=0 // loop_exit
    _

// kernel: transformer_block_forward.9
$region0: #{transformer_block_forward.9}
  #allocation0 [shape = 'u32[]', space=smem, size = 0x4, offset = 0x4, fixed_abs, tag = 'smem constant byte address 0x4 - core index']
  #allocation1 [shape = 'u32[144,128]{1,0:T(1,128)}', space=vmem, size = 0x12000, scoped, tag = 'internal scratch']
  %s0 = inlined_call_operand.vmem [shape: f32[2,16,16,32], index: 0, kind: input, shape index: {}]
  %s1 = inlined_call_operand.vmem [shape: f32[2,16,16,32], index: 1, kind: input, shape index: {}]
  %s2 = inlined_call_operand.vmem [shape: f32[1,32], index: 2, kind: input, shape index: {}]
  %s3 = inlined_call_operand.vmem [shape: f32[1,32], index: 3, kind: input, shape index: {}]
  %s4 = inlined_call_operand.vmem [shape: f32[32,128], index: 4, kind: input, shape index: {}]
  %s5 = inlined_call_operand.vmem [shape: f32[9,128], index: 5, kind: input, shape index: {}]
  %s6 = inlined_call_operand.vmem [shape: f32[64,32], index: 6, kind: input, shape index: {}]
  %s7 = inlined_call_operand.vmem [shape: f32[64,32], index: 7, kind: input, shape index: {}]
  %s8 = inlined_call_operand.hbm [shape: f32[2,16,16,32], index: 8, kind: output, shape index: {}]
  %s9 = sld [smem:[#allocation0]]
  $region65: #{transformer_block_forward.9} parent=0
    _
  %s11 = ssub.s32 1, %s9
  %s12 = scalar_select 0, %s11, %s9
  $region1: #{transformer_block_forward.9} parent=0
    #allocation2 [shape = 'u8[262144]{0}', space=vmem, size = 0x40000, scoped, tag = 'output window, operand 0']
    #allocation3 [shape = 's32[2]{0}', space=sflag, size = 0x8, scoped, tag = 'scoped memory for transformer_block_forward.9']
    %13 = vsyncpa [#allocation3], 0
    %s14 = scalar_lea.sflag [#allocation3], 1
    %15 = vsyncpa %s14, 0
    loop: start=0, step=1, limit=4
    $region2: #{transformer_block_forward.9} parent=1 // loop_pre_header
      _
    $region3: #{transformer_block_forward.9} parent=1 // loop_header
      %s17 = sphi 0, %s21
      %p18 = scmp.ge.s32.totalorder %s17, 4
      %s27 = sphi 0, %s29
      %s30 = sphi 0, %s27
      %s31 = sphi 0, %s30
      %s47 = sphi 0, %s31
      %s53 = sphi 0, %s55
      %s56 = sphi 0, %s53
      %s57 = sphi 0, %s56
      %s73 = sphi 0, %s57
      %s77 = sphi 0, %s77
      %s79 = sphi 0, %s77
      %s80 = sphi 0, %s79
      %s94 = sphi 0, %s80
      %s98 = sphi 0, %s98
      %s100 = sphi 0, %s98
      %s101 = sphi 0, %s100
      %s115 = sphi 0, %s101
      %s119 = sphi 0, %s119
      %s121 = sphi 0, %s119
      %s122 = sphi 0, %s121
      %s136 = sphi 0, %s122
      %s140 = sphi 0, %s140
      %s142 = sphi 0, %s140
      %s143 = sphi 0, %s142
      %s157 = sphi 0, %s143
      %s161 = sphi 0, %s161
      %s163 = sphi 0, %s161
      %s164 = sphi 0, %s163
      %s178 = sphi 0, %s164
      %s182 = sphi 0, %s182
      %s184 = sphi 0, %s182
      %s185 = sphi 0, %s184
      %s199 = sphi 0, %s185
      %s205 = sphi 0, %s207
      %s208 = sphi 0, %s205
      %s209 = sphi 0, %s208
      %s225 = sphi 0, %s209
    $region4: #{transformer_block_forward.9} parent=1 // loop_header_branch
      %20 = sbr.rel (%p18) target = $region8
    $region5: #{transformer_block_forward.9} parent=1 // loop_body
      %s22 = ssub.s32 %s17, 1
      %s23 = ssub.s32 %s17, 2
      %s24 = sadd.s32 %s17, 1
      %s25 = ssub.s32 %s17, %s24
      %p26 = scmp.eq.s32.totalorder %s25, 0
      %s28 = sadd.s32 %s27, 1
      %s29 = scalar_select %p26, %s27, %s28
      %p32 = pneg %p26
      %p33 = scmp.eq.s32.totalorder %s17, 1
      %p34 = por %p32, %p33
      %p35 = scmp.ne.s32.totalorder %s27, %s30
      %p36 = scmp.eq.s32.totalorder %s17, 0
      %p37 = por %p35, %p36
      %p38 = scmp.ne.s32.totalorder %s27, %s30
      %p39 = scmp.eq.s32.totalorder %s22, 1
      %p40 = por %p38, %p39
      %p41 = scmp.ne.s32.totalorder %s30, %s31
      %p42 = scmp.eq.s32.totalorder %s22, 0
      %p43 = por %p41, %p42
      %p44 = scmp.ne.s32.totalorder %s30, %s31
      %p45 = scmp.eq.s32.totalorder %s23, 1
      %p46 = por %p44, %p45
      %p48 = scmp.ne.s32.totalorder %s31, %s47
      %p49 = scmp.eq.s32.totalorder %s23, 0
      %p50 = por %p48, %p49
      %s51 = ssub.s32 %s17, %s24
      %p52 = scmp.eq.s32.totalorder %s51, 0
      %s54 = sadd.s32 %s53, 1
      %s55 = scalar_select %p52, %s53, %s54
      %p58 = pneg %p52
      %p59 = scmp.eq.s32.totalorder %s17, 1
      %p60 = por %p58, %p59
      %p61 = scmp.ne.s32.totalorder %s53, %s56
      %p62 = scmp.eq.s32.totalorder %s17, 0
      %p63 = por %p61, %p62
      %p64 = scmp.ne.s32.totalorder %s53, %s56
      %p65 = scmp.eq.s32.totalorder %s22, 1
      %p66 = por %p64, %p65
      %p67 = scmp.ne.s32.totalorder %s56, %s57
      %p68 = scmp.eq.s32.totalorder %s22, 0
      %p69 = por %p67, %p68
      %p70 = scmp.ne.s32.totalorder %s56, %s57
      %p71 = scmp.eq.s32.totalorder %s23, 1
      %p72 = por %p70, %p71
      %p74 = scmp.ne.s32.totalorder %s57, %s73
      %p75 = scmp.eq.s32.totalorder %s23, 0
      %p76 = por %p74, %p75
      %s78 = sadd.s32 %s77, 1
      %p81 = scmp.eq.s32.totalorder %s17, 1
      %p82 = scmp.ne.s32.totalorder %s77, %s79
      %p83 = scmp.eq.s32.totalorder %s17, 0
      %p84 = por %p82, %p83
      %p85 = scmp.ne.s32.totalorder %s77, %s79
      %p86 = scmp.eq.s32.totalorder %s22, 1
      %p87 = por %p85, %p86
      %p88 = scmp.ne.s32.totalorder %s79, %s80
      %p89 = scmp.eq.s32.totalorder %s22, 0
      %p90 = por %p88, %p89
      %p91 = scmp.ne.s32.totalorder %s79, %s80
      %p92 = scmp.eq.s32.totalorder %s23, 1
      %p93 = por %p91, %p92
      %p95 = scmp.ne.s32.totalorder %s80, %s94
      %p96 = scmp.eq.s32.totalorder %s23, 0
      %p97 = por %p95, %p96
      %s99 = sadd.s32 %s98, 1
      %p102 = scmp.eq.s32.totalorder %s17, 1
      %p103 = scmp.ne.s32.totalorder %s98, %s100
      %p104 = scmp.eq.s32.totalorder %s17, 0
      %p105 = por %p103, %p104
      %p106 = scmp.ne.s32.totalorder %s98, %s100
      %p107 = scmp.eq.s32.totalorder %s22, 1
      %p108 = por %p106, %p107
      %p109 = scmp.ne.s32.totalorder %s100, %s101
      %p110 = scmp.eq.s32.totalorder %s22, 0
      %p111 = por %p109, %p110
      %p112 = scmp.ne.s32.totalorder %s100, %s101
      %p113 = scmp.eq.s32.totalorder %s23, 1
      %p114 = por %p112, %p113
      %p116 = scmp.ne.s32.totalorder %s101, %s115
      %p117 = scmp.eq.s32.totalorder %s23, 0
      %p118 = por %p116, %p117
      %s120 = sadd.s32 %s119, 1
      %p123 = scmp.eq.s32.totalorder %s17, 1
      %p124 = scmp.ne.s32.totalorder %s119, %s121
      %p125 = scmp.eq.s32.totalorder %s17, 0
      %p126 = por %p124, %p125
      %p127 = scmp.ne.s32.totalorder %s119, %s121
      %p128 = scmp.eq.s32.totalorder %s22, 1
      %p129 = por %p127, %p128
      %p130 = scmp.ne.s32.totalorder %s121, %s122
      %p131 = scmp.eq.s32.totalorder %s22, 0
      %p132 = por %p130, %p131
      %p133 = scmp.ne.s32.totalorder %s121, %s122
      %p134 = scmp.eq.s32.totalorder %s23, 1
      %p135 = por %p133, %p134
      %p137 = scmp.ne.s32.totalorder %s122, %s136
      %p138 = scmp.eq.s32.totalorder %s23, 0
      %p139 = por %p137, %p138
      %s141 = sadd.s32 %s140, 1
      %p144 = scmp.eq.s32.totalorder %s17, 1
      %p145 = scmp.ne.s32.totalorder %s140, %s142
      %p146 = scmp.eq.s32.totalorder %s17, 0
      %p147 = por %p145, %p146
      %p148 = scmp.ne.s32.totalorder %s140, %s142
      %p149 = scmp.eq.s32.totalorder %s22, 1
      %p150 = por %p148, %p149
      %p151 = scmp.ne.s32.totalorder %s142, %s143
      %p152 = scmp.eq.s32.totalorder %s22, 0
      %p153 = por %p151, %p152
      %p154 = scmp.ne.s32.totalorder %s142, %s143
      %p155 = scmp.eq.s32.totalorder %s23, 1
      %p156 = por %p154, %p155
      %p158 = scmp.ne.s32.totalorder %s143, %s157
      %p159 = scmp.eq.s32.totalorder %s23, 0
      %p160 = por %p158, %p159
      %s162 = sadd.s32 %s161, 1
      %p165 = scmp.eq.s32.totalorder %s17, 1
      %p166 = scmp.ne.s32.totalorder %s161, %s163
      %p167 = scmp.eq.s32.totalorder %s17, 0
      %p168 = por %p166, %p167
      %p169 = scmp.ne.s32.totalorder %s161, %s163
      %p170 = scmp.eq.s32.totalorder %s22, 1
      %p171 = por %p169, %p170
      %p172 = scmp.ne.s32.totalorder %s163, %s164
      %p173 = scmp.eq.s32.totalorder %s22, 0
      %p174 = por %p172, %p173
      %p175 = scmp.ne.s32.totalorder %s163, %s164
      %p176 = scmp.eq.s32.totalorder %s23, 1
      %p177 = por %p175, %p176
      %p179 = scmp.ne.s32.totalorder %s164, %s178
      %p180 = scmp.eq.s32.totalorder %s23, 0
      %p181 = por %p179, %p180
      %s183 = sadd.s32 %s182, 1
      %p186 = scmp.eq.s32.totalorder %s17, 1
      %p187 = scmp.ne.s32.totalorder %s182, %s184
      %p188 = scmp.eq.s32.totalorder %s17, 0
      %p189 = por %p187, %p188
      %p190 = scmp.ne.s32.totalorder %s182, %s184
      %p191 = scmp.eq.s32.totalorder %s22, 1
      %p192 = por %p190, %p191
      %p193 = scmp.ne.s32.totalorder %s184, %s185
      %p194 = scmp.eq.s32.totalorder %s22, 0
      %p195 = por %p193, %p194
      %p196 = scmp.ne.s32.totalorder %s184, %s185
      %p197 = scmp.eq.s32.totalorder %s23, 1
      %p198 = por %p196, %p197
      %p200 = scmp.ne.s32.totalorder %s185, %s199
      %p201 = scmp.eq.s32.totalorder %s23, 0
      %p202 = por %p200, %p201
      %s203 = ssub.s32 %s17, %s24
      %p204 = scmp.eq.s32.totalorder %s203, 0
      %s206 = sadd.s32 %s205, 1
      %s207 = scalar_select %p204, %s205, %s206
      %p210 = pneg %p204
      %p211 = scmp.eq.s32.totalorder %s17, 1
      %p212 = por %p210, %p211
      %p213 = scmp.ne.s32.totalorder %s205, %s208
      %p214 = scmp.eq.s32.totalorder %s17, 0
      %p215 = por %p213, %p214
      %p216 = scmp.ne.s32.totalorder %s205, %s208
      %p217 = scmp.eq.s32.totalorder %s22, 1
      %p218 = por %p216, %p217
      %p219 = scmp.ne.s32.totalorder %s208, %s209
      %p220 = scmp.eq.s32.totalorder %s22, 0
      %p221 = por %p219, %p220
      %p222 = scmp.ne.s32.totalorder %s208, %s209
      %p223 = scmp.eq.s32.totalorder %s23, 1
      %p224 = por %p222, %p223
      %p226 = scmp.ne.s32.totalorder %s209, %s225
      %p227 = scmp.eq.s32.totalorder %s23, 0
      %p228 = por %p226, %p227
      %p229 = scmp.le.s32.totalorder 1, %s17
      %p230 = scmp.lt.s32.totalorder %s17, 3
      %p231 = pnand %p229, %p230
      %p232 = pneg %p231
      // Predicated region
      $region9: #{transformer_block_forward.9} parent=5 // pred_check
        _
      $region10: #{transformer_block_forward.9} parent=5 // pred_check_branch
        %234 = sbr.rel (%p231) target = $region12
      $region11: #{transformer_block_forward.9} parent=5 // pred_region
        %s235 = ssub.s32 %s17, 1
        // Predicated region
        $region13: #{transformer_block_forward.9} parent=11 // pred_check
          %p236 = pneg %p90
        $region14: #{transformer_block_forward.9} parent=11 // pred_check_branch
          %238 = sbr.rel (%p236) target = $region16
        $region15: #{transformer_block_forward.9} parent=11 // pred_region
          _
        $region16: #{transformer_block_forward.9} parent=11 // pred_fallthru
          _
        // Predicated region
        $region17: #{transformer_block_forward.9} parent=11 // pred_check
          %p239 = pneg %p111
        $region18: #{transformer_block_forward.9} parent=11 // pred_check_branch
          %241 = sbr.rel (%p239) target = $region20
        $region19: #{transformer_block_forward.9} parent=11 // pred_region
          _
        $region20: #{transformer_block_forward.9} parent=11 // pred_fallthru
          _
        // Predicated region
        $region21: #{transformer_block_forward.9} parent=11 // pred_check
          %p242 = pneg %p132
        $region22: #{transformer_block_forward.9} parent=11 // pred_check_branch
          %244 = sbr.rel (%p242) target = $region24
        $region23: #{transformer_block_forward.9} parent=11 // pred_region
          _
        $region24: #{transformer_block_forward.9} parent=11 // pred_fallthru
          _
        // Predicated region
        $region25: #{transformer_block_forward.9} parent=11 // pred_check
          %p245 = pneg %p153
        $region26: #{transformer_block_forward.9} parent=11 // pred_check_branch
          %247 = sbr.rel (%p245) target = $region28
        $region27: #{transformer_block_forward.9} parent=11 // pred_region
          _
        $region28: #{transformer_block_forward.9} parent=11 // pred_fallthru
          _
        // Predicated region
        $region29: #{transformer_block_forward.9} parent=11 // pred_check
          %p248 = pneg %p174
        $region30: #{transformer_block_forward.9} parent=11 // pred_check_branch
          %250 = sbr.rel (%p248) target = $region32
        $region31: #{transformer_block_forward.9} parent=11 // pred_region
          _
        $region32: #{transformer_block_forward.9} parent=11 // pred_fallthru
          _
        // Predicated region
        $region33: #{transformer_block_forward.9} parent=11 // pred_check
          %p251 = pneg %p195
        $region34: #{transformer_block_forward.9} parent=11 // pred_check_branch
          %253 = sbr.rel (%p251) target = $region36
        $region35: #{transformer_block_forward.9} parent=11 // pred_region
          _
        $region36: #{transformer_block_forward.9} parent=11 // pred_fallthru
          _
      $region12: #{transformer_block_forward.9} parent=5 // pred_fallthru
        _
      %p254 = scmp.lt.s32.totalorder %s17, 2
      // Predicated region
      $region37: #{transformer_block_forward.9} parent=5 // pred_check
        %p255 = pneg %p254
      $region38: #{transformer_block_forward.9} parent=5 // pred_check_branch
        %257 = sbr.rel (%p255) target = $region40
      $region39: #{transformer_block_forward.9} parent=5 // pred_region
        // Predicated region
        $region41: #{transformer_block_forward.9} parent=39 // pred_check
          %p258 = pneg %p37
        $region42: #{transformer_block_forward.9} parent=39 // pred_check_branch
          %260 = sbr.rel (%p258) target = $region44
        $region43: #{transformer_block_forward.9} parent=39 // pred_region
          %p261 = scmp.lt.s32.totalorder %s17, 1
          %s262 = scalar_select %p261, %s17, 1
          %s263 = smul.addr %s262, 32
          %s264 = smul.addr %s263, 8
          %s265 = scalar_lea.vmem %s0, %s264
        $region44: #{transformer_block_forward.9} parent=39 // pred_fallthru
          _
        // Predicated region
        $region45: #{transformer_block_forward.9} parent=39 // pred_check
          %p266 = pneg %p63
        $region46: #{transformer_block_forward.9} parent=39 // pred_check_branch
          %268 = sbr.rel (%p266) target = $region48
        $region47: #{transformer_block_forward.9} parent=39 // pred_region
          %p269 = scmp.lt.s32.totalorder %s17, 1
          %s270 = scalar_select %p269, %s17, 1
          %s271 = smul.addr %s270, 32
          %s272 = smul.addr %s271, 8
          %s273 = scalar_lea.vmem %s1, %s272
        $region48: #{transformer_block_forward.9} parent=39 // pred_fallthru
          _
      $region40: #{transformer_block_forward.9} parent=5 // pred_fallthru
        _
      %p274 = scmp.le.s32.totalorder 1, %s17
      %p275 = scmp.lt.s32.totalorder %s17, 3
      %p276 = pnand %p274, %p275
      %p277 = pneg %p276
      // Predicated region
      $region49: #{transformer_block_forward.9} parent=5 // pred_check
        _
      $region50: #{transformer_block_forward.9} parent=5 // pred_check_branch
        %279 = sbr.rel (%p276) target = $region52
      $region51: #{transformer_block_forward.9} parent=5 // pred_region
        %s280 = ssub.s32 %s17, 1
        %p281 = scmp.lt.s32.totalorder %s22, 1
        %s282 = scalar_select %p281, %s22, 1
        %s283 = smul.addr %s282, 32
        %s284 = smul.addr %s283, 8
        %s285 = scalar_lea.vmem %s0, %s284
        %p286 = pneg %p43
        %p287 = pneg %p40
        %p288 = scmp.lt.s32.totalorder %s22, 1
        %s289 = scalar_select %p288, %s22, 1
        %s290 = smul.addr %s289, 32
        %s291 = smul.addr %s290, 8
        %s292 = scalar_lea.vmem %s1, %s291
        %p293 = pneg %p69
        %p294 = pneg %p66
        %p295 = pneg %p90
        %p296 = pneg %p87
        %p297 = pneg %p111
        %p298 = pneg %p108
        %p299 = pneg %p132
        %p300 = pneg %p129
        %p301 = pneg %p153
        %p302 = pneg %p150
        %p303 = pneg %p174
        %p304 = pneg %p171
        %p305 = pneg %p195
        %p306 = pneg %p192
        %p307 = pneg %p221
        %p308 = pneg %p218
        %s309 = sand.u32 %s208, 1
        %s310 = scalar_lea.sflag [#allocation3], %s309
        %s311 = sand.u32 %s208, 1
        %s312 = smul.addr %s311, 256
        %s313 = scalar_lea.vmem [#allocation2], %s312
        %p314 = scmp.lt.s32.totalorder %s22, 1
        %s315 = scalar_select %p314, %s22, 1
        %s316 = smul.addr %s315, 32
        %s317 = smul.addr %s316, 8
        %s318 = scalar_lea.vmem %s0, %s317
        %p319 = scmp.lt.s32.totalorder %s22, 1
        %s320 = scalar_select %p319, %s22, 1
        %s321 = smul.addr %s320, 32
        %s322 = smul.addr %s321, 8
        %s323 = scalar_lea.vmem %s1, %s322
        %v325 = vld [vmem:[%s318] sm:$0xff]
        %v326 = vld [vmem:[%s318 + $0x8] sm:$0xff]
        %v327 = vld [vmem:[%s318 + $0x10] sm:$0xff]
        %v328 = vld [vmem:[%s318 + $0x18] sm:$0xff]
        %v329 = vld [vmem:[%s318 + $0x20] sm:$0xff]
        %v330 = vld [vmem:[%s318 + $0x28] sm:$0xff]
        %v331 = vld [vmem:[%s318 + $0x30] sm:$0xff]
        %v332 = vld [vmem:[%s318 + $0x38] sm:$0xff]
        %v333 = vld [vmem:[%s318 + $0x40] sm:$0xff]
        %v334 = vld [vmem:[%s318 + $0x48] sm:$0xff]
        %v335 = vld [vmem:[%s318 + $0x50] sm:$0xff]
        %v336 = vld [vmem:[%s318 + $0x58] sm:$0xff]
        %v337 = vld [vmem:[%s318 + $0x60] sm:$0xff]
        %v338 = vld [vmem:[%s318 + $0x68] sm:$0xff]
        %v339 = vld [vmem:[%s318 + $0x70] sm:$0xff]
        %v340 = vld [vmem:[%s318 + $0x78] sm:$0xff]
        %v341 = vld [vmem:[%s318 + $0x80] sm:$0xff]
        %v342 = vld [vmem:[%s318 + $0x88] sm:$0xff]
        %v343 = vld [vmem:[%s318 + $0x90] sm:$0xff]
        %v344 = vld [vmem:[%s318 + $0x98] sm:$0xff]
        %v345 = vld [vmem:[%s318 + $0xa0] sm:$0xff]
        %v346 = vld [vmem:[%s318 + $0xa8] sm:$0xff]
        %v347 = vld [vmem:[%s318 + $0xb0] sm:$0xff]
        %v348 = vld [vmem:[%s318 + $0xb8] sm:$0xff]
        %v349 = vld [vmem:[%s318 + $0xc0] sm:$0xff]
        %v350 = vld [vmem:[%s318 + $0xc8] sm:$0xff]
        %v351 = vld [vmem:[%s318 + $0xd0] sm:$0xff]
        %v352 = vld [vmem:[%s318 + $0xd8] sm:$0xff]
        %v353 = vld [vmem:[%s318 + $0xe0] sm:$0xff]
        %v354 = vld [vmem:[%s318 + $0xe8] sm:$0xff]
        %v355 = vld [vmem:[%s318 + $0xf0] sm:$0xff]
        %v356 = vld [vmem:[%s318 + $0xf8] sm:$0xff]
        %v357 = vld [vmem:[%s2] sm:$0x1]
        %v358 = vld [vmem:[%s3] sm:$0x1]
        %vm359 = vcmask 261120
        %v360 = vsel %vm359, %v325, 0.0
        %361 = vadd.xlane.f32.xlu0 %v360
        %v362 = vpop.xlane.xlu0 %361
        %v363 = vsel %vm359, %v326, 0.0
        %364 = vadd.xlane.f32.xlu0 %v363
        %v365 = vpop.xlane.xlu0 %364
        %v366 = vsel %vm359, %v327, 0.0
        %367 = vadd.xlane.f32.xlu0 %v366
        %v368 = vpop.xlane.xlu0 %367
        %v369 = vsel %vm359, %v328, 0.0
        %370 = vadd.xlane.f32.xlu0 %v369
        %v371 = vpop.xlane.xlu0 %370
        %v372 = vsel %vm359, %v329, 0.0
        %373 = vadd.xlane.f32.xlu0 %v372
        %v374 = vpop.xlane.xlu0 %373
        %v375 = vsel %vm359, %v330, 0.0
        %376 = vadd.xlane.f32.xlu0 %v375
        %v377 = vpop.xlane.xlu0 %376
        %v378 = vsel %vm359, %v331, 0.0
        %379 = vadd.xlane.f32.xlu0 %v378
        %v380 = vpop.xlane.xlu0 %379
        %v381 = vsel %vm359, %v332, 0.0
        %382 = vadd.xlane.f32.xlu0 %v381
        %v383 = vpop.xlane.xlu0 %382
        %v384 = vsel %vm359, %v333, 0.0
        %385 = vadd.xlane.f32.xlu0 %v384
        %v386 = vpop.xlane.xlu0 %385
        %v387 = vsel %vm359, %v334, 0.0
        %388 = vadd.xlane.f32.xlu0 %v387
        %v389 = vpop.xlane.xlu0 %388
        %v390 = vsel %vm359, %v335, 0.0
        %391 = vadd.xlane.f32.xlu0 %v390
        %v392 = vpop.xlane.xlu0 %391
        %v393 = vsel %vm359, %v336, 0.0
        %394 = vadd.xlane.f32.xlu0 %v393
        %v395 = vpop.xlane.xlu0 %394
        %v396 = vsel %vm359, %v337, 0.0
        %397 = vadd.xlane.f32.xlu0 %v396
        %v398 = vpop.xlane.xlu0 %397
        %v399 = vsel %vm359, %v338, 0.0
        %400 = vadd.xlane.f32.xlu0 %v399
        %v401 = vpop.xlane.xlu0 %400
        %v402 = vsel %vm359, %v339, 0.0
        %403 = vadd.xlane.f32.xlu0 %v402
        %v404 = vpop.xlane.xlu0 %403
        %v405 = vsel %vm359, %v340, 0.0
        %406 = vadd.xlane.f32.xlu0 %v405
        %v407 = vpop.xlane.xlu0 %406
        %v408 = vsel %vm359, %v341, 0.0
        %409 = vadd.xlane.f32.xlu0 %v408
        %v410 = vpop.xlane.xlu0 %409
        %v411 = vsel %vm359, %v342, 0.0
        %412 = vadd.xlane.f32.xlu0 %v411
        %v413 = vpop.xlane.xlu0 %412
        %v414 = vsel %vm359, %v343, 0.0
        %415 = vadd.xlane.f32.xlu0 %v414
        %v416 = vpop.xlane.xlu0 %415
        %v417 = vsel %vm359, %v344, 0.0
        %418 = vadd.xlane.f32.xlu0 %v417
        %v419 = vpop.xlane.xlu0 %418
        %v420 = vsel %vm359, %v345, 0.0
        %421 = vadd.xlane.f32.xlu0 %v420
        %v422 = vpop.xlane.xlu0 %421
        %v423 = vsel %vm359, %v346, 0.0
        %424 = vadd.xlane.f32.xlu0 %v423
        %v425 = vpop.xlane.xlu0 %424
        %v426 = vsel %vm359, %v347, 0.0
        %427 = vadd.xlane.f32.xlu0 %v426
        %v428 = vpop.xlane.xlu0 %427
        %v429 = vsel %vm359, %v348, 0.0
        %430 = vadd.xlane.f32.xlu0 %v429
        %v431 = vpop.xlane.xlu0 %430
        %v432 = vsel %vm359, %v349, 0.0
        %433 = vadd.xlane.f32.xlu0 %v432
        %v434 = vpop.xlane.xlu0 %433
        %v435 = vsel %vm359, %v350, 0.0
        %436 = vadd.xlane.f32.xlu0 %v435
        %v437 = vpop.xlane.xlu0 %436
        %v438 = vsel %vm359, %v351, 0.0
        %439 = vadd.xlane.f32.xlu0 %v438
        %v440 = vpop.xlane.xlu0 %439
        %v441 = vsel %vm359, %v352, 0.0
        %442 = vadd.xlane.f32.xlu0 %v441
        %v443 = vpop.xlane.xlu0 %442
        %v444 = vsel %vm359, %v353, 0.0
        %445 = vadd.xlane.f32.xlu0 %v444
        %v446 = vpop.xlane.xlu0 %445
        %v447 = vsel %vm359, %v354, 0.0
        %448 = vadd.xlane.f32.xlu0 %v447
        %v449 = vpop.xlane.xlu0 %448
        %v450 = vsel %vm359, %v355, 0.0
        %451 = vadd.xlane.f32.xlu0 %v450
        %v452 = vpop.xlane.xlu0 %451
        %v453 = vsel %vm359, %v356, 0.0
        %454 = vadd.xlane.f32.xlu0 %v453
        %v455 = vpop.xlane.xlu0 %454
        %v456 = vrcp.pop 32.0
        %v457 = vmul.f32 %v362, %v456
        %v458 = vmul.f32 %v365, %v456
        %v459 = vmul.f32 %v368, %v456
        %v460 = vmul.f32 %v371, %v456
        %v461 = vmul.f32 %v374, %v456
        %v462 = vmul.f32 %v377, %v456
        %v463 = vmul.f32 %v380, %v456
        %v464 = vmul.f32 %v383, %v456
        %v465 = vmul.f32 %v386, %v456
        %v466 = vmul.f32 %v389, %v456
        %v467 = vmul.f32 %v392, %v456
        %v468 = vmul.f32 %v395, %v456
        %v469 = vmul.f32 %v398, %v456
        %v470 = vmul.f32 %v401, %v456
        %v471 = vmul.f32 %v404, %v456
        %v472 = vmul.f32 %v407, %v456
        %v473 = vmul.f32 %v410, %v456
        %v474 = vmul.f32 %v413, %v456
        %v475 = vmul.f32 %v416, %v456
        %v476 = vmul.f32 %v419, %v456
        %v477 = vmul.f32 %v422, %v456
        %v478 = vmul.f32 %v425, %v456
        %v479 = vmul.f32 %v428, %v456
        %v480 = vmul.f32 %v431, %v456
        %v481 = vmul.f32 %v434, %v456
        %v482 = vmul.f32 %v437, %v456
        %v483 = vmul.f32 %v440, %v456
        %v484 = vmul.f32 %v443, %v456
        %v485 = vmul.f32 %v446, %v456
        %v486 = vmul.f32 %v449, %v456
        %v487 = vmul.f32 %v452, %v456
        %v488 = vmul.f32 %v455, %v456
        %v489 = vsub.f32 %v325, %v457
        %v490 = vsub.f32 %v326, %v458
        %v491 = vsub.f32 %v327, %v459
        %v492 = vsub.f32 %v328, %v460
        %v493 = vsub.f32 %v329, %v461
        %v494 = vsub.f32 %v330, %v462
        %v495 = vsub.f32 %v331, %v463
        %v496 = vsub.f32 %v332, %v464
        %v497 = vsub.f32 %v333, %v465
        %v498 = vsub.f32 %v334, %v466
        %v499 = vsub.f32 %v335, %v467
        %v500 = vsub.f32 %v336, %v468
        %v501 = vsub.f32 %v337, %v469
        %v502 = vsub.f32 %v338, %v470
        %v503 = vsub.f32 %v339, %v471
        %v504 = vsub.f32 %v340, %v472
        %v505 = vsub.f32 %v341, %v473
        %v506 = vsub.f32 %v342, %v474
        %v507 = vsub.f32 %v343, %v475
        %v508 = vsub.f32 %v344, %v476
        %v509 = vsub.f32 %v345, %v477
        %v510 = vsub.f32 %v346, %v478
        %v511 = vsub.f32 %v347, %v479
        %v512 = vsub.f32 %v348, %v480
        %v513 = vsub.f32 %v349, %v481
        %v514 = vsub.f32 %v350, %v482
        %v515 = vsub.f32 %v351, %v483
        %v516 = vsub.f32 %v352, %v484
        %v517 = vsub.f32 %v353, %v485
        %v518 = vsub.f32 %v354, %v486
        %v519 = vsub.f32 %v355, %v487
        %v520 = vsub.f32 %v356, %v488
        %v521 = vmul.f32 %v489, %v489
        %v522 = vmul.f32 %v490, %v490
        %v523 = vmul.f32 %v491, %v491
        %v524 = vmul.f32 %v492, %v492
        %v525 = vmul.f32 %v493, %v493
        %v526 = vmul.f32 %v494, %v494
        %v527 = vmul.f32 %v495, %v495
        %v528 = vmul.f32 %v496, %v496
        %v529 = vmul.f32 %v497, %v497
        %v530 = vmul.f32 %v498, %v498
        %v531 = vmul.f32 %v499, %v499
        %v532 = vmul.f32 %v500, %v500
        %v533 = vmul.f32 %v501, %v501
        %v534 = vmul.f32 %v502, %v502
        %v535 = vmul.f32 %v503, %v503
        %v536 = vmul.f32 %v504, %v504
        %v537 = vmul.f32 %v505, %v505
        %v538 = vmul.f32 %v506, %v506
        %v539 = vmul.f32 %v507, %v507
        %v540 = vmul.f32 %v508, %v508
        %v541 = vmul.f32 %v509, %v509
        %v542 = vmul.f32 %v510, %v510
        %v543 = vmul.f32 %v511, %v511
        %v544 = vmul.f32 %v512, %v512
        %v545 = vmul.f32 %v513, %v513
        %v546 = vmul.f32 %v514, %v514
        %v547 = vmul.f32 %v515, %v515
        %v548 = vmul.f32 %v516, %v516
        %v549 = vmul.f32 %v517, %v517
        %v550 = vmul.f32 %v518, %v518
        %v551 = vmul.f32 %v519, %v519
        %v552 = vmul.f32 %v520, %v520
        %v553 = vsel %vm359, %v521, 0.0
        %554 = vadd.xlane.f32.xlu0 %v553
        %v555 = vpop.xlane.xlu0 %554
        %v556 = vsel %vm359, %v522, 0.0
        %557 = vadd.xlane.f32.xlu0 %v556
        %v558 = vpop.xlane.xlu0 %557
        %v559 = vsel %vm359, %v523, 0.0
        %560 = vadd.xlane.f32.xlu0 %v559
        %v561 = vpop.xlane.xlu0 %560
        %v562 = vsel %vm359, %v524, 0.0
        %563 = vadd.xlane.f32.xlu0 %v562
        %v564 = vpop.xlane.xlu0 %563
        %v565 = vsel %vm359, %v525, 0.0
        %566 = vadd.xlane.f32.xlu0 %v565
        %v567 = vpop.xlane.xlu0 %566
        %v568 = vsel %vm359, %v526, 0.0
        %569 = vadd.xlane.f32.xlu0 %v568
        %v570 = vpop.xlane.xlu0 %569
        %v571 = vsel %vm359, %v527, 0.0
        %572 = vadd.xlane.f32.xlu0 %v571
        %v573 = vpop.xlane.xlu0 %572
        %v574 = vsel %vm359, %v528, 0.0
        %575 = vadd.xlane.f32.xlu0 %v574
        %v576 = vpop.xlane.xlu0 %575
        %v577 = vsel %vm359, %v529, 0.0
        %578 = vadd.xlane.f32.xlu0 %v577
        %v579 = vpop.xlane.xlu0 %578
        %v580 = vsel %vm359, %v530, 0.0
        %581 = vadd.xlane.f32.xlu0 %v580
        %v582 = vpop.xlane.xlu0 %581
        %v583 = vsel %vm359, %v531, 0.0
        %584 = vadd.xlane.f32.xlu0 %v583
        %v585 = vpop.xlane.xlu0 %584
        %v586 = vsel %vm359, %v532, 0.0
        %587 = vadd.xlane.f32.xlu0 %v586
        %v588 = vpop.xlane.xlu0 %587
        %v589 = vsel %vm359, %v533, 0.0
        %590 = vadd.xlane.f32.xlu0 %v589
        %v591 = vpop.xlane.xlu0 %590
        %v592 = vsel %vm359, %v534, 0.0
        %593 = vadd.xlane.f32.xlu0 %v592
        %v594 = vpop.xlane.xlu0 %593
        %v595 = vsel %vm359, %v535, 0.0
        %596 = vadd.xlane.f32.xlu0 %v595
        %v597 = vpop.xlane.xlu0 %596
        %v598 = vsel %vm359, %v536, 0.0
        %599 = vadd.xlane.f32.xlu0 %v598
        %v600 = vpop.xlane.xlu0 %599
        %v601 = vsel %vm359, %v537, 0.0
        %602 = vadd.xlane.f32.xlu0 %v601
        %v603 = vpop.xlane.xlu0 %602
        %v604 = vsel %vm359, %v538, 0.0
        %605 = vadd.xlane.f32.xlu0 %v604
        %v606 = vpop.xlane.xlu0 %605
        %v607 = vsel %vm359, %v539, 0.0
        %608 = vadd.xlane.f32.xlu0 %v607
        %v609 = vpop.xlane.xlu0 %608
        %v610 = vsel %vm359, %v540, 0.0
        %611 = vadd.xlane.f32.xlu0 %v610
        %v612 = vpop.xlane.xlu0 %611
        %v613 = vsel %vm359, %v541, 0.0
        %614 = vadd.xlane.f32.xlu0 %v613
        %v615 = vpop.xlane.xlu0 %614
        %v616 = vsel %vm359, %v542, 0.0
        %617 = vadd.xlane.f32.xlu0 %v616
        %v618 = vpop.xlane.xlu0 %617
        %v619 = vsel %vm359, %v543, 0.0
        %620 = vadd.xlane.f32.xlu0 %v619
        %v621 = vpop.xlane.xlu0 %620
        %v622 = vsel %vm359, %v544, 0.0
        %623 = vadd.xlane.f32.xlu0 %v622
        %v624 = vpop.xlane.xlu0 %623
        %v625 = vsel %vm359, %v545, 0.0
        %626 = vadd.xlane.f32.xlu0 %v625
        %v627 = vpop.xlane.xlu0 %626
        %v628 = vsel %vm359, %v546, 0.0
        %629 = vadd.xlane.f32.xlu0 %v628
        %v630 = vpop.xlane.xlu0 %629
        %v631 = vsel %vm359, %v547, 0.0
        %632 = vadd.xlane.f32.xlu0 %v631
        %v633 = vpop.xlane.xlu0 %632
        %v634 = vsel %vm359, %v548, 0.0
        %635 = vadd.xlane.f32.xlu0 %v634
        %v636 = vpop.xlane.xlu0 %635
        %v637 = vsel %vm359, %v549, 0.0
        %638 = vadd.xlane.f32.xlu0 %v637
        %v639 = vpop.xlane.xlu0 %638
        %v640 = vsel %vm359, %v550, 0.0
        %641 = vadd.xlane.f32.xlu0 %v640
        %v642 = vpop.xlane.xlu0 %641
        %v643 = vsel %vm359, %v551, 0.0
        %644 = vadd.xlane.f32.xlu0 %v643
        %v645 = vpop.xlane.xlu0 %644
        %v646 = vsel %vm359, %v552, 0.0
        %647 = vadd.xlane.f32.xlu0 %v646
        %v648 = vpop.xlane.xlu0 %647
        %v649 = vmul.f32 %v555, %v456
        %v650 = vmul.f32 %v558, %v456
        %v651 = vmul.f32 %v561, %v456
        %v652 = vmul.f32 %v564, %v456
        %v653 = vmul.f32 %v567, %v456
        %v654 = vmul.f32 %v570, %v456
        %v655 = vmul.f32 %v573, %v456
        %v656 = vmul.f32 %v576, %v456
        %v657 = vmul.f32 %v579, %v456
        %v658 = vmul.f32 %v582, %v456
        %v659 = vmul.f32 %v585, %v456
        %v660 = vmul.f32 %v588, %v456
        %v661 = vmul.f32 %v591, %v456
        %v662 = vmul.f32 %v594, %v456
        %v663 = vmul.f32 %v597, %v456
        %v664 = vmul.f32 %v600, %v456
        %v665 = vmul.f32 %v603, %v456
        %v666 = vmul.f32 %v606, %v456
        %v667 = vmul.f32 %v609, %v456
        %v668 = vmul.f32 %v612, %v456
        %v669 = vmul.f32 %v615, %v456
        %v670 = vmul.f32 %v618, %v456
        %v671 = vmul.f32 %v621, %v456
        %v672 = vmul.f32 %v624, %v456
        %v673 = vmul.f32 %v627, %v456
        %v674 = vmul.f32 %v630, %v456
        %v675 = vmul.f32 %v633, %v456
        %v676 = vmul.f32 %v636, %v456
        %v677 = vmul.f32 %v639, %v456
        %v678 = vmul.f32 %v642, %v456
        %v679 = vmul.f32 %v645, %v456
        %v680 = vmul.f32 %v648, %v456
        %v681 = vadd.f32 %v649, 1e-05
        %v682 = vadd.f32 %v650, 1e-05
        %v683 = vadd.f32 %v651, 1e-05
        %v684 = vadd.f32 %v652, 1e-05
        %v685 = vadd.f32 %v653, 1e-05
        %v686 = vadd.f32 %v654, 1e-05
        %v687 = vadd.f32 %v655, 1e-05
        %v688 = vadd.f32 %v656, 1e-05
        %v689 = vadd.f32 %v657, 1e-05
        %v690 = vadd.f32 %v658, 1e-05
        %v691 = vadd.f32 %v659, 1e-05
        %v692 = vadd.f32 %v660, 1e-05
        %v693 = vadd.f32 %v661, 1e-05
        %v694 = vadd.f32 %v662, 1e-05
        %v695 = vadd.f32 %v663, 1e-05
        %v696 = vadd.f32 %v664, 1e-05
        %v697 = vadd.f32 %v665, 1e-05
        %v698 = vadd.f32 %v666, 1e-05
        %v699 = vadd.f32 %v667, 1e-05
        %v700 = vadd.f32 %v668, 1e-05
        %v701 = vadd.f32 %v669, 1e-05
        %v702 = vadd.f32 %v670, 1e-05
        %v703 = vadd.f32 %v671, 1e-05
        %v704 = vadd.f32 %v672, 1e-05
        %v705 = vadd.f32 %v673, 1e-05
        %v706 = vadd.f32 %v674, 1e-05
        %v707 = vadd.f32 %v675, 1e-05
        %v708 = vadd.f32 %v676, 1e-05
        %v709 = vadd.f32 %v677, 1e-05
        %v710 = vadd.f32 %v678, 1e-05
        %v711 = vadd.f32 %v679, 1e-05
        %v712 = vadd.f32 %v680, 1e-05
        %v713 = vrsqrt.pop %v681
        %v714 = vrsqrt.pop %v682
        %v715 = vrsqrt.pop %v683
        %v716 = vrsqrt.pop %v684
        %v717 = vrsqrt.pop %v685
        %v718 = vrsqrt.pop %v686
        %v719 = vrsqrt.pop %v687
        %v720 = vrsqrt.pop %v688
        %v721 = vrsqrt.pop %v689
        %v722 = vrsqrt.pop %v690
        %v723 = vrsqrt.pop %v691
        %v724 = vrsqrt.pop %v692
        %v725 = vrsqrt.pop %v693
        %v726 = vrsqrt.pop %v694
        %v727 = vrsqrt.pop %v695
        %v728 = vrsqrt.pop %v696
        %v729 = vrsqrt.pop %v697
        %v730 = vrsqrt.pop %v698
        %v731 = vrsqrt.pop %v699
        %v732 = vrsqrt.pop %v700
        %v733 = vrsqrt.pop %v701
        %v734 = vrsqrt.pop %v702
        %v735 = vrsqrt.pop %v703
        %v736 = vrsqrt.pop %v704
        %v737 = vrsqrt.pop %v705
        %v738 = vrsqrt.pop %v706
        %v739 = vrsqrt.pop %v707
        %v740 = vrsqrt.pop %v708
        %v741 = vrsqrt.pop %v709
        %v742 = vrsqrt.pop %v710
        %v743 = vrsqrt.pop %v711
        %v744 = vrsqrt.pop %v712
        %v745 = vmul.f32 %v489, %v713
        %v746 = vmul.f32 %v490, %v714
        %v747 = vmul.f32 %v491, %v715
        %v748 = vmul.f32 %v492, %v716
        %v749 = vmul.f32 %v493, %v717
        %v750 = vmul.f32 %v494, %v718
        %v751 = vmul.f32 %v495, %v719
        %v752 = vmul.f32 %v496, %v720
        %v753 = vmul.f32 %v497, %v721
        %v754 = vmul.f32 %v498, %v722
        %v755 = vmul.f32 %v499, %v723
        %v756 = vmul.f32 %v500, %v724
        %v757 = vmul.f32 %v501, %v725
        %v758 = vmul.f32 %v502, %v726
        %v759 = vmul.f32 %v503, %v727
        %v760 = vmul.f32 %v504, %v728
        %v761 = vmul.f32 %v505, %v729
        %v762 = vmul.f32 %v506, %v730
        %v763 = vmul.f32 %v507, %v731
        %v764 = vmul.f32 %v508, %v732
        %v765 = vmul.f32 %v509, %v733
        %v766 = vmul.f32 %v510, %v734
        %v767 = vmul.f32 %v511, %v735
        %v768 = vmul.f32 %v512, %v736
        %v769 = vmul.f32 %v513, %v737
        %v770 = vmul.f32 %v514, %v738
        %v771 = vmul.f32 %v515, %v739
        %v772 = vmul.f32 %v516, %v740
        %v773 = vmul.f32 %v517, %v741
        %v774 = vmul.f32 %v518, %v742
        %v775 = vmul.f32 %v519, %v743
        %v776 = vmul.f32 %v520, %v744
        %v778 = vlaneseq
        %v779 = vshrl.u32 %v778, 7
        %v780 = vsub.s32 0, %v779
        %v781 = vrot.slane %v357, %v780
        %v783 = vmul.f32 %v745, %v781
        %v784 = vmul.f32 %v746, %v781
        %v785 = vmul.f32 %v747, %v781
        %v786 = vmul.f32 %v748, %v781
        %v787 = vmul.f32 %v749, %v781
        %v788 = vmul.f32 %v750, %v781
        %v789 = vmul.f32 %v751, %v781
        %v790 = vmul.f32 %v752, %v781
        %v791 = vmul.f32 %v753, %v781
        %v792 = vmul.f32 %v754, %v781
        %v793 = vmul.f32 %v755, %v781
        %v794 = vmul.f32 %v756, %v781
        %v795 = vmul.f32 %v757, %v781
        %v796 = vmul.f32 %v758, %v781
        %v797 = vmul.f32 %v759, %v781
        %v798 = vmul.f32 %v760, %v781
        %v799 = vmul.f32 %v761, %v781
        %v800 = vmul.f32 %v762, %v781
        %v801 = vmul.f32 %v763, %v781
        %v802 = vmul.f32 %v764, %v781
        %v803 = vmul.f32 %v765, %v781
        %v804 = vmul.f32 %v766, %v781
        %v805 = vmul.f32 %v767, %v781
        %v806 = vmul.f32 %v768, %v781
        %v807 = vmul.f32 %v769, %v781
        %v808 = vmul.f32 %v770, %v781
        %v809 = vmul.f32 %v771, %v781
        %v810 = vmul.f32 %v772, %v781
        %v811 = vmul.f32 %v773, %v781
        %v812 = vmul.f32 %v774, %v781
        %v813 = vmul.f32 %v775, %v781
        %v814 = vmul.f32 %v776, %v781
        %v816 = vlaneseq
        %v817 = vshrl.u32 %v816, 7
        %v818 = vsub.s32 0, %v817
        %v819 = vrot.slane %v358, %v818
        %v821 = vadd.f32 %v783, %v819
        %v822 = vadd.f32 %v784, %v819
        %v823 = vadd.f32 %v785, %v819
        %v824 = vadd.f32 %v786, %v819
        %v825 = vadd.f32 %v787, %v819
        %v826 = vadd.f32 %v788, %v819
        %v827 = vadd.f32 %v789, %v819
        %v828 = vadd.f32 %v790, %v819
        %v829 = vadd.f32 %v791, %v819
        %v830 = vadd.f32 %v792, %v819
        %v831 = vadd.f32 %v793, %v819
        %v832 = vadd.f32 %v794, %v819
        %v833 = vadd.f32 %v795, %v819
        %v834 = vadd.f32 %v796, %v819
        %v835 = vadd.f32 %v797, %v819
        %v836 = vadd.f32 %v798, %v819
        %v837 = vadd.f32 %v799, %v819
        %v838 = vadd.f32 %v800, %v819
        %v839 = vadd.f32 %v801, %v819
        %v840 = vadd.f32 %v802, %v819
        %v841 = vadd.f32 %v803, %v819
        %v842 = vadd.f32 %v804, %v819
        %v843 = vadd.f32 %v805, %v819
        %v844 = vadd.f32 %v806, %v819
        %v845 = vadd.f32 %v807, %v819
        %v846 = vadd.f32 %v808, %v819
        %v847 = vadd.f32 %v809, %v819
        %v848 = vadd.f32 %v810, %v819
        %v849 = vadd.f32 %v811, %v819
        %v850 = vadd.f32 %v812, %v819
        %v851 = vadd.f32 %v813, %v819
        %v852 = vadd.f32 %v814, %v819
        %v853 = vpack.c.bf16 %v822, %v821
        %v854 = vpack.c.bf16 %v824, %v823
        %v855 = vpack.c.bf16 %v826, %v825
        %v856 = vpack.c.bf16 %v828, %v827
        %v857 = vpack.c.bf16 %v830, %v829
        %v858 = vpack.c.bf16 %v832, %v831
        %v859 = vpack.c.bf16 %v834, %v833
        %v860 = vpack.c.bf16 %v836, %v835
        %v861 = vpack.c.bf16 %v838, %v837
        %v862 = vpack.c.bf16 %v840, %v839
        %v863 = vpack.c.bf16 %v842, %v841
        %v864 = vpack.c.bf16 %v844, %v843
        %v865 = vpack.c.bf16 %v846, %v845
        %v866 = vpack.c.bf16 %v848, %v847
        %v867 = vpack.c.bf16 %v850, %v849
        %v868 = vpack.c.bf16 %v852, %v851
        %v869 = vld [vmem:[%s4] sm:$0xff]
        %v870 = vld [vmem:[%s4 + $0x8] sm:$0xff]
        %v871 = vld [vmem:[%s4 + $0x10] sm:$0xff]
        %v872 = vld [vmem:[%s4 + $0x18] sm:$0xff]
        %v873 = vpack.c.bf16 %v870, %v869
        %v874 = vpack.c.bf16 %v872, %v871
        %v876 = vsel %vm359, %v853, 0
        %v879 = vsel %vm359, %v854, 0
        %v882 = vsel %vm359, %v855, 0
        %v885 = vsel %vm359, %v856, 0
        %v888 = vsel %vm359, %v857, 0
        %v891 = vsel %vm359, %v858, 0
        %v894 = vsel %vm359, %v859, 0
        %v897 = vsel %vm359, %v860, 0
        %v900 = vsel %vm359, %v861, 0
        %v903 = vsel %vm359, %v862, 0
        %v906 = vsel %vm359, %v863, 0
        %v909 = vsel %vm359, %v864, 0
        %v912 = vsel %vm359, %v865, 0
        %v915 = vsel %vm359, %v866, 0
        %v918 = vsel %vm359, %v867, 0
        %v921 = vsel %vm359, %v868, 0
        %923 = vmatprep.subr.bf16.mxu0 0
        %924 = vmatpush1.bf16.msra.mxu0 0
        %925 = vmatprep.subr.bf16.mxu0 0
        %926 = vmatpush1.bf16.msra.mxu0 0
        %927 = vmatprep.subr.bf16.mxu0 0
        %928 = vmatpush1.bf16.msra.mxu0 0
        %929 = vmatprep.subr.bf16.mxu0 0
        %930 = vmatpush1.bf16.msra.mxu0 0
        %931 = vmatprep.subr.bf16.mxu0 0
        %932 = vmatpush1.bf16.msra.mxu0 0
        %933 = vmatprep.subr.bf16.mxu0 0
        %934 = vmatpush1.bf16.msra.mxu0 0
        %935 = vmatprep.subr.bf16.mxu0 0
        %936 = vmatpush1.bf16.msra.mxu0 %v874
        %937 = vmatprep.subr.bf16.mxu0 0
        %938 = vmatpush1.bf16.msra.mxu0 %v873
        %939 = vmatprep.subr.bf16.mxu0 0
        %940 = vmatpush2.bf16.msra.mxu0 0
        %941 = vmatprep.subr.bf16.mxu0 0
        %942 = vmatpush2.bf16.msra.mxu0 0
        %943 = vmatprep.subr.bf16.mxu0 0
        %944 = vmatpush2.bf16.msra.mxu0 0
        %945 = vmatprep.subr.bf16.mxu0 0
        %946 = vmatpush2.bf16.msra.mxu0 0
        %947 = vmatprep.subr.bf16.mxu0 0
        %948 = vmatpush2.bf16.msra.mxu0 0
        %949 = vmatprep.subr.bf16.mxu0 0
        %950 = vmatpush2.bf16.msra.mxu0 0
        %951 = vmatprep.subr.bf16.mxu0 0
        %952 = vmatpush2.bf16.msra.mxu0 0
        %953 = vmatprep.subr.bf16.mxu0 0
        %954 = vmatpush2.bf16.msra.mxu0 0
        %955 = vmatprep.mubr.bf16.mxu0 0
        %956 = vmatmul.mubr.bf16.gmra.mxu0 %v876
        %v957 = vpop.f32.mrf.mxu0
        %v958 = vadd.f32 0.0, %v957
        %v959 = vpop.f32.mrf.mxu0
        %v960 = vpop.f32.mrf.mxu0
        %v961 = vadd.f32 0.0, %v960
        %v962 = vpop.f32.mrf.mxu0
        %963 = vmatprep.mubr.bf16.mxu0 0
        %964 = vmatmul.mubr.bf16.gmra.mxu0 %v879
        %v965 = vpop.f32.mrf.mxu0
        %v966 = vadd.f32 0.0, %v965
        %v967 = vpop.f32.mrf.mxu0
        %v968 = vpop.f32.mrf.mxu0
        %v969 = vadd.f32 0.0, %v968
        %v970 = vpop.f32.mrf.mxu0
        %971 = vmatprep.mubr.bf16.mxu0 0
        %972 = vmatmul.mubr.bf16.gmra.mxu0 %v882
        %v973 = vpop.f32.mrf.mxu0
        %v974 = vadd.f32 0.0, %v973
        %v975 = vpop.f32.mrf.mxu0
        %v976 = vpop.f32.mrf.mxu0
        %v977 = vadd.f32 0.0, %v976
        %v978 = vpop.f32.mrf.mxu0
        %979 = vmatprep.mubr.bf16.mxu0 0
        %980 = vmatmul.mubr.bf16.gmra.mxu0 %v885
        %v981 = vpop.f32.mrf.mxu0
        %v982 = vadd.f32 0.0, %v981
        %v983 = vpop.f32.mrf.mxu0
        %v984 = vpop.f32.mrf.mxu0
        %v985 = vadd.f32 0.0, %v984
        %v986 = vpop.f32.mrf.mxu0
        %987 = vmatprep.mubr.bf16.mxu0 0
        %988 = vmatmul.mubr.bf16.gmra.mxu0 %v888
        %v989 = vpop.f32.mrf.mxu0
        %v990 = vadd.f32 0.0, %v989
        %v991 = vpop.f32.mrf.mxu0
        %v992 = vpop.f32.mrf.mxu0
        %v993 = vadd.f32 0.0, %v992
        %v994 = vpop.f32.mrf.mxu0
        %995 = vmatprep.mubr.bf16.mxu0 0
        %996 = vmatmul.mubr.bf16.gmra.mxu0 %v891
        %v997 = vpop.f32.mrf.mxu0
        %v998 = vadd.f32 0.0, %v997
        %v999 = vpop.f32.mrf.mxu0
        %v1000 = vpop.f32.mrf.mxu0
        %v1001 = vadd.f32 0.0, %v1000
        %v1002 = vpop.f32.mrf.mxu0
        %1003 = vmatprep.mubr.bf16.mxu0 0
        %1004 = vmatmul.mubr.bf16.gmra.mxu0 %v894
        %v1005 = vpop.f32.mrf.mxu0
        %v1006 = vadd.f32 0.0, %v1005
        %v1007 = vpop.f32.mrf.mxu0
        %v1008 = vpop.f32.mrf.mxu0
        %v1009 = vadd.f32 0.0, %v1008
        %v1010 = vpop.f32.mrf.mxu0
        %1011 = vmatprep.mubr.bf16.mxu0 0
        %1012 = vmatmul.mubr.bf16.gmra.mxu0 %v897
        %v1013 = vpop.f32.mrf.mxu0
        %v1014 = vadd.f32 0.0, %v1013
        %v1015 = vpop.f32.mrf.mxu0
        %v1016 = vpop.f32.mrf.mxu0
        %v1017 = vadd.f32 0.0, %v1016
        %v1018 = vpop.f32.mrf.mxu0
        %1019 = vmatprep.mubr.bf16.mxu0 0
        %1020 = vmatmul.mubr.bf16.gmra.mxu0 %v900
        %v1021 = vpop.f32.mrf.mxu0
        %v1022 = vadd.f32 0.0, %v1021
        %v1023 = vpop.f32.mrf.mxu0
        %v1024 = vpop.f32.mrf.mxu0
        %v1025 = vadd.f32 0.0, %v1024
        %v1026 = vpop.f32.mrf.mxu0
        %1027 = vmatprep.mubr.bf16.mxu0 0
        %1028 = vmatmul.mubr.bf16.gmra.mxu0 %v903
        %v1029 = vpop.f32.mrf.mxu0
        %v1030 = vadd.f32 0.0, %v1029
        %v1031 = vpop.f32.mrf.mxu0
        %v1032 = vpop.f32.mrf.mxu0
        %v1033 = vadd.f32 0.0, %v1032
        %v1034 = vpop.f32.mrf.mxu0
        %1035 = vmatprep.mubr.bf16.mxu0 0
        %1036 = vmatmul.mubr.bf16.gmra.mxu0 %v906
        %v1037 = vpop.f32.mrf.mxu0
        %v1038 = vadd.f32 0.0, %v1037
        %v1039 = vpop.f32.mrf.mxu0
        %v1040 = vpop.f32.mrf.mxu0
        %v1041 = vadd.f32 0.0, %v1040
        %v1042 = vpop.f32.mrf.mxu0
        %1043 = vmatprep.mubr.bf16.mxu0 0
        %1044 = vmatmul.mubr.bf16.gmra.mxu0 %v909
        %v1045 = vpop.f32.mrf.mxu0
        %v1046 = vadd.f32 0.0, %v1045
        %v1047 = vpop.f32.mrf.mxu0
        %v1048 = vpop.f32.mrf.mxu0
        %v1049 = vadd.f32 0.0, %v1048
        %v1050 = vpop.f32.mrf.mxu0
        %1051 = vmatprep.mubr.bf16.mxu0 0
        %1052 = vmatmul.mubr.bf16.gmra.mxu0 %v912
        %v1053 = vpop.f32.mrf.mxu0
        %v1054 = vadd.f32 0.0, %v1053
        %v1055 = vpop.f32.mrf.mxu0
        %v1056 = vpop.f32.mrf.mxu0
        %v1057 = vadd.f32 0.0, %v1056
        %v1058 = vpop.f32.mrf.mxu0
        %1059 = vmatprep.mubr.bf16.mxu0 0
        %1060 = vmatmul.mubr.bf16.gmra.mxu0 %v915
        %v1061 = vpop.f32.mrf.mxu0
        %v1062 = vadd.f32 0.0, %v1061
        %v1063 = vpop.f32.mrf.mxu0
        %v1064 = vpop.f32.mrf.mxu0
        %v1065 = vadd.f32 0.0, %v1064
        %v1066 = vpop.f32.mrf.mxu0
        %1067 = vmatprep.mubr.bf16.mxu0 0
        %1068 = vmatmul.mubr.bf16.gmra.mxu0 %v918
        %v1069 = vpop.f32.mrf.mxu0
        %v1070 = vadd.f32 0.0, %v1069
        %v1071 = vpop.f32.mrf.mxu0
        %v1072 = vpop.f32.mrf.mxu0
        %v1073 = vadd.f32 0.0, %v1072
        %v1074 = vpop.f32.mrf.mxu0
        %1075 = vmatprep.mubr.bf16.mxu0 0
        %1076 = vmatmul.mubr.bf16.gmra.mxu0 %v921
        %v1077 = vpop.f32.mrf.mxu0
        %v1078 = vadd.f32 0.0, %v1077
        %v1079 = vpop.f32.mrf.mxu0
        %v1080 = vpop.f32.mrf.mxu0
        %v1081 = vadd.f32 0.0, %v1080
        %v1082 = vpop.f32.mrf.mxu0
        %1083 = vdwg.mxu0
        %v1084 = vld [vmem:[%s5] sm:$0xff]
        %v1085 = vld [vmem:[%s5 + $0x8] sm:$0x1]
        %vm1119 = vcmask 1040384
        %v1120 = vrot.slane 0.0, 7
        %v1121 = vsel %vm1119, %v1120, %v1120
        %v1122 = vrot.slane %v958, 7
        %v1123 = vrot.slane %v961, 7
        %v1124 = vsel %vm1119, %v1122, %v1123
        %v1125 = vrot.slane %v966, 7
        %v1126 = vrot.slane %v969, 7
        %v1127 = vsel %vm1119, %v1125, %v1126
        %v1128 = vrot.slane %v974, 7
        %v1129 = vrot.slane %v977, 7
        %v1130 = vsel %vm1119, %v1128, %v1129
        %v1131 = vrot.slane %v982, 7
        %v1132 = vrot.slane %v985, 7
        %v1133 = vsel %vm1119, %v1131, %v1132
        %v1134 = vrot.slane %v990, 7
        %v1135 = vrot.slane %v993, 7
        %v1136 = vsel %vm1119, %v1134, %v1135
        %v1137 = vrot.slane %v998, 7
        %v1138 = vrot.slane %v1001, 7
        %v1139 = vsel %vm1119, %v1137, %v1138
        %v1140 = vrot.slane %v1006, 7
        %v1141 = vrot.slane %v1009, 7
        %v1142 = vsel %vm1119, %v1140, %v1141
        %v1143 = vrot.slane %v1014, 7
        %v1144 = vrot.slane %v1017, 7
        %v1145 = vsel %vm1119, %v1143, %v1144
        %v1146 = vrot.slane %v1022, 7
        %v1147 = vrot.slane %v1025, 7
        %v1148 = vsel %vm1119, %v1146, %v1147
        %v1149 = vrot.slane %v1030, 7
        %v1150 = vrot.slane %v1033, 7
        %v1151 = vsel %vm1119, %v1149, %v1150
        %v1152 = vrot.slane %v1038, 7
        %v1153 = vrot.slane %v1041, 7
        %v1154 = vsel %vm1119, %v1152, %v1153
        %v1155 = vrot.slane %v1046, 7
        %v1156 = vrot.slane %v1049, 7
        %v1157 = vsel %vm1119, %v1155, %v1156
        %v1158 = vrot.slane %v1054, 7
        %v1159 = vrot.slane %v1057, 7
        %v1160 = vsel %vm1119, %v1158, %v1159
        %v1161 = vrot.slane %v1062, 7
        %v1162 = vrot.slane %v1065, 7
        %v1163 = vsel %vm1119, %v1161, %v1162
        %v1164 = vrot.slane %v1070, 7
        %v1165 = vrot.slane %v1073, 7
        %v1166 = vsel %vm1119, %v1164, %v1165
        %v1167 = vrot.slane %v1078, 7
        %v1168 = vrot.slane %v1081, 7
        %v1169 = vsel %vm1119, %v1167, %v1168
        %v1220 = vsel %vm1119, 0.0, %v1120
        %v1221 = vsel %vm1119, 0.0, %v1122
        %v1222 = vsel %vm1119, 0.0, %v1125
        %v1223 = vsel %vm1119, 0.0, %v1128
        %v1224 = vsel %vm1119, 0.0, %v1131
        %v1225 = vsel %vm1119, 0.0, %v1134
        %v1226 = vsel %vm1119, 0.0, %v1137
        %v1227 = vsel %vm1119, 0.0, %v1140
        %v1228 = vsel %vm1119, 0.0, %v1143
        %v1229 = vsel %vm1119, 0.0, %v1146
        %v1230 = vsel %vm1119, 0.0, %v1149
        %v1231 = vsel %vm1119, 0.0, %v1152
        %v1232 = vsel %vm1119, 0.0, %v1155
        %v1233 = vsel %vm1119, 0.0, %v1158
        %v1234 = vsel %vm1119, 0.0, %v1161
        %v1235 = vsel %vm1119, 0.0, %v1164
        %v1236 = vsel %vm1119, 0.0, %v1167
        %v1237 = vsel %vm1119, %v1120, 0.0
        %v1238 = vsel %vm1119, %v1123, 0.0
        %v1239 = vsel %vm1119, %v1126, 0.0
        %v1240 = vsel %vm1119, %v1129, 0.0
        %v1241 = vsel %vm1119, %v1132, 0.0
        %v1242 = vsel %vm1119, %v1135, 0.0
        %v1243 = vsel %vm1119, %v1138, 0.0
        %v1244 = vsel %vm1119, %v1141, 0.0
        %v1245 = vsel %vm1119, %v1144, 0.0
        %v1246 = vsel %vm1119, %v1147, 0.0
        %v1247 = vsel %vm1119, %v1150, 0.0
        %v1248 = vsel %vm1119, %v1153, 0.0
        %v1249 = vsel %vm1119, %v1156, 0.0
        %v1250 = vsel %vm1119, %v1159, 0.0
        %v1251 = vsel %vm1119, %v1162, 0.0
        %v1252 = vsel %vm1119, %v1165, 0.0
        %v1253 = vsel %vm1119, %v1168, 0.0
        %v1254 = vlaneseq
        %v1255 = vshrl.u32 %v1254, 7
        %v1256 = vsub.s32 0, %v1255
        %v1257 = vrot.slane %v1084, %v1256
        %v1258 = vmul.f32 %v1220, %v1257
        %v1259 = vmul.f32 %v1121, %v1257
        %v1260 = vmul.f32 %v1221, %v1257
        %v1261 = vmul.f32 %v1124, %v1257
        %v1262 = vmul.f32 %v1222, %v1257
        %v1263 = vmul.f32 %v1127, %v1257
        %v1264 = vmul.f32 %v1223, %v1257
        %v1265 = vmul.f32 %v1130, %v1257
        %v1266 = vmul.f32 %v1224, %v1257
        %v1267 = vmul.f32 %v1133, %v1257
        %v1268 = vmul.f32 %v1225, %v1257
        %v1269 = vmul.f32 %v1136, %v1257
        %v1270 = vmul.f32 %v1226, %v1257
        %v1271 = vmul.f32 %v1139, %v1257
        %v1272 = vmul.f32 %v1227, %v1257
        %v1273 = vmul.f32 %v1142, %v1257
        %v1274 = vmul.f32 %v1228, %v1257
        %v1275 = vmul.f32 %v1145, %v1257
        %v1276 = vmul.f32 %v1229, %v1257
        %v1277 = vmul.f32 %v1148, %v1257
        %v1278 = vmul.f32 %v1230, %v1257
        %v1279 = vmul.f32 %v1151, %v1257
        %v1280 = vmul.f32 %v1231, %v1257
        %v1281 = vmul.f32 %v1154, %v1257
        %v1282 = vmul.f32 %v1232, %v1257
        %v1283 = vmul.f32 %v1157, %v1257
        %v1284 = vmul.f32 %v1233, %v1257
        %v1285 = vmul.f32 %v1160, %v1257
        %v1286 = vmul.f32 %v1234, %v1257
        %v1287 = vmul.f32 %v1163, %v1257
        %v1288 = vmul.f32 %v1235, %v1257
        %v1289 = vmul.f32 %v1166, %v1257
        %v1290 = vlaneseq
        %v1291 = vshrl.u32 %v1290, 7
        %v1292 = vsub.s32 1, %v1291
        %v1293 = vrot.slane %v1084, %v1292
        %v1294 = vmul.f32 %v1220, %v1293
        %v1295 = vmul.f32 %v1121, %v1293
        %v1296 = vmul.f32 %v1237, %v1293
        %v1297 = vmul.f32 %v1221, %v1293
        %v1298 = vmul.f32 %v1124, %v1293
        %v1299 = vmul.f32 %v1238, %v1293
        %v1300 = vmul.f32 %v1222, %v1293
        %v1301 = vmul.f32 %v1127, %v1293
        %v1302 = vmul.f32 %v1239, %v1293
        %v1303 = vmul.f32 %v1223, %v1293
        %v1304 = vmul.f32 %v1130, %v1293
        %v1305 = vmul.f32 %v1240, %v1293
        %v1306 = vmul.f32 %v1224, %v1293
        %v1307 = vmul.f32 %v1133, %v1293
        %v1308 = vmul.f32 %v1241, %v1293
        %v1309 = vmul.f32 %v1225, %v1293
        %v1310 = vmul.f32 %v1136, %v1293
        %v1311 = vmul.f32 %v1242, %v1293
        %v1312 = vmul.f32 %v1226, %v1293
        %v1313 = vmul.f32 %v1139, %v1293
        %v1314 = vmul.f32 %v1243, %v1293
        %v1315 = vmul.f32 %v1227, %v1293
        %v1316 = vmul.f32 %v1142, %v1293
        %v1317 = vmul.f32 %v1244, %v1293
        %v1318 = vmul.f32 %v1228, %v1293
        %v1319 = vmul.f32 %v1145, %v1293
        %v1320 = vmul.f32 %v1245, %v1293
        %v1321 = vmul.f32 %v1229, %v1293
        %v1322 = vmul.f32 %v1148, %v1293
        %v1323 = vmul.f32 %v1246, %v1293
        %v1324 = vmul.f32 %v1230, %v1293
        %v1325 = vmul.f32 %v1151, %v1293
        %v1326 = vmul.f32 %v1247, %v1293
        %v1327 = vmul.f32 %v1231, %v1293
        %v1328 = vmul.f32 %v1154, %v1293
        %v1329 = vmul.f32 %v1248, %v1293
        %v1330 = vmul.f32 %v1232, %v1293
        %v1331 = vmul.f32 %v1157, %v1293
        %v1332 = vmul.f32 %v1249, %v1293
        %v1333 = vmul.f32 %v1233, %v1293
        %v1334 = vmul.f32 %v1160, %v1293
        %v1335 = vmul.f32 %v1250, %v1293
        %v1336 = vmul.f32 %v1234, %v1293
        %v1337 = vmul.f32 %v1163, %v1293
        %v1338 = vmul.f32 %v1251, %v1293
        %v1339 = vmul.f32 %v1235, %v1293
        %v1340 = vmul.f32 %v1166, %v1293
        %v1341 = vmul.f32 %v1252, %v1293
        %vm1390 = vcmask 1046528
        %v1391 = vrot.slane %v1294, 1
        %v1392 = vrot.slane %v1295, 1
        %v1393 = vsel %vm1390, %v1391, %v1392
        %v1394 = vrot.slane %v1296, 1
        %v1395 = vsel %vm1390, %v1392, %v1394
        %v1396 = vrot.slane %v1297, 1
        %v1397 = vrot.slane %v1298, 1
        %v1398 = vsel %vm1390, %v1396, %v1397
        %v1399 = vrot.slane %v1299, 1
        %v1400 = vsel %vm1390, %v1397, %v1399
        %v1401 = vrot.slane %v1300, 1
        %v1402 = vrot.slane %v1301, 1
        %v1403 = vsel %vm1390, %v1401, %v1402
        %v1404 = vrot.slane %v1302, 1
        %v1405 = vsel %vm1390, %v1402, %v1404
        %v1406 = vrot.slane %v1303, 1
        %v1407 = vrot.slane %v1304, 1
        %v1408 = vsel %vm1390, %v1406, %v1407
        %v1409 = vrot.slane %v1305, 1
        %v1410 = vsel %vm1390, %v1407, %v1409
        %v1411 = vrot.slane %v1306, 1
        %v1412 = vrot.slane %v1307, 1
        %v1413 = vsel %vm1390, %v1411, %v1412
        %v1414 = vrot.slane %v1308, 1
        %v1415 = vsel %vm1390, %v1412, %v1414
        %v1416 = vrot.slane %v1309, 1
        %v1417 = vrot.slane %v1310, 1
        %v1418 = vsel %vm1390, %v1416, %v1417
        %v1419 = vrot.slane %v1311, 1
        %v1420 = vsel %vm1390, %v1417, %v1419
        %v1421 = vrot.slane %v1312, 1
        %v1422 = vrot.slane %v1313, 1
        %v1423 = vsel %vm1390, %v1421, %v1422
        %v1424 = vrot.slane %v1314, 1
        %v1425 = vsel %vm1390, %v1422, %v1424
        %v1426 = vrot.slane %v1315, 1
        %v1427 = vrot.slane %v1316, 1
        %v1428 = vsel %vm1390, %v1426, %v1427
        %v1429 = vrot.slane %v1317, 1
        %v1430 = vsel %vm1390, %v1427, %v1429
        %v1431 = vrot.slane %v1318, 1
        %v1432 = vrot.slane %v1319, 1
        %v1433 = vsel %vm1390, %v1431, %v1432
        %v1434 = vrot.slane %v1320, 1
        %v1435 = vsel %vm1390, %v1432, %v1434
        %v1436 = vrot.slane %v1321, 1
        %v1437 = vrot.slane %v1322, 1
        %v1438 = vsel %vm1390, %v1436, %v1437
        %v1439 = vrot.slane %v1323, 1
        %v1440 = vsel %vm1390, %v1437, %v1439
        %v1441 = vrot.slane %v1324, 1
        %v1442 = vrot.slane %v1325, 1
        %v1443 = vsel %vm1390, %v1441, %v1442
        %v1444 = vrot.slane %v1326, 1
        %v1445 = vsel %vm1390, %v1442, %v1444
        %v1446 = vrot.slane %v1327, 1
        %v1447 = vrot.slane %v1328, 1
        %v1448 = vsel %vm1390, %v1446, %v1447
        %v1449 = vrot.slane %v1329, 1
        %v1450 = vsel %vm1390, %v1447, %v1449
        %v1451 = vrot.slane %v1330, 1
        %v1452 = vrot.slane %v1331, 1
        %v1453 = vsel %vm1390, %v1451, %v1452
        %v1454 = vrot.slane %v1332, 1
        %v1455 = vsel %vm1390, %v1452, %v1454
        %v1456 = vrot.slane %v1333, 1
        %v1457 = vrot.slane %v1334, 1
        %v1458 = vsel %vm1390, %v1456, %v1457
        %v1459 = vrot.slane %v1335, 1
        %v1460 = vsel %vm1390, %v1457, %v1459
        %v1461 = vrot.slane %v1336, 1
        %v1462 = vrot.slane %v1337, 1
        %v1463 = vsel %vm1390, %v1461, %v1462
        %v1464 = vrot.slane %v1338, 1
        %v1465 = vsel %vm1390, %v1462, %v1464
        %v1466 = vrot.slane %v1339, 1
        %v1467 = vrot.slane %v1340, 1
        %v1468 = vsel %vm1390, %v1466, %v1467
        %v1469 = vrot.slane %v1341, 1
        %v1470 = vsel %vm1390, %v1467, %v1469
        %v1503 = vadd.f32 %v1258, %v1393
        %v1504 = vadd.f32 %v1259, %v1395
        %v1505 = vadd.f32 %v1260, %v1398
        %v1506 = vadd.f32 %v1261, %v1400
        %v1507 = vadd.f32 %v1262, %v1403
        %v1508 = vadd.f32 %v1263, %v1405
        %v1509 = vadd.f32 %v1264, %v1408
        %v1510 = vadd.f32 %v1265, %v1410
        %v1511 = vadd.f32 %v1266, %v1413
        %v1512 = vadd.f32 %v1267, %v1415
        %v1513 = vadd.f32 %v1268, %v1418
        %v1514 = vadd.f32 %v1269, %v1420
        %v1515 = vadd.f32 %v1270, %v1423
        %v1516 = vadd.f32 %v1271, %v1425
        %v1517 = vadd.f32 %v1272, %v1428
        %v1518 = vadd.f32 %v1273, %v1430
        %v1519 = vadd.f32 %v1274, %v1433
        %v1520 = vadd.f32 %v1275, %v1435
        %v1521 = vadd.f32 %v1276, %v1438
        %v1522 = vadd.f32 %v1277, %v1440
        %v1523 = vadd.f32 %v1278, %v1443
        %v1524 = vadd.f32 %v1279, %v1445
        %v1525 = vadd.f32 %v1280, %v1448
        %v1526 = vadd.f32 %v1281, %v1450
        %v1527 = vadd.f32 %v1282, %v1453
        %v1528 = vadd.f32 %v1283, %v1455
        %v1529 = vadd.f32 %v1284, %v1458
        %v1530 = vadd.f32 %v1285, %v1460
        %v1531 = vadd.f32 %v1286, %v1463
        %v1532 = vadd.f32 %v1287, %v1465
        %v1533 = vadd.f32 %v1288, %v1468
        %v1534 = vadd.f32 %v1289, %v1470
        %v1535 = vlaneseq
        %v1536 = vshrl.u32 %v1535, 7
        %v1537 = vsub.s32 2, %v1536
        %v1538 = vrot.slane %v1084, %v1537
        %v1539 = vmul.f32 %v1220, %v1538
        %v1540 = vmul.f32 %v1121, %v1538
        %v1541 = vmul.f32 %v1237, %v1538
        %v1542 = vmul.f32 %v1221, %v1538
        %v1543 = vmul.f32 %v1124, %v1538
        %v1544 = vmul.f32 %v1238, %v1538
        %v1545 = vmul.f32 %v1222, %v1538
        %v1546 = vmul.f32 %v1127, %v1538
        %v1547 = vmul.f32 %v1239, %v1538
        %v1548 = vmul.f32 %v1223, %v1538
        %v1549 = vmul.f32 %v1130, %v1538
        %v1550 = vmul.f32 %v1240, %v1538
        %v1551 = vmul.f32 %v1224, %v1538
        %v1552 = vmul.f32 %v1133, %v1538
        %v1553 = vmul.f32 %v1241, %v1538
        %v1554 = vmul.f32 %v1225, %v1538
        %v1555 = vmul.f32 %v1136, %v1538
        %v1556 = vmul.f32 %v1242, %v1538
        %v1557 = vmul.f32 %v1226, %v1538
        %v1558 = vmul.f32 %v1139, %v1538
        %v1559 = vmul.f32 %v1243, %v1538
        %v1560 = vmul.f32 %v1227, %v1538
        %v1561 = vmul.f32 %v1142, %v1538
        %v1562 = vmul.f32 %v1244, %v1538
        %v1563 = vmul.f32 %v1228, %v1538
        %v1564 = vmul.f32 %v1145, %v1538
        %v1565 = vmul.f32 %v1245, %v1538
        %v1566 = vmul.f32 %v1229, %v1538
        %v1567 = vmul.f32 %v1148, %v1538
        %v1568 = vmul.f32 %v1246, %v1538
        %v1569 = vmul.f32 %v1230, %v1538
        %v1570 = vmul.f32 %v1151, %v1538
        %v1571 = vmul.f32 %v1247, %v1538
        %v1572 = vmul.f32 %v1231, %v1538
        %v1573 = vmul.f32 %v1154, %v1538
        %v1574 = vmul.f32 %v1248, %v1538
        %v1575 = vmul.f32 %v1232, %v1538
        %v1576 = vmul.f32 %v1157, %v1538
        %v1577 = vmul.f32 %v1249, %v1538
        %v1578 = vmul.f32 %v1233, %v1538
        %v1579 = vmul.f32 %v1160, %v1538
        %v1580 = vmul.f32 %v1250, %v1538
        %v1581 = vmul.f32 %v1234, %v1538
        %v1582 = vmul.f32 %v1163, %v1538
        %v1583 = vmul.f32 %v1251, %v1538
        %v1584 = vmul.f32 %v1235, %v1538
        %v1585 = vmul.f32 %v1166, %v1538
        %v1586 = vmul.f32 %v1252, %v1538
        %vm1635 = vcmask 1045504
        %v1636 = vrot.slane %v1539, 2
        %v1637 = vrot.slane %v1540, 2
        %v1638 = vsel %vm1635, %v1636, %v1637
        %v1639 = vrot.slane %v1541, 2
        %v1640 = vsel %vm1635, %v1637, %v1639
        %v1641 = vrot.slane %v1542, 2
        %v1642 = vrot.slane %v1543, 2
        %v1643 = vsel %vm1635, %v1641, %v1642
        %v1644 = vrot.slane %v1544, 2
        %v1645 = vsel %vm1635, %v1642, %v1644
        %v1646 = vrot.slane %v1545, 2
        %v1647 = vrot.slane %v1546, 2
        %v1648 = vsel %vm1635, %v1646, %v1647
        %v1649 = vrot.slane %v1547, 2
        %v1650 = vsel %vm1635, %v1647, %v1649
        %v1651 = vrot.slane %v1548, 2
        %v1652 = vrot.slane %v1549, 2
        %v1653 = vsel %vm1635, %v1651, %v1652
        %v1654 = vrot.slane %v1550, 2
        %v1655 = vsel %vm1635, %v1652, %v1654
        %v1656 = vrot.slane %v1551, 2
        %v1657 = vrot.slane %v1552, 2
        %v1658 = vsel %vm1635, %v1656, %v1657
        %v1659 = vrot.slane %v1553, 2
        %v1660 = vsel %vm1635, %v1657, %v1659
        %v1661 = vrot.slane %v1554, 2
        %v1662 = vrot.slane %v1555, 2
        %v1663 = vsel %vm1635, %v1661, %v1662
        %v1664 = vrot.slane %v1556, 2
        %v1665 = vsel %vm1635, %v1662, %v1664
        %v1666 = vrot.slane %v1557, 2
        %v1667 = vrot.slane %v1558, 2
        %v1668 = vsel %vm1635, %v1666, %v1667
        %v1669 = vrot.slane %v1559, 2
        %v1670 = vsel %vm1635, %v1667, %v1669
        %v1671 = vrot.slane %v1560, 2
        %v1672 = vrot.slane %v1561, 2
        %v1673 = vsel %vm1635, %v1671, %v1672
        %v1674 = vrot.slane %v1562, 2
        %v1675 = vsel %vm1635, %v1672, %v1674
        %v1676 = vrot.slane %v1563, 2
        %v1677 = vrot.slane %v1564, 2
        %v1678 = vsel %vm1635, %v1676, %v1677
        %v1679 = vrot.slane %v1565, 2
        %v1680 = vsel %vm1635, %v1677, %v1679
        %v1681 = vrot.slane %v1566, 2
        %v1682 = vrot.slane %v1567, 2
        %v1683 = vsel %vm1635, %v1681, %v1682
        %v1684 = vrot.slane %v1568, 2
        %v1685 = vsel %vm1635, %v1682, %v1684
        %v1686 = vrot.slane %v1569, 2
        %v1687 = vrot.slane %v1570, 2
        %v1688 = vsel %vm1635, %v1686, %v1687
        %v1689 = vrot.slane %v1571, 2
        %v1690 = vsel %vm1635, %v1687, %v1689
        %v1691 = vrot.slane %v1572, 2
        %v1692 = vrot.slane %v1573, 2
        %v1693 = vsel %vm1635, %v1691, %v1692
        %v1694 = vrot.slane %v1574, 2
        %v1695 = vsel %vm1635, %v1692, %v1694
        %v1696 = vrot.slane %v1575, 2
        %v1697 = vrot.slane %v1576, 2
        %v1698 = vsel %vm1635, %v1696, %v1697
        %v1699 = vrot.slane %v1577, 2
        %v1700 = vsel %vm1635, %v1697, %v1699
        %v1701 = vrot.slane %v1578, 2
        %v1702 = vrot.slane %v1579, 2
        %v1703 = vsel %vm1635, %v1701, %v1702
        %v1704 = vrot.slane %v1580, 2
        %v1705 = vsel %vm1635, %v1702, %v1704
        %v1706 = vrot.slane %v1581, 2
        %v1707 = vrot.slane %v1582, 2
        %v1708 = vsel %vm1635, %v1706, %v1707
        %v1709 = vrot.slane %v1583, 2
        %v1710 = vsel %vm1635, %v1707, %v1709
        %v1711 = vrot.slane %v1584, 2
        %v1712 = vrot.slane %v1585, 2
        %v1713 = vsel %vm1635, %v1711, %v1712
        %v1714 = vrot.slane %v1586, 2
        %v1715 = vsel %vm1635, %v1712, %v1714
        %v1748 = vadd.f32 %v1503, %v1638
        %v1749 = vadd.f32 %v1504, %v1640
        %v1750 = vadd.f32 %v1505, %v1643
        %v1751 = vadd.f32 %v1506, %v1645
        %v1752 = vadd.f32 %v1507, %v1648
        %v1753 = vadd.f32 %v1508, %v1650
        %v1754 = vadd.f32 %v1509, %v1653
        %v1755 = vadd.f32 %v1510, %v1655
        %v1756 = vadd.f32 %v1511, %v1658
        %v1757 = vadd.f32 %v1512, %v1660
        %v1758 = vadd.f32 %v1513, %v1663
        %v1759 = vadd.f32 %v1514, %v1665
        %v1760 = vadd.f32 %v1515, %v1668
        %v1761 = vadd.f32 %v1516, %v1670
        %v1762 = vadd.f32 %v1517, %v1673
        %v1763 = vadd.f32 %v1518, %v1675
        %v1764 = vadd.f32 %v1519, %v1678
        %v1765 = vadd.f32 %v1520, %v1680
        %v1766 = vadd.f32 %v1521, %v1683
        %v1767 = vadd.f32 %v1522, %v1685
        %v1768 = vadd.f32 %v1523, %v1688
        %v1769 = vadd.f32 %v1524, %v1690
        %v1770 = vadd.f32 %v1525, %v1693
        %v1771 = vadd.f32 %v1526, %v1695
        %v1772 = vadd.f32 %v1527, %v1698
        %v1773 = vadd.f32 %v1528, %v1700
        %v1774 = vadd.f32 %v1529, %v1703
        %v1775 = vadd.f32 %v1530, %v1705
        %v1776 = vadd.f32 %v1531, %v1708
        %v1777 = vadd.f32 %v1532, %v1710
        %v1778 = vadd.f32 %v1533, %v1713
        %v1779 = vadd.f32 %v1534, %v1715
        %v1780 = vlaneseq
        %v1781 = vshrl.u32 %v1780, 7
        %v1782 = vsub.s32 3, %v1781
        %v1783 = vrot.slane %v1084, %v1782
        %v1784 = vmul.f32 %v1221, %v1783
        %v1785 = vmul.f32 %v1124, %v1783
        %v1786 = vmul.f32 %v1222, %v1783
        %v1787 = vmul.f32 %v1127, %v1783
        %v1788 = vmul.f32 %v1223, %v1783
        %v1789 = vmul.f32 %v1130, %v1783
        %v1790 = vmul.f32 %v1224, %v1783
        %v1791 = vmul.f32 %v1133, %v1783
        %v1792 = vmul.f32 %v1225, %v1783
        %v1793 = vmul.f32 %v1136, %v1783
        %v1794 = vmul.f32 %v1226, %v1783
        %v1795 = vmul.f32 %v1139, %v1783
        %v1796 = vmul.f32 %v1227, %v1783
        %v1797 = vmul.f32 %v1142, %v1783
        %v1798 = vmul.f32 %v1228, %v1783
        %v1799 = vmul.f32 %v1145, %v1783
        %v1800 = vmul.f32 %v1229, %v1783
        %v1801 = vmul.f32 %v1148, %v1783
        %v1802 = vmul.f32 %v1230, %v1783
        %v1803 = vmul.f32 %v1151, %v1783
        %v1804 = vmul.f32 %v1231, %v1783
        %v1805 = vmul.f32 %v1154, %v1783
        %v1806 = vmul.f32 %v1232, %v1783
        %v1807 = vmul.f32 %v1157, %v1783
        %v1808 = vmul.f32 %v1233, %v1783
        %v1809 = vmul.f32 %v1160, %v1783
        %v1810 = vmul.f32 %v1234, %v1783
        %v1811 = vmul.f32 %v1163, %v1783
        %v1812 = vmul.f32 %v1235, %v1783
        %v1813 = vmul.f32 %v1166, %v1783
        %v1814 = vmul.f32 %v1236, %v1783
        %v1815 = vmul.f32 %v1169, %v1783
        %v1816 = vadd.f32 %v1748, %v1784
        %v1817 = vadd.f32 %v1749, %v1785
        %v1818 = vadd.f32 %v1750, %v1786
        %v1819 = vadd.f32 %v1751, %v1787
        %v1820 = vadd.f32 %v1752, %v1788
        %v1821 = vadd.f32 %v1753, %v1789
        %v1822 = vadd.f32 %v1754, %v1790
        %v1823 = vadd.f32 %v1755, %v1791
        %v1824 = vadd.f32 %v1756, %v1792
        %v1825 = vadd.f32 %v1757, %v1793
        %v1826 = vadd.f32 %v1758, %v1794
        %v1827 = vadd.f32 %v1759, %v1795
        %v1828 = vadd.f32 %v1760, %v1796
        %v1829 = vadd.f32 %v1761, %v1797
        %v1830 = vadd.f32 %v1762, %v1798
        %v1831 = vadd.f32 %v1763, %v1799
        %v1832 = vadd.f32 %v1764, %v1800
        %v1833 = vadd.f32 %v1765, %v1801
        %v1834 = vadd.f32 %v1766, %v1802
        %v1835 = vadd.f32 %v1767, %v1803
        %v1836 = vadd.f32 %v1768, %v1804
        %v1837 = vadd.f32 %v1769, %v1805
        %v1838 = vadd.f32 %v1770, %v1806
        %v1839 = vadd.f32 %v1771, %v1807
        %v1840 = vadd.f32 %v1772, %v1808
        %v1841 = vadd.f32 %v1773, %v1809
        %v1842 = vadd.f32 %v1774, %v1810
        %v1843 = vadd.f32 %v1775, %v1811
        %v1844 = vadd.f32 %v1776, %v1812
        %v1845 = vadd.f32 %v1777, %v1813
        %v1846 = vadd.f32 %v1778, %v1814
        %v1847 = vadd.f32 %v1779, %v1815
        %v1848 = vlaneseq
        %v1849 = vshrl.u32 %v1848, 7
        %v1850 = vsub.s32 4, %v1849
        %v1851 = vrot.slane %v1084, %v1850
        %v1852 = vmul.f32 %v1221, %v1851
        %v1853 = vmul.f32 %v1124, %v1851
        %v1854 = vmul.f32 %v1238, %v1851
        %v1855 = vmul.f32 %v1222, %v1851
        %v1856 = vmul.f32 %v1127, %v1851
        %v1857 = vmul.f32 %v1239, %v1851
        %v1858 = vmul.f32 %v1223, %v1851
        %v1859 = vmul.f32 %v1130, %v1851
        %v1860 = vmul.f32 %v1240, %v1851
        %v1861 = vmul.f32 %v1224, %v1851
        %v1862 = vmul.f32 %v1133, %v1851
        %v1863 = vmul.f32 %v1241, %v1851
        %v1864 = vmul.f32 %v1225, %v1851
        %v1865 = vmul.f32 %v1136, %v1851
        %v1866 = vmul.f32 %v1242, %v1851
        %v1867 = vmul.f32 %v1226, %v1851
        %v1868 = vmul.f32 %v1139, %v1851
        %v1869 = vmul.f32 %v1243, %v1851
        %v1870 = vmul.f32 %v1227, %v1851
        %v1871 = vmul.f32 %v1142, %v1851
        %v1872 = vmul.f32 %v1244, %v1851
        %v1873 = vmul.f32 %v1228, %v1851
        %v1874 = vmul.f32 %v1145, %v1851
        %v1875 = vmul.f32 %v1245, %v1851
        %v1876 = vmul.f32 %v1229, %v1851
        %v1877 = vmul.f32 %v1148, %v1851
        %v1878 = vmul.f32 %v1246, %v1851
        %v1879 = vmul.f32 %v1230, %v1851
        %v1880 = vmul.f32 %v1151, %v1851
        %v1881 = vmul.f32 %v1247, %v1851
        %v1882 = vmul.f32 %v1231, %v1851
        %v1883 = vmul.f32 %v1154, %v1851
        %v1884 = vmul.f32 %v1248, %v1851
        %v1885 = vmul.f32 %v1232, %v1851
        %v1886 = vmul.f32 %v1157, %v1851
        %v1887 = vmul.f32 %v1249, %v1851
        %v1888 = vmul.f32 %v1233, %v1851
        %v1889 = vmul.f32 %v1160, %v1851
        %v1890 = vmul.f32 %v1250, %v1851
        %v1891 = vmul.f32 %v1234, %v1851
        %v1892 = vmul.f32 %v1163, %v1851
        %v1893 = vmul.f32 %v1251, %v1851
        %v1894 = vmul.f32 %v1235, %v1851
        %v1895 = vmul.f32 %v1166, %v1851
        %v1896 = vmul.f32 %v1252, %v1851
        %v1897 = vmul.f32 %v1236, %v1851
        %v1898 = vmul.f32 %v1169, %v1851
        %v1899 = vmul.f32 %v1253, %v1851
        %v1948 = vrot.slane %v1852, 1
        %v1949 = vrot.slane %v1853, 1
        %v1950 = vsel %vm1390, %v1948, %v1949
        %v1951 = vrot.slane %v1854, 1
        %v1952 = vsel %vm1390, %v1949, %v1951
        %v1953 = vrot.slane %v1855, 1
        %v1954 = vrot.slane %v1856, 1
        %v1955 = vsel %vm1390, %v1953, %v1954
        %v1956 = vrot.slane %v1857, 1
        %v1957 = vsel %vm1390, %v1954, %v1956
        %v1958 = vrot.slane %v1858, 1
        %v1959 = vrot.slane %v1859, 1
        %v1960 = vsel %vm1390, %v1958, %v1959
        %v1961 = vrot.slane %v1860, 1
        %v1962 = vsel %vm1390, %v1959, %v1961
        %v1963 = vrot.slane %v1861, 1
        %v1964 = vrot.slane %v1862, 1
        %v1965 = vsel %vm1390, %v1963, %v1964
        %v1966 = vrot.slane %v1863, 1
        %v1967 = vsel %vm1390, %v1964, %v1966
        %v1968 = vrot.slane %v1864, 1
        %v1969 = vrot.slane %v1865, 1
        %v1970 = vsel %vm1390, %v1968, %v1969
        %v1971 = vrot.slane %v1866, 1
        %v1972 = vsel %vm1390, %v1969, %v1971
        %v1973 = vrot.slane %v1867, 1
        %v1974 = vrot.slane %v1868, 1
        %v1975 = vsel %vm1390, %v1973, %v1974
        %v1976 = vrot.slane %v1869, 1
        %v1977 = vsel %vm1390, %v1974, %v1976
        %v1978 = vrot.slane %v1870, 1
        %v1979 = vrot.slane %v1871, 1
        %v1980 = vsel %vm1390, %v1978, %v1979
        %v1981 = vrot.slane %v1872, 1
        %v1982 = vsel %vm1390, %v1979, %v1981
        %v1983 = vrot.slane %v1873, 1
        %v1984 = vrot.slane %v1874, 1
        %v1985 = vsel %vm1390, %v1983, %v1984
        %v1986 = vrot.slane %v1875, 1
        %v1987 = vsel %vm1390, %v1984, %v1986
        %v1988 = vrot.slane %v1876, 1
        %v1989 = vrot.slane %v1877, 1
        %v1990 = vsel %vm1390, %v1988, %v1989
        %v1991 = vrot.slane %v1878, 1
        %v1992 = vsel %vm1390, %v1989, %v1991
        %v1993 = vrot.slane %v1879, 1
        %v1994 = vrot.slane %v1880, 1
        %v1995 = vsel %vm1390, %v1993, %v1994
        %v1996 = vrot.slane %v1881, 1
        %v1997 = vsel %vm1390, %v1994, %v1996
        %v1998 = vrot.slane %v1882, 1
        %v1999 = vrot.slane %v1883, 1
        %v2000 = vsel %vm1390, %v1998, %v1999
        %v2001 = vrot.slane %v1884, 1
        %v2002 = vsel %vm1390, %v1999, %v2001
        %v2003 = vrot.slane %v1885, 1
        %v2004 = vrot.slane %v1886, 1
        %v2005 = vsel %vm1390, %v2003, %v2004
        %v2006 = vrot.slane %v1887, 1
        %v2007 = vsel %vm1390, %v2004, %v2006
        %v2008 = vrot.slane %v1888, 1
        %v2009 = vrot.slane %v1889, 1
        %v2010 = vsel %vm1390, %v2008, %v2009
        %v2011 = vrot.slane %v1890, 1
        %v2012 = vsel %vm1390, %v2009, %v2011
        %v2013 = vrot.slane %v1891, 1
        %v2014 = vrot.slane %v1892, 1
        %v2015 = vsel %vm1390, %v2013, %v2014
        %v2016 = vrot.slane %v1893, 1
        %v2017 = vsel %vm1390, %v2014, %v2016
        %v2018 = vrot.slane %v1894, 1
        %v2019 = vrot.slane %v1895, 1
        %v2020 = vsel %vm1390, %v2018, %v2019
        %v2021 = vrot.slane %v1896, 1
        %v2022 = vsel %vm1390, %v2019, %v2021
        %v2023 = vrot.slane %v1897, 1
        %v2024 = vrot.slane %v1898, 1
        %v2025 = vsel %vm1390, %v2023, %v2024
        %v2026 = vrot.slane %v1899, 1
        %v2027 = vsel %vm1390, %v2024, %v2026
        %v2060 = vadd.f32 %v1816, %v1950
        %v2061 = vadd.f32 %v1817, %v1952
        %v2062 = vadd.f32 %v1818, %v1955
        %v2063 = vadd.f32 %v1819, %v1957
        %v2064 = vadd.f32 %v1820, %v1960
        %v2065 = vadd.f32 %v1821, %v1962
        %v2066 = vadd.f32 %v1822, %v1965
        %v2067 = vadd.f32 %v1823, %v1967
        %v2068 = vadd.f32 %v1824, %v1970
        %v2069 = vadd.f32 %v1825, %v1972
        %v2070 = vadd.f32 %v1826, %v1975
        %v2071 = vadd.f32 %v1827, %v1977
        %v2072 = vadd.f32 %v1828, %v1980
        %v2073 = vadd.f32 %v1829, %v1982
        %v2074 = vadd.f32 %v1830, %v1985
        %v2075 = vadd.f32 %v1831, %v1987
        %v2076 = vadd.f32 %v1832, %v1990
        %v2077 = vadd.f32 %v1833, %v1992
        %v2078 = vadd.f32 %v1834, %v1995
        %v2079 = vadd.f32 %v1835, %v1997
        %v2080 = vadd.f32 %v1836, %v2000
        %v2081 = vadd.f32 %v1837, %v2002
        %v2082 = vadd.f32 %v1838, %v2005
        %v2083 = vadd.f32 %v1839, %v2007
        %v2084 = vadd.f32 %v1840, %v2010
        %v2085 = vadd.f32 %v1841, %v2012
        %v2086 = vadd.f32 %v1842, %v2015
        %v2087 = vadd.f32 %v1843, %v2017
        %v2088 = vadd.f32 %v1844, %v2020
        %v2089 = vadd.f32 %v1845, %v2022
        %v2090 = vadd.f32 %v1846, %v2025
        %v2091 = vadd.f32 %v1847, %v2027
        %v2092 = vlaneseq
        %v2093 = vshrl.u32 %v2092, 7
        %v2094 = vsub.s32 5, %v2093
        %v2095 = vrot.slane %v1084, %v2094
        %v2096 = vmul.f32 %v1221, %v2095
        %v2097 = vmul.f32 %v1124, %v2095
        %v2098 = vmul.f32 %v1238, %v2095
        %v2099 = vmul.f32 %v1222, %v2095
        %v2100 = vmul.f32 %v1127, %v2095
        %v2101 = vmul.f32 %v1239, %v2095
        %v2102 = vmul.f32 %v1223, %v2095
        %v2103 = vmul.f32 %v1130, %v2095
        %v2104 = vmul.f32 %v1240, %v2095
        %v2105 = vmul.f32 %v1224, %v2095
        %v2106 = vmul.f32 %v1133, %v2095
        %v2107 = vmul.f32 %v1241, %v2095
        %v2108 = vmul.f32 %v1225, %v2095
        %v2109 = vmul.f32 %v1136, %v2095
        %v2110 = vmul.f32 %v1242, %v2095
        %v2111 = vmul.f32 %v1226, %v2095
        %v2112 = vmul.f32 %v1139, %v2095
        %v2113 = vmul.f32 %v1243, %v2095
        %v2114 = vmul.f32 %v1227, %v2095
        %v2115 = vmul.f32 %v1142, %v2095
        %v2116 = vmul.f32 %v1244, %v2095
        %v2117 = vmul.f32 %v1228, %v2095
        %v2118 = vmul.f32 %v1145, %v2095
        %v2119 = vmul.f32 %v1245, %v2095
        %v2120 = vmul.f32 %v1229, %v2095
        %v2121 = vmul.f32 %v1148, %v2095
        %v2122 = vmul.f32 %v1246, %v2095
        %v2123 = vmul.f32 %v1230, %v2095
        %v2124 = vmul.f32 %v1151, %v2095
        %v2125 = vmul.f32 %v1247, %v2095
        %v2126 = vmul.f32 %v1231, %v2095
        %v2127 = vmul.f32 %v1154, %v2095
        %v2128 = vmul.f32 %v1248, %v2095
        %v2129 = vmul.f32 %v1232, %v2095
        %v2130 = vmul.f32 %v1157, %v2095
        %v2131 = vmul.f32 %v1249, %v2095
        %v2132 = vmul.f32 %v1233, %v2095
        %v2133 = vmul.f32 %v1160, %v2095
        %v2134 = vmul.f32 %v1250, %v2095
        %v2135 = vmul.f32 %v1234, %v2095
        %v2136 = vmul.f32 %v1163, %v2095
        %v2137 = vmul.f32 %v1251, %v2095
        %v2138 = vmul.f32 %v1235, %v2095
        %v2139 = vmul.f32 %v1166, %v2095
        %v2140 = vmul.f32 %v1252, %v2095
        %v2141 = vmul.f32 %v1236, %v2095
        %v2142 = vmul.f32 %v1169, %v2095
        %v2143 = vmul.f32 %v1253, %v2095
        %v2192 = vrot.slane %v2096, 2
        %v2193 = vrot.slane %v2097, 2
        %v2194 = vsel %vm1635, %v2192, %v2193
        %v2195 = vrot.slane %v2098, 2
        %v2196 = vsel %vm1635, %v2193, %v2195
        %v2197 = vrot.slane %v2099, 2
        %v2198 = vrot.slane %v2100, 2
        %v2199 = vsel %vm1635, %v2197, %v2198
        %v2200 = vrot.slane %v2101, 2
        %v2201 = vsel %vm1635, %v2198, %v2200
        %v2202 = vrot.slane %v2102, 2
        %v2203 = vrot.slane %v2103, 2
        %v2204 = vsel %vm1635, %v2202, %v2203
        %v2205 = vrot.slane %v2104, 2
        %v2206 = vsel %vm1635, %v2203, %v2205
        %v2207 = vrot.slane %v2105, 2
        %v2208 = vrot.slane %v2106, 2
        %v2209 = vsel %vm1635, %v2207, %v2208
        %v2210 = vrot.slane %v2107, 2
        %v2211 = vsel %vm1635, %v2208, %v2210
        %v2212 = vrot.slane %v2108, 2
        %v2213 = vrot.slane %v2109, 2
        %v2214 = vsel %vm1635, %v2212, %v2213
        %v2215 = vrot.slane %v2110, 2
        %v2216 = vsel %vm1635, %v2213, %v2215
        %v2217 = vrot.slane %v2111, 2
        %v2218 = vrot.slane %v2112, 2
        %v2219 = vsel %vm1635, %v2217, %v2218
        %v2220 = vrot.slane %v2113, 2
        %v2221 = vsel %vm1635, %v2218, %v2220
        %v2222 = vrot.slane %v2114, 2
        %v2223 = vrot.slane %v2115, 2
        %v2224 = vsel %vm1635, %v2222, %v2223
        %v2225 = vrot.slane %v2116, 2
        %v2226 = vsel %vm1635, %v2223, %v2225
        %v2227 = vrot.slane %v2117, 2
        %v2228 = vrot.slane %v2118, 2
        %v2229 = vsel %vm1635, %v2227, %v2228
        %v2230 = vrot.slane %v2119, 2
        %v2231 = vsel %vm1635, %v2228, %v2230
        %v2232 = vrot.slane %v2120, 2
        %v2233 = vrot.slane %v2121, 2
        %v2234 = vsel %vm1635, %v2232, %v2233
        %v2235 = vrot.slane %v2122, 2
        %v2236 = vsel %vm1635, %v2233, %v2235
        %v2237 = vrot.slane %v2123, 2
        %v2238 = vrot.slane %v2124, 2
        %v2239 = vsel %vm1635, %v2237, %v2238
        %v2240 = vrot.slane %v2125, 2
        %v2241 = vsel %vm1635, %v2238, %v2240
        %v2242 = vrot.slane %v2126, 2
        %v2243 = vrot.slane %v2127, 2
        %v2244 = vsel %vm1635, %v2242, %v2243
        %v2245 = vrot.slane %v2128, 2
        %v2246 = vsel %vm1635, %v2243, %v2245
        %v2247 = vrot.slane %v2129, 2
        %v2248 = vrot.slane %v2130, 2
        %v2249 = vsel %vm1635, %v2247, %v2248
        %v2250 = vrot.slane %v2131, 2
        %v2251 = vsel %vm1635, %v2248, %v2250
        %v2252 = vrot.slane %v2132, 2
        %v2253 = vrot.slane %v2133, 2
        %v2254 = vsel %vm1635, %v2252, %v2253
        %v2255 = vrot.slane %v2134, 2
        %v2256 = vsel %vm1635, %v2253, %v2255
        %v2257 = vrot.slane %v2135, 2
        %v2258 = vrot.slane %v2136, 2
        %v2259 = vsel %vm1635, %v2257, %v2258
        %v2260 = vrot.slane %v2137, 2
        %v2261 = vsel %vm1635, %v2258, %v2260
        %v2262 = vrot.slane %v2138, 2
        %v2263 = vrot.slane %v2139, 2
        %v2264 = vsel %vm1635, %v2262, %v2263
        %v2265 = vrot.slane %v2140, 2
        %v2266 = vsel %vm1635, %v2263, %v2265
        %v2267 = vrot.slane %v2141, 2
        %v2268 = vrot.slane %v2142, 2
        %v2269 = vsel %vm1635, %v2267, %v2268
        %v2270 = vrot.slane %v2143, 2
        %v2271 = vsel %vm1635, %v2268, %v2270
        %v2304 = vadd.f32 %v2060, %v2194
        %v2305 = vadd.f32 %v2061, %v2196
        %v2306 = vadd.f32 %v2062, %v2199
        %v2307 = vadd.f32 %v2063, %v2201
        %v2308 = vadd.f32 %v2064, %v2204
        %v2309 = vadd.f32 %v2065, %v2206
        %v2310 = vadd.f32 %v2066, %v2209
        %v2311 = vadd.f32 %v2067, %v2211
        %v2312 = vadd.f32 %v2068, %v2214
        %v2313 = vadd.f32 %v2069, %v2216
        %v2314 = vadd.f32 %v2070, %v2219
        %v2315 = vadd.f32 %v2071, %v2221
        %v2316 = vadd.f32 %v2072, %v2224
        %v2317 = vadd.f32 %v2073, %v2226
        %v2318 = vadd.f32 %v2074, %v2229
        %v2319 = vadd.f32 %v2075, %v2231
        %v2320 = vadd.f32 %v2076, %v2234
        %v2321 = vadd.f32 %v2077, %v2236
        %v2322 = vadd.f32 %v2078, %v2239
        %v2323 = vadd.f32 %v2079, %v2241
        %v2324 = vadd.f32 %v2080, %v2244
        %v2325 = vadd.f32 %v2081, %v2246
        %v2326 = vadd.f32 %v2082, %v2249
        %v2327 = vadd.f32 %v2083, %v2251
        %v2328 = vadd.f32 %v2084, %v2254
        %v2329 = vadd.f32 %v2085, %v2256
        %v2330 = vadd.f32 %v2086, %v2259
        %v2331 = vadd.f32 %v2087, %v2261
        %v2332 = vadd.f32 %v2088, %v2264
        %v2333 = vadd.f32 %v2089, %v2266
        %v2334 = vadd.f32 %v2090, %v2269
        %v2335 = vadd.f32 %v2091, %v2271
        %v2336 = vlaneseq
        %v2337 = vshrl.u32 %v2336, 7
        %v2338 = vsub.s32 6, %v2337
        %v2339 = vrot.slane %v1084, %v2338
        %v2340 = vmul.f32 %v1222, %v2339
        %v2341 = vmul.f32 %v1127, %v2339
        %v2342 = vmul.f32 %v1223, %v2339
        %v2343 = vmul.f32 %v1130, %v2339
        %v2344 = vmul.f32 %v1224, %v2339
        %v2345 = vmul.f32 %v1133, %v2339
        %v2346 = vmul.f32 %v1225, %v2339
        %v2347 = vmul.f32 %v1136, %v2339
        %v2348 = vmul.f32 %v1226, %v2339
        %v2349 = vmul.f32 %v1139, %v2339
        %v2350 = vmul.f32 %v1227, %v2339
        %v2351 = vmul.f32 %v1142, %v2339
        %v2352 = vmul.f32 %v1228, %v2339
        %v2353 = vmul.f32 %v1145, %v2339
        %v2354 = vmul.f32 %v1229, %v2339
        %v2355 = vmul.f32 %v1148, %v2339
        %v2356 = vmul.f32 %v1230, %v2339
        %v2357 = vmul.f32 %v1151, %v2339
        %v2358 = vmul.f32 %v1231, %v2339
        %v2359 = vmul.f32 %v1154, %v2339
        %v2360 = vmul.f32 %v1232, %v2339
        %v2361 = vmul.f32 %v1157, %v2339
        %v2362 = vmul.f32 %v1233, %v2339
        %v2363 = vmul.f32 %v1160, %v2339
        %v2364 = vmul.f32 %v1234, %v2339
        %v2365 = vmul.f32 %v1163, %v2339
        %v2366 = vmul.f32 %v1235, %v2339
        %v2367 = vmul.f32 %v1166, %v2339
        %v2368 = vmul.f32 %v1236, %v2339
        %v2369 = vmul.f32 %v1169, %v2339
        %v2370 = vmul.f32 %v1220, %v2339
        %v2371 = vmul.f32 %v1121, %v2339
        %v2372 = vadd.f32 %v2304, %v2340
        %v2373 = vadd.f32 %v2305, %v2341
        %v2374 = vadd.f32 %v2306, %v2342
        %v2375 = vadd.f32 %v2307, %v2343
        %v2376 = vadd.f32 %v2308, %v2344
        %v2377 = vadd.f32 %v2309, %v2345
        %v2378 = vadd.f32 %v2310, %v2346
        %v2379 = vadd.f32 %v2311, %v2347
        %v2380 = vadd.f32 %v2312, %v2348
        %v2381 = vadd.f32 %v2313, %v2349
        %v2382 = vadd.f32 %v2314, %v2350
        %v2383 = vadd.f32 %v2315, %v2351
        %v2384 = vadd.f32 %v2316, %v2352
        %v2385 = vadd.f32 %v2317, %v2353
        %v2386 = vadd.f32 %v2318, %v2354
        %v2387 = vadd.f32 %v2319, %v2355
        %v2388 = vadd.f32 %v2320, %v2356
        %v2389 = vadd.f32 %v2321, %v2357
        %v2390 = vadd.f32 %v2322, %v2358
        %v2391 = vadd.f32 %v2323, %v2359
        %v2392 = vadd.f32 %v2324, %v2360
        %v2393 = vadd.f32 %v2325, %v2361
        %v2394 = vadd.f32 %v2326, %v2362
        %v2395 = vadd.f32 %v2327, %v2363
        %v2396 = vadd.f32 %v2328, %v2364
        %v2397 = vadd.f32 %v2329, %v2365
        %v2398 = vadd.f32 %v2330, %v2366
        %v2399 = vadd.f32 %v2331, %v2367
        %v2400 = vadd.f32 %v2332, %v2368
        %v2401 = vadd.f32 %v2333, %v2369
        %v2402 = vadd.f32 %v2334, %v2370
        %v2403 = vadd.f32 %v2335, %v2371
        %v2404 = vlaneseq
        %v2405 = vshrl.u32 %v2404, 7
        %v2406 = vsub.s32 7, %v2405
        %v2407 = vrot.slane %v1084, %v2406
        %v2408 = vmul.f32 %v1222, %v2407
        %v2409 = vmul.f32 %v1127, %v2407
        %v2410 = vmul.f32 %v1239, %v2407
        %v2411 = vmul.f32 %v1223, %v2407
        %v2412 = vmul.f32 %v1130, %v2407
        %v2413 = vmul.f32 %v1240, %v2407
        %v2414 = vmul.f32 %v1224, %v2407
        %v2415 = vmul.f32 %v1133, %v2407
        %v2416 = vmul.f32 %v1241, %v2407
        %v2417 = vmul.f32 %v1225, %v2407
        %v2418 = vmul.f32 %v1136, %v2407
        %v2419 = vmul.f32 %v1242, %v2407
        %v2420 = vmul.f32 %v1226, %v2407
        %v2421 = vmul.f32 %v1139, %v2407
        %v2422 = vmul.f32 %v1243, %v2407
        %v2423 = vmul.f32 %v1227, %v2407
        %v2424 = vmul.f32 %v1142, %v2407
        %v2425 = vmul.f32 %v1244, %v2407
        %v2426 = vmul.f32 %v1228, %v2407
        %v2427 = vmul.f32 %v1145, %v2407
        %v2428 = vmul.f32 %v1245, %v2407
        %v2429 = vmul.f32 %v1229, %v2407
        %v2430 = vmul.f32 %v1148, %v2407
        %v2431 = vmul.f32 %v1246, %v2407
        %v2432 = vmul.f32 %v1230, %v2407
        %v2433 = vmul.f32 %v1151, %v2407
        %v2434 = vmul.f32 %v1247, %v2407
        %v2435 = vmul.f32 %v1231, %v2407
        %v2436 = vmul.f32 %v1154, %v2407
        %v2437 = vmul.f32 %v1248, %v2407
        %v2438 = vmul.f32 %v1232, %v2407
        %v2439 = vmul.f32 %v1157, %v2407
        %v2440 = vmul.f32 %v1249, %v2407
        %v2441 = vmul.f32 %v1233, %v2407
        %v2442 = vmul.f32 %v1160, %v2407
        %v2443 = vmul.f32 %v1250, %v2407
        %v2444 = vmul.f32 %v1234, %v2407
        %v2445 = vmul.f32 %v1163, %v2407
        %v2446 = vmul.f32 %v1251, %v2407
        %v2447 = vmul.f32 %v1235, %v2407
        %v2448 = vmul.f32 %v1166, %v2407
        %v2449 = vmul.f32 %v1252, %v2407
        %v2450 = vmul.f32 %v1236, %v2407
        %v2451 = vmul.f32 %v1169, %v2407
        %v2452 = vmul.f32 %v1253, %v2407
        %v2453 = vmul.f32 %v1220, %v2407
        %v2454 = vmul.f32 %v1121, %v2407
        %v2455 = vmul.f32 %v1237, %v2407
        %v2504 = vrot.slane %v2408, 1
        %v2505 = vrot.slane %v2409, 1
        %v2506 = vsel %vm1390, %v2504, %v2505
        %v2507 = vrot.slane %v2410, 1
        %v2508 = vsel %vm1390, %v2505, %v2507
        %v2509 = vrot.slane %v2411, 1
        %v2510 = vrot.slane %v2412, 1
        %v2511 = vsel %vm1390, %v2509, %v2510
        %v2512 = vrot.slane %v2413, 1
        %v2513 = vsel %vm1390, %v2510, %v2512
        %v2514 = vrot.slane %v2414, 1
        %v2515 = vrot.slane %v2415, 1
        %v2516 = vsel %vm1390, %v2514, %v2515
        %v2517 = vrot.slane %v2416, 1
        %v2518 = vsel %vm1390, %v2515, %v2517
        %v2519 = vrot.slane %v2417, 1
        %v2520 = vrot.slane %v2418, 1
        %v2521 = vsel %vm1390, %v2519, %v2520
        %v2522 = vrot.slane %v2419, 1
        %v2523 = vsel %vm1390, %v2520, %v2522
        %v2524 = vrot.slane %v2420, 1
        %v2525 = vrot.slane %v2421, 1
        %v2526 = vsel %vm1390, %v2524, %v2525
        %v2527 = vrot.slane %v2422, 1
        %v2528 = vsel %vm1390, %v2525, %v2527
        %v2529 = vrot.slane %v2423, 1
        %v2530 = vrot.slane %v2424, 1
        %v2531 = vsel %vm1390, %v2529, %v2530
        %v2532 = vrot.slane %v2425, 1
        %v2533 = vsel %vm1390, %v2530, %v2532
        %v2534 = vrot.slane %v2426, 1
        %v2535 = vrot.slane %v2427, 1
        %v2536 = vsel %vm1390, %v2534, %v2535
        %v2537 = vrot.slane %v2428, 1
        %v2538 = vsel %vm1390, %v2535, %v2537
        %v2539 = vrot.slane %v2429, 1
        %v2540 = vrot.slane %v2430, 1
        %v2541 = vsel %vm1390, %v2539, %v2540
        %v2542 = vrot.slane %v2431, 1
        %v2543 = vsel %vm1390, %v2540, %v2542
        %v2544 = vrot.slane %v2432, 1
        %v2545 = vrot.slane %v2433, 1
        %v2546 = vsel %vm1390, %v2544, %v2545
        %v2547 = vrot.slane %v2434, 1
        %v2548 = vsel %vm1390, %v2545, %v2547
        %v2549 = vrot.slane %v2435, 1
        %v2550 = vrot.slane %v2436, 1
        %v2551 = vsel %vm1390, %v2549, %v2550
        %v2552 = vrot.slane %v2437, 1
        %v2553 = vsel %vm1390, %v2550, %v2552
        %v2554 = vrot.slane %v2438, 1
        %v2555 = vrot.slane %v2439, 1
        %v2556 = vsel %vm1390, %v2554, %v2555
        %v2557 = vrot.slane %v2440, 1
        %v2558 = vsel %vm1390, %v2555, %v2557
        %v2559 = vrot.slane %v2441, 1
        %v2560 = vrot.slane %v2442, 1
        %v2561 = vsel %vm1390, %v2559, %v2560
        %v2562 = vrot.slane %v2443, 1
        %v2563 = vsel %vm1390, %v2560, %v2562
        %v2564 = vrot.slane %v2444, 1
        %v2565 = vrot.slane %v2445, 1
        %v2566 = vsel %vm1390, %v2564, %v2565
        %v2567 = vrot.slane %v2446, 1
        %v2568 = vsel %vm1390, %v2565, %v2567
        %v2569 = vrot.slane %v2447, 1
        %v2570 = vrot.slane %v2448, 1
        %v2571 = vsel %vm1390, %v2569, %v2570
        %v2572 = vrot.slane %v2449, 1
        %v2573 = vsel %vm1390, %v2570, %v2572
        %v2574 = vrot.slane %v2450, 1
        %v2575 = vrot.slane %v2451, 1
        %v2576 = vsel %vm1390, %v2574, %v2575
        %v2577 = vrot.slane %v2452, 1
        %v2578 = vsel %vm1390, %v2575, %v2577
        %v2579 = vrot.slane %v2453, 1
        %v2580 = vrot.slane %v2454, 1
        %v2581 = vsel %vm1390, %v2579, %v2580
        %v2582 = vrot.slane %v2455, 1
        %v2583 = vsel %vm1390, %v2580, %v2582
        %v2616 = vadd.f32 %v2372, %v2506
        %v2617 = vadd.f32 %v2373, %v2508
        %v2618 = vadd.f32 %v2374, %v2511
        %v2619 = vadd.f32 %v2375, %v2513
        %v2620 = vadd.f32 %v2376, %v2516
        %v2621 = vadd.f32 %v2377, %v2518
        %v2622 = vadd.f32 %v2378, %v2521
        %v2623 = vadd.f32 %v2379, %v2523
        %v2624 = vadd.f32 %v2380, %v2526
        %v2625 = vadd.f32 %v2381, %v2528
        %v2626 = vadd.f32 %v2382, %v2531
        %v2627 = vadd.f32 %v2383, %v2533
        %v2628 = vadd.f32 %v2384, %v2536
        %v2629 = vadd.f32 %v2385, %v2538
        %v2630 = vadd.f32 %v2386, %v2541
        %v2631 = vadd.f32 %v2387, %v2543
        %v2632 = vadd.f32 %v2388, %v2546
        %v2633 = vadd.f32 %v2389, %v2548
        %v2634 = vadd.f32 %v2390, %v2551
        %v2635 = vadd.f32 %v2391, %v2553
        %v2636 = vadd.f32 %v2392, %v2556
        %v2637 = vadd.f32 %v2393, %v2558
        %v2638 = vadd.f32 %v2394, %v2561
        %v2639 = vadd.f32 %v2395, %v2563
        %v2640 = vadd.f32 %v2396, %v2566
        %v2641 = vadd.f32 %v2397, %v2568
        %v2642 = vadd.f32 %v2398, %v2571
        %v2643 = vadd.f32 %v2399, %v2573
        %v2644 = vadd.f32 %v2400, %v2576
        %v2645 = vadd.f32 %v2401, %v2578
        %v2646 = vadd.f32 %v2402, %v2581
        %v2647 = vadd.f32 %v2403, %v2583
        %v2648 = vlaneseq
        %v2649 = vshrl.u32 %v2648, 7
        %v2650 = vsub.s32 0, %v2649
        %v2651 = vrot.slane %v1085, %v2650
        %v2652 = vmul.f32 %v1222, %v2651
        %v2653 = vmul.f32 %v1127, %v2651
        %v2654 = vmul.f32 %v1239, %v2651
        %v2655 = vmul.f32 %v1223, %v2651
        %v2656 = vmul.f32 %v1130, %v2651
        %v2657 = vmul.f32 %v1240, %v2651
        %v2658 = vmul.f32 %v1224, %v2651
        %v2659 = vmul.f32 %v1133, %v2651
        %v2660 = vmul.f32 %v1241, %v2651
        %v2661 = vmul.f32 %v1225, %v2651
        %v2662 = vmul.f32 %v1136, %v2651
        %v2663 = vmul.f32 %v1242, %v2651
        %v2664 = vmul.f32 %v1226, %v2651
        %v2665 = vmul.f32 %v1139, %v2651
        %v2666 = vmul.f32 %v1243, %v2651
        %v2667 = vmul.f32 %v1227, %v2651
        %v2668 = vmul.f32 %v1142, %v2651
        %v2669 = vmul.f32 %v1244, %v2651
        %v2670 = vmul.f32 %v1228, %v2651
        %v2671 = vmul.f32 %v1145, %v2651
        %v2672 = vmul.f32 %v1245, %v2651
        %v2673 = vmul.f32 %v1229, %v2651
        %v2674 = vmul.f32 %v1148, %v2651
        %v2675 = vmul.f32 %v1246, %v2651
        %v2676 = vmul.f32 %v1230, %v2651
        %v2677 = vmul.f32 %v1151, %v2651
        %v2678 = vmul.f32 %v1247, %v2651
        %v2679 = vmul.f32 %v1231, %v2651
        %v2680 = vmul.f32 %v1154, %v2651
        %v2681 = vmul.f32 %v1248, %v2651
        %v2682 = vmul.f32 %v1232, %v2651
        %v2683 = vmul.f32 %v1157, %v2651
        %v2684 = vmul.f32 %v1249, %v2651
        %v2685 = vmul.f32 %v1233, %v2651
        %v2686 = vmul.f32 %v1160, %v2651
        %v2687 = vmul.f32 %v1250, %v2651
        %v2688 = vmul.f32 %v1234, %v2651
        %v2689 = vmul.f32 %v1163, %v2651
        %v2690 = vmul.f32 %v1251, %v2651
        %v2691 = vmul.f32 %v1235, %v2651
        %v2692 = vmul.f32 %v1166, %v2651
        %v2693 = vmul.f32 %v1252, %v2651
        %v2694 = vmul.f32 %v1236, %v2651
        %v2695 = vmul.f32 %v1169, %v2651
        %v2696 = vmul.f32 %v1253, %v2651
        %v2697 = vmul.f32 %v1220, %v2651
        %v2698 = vmul.f32 %v1121, %v2651
        %v2699 = vmul.f32 %v1237, %v2651
        %v2748 = vrot.slane %v2652, 2
        %v2749 = vrot.slane %v2653, 2
        %v2750 = vsel %vm1635, %v2748, %v2749
        %v2751 = vrot.slane %v2654, 2
        %v2752 = vsel %vm1635, %v2749, %v2751
        %v2753 = vrot.slane %v2655, 2
        %v2754 = vrot.slane %v2656, 2
        %v2755 = vsel %vm1635, %v2753, %v2754
        %v2756 = vrot.slane %v2657, 2
        %v2757 = vsel %vm1635, %v2754, %v2756
        %v2758 = vrot.slane %v2658, 2
        %v2759 = vrot.slane %v2659, 2
        %v2760 = vsel %vm1635, %v2758, %v2759
        %v2761 = vrot.slane %v2660, 2
        %v2762 = vsel %vm1635, %v2759, %v2761
        %v2763 = vrot.slane %v2661, 2
        %v2764 = vrot.slane %v2662, 2
        %v2765 = vsel %vm1635, %v2763, %v2764
        %v2766 = vrot.slane %v2663, 2
        %v2767 = vsel %vm1635, %v2764, %v2766
        %v2768 = vrot.slane %v2664, 2
        %v2769 = vrot.slane %v2665, 2
        %v2770 = vsel %vm1635, %v2768, %v2769
        %v2771 = vrot.slane %v2666, 2
        %v2772 = vsel %vm1635, %v2769, %v2771
        %v2773 = vrot.slane %v2667, 2
        %v2774 = vrot.slane %v2668, 2
        %v2775 = vsel %vm1635, %v2773, %v2774
        %v2776 = vrot.slane %v2669, 2
        %v2777 = vsel %vm1635, %v2774, %v2776
        %v2778 = vrot.slane %v2670, 2
        %v2779 = vrot.slane %v2671, 2
        %v2780 = vsel %vm1635, %v2778, %v2779
        %v2781 = vrot.slane %v2672, 2
        %v2782 = vsel %vm1635, %v2779, %v2781
        %v2783 = vrot.slane %v2673, 2
        %v2784 = vrot.slane %v2674, 2
        %v2785 = vsel %vm1635, %v2783, %v2784
        %v2786 = vrot.slane %v2675, 2
        %v2787 = vsel %vm1635, %v2784, %v2786
        %v2788 = vrot.slane %v2676, 2
        %v2789 = vrot.slane %v2677, 2
        %v2790 = vsel %vm1635, %v2788, %v2789
        %v2791 = vrot.slane %v2678, 2
        %v2792 = vsel %vm1635, %v2789, %v2791
        %v2793 = vrot.slane %v2679, 2
        %v2794 = vrot.slane %v2680, 2
        %v2795 = vsel %vm1635, %v2793, %v2794
        %v2796 = vrot.slane %v2681, 2
        %v2797 = vsel %vm1635, %v2794, %v2796
        %v2798 = vrot.slane %v2682, 2
        %v2799 = vrot.slane %v2683, 2
        %v2800 = vsel %vm1635, %v2798, %v2799
        %v2801 = vrot.slane %v2684, 2
        %v2802 = vsel %vm1635, %v2799, %v2801
        %v2803 = vrot.slane %v2685, 2
        %v2804 = vrot.slane %v2686, 2
        %v2805 = vsel %vm1635, %v2803, %v2804
        %v2806 = vrot.slane %v2687, 2
        %v2807 = vsel %vm1635, %v2804, %v2806
        %v2808 = vrot.slane %v2688, 2
        %v2809 = vrot.slane %v2689, 2
        %v2810 = vsel %vm1635, %v2808, %v2809
        %v2811 = vrot.slane %v2690, 2
        %v2812 = vsel %vm1635, %v2809, %v2811
        %v2813 = vrot.slane %v2691, 2
        %v2814 = vrot.slane %v2692, 2
        %v2815 = vsel %vm1635, %v2813, %v2814
        %v2816 = vrot.slane %v2693, 2
        %v2817 = vsel %vm1635, %v2814, %v2816
        %v2818 = vrot.slane %v2694, 2
        %v2819 = vrot.slane %v2695, 2
        %v2820 = vsel %vm1635, %v2818, %v2819
        %v2821 = vrot.slane %v2696, 2
        %v2822 = vsel %vm1635, %v2819, %v2821
        %v2823 = vrot.slane %v2697, 2
        %v2824 = vrot.slane %v2698, 2
        %v2825 = vsel %vm1635, %v2823, %v2824
        %v2826 = vrot.slane %v2699, 2
        %v2827 = vsel %vm1635, %v2824, %v2826
        %v2860 = vadd.f32 %v2616, %v2750
        %v2861 = vadd.f32 %v2617, %v2752
        %v2862 = vadd.f32 %v2618, %v2755
        %v2863 = vadd.f32 %v2619, %v2757
        %v2864 = vadd.f32 %v2620, %v2760
        %v2865 = vadd.f32 %v2621, %v2762
        %v2866 = vadd.f32 %v2622, %v2765
        %v2867 = vadd.f32 %v2623, %v2767
        %v2868 = vadd.f32 %v2624, %v2770
        %v2869 = vadd.f32 %v2625, %v2772
        %v2870 = vadd.f32 %v2626, %v2775
        %v2871 = vadd.f32 %v2627, %v2777
        %v2872 = vadd.f32 %v2628, %v2780
        %v2873 = vadd.f32 %v2629, %v2782
        %v2874 = vadd.f32 %v2630, %v2785
        %v2875 = vadd.f32 %v2631, %v2787
        %v2876 = vadd.f32 %v2632, %v2790
        %v2877 = vadd.f32 %v2633, %v2792
        %v2878 = vadd.f32 %v2634, %v2795
        %v2879 = vadd.f32 %v2635, %v2797
        %v2880 = vadd.f32 %v2636, %v2800
        %v2881 = vadd.f32 %v2637, %v2802
        %v2882 = vadd.f32 %v2638, %v2805
        %v2883 = vadd.f32 %v2639, %v2807
        %v2884 = vadd.f32 %v2640, %v2810
        %v2885 = vadd.f32 %v2641, %v2812
        %v2886 = vadd.f32 %v2642, %v2815
        %v2887 = vadd.f32 %v2643, %v2817
        %v2888 = vadd.f32 %v2644, %v2820
        %v2889 = vadd.f32 %v2645, %v2822
        %v2890 = vadd.f32 %v2646, %v2825
        %v2891 = vadd.f32 %v2647, %v2827
        %v2892 = vmul.f32 %v2860, 0.5
        %v2893 = vmul.f32 %v2861, 0.5
        %v2894 = vmul.f32 %v2862, 0.5
        %v2895 = vmul.f32 %v2863, 0.5
        %v2896 = vmul.f32 %v2864, 0.5
        %v2897 = vmul.f32 %v2865, 0.5
        %v2898 = vmul.f32 %v2866, 0.5
        %v2899 = vmul.f32 %v2867, 0.5
        %v2900 = vmul.f32 %v2868, 0.5
        %v2901 = vmul.f32 %v2869, 0.5
        %v2902 = vmul.f32 %v2870, 0.5
        %v2903 = vmul.f32 %v2871, 0.5
        %v2904 = vmul.f32 %v2872, 0.5
        %v2905 = vmul.f32 %v2873, 0.5
        %v2906 = vmul.f32 %v2874, 0.5
        %v2907 = vmul.f32 %v2875, 0.5
        %v2908 = vmul.f32 %v2876, 0.5
        %v2909 = vmul.f32 %v2877, 0.5
        %v2910 = vmul.f32 %v2878, 0.5
        %v2911 = vmul.f32 %v2879, 0.5
        %v2912 = vmul.f32 %v2880, 0.5
        %v2913 = vmul.f32 %v2881, 0.5
        %v2914 = vmul.f32 %v2882, 0.5
        %v2915 = vmul.f32 %v2883, 0.5
        %v2916 = vmul.f32 %v2884, 0.5
        %v2917 = vmul.f32 %v2885, 0.5
        %v2918 = vmul.f32 %v2886, 0.5
        %v2919 = vmul.f32 %v2887, 0.5
        %v2920 = vmul.f32 %v2888, 0.5
        %v2921 = vmul.f32 %v2889, 0.5
        %v2922 = vmul.f32 %v2890, 0.5
        %v2923 = vmul.f32 %v2891, 0.5
        %v2924 = vmul.f32 %v2860, 0.044715
        %v2925 = vmul.f32 %v2861, 0.044715
        %v2926 = vmul.f32 %v2862, 0.044715
        %v2927 = vmul.f32 %v2863, 0.044715
        %v2928 = vmul.f32 %v2864, 0.044715
        %v2929 = vmul.f32 %v2865, 0.044715
        %v2930 = vmul.f32 %v2866, 0.044715
        %v2931 = vmul.f32 %v2867, 0.044715
        %v2932 = vmul.f32 %v2868, 0.044715
        %v2933 = vmul.f32 %v2869, 0.044715
        %v2934 = vmul.f32 %v2870, 0.044715
        %v2935 = vmul.f32 %v2871, 0.044715
        %v2936 = vmul.f32 %v2872, 0.044715
        %v2937 = vmul.f32 %v2873, 0.044715
        %v2938 = vmul.f32 %v2874, 0.044715
        %v2939 = vmul.f32 %v2875, 0.044715
        %v2940 = vmul.f32 %v2876, 0.044715
        %v2941 = vmul.f32 %v2877, 0.044715
        %v2942 = vmul.f32 %v2878, 0.044715
        %v2943 = vmul.f32 %v2879, 0.044715
        %v2944 = vmul.f32 %v2880, 0.044715
        %v2945 = vmul.f32 %v2881, 0.044715
        %v2946 = vmul.f32 %v2882, 0.044715
        %v2947 = vmul.f32 %v2883, 0.044715
        %v2948 = vmul.f32 %v2884, 0.044715
        %v2949 = vmul.f32 %v2885, 0.044715
        %v2950 = vmul.f32 %v2886, 0.044715
        %v2951 = vmul.f32 %v2887, 0.044715
        %v2952 = vmul.f32 %v2888, 0.044715
        %v2953 = vmul.f32 %v2889, 0.044715
        %v2954 = vmul.f32 %v2890, 0.044715
        %v2955 = vmul.f32 %v2891, 0.044715
        %v2956 = vmul.f32 %v2924, %v2860
        %v2957 = vmul.f32 %v2925, %v2861
        %v2958 = vmul.f32 %v2926, %v2862
        %v2959 = vmul.f32 %v2927, %v2863
        %v2960 = vmul.f32 %v2928, %v2864
        %v2961 = vmul.f32 %v2929, %v2865
        %v2962 = vmul.f32 %v2930, %v2866
        %v2963 = vmul.f32 %v2931, %v2867
        %v2964 = vmul.f32 %v2932, %v2868
        %v2965 = vmul.f32 %v2933, %v2869
        %v2966 = vmul.f32 %v2934, %v2870
        %v2967 = vmul.f32 %v2935, %v2871
        %v2968 = vmul.f32 %v2936, %v2872
        %v2969 = vmul.f32 %v2937, %v2873
        %v2970 = vmul.f32 %v2938, %v2874
        %v2971 = vmul.f32 %v2939, %v2875
        %v2972 = vmul.f32 %v2940, %v2876
        %v2973 = vmul.f32 %v2941, %v2877
        %v2974 = vmul.f32 %v2942, %v2878
        %v2975 = vmul.f32 %v2943, %v2879
        %v2976 = vmul.f32 %v2944, %v2880
        %v2977 = vmul.f32 %v2945, %v2881
        %v2978 = vmul.f32 %v2946, %v2882
        %v2979 = vmul.f32 %v2947, %v2883
        %v2980 = vmul.f32 %v2948, %v2884
        %v2981 = vmul.f32 %v2949, %v2885
        %v2982 = vmul.f32 %v2950, %v2886
        %v2983 = vmul.f32 %v2951, %v2887
        %v2984 = vmul.f32 %v2952, %v2888
        %v2985 = vmul.f32 %v2953, %v2889
        %v2986 = vmul.f32 %v2954, %v2890
        %v2987 = vmul.f32 %v2955, %v2891
        %v2988 = vmul.f32 %v2956, %v2860
        %v2989 = vmul.f32 %v2957, %v2861
        %v2990 = vmul.f32 %v2958, %v2862
        %v2991 = vmul.f32 %v2959, %v2863
        %v2992 = vmul.f32 %v2960, %v2864
        %v2993 = vmul.f32 %v2961, %v2865
        %v2994 = vmul.f32 %v2962, %v2866
        %v2995 = vmul.f32 %v2963, %v2867
        %v2996 = vmul.f32 %v2964, %v2868
        %v2997 = vmul.f32 %v2965, %v2869
        %v2998 = vmul.f32 %v2966, %v2870
        %v2999 = vmul.f32 %v2967, %v2871
        %v3000 = vmul.f32 %v2968, %v2872
        %v3001 = vmul.f32 %v2969, %v2873
        %v3002 = vmul.f32 %v2970, %v2874
        %v3003 = vmul.f32 %v2971, %v2875
        %v3004 = vmul.f32 %v2972, %v2876
        %v3005 = vmul.f32 %v2973, %v2877
        %v3006 = vmul.f32 %v2974, %v2878
        %v3007 = vmul.f32 %v2975, %v2879
        %v3008 = vmul.f32 %v2976, %v2880
        %v3009 = vmul.f32 %v2977, %v2881
        %v3010 = vmul.f32 %v2978, %v2882
        %v3011 = vmul.f32 %v2979, %v2883
        %v3012 = vmul.f32 %v2980, %v2884
        %v3013 = vmul.f32 %v2981, %v2885
        %v3014 = vmul.f32 %v2982, %v2886
        %v3015 = vmul.f32 %v2983, %v2887
        %v3016 = vmul.f32 %v2984, %v2888
        %v3017 = vmul.f32 %v2985, %v2889
        %v3018 = vmul.f32 %v2986, %v2890
        %v3019 = vmul.f32 %v2987, %v2891
        %v3020 = vadd.f32 %v2860, %v2988
        %v3021 = vadd.f32 %v2861, %v2989
        %v3022 = vadd.f32 %v2862, %v2990
        %v3023 = vadd.f32 %v2863, %v2991
        %v3024 = vadd.f32 %v2864, %v2992
        %v3025 = vadd.f32 %v2865, %v2993
        %v3026 = vadd.f32 %v2866, %v2994
        %v3027 = vadd.f32 %v2867, %v2995
        %v3028 = vadd.f32 %v2868, %v2996
        %v3029 = vadd.f32 %v2869, %v2997
        %v3030 = vadd.f32 %v2870, %v2998
        %v3031 = vadd.f32 %v2871, %v2999
        %v3032 = vadd.f32 %v2872, %v3000
        %v3033 = vadd.f32 %v2873, %v3001
        %v3034 = vadd.f32 %v2874, %v3002
        %v3035 = vadd.f32 %v2875, %v3003
        %v3036 = vadd.f32 %v2876, %v3004
        %v3037 = vadd.f32 %v2877, %v3005
        %v3038 = vadd.f32 %v2878, %v3006
        %v3039 = vadd.f32 %v2879, %v3007
        %v3040 = vadd.f32 %v2880, %v3008
        %v3041 = vadd.f32 %v2881, %v3009
        %v3042 = vadd.f32 %v2882, %v3010
        %v3043 = vadd.f32 %v2883, %v3011
        %v3044 = vadd.f32 %v2884, %v3012
        %v3045 = vadd.f32 %v2885, %v3013
        %v3046 = vadd.f32 %v2886, %v3014
        %v3047 = vadd.f32 %v2887, %v3015
        %v3048 = vadd.f32 %v2888, %v3016
        %v3049 = vadd.f32 %v2889, %v3017
        %v3050 = vadd.f32 %v2890, %v3018
        %v3051 = vadd.f32 %v2891, %v3019
        %v3052 = vmul.f32 %v3020, 0.7978846
        %v3053 = vmul.f32 %v3021, 0.7978846
        %v3054 = vmul.f32 %v3022, 0.7978846
        %v3055 = vmul.f32 %v3023, 0.7978846
        %v3056 = vmul.f32 %v3024, 0.7978846
        %v3057 = vmul.f32 %v3025, 0.7978846
        %v3058 = vmul.f32 %v3026, 0.7978846
        %v3059 = vmul.f32 %v3027, 0.7978846
        %v3060 = vmul.f32 %v3028, 0.7978846
        %v3061 = vmul.f32 %v3029, 0.7978846
        %v3062 = vmul.f32 %v3030, 0.7978846
        %v3063 = vmul.f32 %v3031, 0.7978846
        %v3064 = vmul.f32 %v3032, 0.7978846
        %v3065 = vmul.f32 %v3033, 0.7978846
        %v3066 = vmul.f32 %v3034, 0.7978846
        %v3067 = vmul.f32 %v3035, 0.7978846
        %v3068 = vmul.f32 %v3036, 0.7978846
        %v3069 = vmul.f32 %v3037, 0.7978846
        %v3070 = vmul.f32 %v3038, 0.7978846
        %v3071 = vmul.f32 %v3039, 0.7978846
        %v3072 = vmul.f32 %v3040, 0.7978846
        %v3073 = vmul.f32 %v3041, 0.7978846
        %v3074 = vmul.f32 %v3042, 0.7978846
        %v3075 = vmul.f32 %v3043, 0.7978846
        %v3076 = vmul.f32 %v3044, 0.7978846
        %v3077 = vmul.f32 %v3045, 0.7978846
        %v3078 = vmul.f32 %v3046, 0.7978846
        %v3079 = vmul.f32 %v3047, 0.7978846
        %v3080 = vmul.f32 %v3048, 0.7978846
        %v3081 = vmul.f32 %v3049, 0.7978846
        %v3082 = vmul.f32 %v3050, 0.7978846
        %v3083 = vmul.f32 %v3051, 0.7978846
        %v3084 = vtanh.pop %v3052
        %v3085 = vtanh.pop %v3053
        %v3086 = vtanh.pop %v3054
        %v3087 = vtanh.pop %v3055
        %v3088 = vtanh.pop %v3056
        %v3089 = vtanh.pop %v3057
        %v3090 = vtanh.pop %v3058
        %v3091 = vtanh.pop %v3059
        %v3092 = vtanh.pop %v3060
        %v3093 = vtanh.pop %v3061
        %v3094 = vtanh.pop %v3062
        %v3095 = vtanh.pop %v3063
        %v3096 = vtanh.pop %v3064
        %v3097 = vtanh.pop %v3065
        %v3098 = vtanh.pop %v3066
        %v3099 = vtanh.pop %v3067
        %v3100 = vtanh.pop %v3068
        %v3101 = vtanh.pop %v3069
        %v3102 = vtanh.pop %v3070
        %v3103 = vtanh.pop %v3071
        %v3104 = vtanh.pop %v3072
        %v3105 = vtanh.pop %v3073
        %v3106 = vtanh.pop %v3074
        %v3107 = vtanh.pop %v3075
        %v3108 = vtanh.pop %v3076
        %v3109 = vtanh.pop %v3077
        %v3110 = vtanh.pop %v3078
        %v3111 = vtanh.pop %v3079
        %v3112 = vtanh.pop %v3080
        %v3113 = vtanh.pop %v3081
        %v3114 = vtanh.pop %v3082
        %v3115 = vtanh.pop %v3083
        %v3116 = vadd.f32 %v3084, 1.0
        %v3117 = vadd.f32 %v3085, 1.0
        %v3118 = vadd.f32 %v3086, 1.0
        %v3119 = vadd.f32 %v3087, 1.0
        %v3120 = vadd.f32 %v3088, 1.0
        %v3121 = vadd.f32 %v3089, 1.0
        %v3122 = vadd.f32 %v3090, 1.0
        %v3123 = vadd.f32 %v3091, 1.0
        %v3124 = vadd.f32 %v3092, 1.0
        %v3125 = vadd.f32 %v3093, 1.0
        %v3126 = vadd.f32 %v3094, 1.0
        %v3127 = vadd.f32 %v3095, 1.0
        %v3128 = vadd.f32 %v3096, 1.0
        %v3129 = vadd.f32 %v3097, 1.0
        %v3130 = vadd.f32 %v3098, 1.0
        %v3131 = vadd.f32 %v3099, 1.0
        %v3132 = vadd.f32 %v3100, 1.0
        %v3133 = vadd.f32 %v3101, 1.0
        %v3134 = vadd.f32 %v3102, 1.0
        %v3135 = vadd.f32 %v3103, 1.0
        %v3136 = vadd.f32 %v3104, 1.0
        %v3137 = vadd.f32 %v3105, 1.0
        %v3138 = vadd.f32 %v3106, 1.0
        %v3139 = vadd.f32 %v3107, 1.0
        %v3140 = vadd.f32 %v3108, 1.0
        %v3141 = vadd.f32 %v3109, 1.0
        %v3142 = vadd.f32 %v3110, 1.0
        %v3143 = vadd.f32 %v3111, 1.0
        %v3144 = vadd.f32 %v3112, 1.0
        %v3145 = vadd.f32 %v3113, 1.0
        %v3146 = vadd.f32 %v3114, 1.0
        %v3147 = vadd.f32 %v3115, 1.0
        %v3148 = vmul.f32 %v2892, %v3116
        %v3149 = vmul.f32 %v2893, %v3117
        %v3150 = vmul.f32 %v2894, %v3118
        %v3151 = vmul.f32 %v2895, %v3119
        %v3152 = vmul.f32 %v2896, %v3120
        %v3153 = vmul.f32 %v2897, %v3121
        %v3154 = vmul.f32 %v2898, %v3122
        %v3155 = vmul.f32 %v2899, %v3123
        %v3156 = vmul.f32 %v2900, %v3124
        %v3157 = vmul.f32 %v2901, %v3125
        %v3158 = vmul.f32 %v2902, %v3126
        %v3159 = vmul.f32 %v2903, %v3127
        %v3160 = vmul.f32 %v2904, %v3128
        %v3161 = vmul.f32 %v2905, %v3129
        %v3162 = vmul.f32 %v2906, %v3130
        %v3163 = vmul.f32 %v2907, %v3131
        %v3164 = vmul.f32 %v2908, %v3132
        %v3165 = vmul.f32 %v2909, %v3133
        %v3166 = vmul.f32 %v2910, %v3134
        %v3167 = vmul.f32 %v2911, %v3135
        %v3168 = vmul.f32 %v2912, %v3136
        %v3169 = vmul.f32 %v2913, %v3137
        %v3170 = vmul.f32 %v2914, %v3138
        %v3171 = vmul.f32 %v2915, %v3139
        %v3172 = vmul.f32 %v2916, %v3140
        %v3173 = vmul.f32 %v2917, %v3141
        %v3174 = vmul.f32 %v2918, %v3142
        %v3175 = vmul.f32 %v2919, %v3143
        %v3176 = vmul.f32 %v2920, %v3144
        %v3177 = vmul.f32 %v2921, %v3145
        %v3178 = vmul.f32 %v2922, %v3146
        %v3179 = vmul.f32 %v2923, %v3147
        %3212 = vrot.lane.b32.xlu0 %v2860, 64
        %v3213 = vpop.permute.xlu0 %3212
        %3214 = vrot.lane.b32.xlu0 %v2861, 64
        %v3215 = vpop.permute.xlu0 %3214
        %3216 = vrot.lane.b32.xlu0 %v2862, 64
        %v3217 = vpop.permute.xlu0 %3216
        %3218 = vrot.lane.b32.xlu0 %v2863, 64
        %v3219 = vpop.permute.xlu0 %3218
        %3220 = vrot.lane.b32.xlu0 %v2864, 64
        %v3221 = vpop.permute.xlu0 %3220
        %3222 = vrot.lane.b32.xlu0 %v2865, 64
        %v3223 = vpop.permute.xlu0 %3222
        %3224 = vrot.lane.b32.xlu0 %v2866, 64
        %v3225 = vpop.permute.xlu0 %3224
        %3226 = vrot.lane.b32.xlu0 %v2867, 64
        %v3227 = vpop.permute.xlu0 %3226
        %3228 = vrot.lane.b32.xlu0 %v2868, 64
        %v3229 = vpop.permute.xlu0 %3228
        %3230 = vrot.lane.b32.xlu0 %v2869, 64
        %v3231 = vpop.permute.xlu0 %3230
        %3232 = vrot.lane.b32.xlu0 %v2870, 64
        %v3233 = vpop.permute.xlu0 %3232
        %3234 = vrot.lane.b32.xlu0 %v2871, 64
        %v3235 = vpop.permute.xlu0 %3234
        %3236 = vrot.lane.b32.xlu0 %v2872, 64
        %v3237 = vpop.permute.xlu0 %3236
        %3238 = vrot.lane.b32.xlu0 %v2873, 64
        %v3239 = vpop.permute.xlu0 %3238
        %3240 = vrot.lane.b32.xlu0 %v2874, 64
        %v3241 = vpop.permute.xlu0 %3240
        %3242 = vrot.lane.b32.xlu0 %v2875, 64
        %v3243 = vpop.permute.xlu0 %3242
        %3244 = vrot.lane.b32.xlu0 %v2876, 64
        %v3245 = vpop.permute.xlu0 %3244
        %3246 = vrot.lane.b32.xlu0 %v2877, 64
        %v3247 = vpop.permute.xlu0 %3246
        %3248 = vrot.lane.b32.xlu0 %v2878, 64
        %v3249 = vpop.permute.xlu0 %3248
        %3250 = vrot.lane.b32.xlu0 %v2879, 64
        %v3251 = vpop.permute.xlu0 %3250
        %3252 = vrot.lane.b32.xlu0 %v2880, 64
        %v3253 = vpop.permute.xlu0 %3252
        %3254 = vrot.lane.b32.xlu0 %v2881, 64
        %v3255 = vpop.permute.xlu0 %3254
        %3256 = vrot.lane.b32.xlu0 %v2882, 64
        %v3257 = vpop.permute.xlu0 %3256
        %3258 = vrot.lane.b32.xlu0 %v2883, 64
        %v3259 = vpop.permute.xlu0 %3258
        %3260 = vrot.lane.b32.xlu0 %v2884, 64
        %v3261 = vpop.permute.xlu0 %3260
        %3262 = vrot.lane.b32.xlu0 %v2885, 64
        %v3263 = vpop.permute.xlu0 %3262
        %3264 = vrot.lane.b32.xlu0 %v2886, 64
        %v3265 = vpop.permute.xlu0 %3264
        %3266 = vrot.lane.b32.xlu0 %v2887, 64
        %v3267 = vpop.permute.xlu0 %3266
        %3268 = vrot.lane.b32.xlu0 %v2888, 64
        %v3269 = vpop.permute.xlu0 %3268
        %3270 = vrot.lane.b32.xlu0 %v2889, 64
        %v3271 = vpop.permute.xlu0 %3270
        %3272 = vrot.lane.b32.xlu0 %v2890, 64
        %v3273 = vpop.permute.xlu0 %3272
        %3274 = vrot.lane.b32.xlu0 %v2891, 64
        %v3275 = vpop.permute.xlu0 %3274
        %v3308 = vmul.f32 %v3148, %v3213
        %v3309 = vmul.f32 %v3149, %v3215
        %v3310 = vmul.f32 %v3150, %v3217
        %v3311 = vmul.f32 %v3151, %v3219
        %v3312 = vmul.f32 %v3152, %v3221
        %v3313 = vmul.f32 %v3153, %v3223
        %v3314 = vmul.f32 %v3154, %v3225
        %v3315 = vmul.f32 %v3155, %v3227
        %v3316 = vmul.f32 %v3156, %v3229
        %v3317 = vmul.f32 %v3157, %v3231
        %v3318 = vmul.f32 %v3158, %v3233
        %v3319 = vmul.f32 %v3159, %v3235
        %v3320 = vmul.f32 %v3160, %v3237
        %v3321 = vmul.f32 %v3161, %v3239
        %v3322 = vmul.f32 %v3162, %v3241
        %v3323 = vmul.f32 %v3163, %v3243
        %v3324 = vmul.f32 %v3164, %v3245
        %v3325 = vmul.f32 %v3165, %v3247
        %v3326 = vmul.f32 %v3166, %v3249
        %v3327 = vmul.f32 %v3167, %v3251
        %v3328 = vmul.f32 %v3168, %v3253
        %v3329 = vmul.f32 %v3169, %v3255
        %v3330 = vmul.f32 %v3170, %v3257
        %v3331 = vmul.f32 %v3171, %v3259
        %v3332 = vmul.f32 %v3172, %v3261
        %v3333 = vmul.f32 %v3173, %v3263
        %v3334 = vmul.f32 %v3174, %v3265
        %v3335 = vmul.f32 %v3175, %v3267
        %v3336 = vmul.f32 %v3176, %v3269
        %v3337 = vmul.f32 %v3177, %v3271
        %v3338 = vmul.f32 %v3178, %v3273
        %v3339 = vmul.f32 %v3179, %v3275
        %v3340 = vpack.c.bf16 %v3309, %v3308
        %v3341 = vpack.c.bf16 %v3311, %v3310
        %v3342 = vpack.c.bf16 %v3313, %v3312
        %v3343 = vpack.c.bf16 %v3315, %v3314
        %v3344 = vpack.c.bf16 %v3317, %v3316
        %v3345 = vpack.c.bf16 %v3319, %v3318
        %v3346 = vpack.c.bf16 %v3321, %v3320
        %v3347 = vpack.c.bf16 %v3323, %v3322
        %v3348 = vpack.c.bf16 %v3325, %v3324
        %v3349 = vpack.c.bf16 %v3327, %v3326
        %v3350 = vpack.c.bf16 %v3329, %v3328
        %v3351 = vpack.c.bf16 %v3331, %v3330
        %v3352 = vpack.c.bf16 %v3333, %v3332
        %v3353 = vpack.c.bf16 %v3335, %v3334
        %v3354 = vpack.c.bf16 %v3337, %v3336
        %v3355 = vpack.c.bf16 %v3339, %v3338
        %v3356 = vld [vmem:[%s6] sm:$0xff]
        %v3357 = vld [vmem:[%s6 + $0x8] sm:$0xff]
        %v3358 = vld [vmem:[%s6 + $0x10] sm:$0xff]
        %v3359 = vld [vmem:[%s6 + $0x18] sm:$0xff]
        %v3360 = vld [vmem:[%s6 + $0x20] sm:$0xff]
        %v3361 = vld [vmem:[%s6 + $0x28] sm:$0xff]
        %v3362 = vld [vmem:[%s6 + $0x30] sm:$0xff]
        %v3363 = vld [vmem:[%s6 + $0x38] sm:$0xff]
        %v3364 = vpack.c.bf16 %v3357, %v3356
        %v3365 = vpack.c.bf16 %v3359, %v3358
        %v3366 = vpack.c.bf16 %v3361, %v3360
        %v3367 = vpack.c.bf16 %v3363, %v3362
        %vm3368 = vcmask 523264
        %v3370 = vsel %vm3368, %v3340, 0
        %v3373 = vsel %vm3368, %v3341, 0
        %v3376 = vsel %vm3368, %v3342, 0
        %v3379 = vsel %vm3368, %v3343, 0
        %v3382 = vsel %vm3368, %v3344, 0
        %v3385 = vsel %vm3368, %v3345, 0
        %v3388 = vsel %vm3368, %v3346, 0
        %v3391 = vsel %vm3368, %v3347, 0
        %v3394 = vsel %vm3368, %v3348, 0
        %v3397 = vsel %vm3368, %v3349, 0
        %v3400 = vsel %vm3368, %v3350, 0
        %v3403 = vsel %vm3368, %v3351, 0
        %v3406 = vsel %vm3368, %v3352, 0
        %v3409 = vsel %vm3368, %v3353, 0
        %v3412 = vsel %vm3368, %v3354, 0
        %v3415 = vsel %vm3368, %v3355, 0
        %3417 = vmatprep.subr.bf16.mxu0 0
        %3418 = vmatpush1.bf16.msra.mxu0 0
        %3419 = vmatprep.subr.bf16.mxu0 0
        %3420 = vmatpush1.bf16.msra.mxu0 0
        %3421 = vmatprep.subr.bf16.mxu0 0
        %3422 = vmatpush1.bf16.msra.mxu0 0
        %3423 = vmatprep.subr.bf16.mxu0 0
        %3424 = vmatpush1.bf16.msra.mxu0 0
        %3425 = vmatprep.subr.bf16.mxu0 0
        %3426 = vmatpush1.bf16.msra.mxu0 %v3367
        %3427 = vmatprep.subr.bf16.mxu0 0
        %3428 = vmatpush1.bf16.msra.mxu0 %v3366
        %3429 = vmatprep.subr.bf16.mxu0 0
        %3430 = vmatpush1.bf16.msra.mxu0 %v3365
        %3431 = vmatprep.subr.bf16.mxu0 0
        %3432 = vmatpush1.bf16.msra.mxu0 %v3364
        %3433 = vmatprep.subr.bf16.mxu0 0
        %3434 = vmatpush2.bf16.msra.mxu0 0
        %3435 = vmatprep.subr.bf16.mxu0 0
        %3436 = vmatpush2.bf16.msra.mxu0 0
        %3437 = vmatprep.subr.bf16.mxu0 0
        %3438 = vmatpush2.bf16.msra.mxu0 0
        %3439 = vmatprep.subr.bf16.mxu0 0
        %3440 = vmatpush2.bf16.msra.mxu0 0
        %3441 = vmatprep.subr.bf16.mxu0 0
        %3442 = vmatpush2.bf16.msra.mxu0 0
        %3443 = vmatprep.subr.bf16.mxu0 0
        %3444 = vmatpush2.bf16.msra.mxu0 0
        %3445 = vmatprep.subr.bf16.mxu0 0
        %3446 = vmatpush2.bf16.msra.mxu0 0
        %3447 = vmatprep.subr.bf16.mxu0 0
        %3448 = vmatpush2.bf16.msra.mxu0 0
        %3449 = vmatprep.mubr.bf16.mxu0 0
        %3450 = vmatmul.mubr.bf16.gmra.mxu0 %v3370
        %v3451 = vpop.f32.mrf.mxu0
        %v3452 = vadd.f32 0.0, %v3451
        %v3453 = vpop.f32.mrf.mxu0
        %v3454 = vpop.f32.mrf.mxu0
        %v3455 = vadd.f32 0.0, %v3454
        %v3456 = vpop.f32.mrf.mxu0
        %3457 = vmatprep.mubr.bf16.mxu0 0
        %3458 = vmatmul.mubr.bf16.gmra.mxu0 %v3373
        %v3459 = vpop.f32.mrf.mxu0
        %v3460 = vadd.f32 0.0, %v3459
        %v3461 = vpop.f32.mrf.mxu0
        %v3462 = vpop.f32.mrf.mxu0
        %v3463 = vadd.f32 0.0, %v3462
        %v3464 = vpop.f32.mrf.mxu0
        %3465 = vmatprep.mubr.bf16.mxu0 0
        %3466 = vmatmul.mubr.bf16.gmra.mxu0 %v3376
        %v3467 = vpop.f32.mrf.mxu0
        %v3468 = vadd.f32 0.0, %v3467
        %v3469 = vpop.f32.mrf.mxu0
        %v3470 = vpop.f32.mrf.mxu0
        %v3471 = vadd.f32 0.0, %v3470
        %v3472 = vpop.f32.mrf.mxu0
        %3473 = vmatprep.mubr.bf16.mxu0 0
        %3474 = vmatmul.mubr.bf16.gmra.mxu0 %v3379
        %v3475 = vpop.f32.mrf.mxu0
        %v3476 = vadd.f32 0.0, %v3475
        %v3477 = vpop.f32.mrf.mxu0
        %v3478 = vpop.f32.mrf.mxu0
        %v3479 = vadd.f32 0.0, %v3478
        %v3480 = vpop.f32.mrf.mxu0
        %3481 = vmatprep.mubr.bf16.mxu0 0
        %3482 = vmatmul.mubr.bf16.gmra.mxu0 %v3382
        %v3483 = vpop.f32.mrf.mxu0
        %v3484 = vadd.f32 0.0, %v3483
        %v3485 = vpop.f32.mrf.mxu0
        %v3486 = vpop.f32.mrf.mxu0
        %v3487 = vadd.f32 0.0, %v3486
        %v3488 = vpop.f32.mrf.mxu0
        %3489 = vmatprep.mubr.bf16.mxu0 0
        %3490 = vmatmul.mubr.bf16.gmra.mxu0 %v3385
        %v3491 = vpop.f32.mrf.mxu0
        %v3492 = vadd.f32 0.0, %v3491
        %v3493 = vpop.f32.mrf.mxu0
        %v3494 = vpop.f32.mrf.mxu0
        %v3495 = vadd.f32 0.0, %v3494
        %v3496 = vpop.f32.mrf.mxu0
        %3497 = vmatprep.mubr.bf16.mxu0 0
        %3498 = vmatmul.mubr.bf16.gmra.mxu0 %v3388
        %v3499 = vpop.f32.mrf.mxu0
        %v3500 = vadd.f32 0.0, %v3499
        %v3501 = vpop.f32.mrf.mxu0
        %v3502 = vpop.f32.mrf.mxu0
        %v3503 = vadd.f32 0.0, %v3502
        %v3504 = vpop.f32.mrf.mxu0
        %3505 = vmatprep.mubr.bf16.mxu0 0
        %3506 = vmatmul.mubr.bf16.gmra.mxu0 %v3391
        %v3507 = vpop.f32.mrf.mxu0
        %v3508 = vadd.f32 0.0, %v3507
        %v3509 = vpop.f32.mrf.mxu0
        %v3510 = vpop.f32.mrf.mxu0
        %v3511 = vadd.f32 0.0, %v3510
        %v3512 = vpop.f32.mrf.mxu0
        %3513 = vmatprep.mubr.bf16.mxu0 0
        %3514 = vmatmul.mubr.bf16.gmra.mxu0 %v3394
        %v3515 = vpop.f32.mrf.mxu0
        %v3516 = vadd.f32 0.0, %v3515
        %v3517 = vpop.f32.mrf.mxu0
        %v3518 = vpop.f32.mrf.mxu0
        %v3519 = vadd.f32 0.0, %v3518
        %v3520 = vpop.f32.mrf.mxu0
        %3521 = vmatprep.mubr.bf16.mxu0 0
        %3522 = vmatmul.mubr.bf16.gmra.mxu0 %v3397
        %v3523 = vpop.f32.mrf.mxu0
        %v3524 = vadd.f32 0.0, %v3523
        %v3525 = vpop.f32.mrf.mxu0
        %v3526 = vpop.f32.mrf.mxu0
        %v3527 = vadd.f32 0.0, %v3526
        %v3528 = vpop.f32.mrf.mxu0
        %3529 = vmatprep.mubr.bf16.mxu0 0
        %3530 = vmatmul.mubr.bf16.gmra.mxu0 %v3400
        %v3531 = vpop.f32.mrf.mxu0
        %v3532 = vadd.f32 0.0, %v3531
        %v3533 = vpop.f32.mrf.mxu0
        %v3534 = vpop.f32.mrf.mxu0
        %v3535 = vadd.f32 0.0, %v3534
        %v3536 = vpop.f32.mrf.mxu0
        %3537 = vmatprep.mubr.bf16.mxu0 0
        %3538 = vmatmul.mubr.bf16.gmra.mxu0 %v3403
        %v3539 = vpop.f32.mrf.mxu0
        %v3540 = vadd.f32 0.0, %v3539
        %v3541 = vpop.f32.mrf.mxu0
        %v3542 = vpop.f32.mrf.mxu0
        %v3543 = vadd.f32 0.0, %v3542
        %v3544 = vpop.f32.mrf.mxu0
        %3545 = vmatprep.mubr.bf16.mxu0 0
        %3546 = vmatmul.mubr.bf16.gmra.mxu0 %v3406
        %v3547 = vpop.f32.mrf.mxu0
        %v3548 = vadd.f32 0.0, %v3547
        %v3549 = vpop.f32.mrf.mxu0
        %v3550 = vpop.f32.mrf.mxu0
        %v3551 = vadd.f32 0.0, %v3550
        %v3552 = vpop.f32.mrf.mxu0
        %3553 = vmatprep.mubr.bf16.mxu0 0
        %3554 = vmatmul.mubr.bf16.gmra.mxu0 %v3409
        %v3555 = vpop.f32.mrf.mxu0
        %v3556 = vadd.f32 0.0, %v3555
        %v3557 = vpop.f32.mrf.mxu0
        %v3558 = vpop.f32.mrf.mxu0
        %v3559 = vadd.f32 0.0, %v3558
        %v3560 = vpop.f32.mrf.mxu0
        %3561 = vmatprep.mubr.bf16.mxu0 0
        %3562 = vmatmul.mubr.bf16.gmra.mxu0 %v3412
        %v3563 = vpop.f32.mrf.mxu0
        %v3564 = vadd.f32 0.0, %v3563
        %v3565 = vpop.f32.mrf.mxu0
        %v3566 = vpop.f32.mrf.mxu0
        %v3567 = vadd.f32 0.0, %v3566
        %v3568 = vpop.f32.mrf.mxu0
        %3569 = vmatprep.mubr.bf16.mxu0 0
        %3570 = vmatmul.mubr.bf16.gmra.mxu0 %v3415
        %v3571 = vpop.f32.mrf.mxu0
        %v3572 = vadd.f32 0.0, %v3571
        %v3573 = vpop.f32.mrf.mxu0
        %v3574 = vpop.f32.mrf.mxu0
        %v3575 = vadd.f32 0.0, %v3574
        %v3576 = vpop.f32.mrf.mxu0
        %3577 = vdwg.mxu0
        %v3578 = vadd.f32 %v325, %v3452
        %v3579 = vadd.f32 %v326, %v3455
        %v3580 = vadd.f32 %v327, %v3460
        %v3581 = vadd.f32 %v328, %v3463
        %v3582 = vadd.f32 %v329, %v3468
        %v3583 = vadd.f32 %v330, %v3471
        %v3584 = vadd.f32 %v331, %v3476
        %v3585 = vadd.f32 %v332, %v3479
        %v3586 = vadd.f32 %v333, %v3484
        %v3587 = vadd.f32 %v334, %v3487
        %v3588 = vadd.f32 %v335, %v3492
        %v3589 = vadd.f32 %v336, %v3495
        %v3590 = vadd.f32 %v337, %v3500
        %v3591 = vadd.f32 %v338, %v3503
        %v3592 = vadd.f32 %v339, %v3508
        %v3593 = vadd.f32 %v340, %v3511
        %v3594 = vadd.f32 %v341, %v3516
        %v3595 = vadd.f32 %v342, %v3519
        %v3596 = vadd.f32 %v343, %v3524
        %v3597 = vadd.f32 %v344, %v3527
        %v3598 = vadd.f32 %v345, %v3532
        %v3599 = vadd.f32 %v346, %v3535
        %v3600 = vadd.f32 %v347, %v3540
        %v3601 = vadd.f32 %v348, %v3543
        %v3602 = vadd.f32 %v349, %v3548
        %v3603 = vadd.f32 %v350, %v3551
        %v3604 = vadd.f32 %v351, %v3556
        %v3605 = vadd.f32 %v352, %v3559
        %v3606 = vadd.f32 %v353, %v3564
        %v3607 = vadd.f32 %v354, %v3567
        %v3608 = vadd.f32 %v355, %v3572
        %v3609 = vadd.f32 %v356, %v3575
        %v3610 = vld [vmem:[%s323] sm:$0xff]
        %v3611 = vld [vmem:[%s323 + $0x8] sm:$0xff]
        %v3612 = vld [vmem:[%s323 + $0x10] sm:$0xff]
        %v3613 = vld [vmem:[%s323 + $0x18] sm:$0xff]
        %v3614 = vld [vmem:[%s323 + $0x20] sm:$0xff]
        %v3615 = vld [vmem:[%s323 + $0x28] sm:$0xff]
        %v3616 = vld [vmem:[%s323 + $0x30] sm:$0xff]
        %v3617 = vld [vmem:[%s323 + $0x38] sm:$0xff]
        %v3618 = vld [vmem:[%s323 + $0x40] sm:$0xff]
        %v3619 = vld [vmem:[%s323 + $0x48] sm:$0xff]
        %v3620 = vld [vmem:[%s323 + $0x50] sm:$0xff]
        %v3621 = vld [vmem:[%s323 + $0x58] sm:$0xff]
        %v3622 = vld [vmem:[%s323 + $0x60] sm:$0xff]
        %v3623 = vld [vmem:[%s323 + $0x68] sm:$0xff]
        %v3624 = vld [vmem:[%s323 + $0x70] sm:$0xff]
        %v3625 = vld [vmem:[%s323 + $0x78] sm:$0xff]
        %v3626 = vld [vmem:[%s323 + $0x80] sm:$0xff]
        %v3627 = vld [vmem:[%s323 + $0x88] sm:$0xff]
        %v3628 = vld [vmem:[%s323 + $0x90] sm:$0xff]
        %v3629 = vld [vmem:[%s323 + $0x98] sm:$0xff]
        %v3630 = vld [vmem:[%s323 + $0xa0] sm:$0xff]
        %v3631 = vld [vmem:[%s323 + $0xa8] sm:$0xff]
        %v3632 = vld [vmem:[%s323 + $0xb0] sm:$0xff]
        %v3633 = vld [vmem:[%s323 + $0xb8] sm:$0xff]
        %v3634 = vld [vmem:[%s323 + $0xc0] sm:$0xff]
        %v3635 = vld [vmem:[%s323 + $0xc8] sm:$0xff]
        %v3636 = vld [vmem:[%s323 + $0xd0] sm:$0xff]
        %v3637 = vld [vmem:[%s323 + $0xd8] sm:$0xff]
        %v3638 = vld [vmem:[%s323 + $0xe0] sm:$0xff]
        %v3639 = vld [vmem:[%s323 + $0xe8] sm:$0xff]
        %v3640 = vld [vmem:[%s323 + $0xf0] sm:$0xff]
        %v3641 = vld [vmem:[%s323 + $0xf8] sm:$0xff]
        %3674 = vrot.lane.b32.xlu0 %v3578, 32
        %v3675 = vpop.permute.xlu0 %3674
        %3676 = vrot.lane.b32.xlu0 %v3579, 32
        %v3677 = vpop.permute.xlu0 %3676
        %3678 = vrot.lane.b32.xlu0 %v3580, 32
        %v3679 = vpop.permute.xlu0 %3678
        %3680 = vrot.lane.b32.xlu0 %v3581, 32
        %v3681 = vpop.permute.xlu0 %3680
        %3682 = vrot.lane.b32.xlu0 %v3582, 32
        %v3683 = vpop.permute.xlu0 %3682
        %3684 = vrot.lane.b32.xlu0 %v3583, 32
        %v3685 = vpop.permute.xlu0 %3684
        %3686 = vrot.lane.b32.xlu0 %v3584, 32
        %v3687 = vpop.permute.xlu0 %3686
        %3688 = vrot.lane.b32.xlu0 %v3585, 32
        %v3689 = vpop.permute.xlu0 %3688
        %3690 = vrot.lane.b32.xlu0 %v3586, 32
        %v3691 = vpop.permute.xlu0 %3690
        %3692 = vrot.lane.b32.xlu0 %v3587, 32
        %v3693 = vpop.permute.xlu0 %3692
        %3694 = vrot.lane.b32.xlu0 %v3588, 32
        %v3695 = vpop.permute.xlu0 %3694
        %3696 = vrot.lane.b32.xlu0 %v3589, 32
        %v3697 = vpop.permute.xlu0 %3696
        %3698 = vrot.lane.b32.xlu0 %v3590, 32
        %v3699 = vpop.permute.xlu0 %3698
        %3700 = vrot.lane.b32.xlu0 %v3591, 32
        %v3701 = vpop.permute.xlu0 %3700
        %3702 = vrot.lane.b32.xlu0 %v3592, 32
        %v3703 = vpop.permute.xlu0 %3702
        %3704 = vrot.lane.b32.xlu0 %v3593, 32
        %v3705 = vpop.permute.xlu0 %3704
        %3706 = vrot.lane.b32.xlu0 %v3594, 32
        %v3707 = vpop.permute.xlu0 %3706
        %3708 = vrot.lane.b32.xlu0 %v3595, 32
        %v3709 = vpop.permute.xlu0 %3708
        %3710 = vrot.lane.b32.xlu0 %v3596, 32
        %v3711 = vpop.permute.xlu0 %3710
        %3712 = vrot.lane.b32.xlu0 %v3597, 32
        %v3713 = vpop.permute.xlu0 %3712
        %3714 = vrot.lane.b32.xlu0 %v3598, 32
        %v3715 = vpop.permute.xlu0 %3714
        %3716 = vrot.lane.b32.xlu0 %v3599, 32
        %v3717 = vpop.permute.xlu0 %3716
        %3718 = vrot.lane.b32.xlu0 %v3600, 32
        %v3719 = vpop.permute.xlu0 %3718
        %3720 = vrot.lane.b32.xlu0 %v3601, 32
        %v3721 = vpop.permute.xlu0 %3720
        %3722 = vrot.lane.b32.xlu0 %v3602, 32
        %v3723 = vpop.permute.xlu0 %3722
        %3724 = vrot.lane.b32.xlu0 %v3603, 32
        %v3725 = vpop.permute.xlu0 %3724
        %3726 = vrot.lane.b32.xlu0 %v3604, 32
        %v3727 = vpop.permute.xlu0 %3726
        %3728 = vrot.lane.b32.xlu0 %v3605, 32
        %v3729 = vpop.permute.xlu0 %3728
        %3730 = vrot.lane.b32.xlu0 %v3606, 32
        %v3731 = vpop.permute.xlu0 %3730
        %3732 = vrot.lane.b32.xlu0 %v3607, 32
        %v3733 = vpop.permute.xlu0 %3732
        %3734 = vrot.lane.b32.xlu0 %v3608, 32
        %v3735 = vpop.permute.xlu0 %3734
        %3736 = vrot.lane.b32.xlu0 %v3609, 32
        %v3737 = vpop.permute.xlu0 %3736
        %v3770 = vsel %vm359, %v3610, %v3675
        %v3771 = vsel %vm359, %v3611, %v3677
        %v3772 = vsel %vm359, %v3612, %v3679
        %v3773 = vsel %vm359, %v3613, %v3681
        %v3774 = vsel %vm359, %v3614, %v3683
        %v3775 = vsel %vm359, %v3615, %v3685
        %v3776 = vsel %vm359, %v3616, %v3687
        %v3777 = vsel %vm359, %v3617, %v3689
        %v3778 = vsel %vm359, %v3618, %v3691
        %v3779 = vsel %vm359, %v3619, %v3693
        %v3780 = vsel %vm359, %v3620, %v3695
        %v3781 = vsel %vm359, %v3621, %v3697
        %v3782 = vsel %vm359, %v3622, %v3699
        %v3783 = vsel %vm359, %v3623, %v3701
        %v3784 = vsel %vm359, %v3624, %v3703
        %v3785 = vsel %vm359, %v3625, %v3705
        %v3786 = vsel %vm359, %v3626, %v3707
        %v3787 = vsel %vm359, %v3627, %v3709
        %v3788 = vsel %vm359, %v3628, %v3711
        %v3789 = vsel %vm359, %v3629, %v3713
        %v3790 = vsel %vm359, %v3630, %v3715
        %v3791 = vsel %vm359, %v3631, %v3717
        %v3792 = vsel %vm359, %v3632, %v3719
        %v3793 = vsel %vm359, %v3633, %v3721
        %v3794 = vsel %vm359, %v3634, %v3723
        %v3795 = vsel %vm359, %v3635, %v3725
        %v3796 = vsel %vm359, %v3636, %v3727
        %v3797 = vsel %vm359, %v3637, %v3729
        %v3798 = vsel %vm359, %v3638, %v3731
        %v3799 = vsel %vm359, %v3639, %v3733
        %v3800 = vsel %vm359, %v3640, %v3735
        %v3801 = vsel %vm359, %v3641, %v3737
        %v3802 = vpack.c.bf16 %v3771, %v3770
        %v3803 = vpack.c.bf16 %v3773, %v3772
        %v3804 = vpack.c.bf16 %v3775, %v3774
        %v3805 = vpack.c.bf16 %v3777, %v3776
        %v3806 = vpack.c.bf16 %v3779, %v3778
        %v3807 = vpack.c.bf16 %v3781, %v3780
        %v3808 = vpack.c.bf16 %v3783, %v3782
        %v3809 = vpack.c.bf16 %v3785, %v3784
        %v3810 = vpack.c.bf16 %v3787, %v3786
        %v3811 = vpack.c.bf16 %v3789, %v3788
        %v3812 = vpack.c.bf16 %v3791, %v3790
        %v3813 = vpack.c.bf16 %v3793, %v3792
        %v3814 = vpack.c.bf16 %v3795, %v3794
        %v3815 = vpack.c.bf16 %v3797, %v3796
        %v3816 = vpack.c.bf16 %v3799, %v3798
        %v3817 = vpack.c.bf16 %v3801, %v3800
        %v3818 = vld [vmem:[%s7] sm:$0xff]
        %v3819 = vld [vmem:[%s7 + $0x8] sm:$0xff]
        %v3820 = vld [vmem:[%s7 + $0x10] sm:$0xff]
        %v3821 = vld [vmem:[%s7 + $0x18] sm:$0xff]
        %v3822 = vld [vmem:[%s7 + $0x20] sm:$0xff]
        %v3823 = vld [vmem:[%s7 + $0x28] sm:$0xff]
        %v3824 = vld [vmem:[%s7 + $0x30] sm:$0xff]
        %v3825 = vld [vmem:[%s7 + $0x38] sm:$0xff]
        %v3826 = vpack.c.bf16 %v3819, %v3818
        %v3827 = vpack.c.bf16 %v3821, %v3820
        %v3828 = vpack.c.bf16 %v3823, %v3822
        %v3829 = vpack.c.bf16 %v3825, %v3824
        %v3831 = vsel %vm3368, %v3802, 0
        %v3834 = vsel %vm3368, %v3803, 0
        %v3837 = vsel %vm3368, %v3804, 0
        %v3840 = vsel %vm3368, %v3805, 0
        %v3843 = vsel %vm3368, %v3806, 0
        %v3846 = vsel %vm3368, %v3807, 0
        %v3849 = vsel %vm3368, %v3808, 0
        %v3852 = vsel %vm3368, %v3809, 0
        %v3855 = vsel %vm3368, %v3810, 0
        %v3858 = vsel %vm3368, %v3811, 0
        %v3861 = vsel %vm3368, %v3812, 0
        %v3864 = vsel %vm3368, %v3813, 0
        %v3867 = vsel %vm3368, %v3814, 0
        %v3870 = vsel %vm3368, %v3815, 0
        %v3873 = vsel %vm3368, %v3816, 0
        %v3876 = vsel %vm3368, %v3817, 0
        %3878 = vmatprep.subr.bf16.mxu0 0
        %3879 = vmatpush1.bf16.msra.mxu0 0
        %3880 = vmatprep.subr.bf16.mxu0 0
        %3881 = vmatpush1.bf16.msra.mxu0 0
        %3882 = vmatprep.subr.bf16.mxu0 0
        %3883 = vmatpush1.bf16.msra.mxu0 0
        %3884 = vmatprep.subr.bf16.mxu0 0
        %3885 = vmatpush1.bf16.msra.mxu0 0
        %3886 = vmatprep.subr.bf16.mxu0 0
        %3887 = vmatpush1.bf16.msra.mxu0 %v3829
        %3888 = vmatprep.subr.bf16.mxu0 0
        %3889 = vmatpush1.bf16.msra.mxu0 %v3828
        %3890 = vmatprep.subr.bf16.mxu0 0
        %3891 = vmatpush1.bf16.msra.mxu0 %v3827
        %3892 = vmatprep.subr.bf16.mxu0 0
        %3893 = vmatpush1.bf16.msra.mxu0 %v3826
        %3894 = vmatprep.subr.bf16.mxu0 0
        %3895 = vmatpush2.bf16.msra.mxu0 0
        %3896 = vmatprep.subr.bf16.mxu0 0
        %3897 = vmatpush2.bf16.msra.mxu0 0
        %3898 = vmatprep.subr.bf16.mxu0 0
        %3899 = vmatpush2.bf16.msra.mxu0 0
        %3900 = vmatprep.subr.bf16.mxu0 0
        %3901 = vmatpush2.bf16.msra.mxu0 0
        %3902 = vmatprep.subr.bf16.mxu0 0
        %3903 = vmatpush2.bf16.msra.mxu0 0
        %3904 = vmatprep.subr.bf16.mxu0 0
        %3905 = vmatpush2.bf16.msra.mxu0 0
        %3906 = vmatprep.subr.bf16.mxu0 0
        %3907 = vmatpush2.bf16.msra.mxu0 0
        %3908 = vmatprep.subr.bf16.mxu0 0
        %3909 = vmatpush2.bf16.msra.mxu0 0
        %3910 = vmatprep.mubr.bf16.mxu0 0
        %3911 = vmatmul.mubr.bf16.gmra.mxu0 %v3831
        %v3912 = vpop.f32.mrf.mxu0
        %v3913 = vadd.f32 0.0, %v3912
        %v3914 = vpop.f32.mrf.mxu0
        %v3915 = vpop.f32.mrf.mxu0
        %v3916 = vadd.f32 0.0, %v3915
        %v3917 = vpop.f32.mrf.mxu0
        %3918 = vmatprep.mubr.bf16.mxu0 0
        %3919 = vmatmul.mubr.bf16.gmra.mxu0 %v3834
        %v3920 = vpop.f32.mrf.mxu0
        %v3921 = vadd.f32 0.0, %v3920
        %v3922 = vpop.f32.mrf.mxu0
        %v3923 = vpop.f32.mrf.mxu0
        %v3924 = vadd.f32 0.0, %v3923
        %v3925 = vpop.f32.mrf.mxu0
        %3926 = vmatprep.mubr.bf16.mxu0 0
        %3927 = vmatmul.mubr.bf16.gmra.mxu0 %v3837
        %v3928 = vpop.f32.mrf.mxu0
        %v3929 = vadd.f32 0.0, %v3928
        %v3930 = vpop.f32.mrf.mxu0
        %v3931 = vpop.f32.mrf.mxu0
        %v3932 = vadd.f32 0.0, %v3931
        %v3933 = vpop.f32.mrf.mxu0
        %3934 = vmatprep.mubr.bf16.mxu0 0
        %3935 = vmatmul.mubr.bf16.gmra.mxu0 %v3840
        %v3936 = vpop.f32.mrf.mxu0
        %v3937 = vadd.f32 0.0, %v3936
        %v3938 = vpop.f32.mrf.mxu0
        %v3939 = vpop.f32.mrf.mxu0
        %v3940 = vadd.f32 0.0, %v3939
        %v3941 = vpop.f32.mrf.mxu0
        %3942 = vmatprep.mubr.bf16.mxu0 0
        %3943 = vmatmul.mubr.bf16.gmra.mxu0 %v3843
        %v3944 = vpop.f32.mrf.mxu0
        %v3945 = vadd.f32 0.0, %v3944
        %v3946 = vpop.f32.mrf.mxu0
        %v3947 = vpop.f32.mrf.mxu0
        %v3948 = vadd.f32 0.0, %v3947
        %v3949 = vpop.f32.mrf.mxu0
        %3950 = vmatprep.mubr.bf16.mxu0 0
        %3951 = vmatmul.mubr.bf16.gmra.mxu0 %v3846
        %v3952 = vpop.f32.mrf.mxu0
        %v3953 = vadd.f32 0.0, %v3952
        %v3954 = vpop.f32.mrf.mxu0
        %v3955 = vpop.f32.mrf.mxu0
        %v3956 = vadd.f32 0.0, %v3955
        %v3957 = vpop.f32.mrf.mxu0
        %3958 = vmatprep.mubr.bf16.mxu0 0
        %3959 = vmatmul.mubr.bf16.gmra.mxu0 %v3849
        %v3960 = vpop.f32.mrf.mxu0
        %v3961 = vadd.f32 0.0, %v3960
        %v3962 = vpop.f32.mrf.mxu0
        %v3963 = vpop.f32.mrf.mxu0
        %v3964 = vadd.f32 0.0, %v3963
        %v3965 = vpop.f32.mrf.mxu0
        %3966 = vmatprep.mubr.bf16.mxu0 0
        %3967 = vmatmul.mubr.bf16.gmra.mxu0 %v3852
        %v3968 = vpop.f32.mrf.mxu0
        %v3969 = vadd.f32 0.0, %v3968
        %v3970 = vpop.f32.mrf.mxu0
        %v3971 = vpop.f32.mrf.mxu0
        %v3972 = vadd.f32 0.0, %v3971
        %v3973 = vpop.f32.mrf.mxu0
        %3974 = vmatprep.mubr.bf16.mxu0 0
        %3975 = vmatmul.mubr.bf16.gmra.mxu0 %v3855
        %v3976 = vpop.f32.mrf.mxu0
        %v3977 = vadd.f32 0.0, %v3976
        %v3978 = vpop.f32.mrf.mxu0
        %v3979 = vpop.f32.mrf.mxu0
        %v3980 = vadd.f32 0.0, %v3979
        %v3981 = vpop.f32.mrf.mxu0
        %3982 = vmatprep.mubr.bf16.mxu0 0
        %3983 = vmatmul.mubr.bf16.gmra.mxu0 %v3858
        %v3984 = vpop.f32.mrf.mxu0
        %v3985 = vadd.f32 0.0, %v3984
        %v3986 = vpop.f32.mrf.mxu0
        %v3987 = vpop.f32.mrf.mxu0
        %v3988 = vadd.f32 0.0, %v3987
        %v3989 = vpop.f32.mrf.mxu0
        %3990 = vmatprep.mubr.bf16.mxu0 0
        %3991 = vmatmul.mubr.bf16.gmra.mxu0 %v3861
        %v3992 = vpop.f32.mrf.mxu0
        %v3993 = vadd.f32 0.0, %v3992
        %v3994 = vpop.f32.mrf.mxu0
        %v3995 = vpop.f32.mrf.mxu0
        %v3996 = vadd.f32 0.0, %v3995
        %v3997 = vpop.f32.mrf.mxu0
        %3998 = vmatprep.mubr.bf16.mxu0 0
        %3999 = vmatmul.mubr.bf16.gmra.mxu0 %v3864
        %v4000 = vpop.f32.mrf.mxu0
        %v4001 = vadd.f32 0.0, %v4000
        %v4002 = vpop.f32.mrf.mxu0
        %v4003 = vpop.f32.mrf.mxu0
        %v4004 = vadd.f32 0.0, %v4003
        %v4005 = vpop.f32.mrf.mxu0
        %4006 = vmatprep.mubr.bf16.mxu0 0
        %4007 = vmatmul.mubr.bf16.gmra.mxu0 %v3867
        %v4008 = vpop.f32.mrf.mxu0
        %v4009 = vadd.f32 0.0, %v4008
        %v4010 = vpop.f32.mrf.mxu0
        %v4011 = vpop.f32.mrf.mxu0
        %v4012 = vadd.f32 0.0, %v4011
        %v4013 = vpop.f32.mrf.mxu0
        %4014 = vmatprep.mubr.bf16.mxu0 0
        %4015 = vmatmul.mubr.bf16.gmra.mxu0 %v3870
        %v4016 = vpop.f32.mrf.mxu0
        %v4017 = vadd.f32 0.0, %v4016
        %v4018 = vpop.f32.mrf.mxu0
        %v4019 = vpop.f32.mrf.mxu0
        %v4020 = vadd.f32 0.0, %v4019
        %v4021 = vpop.f32.mrf.mxu0
        %4022 = vmatprep.mubr.bf16.mxu0 0
        %4023 = vmatmul.mubr.bf16.gmra.mxu0 %v3873
        %v4024 = vpop.f32.mrf.mxu0
        %v4025 = vadd.f32 0.0, %v4024
        %v4026 = vpop.f32.mrf.mxu0
        %v4027 = vpop.f32.mrf.mxu0
        %v4028 = vadd.f32 0.0, %v4027
        %v4029 = vpop.f32.mrf.mxu0
        %4030 = vmatprep.mubr.bf16.mxu0 0
        %4031 = vmatmul.mubr.bf16.gmra.mxu0 %v3876
        %v4032 = vpop.f32.mrf.mxu0
        %v4033 = vadd.f32 0.0, %v4032
        %v4034 = vpop.f32.mrf.mxu0
        %v4035 = vpop.f32.mrf.mxu0
        %v4036 = vadd.f32 0.0, %v4035
        %v4037 = vpop.f32.mrf.mxu0
        %4038 = vdwg.mxu0
        %4039 = vst.msk [vmem:[%s313] sm:$0xff] %vm359, %v3913
        %4040 = vst.msk [vmem:[%s313 + $0x8] sm:$0xff] %vm359, %v3916
        %4041 = vst.msk [vmem:[%s313 + $0x10] sm:$0xff] %vm359, %v3921
        %4042 = vst.msk [vmem:[%s313 + $0x18] sm:$0xff] %vm359, %v3924
        %4043 = vst.msk [vmem:[%s313 + $0x20] sm:$0xff] %vm359, %v3929
        %4044 = vst.msk [vmem:[%s313 + $0x28] sm:$0xff] %vm359, %v3932
        %4045 = vst.msk [vmem:[%s313 + $0x30] sm:$0xff] %vm359, %v3937
        %4046 = vst.msk [vmem:[%s313 + $0x38] sm:$0xff] %vm359, %v3940
        %4047 = vst.msk [vmem:[%s313 + $0x40] sm:$0xff] %vm359, %v3945
        %4048 = vst.msk [vmem:[%s313 + $0x48] sm:$0xff] %vm359, %v3948
        %4049 = vst.msk [vmem:[%s313 + $0x50] sm:$0xff] %vm359, %v3953
        %4050 = vst.msk [vmem:[%s313 + $0x58] sm:$0xff] %vm359, %v3956
        %4051 = vst.msk [vmem:[%s313 + $0x60] sm:$0xff] %vm359, %v3961
        %4052 = vst.msk [vmem:[%s313 + $0x68] sm:$0xff] %vm359, %v3964
        %4053 = vst.msk [vmem:[%s313 + $0x70] sm:$0xff] %vm359, %v3969
        %4054 = vst.msk [vmem:[%s313 + $0x78] sm:$0xff] %vm359, %v3972
        %4055 = vst.msk [vmem:[%s313 + $0x80] sm:$0xff] %vm359, %v3977
        %4056 = vst.msk [vmem:[%s313 + $0x88] sm:$0xff] %vm359, %v3980
        %4057 = vst.msk [vmem:[%s313 + $0x90] sm:$0xff] %vm359, %v3985
        %4058 = vst.msk [vmem:[%s313 + $0x98] sm:$0xff] %vm359, %v3988
        %4059 = vst.msk [vmem:[%s313 + $0xa0] sm:$0xff] %vm359, %v3993
        %4060 = vst.msk [vmem:[%s313 + $0xa8] sm:$0xff] %vm359, %v3996
        %4061 = vst.msk [vmem:[%s313 + $0xb0] sm:$0xff] %vm359, %v4001
        %4062 = vst.msk [vmem:[%s313 + $0xb8] sm:$0xff] %vm359, %v4004
        %4063 = vst.msk [vmem:[%s313 + $0xc0] sm:$0xff] %vm359, %v4009
        %4064 = vst.msk [vmem:[%s313 + $0xc8] sm:$0xff] %vm359, %v4012
        %4065 = vst.msk [vmem:[%s313 + $0xd0] sm:$0xff] %vm359, %v4017
        %4066 = vst.msk [vmem:[%s313 + $0xd8] sm:$0xff] %vm359, %v4020
        %4067 = vst.msk [vmem:[%s313 + $0xe0] sm:$0xff] %vm359, %v4025
        %4068 = vst.msk [vmem:[%s313 + $0xe8] sm:$0xff] %vm359, %v4028
        %4069 = vst.msk [vmem:[%s313 + $0xf0] sm:$0xff] %vm359, %v4033
        %4070 = vst.msk [vmem:[%s313 + $0xf8] sm:$0xff] %vm359, %v4036
        %s4071 = sand.u32 %s208, 1
        %s4072 = scalar_lea.sflag [#allocation3], %s4071
        %s4073 = sand.u32 %s208, 1
        %s4074 = smul.addr %s4073, 256
        %s4075 = scalar_lea.vmem [#allocation2], %s4074
        // Predicated region
        $region53: #{transformer_block_forward.9} parent=51 // pred_check
          %p4076 = pneg %p218
        $region54: #{transformer_block_forward.9} parent=51 // pred_check_branch
          %4078 = sbr.rel (%p4076) target = $region56
        $region55: #{transformer_block_forward.9} parent=51 // pred_region
          %s4080 = ssub.s32 4096, 4096
          %4081 = vsyncadd %s4072, %s4080
          %s4082 = smul.addr %s22, 32
          %s4083 = smul.addr %s4082, 128
          %s4084 = scalar_lea.hbm %s8, %s4083
          %s4085 = sshll.u32 %s4075, 4
          %s4086 = int_to_ptr.vmem [resolvable:$true] %s4085
          %4091 = dma.vmem_to_hbm [thread:$0]  %s4086, 4096, %s4084, %s4072, 128, 128, 8
        $region56: #{transformer_block_forward.9} parent=51 // pred_fallthru
          _
      $region52: #{transformer_block_forward.9} parent=5 // pred_fallthru
        _
      %p4092 = scmp.le.s32.totalorder 2, %s17
      // Predicated region
      $region57: #{transformer_block_forward.9} parent=5 // pred_check
        %p4093 = pneg %p4092
      $region58: #{transformer_block_forward.9} parent=5 // pred_check_branch
        %4095 = sbr.rel (%p4093) target = $region60
      $region59: #{transformer_block_forward.9} parent=5 // pred_region
        %s4096 = ssub.s32 %s17, 2
        // Predicated region
        $region61: #{transformer_block_forward.9} parent=59 // pred_check
          %p4097 = pneg %p224
        $region62: #{transformer_block_forward.9} parent=59 // pred_check_branch
          %4099 = sbr.rel (%p4097) target = $region64
        $region63: #{transformer_block_forward.9} parent=59 // pred_region
          %s4100 = sand.u32 %s209, 1
          %s4101 = scalar_lea.sflag [#allocation3], %s4100
          %s4102 = sand.u32 %s209, 1
          %s4103 = smul.addr %s4102, 256
          %s4104 = scalar_lea.vmem [#allocation2], %s4103
          %4105 = dma.done %s4101, 4096
        $region64: #{transformer_block_forward.9} parent=59 // pred_fallthru
          _
      $region60: #{transformer_block_forward.9} parent=5 // pred_fallthru
        _
    $region6: #{transformer_block_forward.9} parent=1 // loop_footer
      %s21 = sadd.s32 1, %s17
    $region7: #{transformer_block_forward.9} parent=1 // loop_footer_branch
      %16 = sbr.rel target = $region3
    $region8: #{transformer_block_forward.9} parent=1 // loop_exit
      _
    %4106 = vsyncpa [#allocation3], 1
    %s4107 = scalar_lea.sflag [#allocation3], 1
    %4108 = vsyncpa %s4107, 1

</llo_original>
